<compile_context>
chip_gen: v7x
topology: tpu7x:2x2x1
jax: 0.10.0
libtpu: 0.0.40
codegen_flags: <defaults>
</compile_context>

<pallas_src>
import numpy as np
import jax
import jax.numpy as jnp
from jax import lax
from jax.experimental import pallas as pl
from jax.experimental.pallas import tpu as pltpu


def rnn_kernel(x_ref, len2d_ref,
               wih1_ref, whh1_ref, b1_ref,
               wih2_ref, whh2_ref, b2_ref,
               bn1s_ref, bn1b_ref, wl1_ref, bl1_ref,
               bn2s_ref, bn2b_ref, wl2_ref, bl2_ref,
               out_ref):
    T, B, _ = x_ref.shape
    HP = whh1_ref.shape[0]            # padded per-gate width (128)
    GP = whh1_ref.shape[1]            # 4 * HP

    lengths_col = len2d_ref[...]      # (B, 1) int32 -> per-step validity mask

    wih1 = wih1_ref[...]
    whh1 = whh1_ref[...]
    wih2 = wih2_ref[...]
    whh2 = whh2_ref[...]

    # Hoist loop-invariant broadcasts (JAX does not CSE broadcast_in_dim).
    b1b = jnp.broadcast_to(b1_ref[...], (B, GP))
    b2b = jnp.broadcast_to(b2_ref[...], (B, GP))

    def gate_slices(g):
        # PyTorch gate order i, f, g, o. Each gate lives in its own 128-lane
        # aligned block -> these slices are vreg selections, not XLU relayouts.
        i = jax.nn.sigmoid(g[:, 0 * HP:1 * HP])
        f = jax.nn.sigmoid(g[:, 1 * HP:2 * HP])
        gg = jnp.tanh(g[:, 2 * HP:3 * HP])
        o = jax.nn.sigmoid(g[:, 3 * HP:4 * HP])
        return i, f, gg, o

    def step(t, carry):
        h1, c1, h2, c2 = carry
        valid = lengths_col > t                       # (B, 1) padded-step mask

        # ---- layer 1. x[t]@wih1 depends only on the input; with the loop fully
        # unrolled the scheduler can hoist it ahead of the recurrent chain.
        g1 = (jnp.dot(x_ref[t], wih1, preferred_element_type=jnp.float32) + b1b
              + jnp.dot(h1, whh1, preferred_element_type=jnp.float32))
        i1, f1, gg1, o1 = gate_slices(g1)
        c1n = f1 * c1 + i1 * gg1
        h1n = o1 * jnp.tanh(c1n)
        h1n = jnp.where(valid, h1n, h1)
        c1n = jnp.where(valid, c1n, c1)

        # ---- layer 2: two dots (no concat); the h2@whh2 dot only depends on the
        # previous step so it can issue before h1n is ready.
        # (dropout=0.5 between layers is training-only; disabled here.)
        g2 = (jnp.dot(h2, whh2, preferred_element_type=jnp.float32) + b2b
              + jnp.dot(h1n, wih2, preferred_element_type=jnp.float32))
        i2, f2, gg2, o2 = gate_slices(g2)
        c2n = f2 * c2 + i2 * gg2
        h2n = o2 * jnp.tanh(c2n)
        h2n = jnp.where(valid, h2n, h2)
        c2n = jnp.where(valid, c2n, c2)

        return h1n, c1n, h2n, c2n

    z0 = jnp.zeros((B, HP), jnp.float32)
    _, _, h2, _ = lax.fori_loop(0, T, step, (z0, z0, z0, z0), unroll=True)

    # ---- classifier head on h_n[-1] (runs once; all operands lane-padded to 128).
    z = h2 * bn1s_ref[...] + bn1b_ref[...]
    z = jnp.dot(z, wl1_ref[...], preferred_element_type=jnp.float32) + bl1_ref[...]
    z = z * bn2s_ref[...] + bn2b_ref[...]
    z = jnp.dot(z, wl2_ref[...], preferred_element_type=jnp.float32) + bl2_ref[...]
    z = z - jnp.max(z, axis=1, keepdims=True)
    e = jnp.exp(z)                                    # padded classes -> exp(-huge) = 0
    out_ref[...] = e / jnp.sum(e, axis=1, keepdims=True)


def prepare_params(p, HP=128, H2P=128, CP=128):
    """One-time weight prep: per-gate 128-lane padding, head padding, BN folding."""
    D = p["wih1"].shape[0]
    H = p["whh1"].shape[0]
    H2 = p["wl1"].shape[1]
    C = p["wl2"].shape[1]
    GP = 4 * HP

    def pad_gate_mat(w, rows_out):
        # (rows_in, 4H) -> (rows_out, 4*HP); gate k at columns [k*HP, k*HP+H).
        rows_in = w.shape[0]
        out = jnp.zeros((rows_out, GP), jnp.float32)
        for k in range(4):
            out = out.at[:rows_in, k * HP:k * HP + H].set(w[:, k * H:(k + 1) * H])
        return out

    def pad_gate_bias(b):
        out = jnp.zeros((1, GP), jnp.float32)
        for k in range(4):
            out = out.at[:, k * HP:k * HP + H].set(b[:, k * H:(k + 1) * H])
        return out

    prep = dict(
        wih1=pad_gate_mat(p["wih1"], D),        # (D, 4*HP)
        whh1=pad_gate_mat(p["whh1"], HP),       # (HP, 4*HP), rows >= H are zero
        b1=pad_gate_bias(p["b1"]),
        wih2=pad_gate_mat(p["wih2"], HP),
        whh2=pad_gate_mat(p["whh2"], HP),
        b2=pad_gate_bias(p["b2"]),
        bn1s=jnp.zeros((1, HP), jnp.float32).at[:, :H].set(p["bn1_scale"]),
        bn1b=jnp.zeros((1, HP), jnp.float32).at[:, :H].set(p["bn1_shift"]),
        wl1=jnp.zeros((HP, H2P), jnp.float32).at[:H, :H2].set(p["wl1"]),
        bl1=jnp.zeros((1, H2P), jnp.float32).at[:, :H2].set(p["bl1"]),
        bn2s=jnp.zeros((1, H2P), jnp.float32).at[:, :H2].set(p["bn2_scale"]),
        bn2b=jnp.zeros((1, H2P), jnp.float32).at[:, :H2].set(p["bn2_shift"]),
        wl2=jnp.zeros((H2P, CP), jnp.float32).at[:H2, :C].set(p["wl2"]),
        # padded classes get a huge negative bias (f32-safe) -> zero softmax prob
        bl2=jnp.full((1, CP), -1e30, jnp.float32).at[:, :C].set(p["bl2"]),
        num_classes=C, HP=HP, H2P=H2P, CP=CP,
    )
    return prep


def rnn_forward(X, lengths, prep):
    """X: (T, B, D) time-major f32; lengths: (B,) int. Returns (B, C) softmax probs."""
    T, B, D = X.shape
    HP, H2P, CP = prep["HP"], prep["H2P"], prep["CP"]
    C = prep["num_classes"]
    GP = 4 * HP

    lengths2d = lengths.astype(jnp.int32).reshape(B, 1)

    def full(shape):
        n = len(shape)
        return pl.BlockSpec(shape, lambda i, _n=n: (0,) * _n)

    in_specs = [
        full((T, B, D)),                       # X (raw; layer-1 projection done in-kernel)
        full((B, 1)),                          # lengths column (validity mask)
        full((D, GP)), full((HP, GP)), full((1, GP)),     # layer-1 weights / bias
        full((HP, GP)), full((HP, GP)), full((1, GP)),    # layer-2 weights / bias
        full((1, HP)), full((1, HP)),          # BN1 scale/shift
        full((HP, H2P)), full((1, H2P)),       # Linear1
        full((1, H2P)), full((1, H2P)),        # BN2 scale/shift
        full((H2P, CP)), full((1, CP)),        # Linear2 (lane-dense padded classes)
    ]

    out = pl.pallas_call(
        rnn_kernel,
        out_shape=jax.ShapeDtypeStruct((B, CP), jnp.float32),
        grid_spec=pltpu.PrefetchScalarGridSpec(
            num_scalar_prefetch=0,
            grid=(1,),                         # whole recurrence in one invocation
            in_specs=in_specs,
            out_specs=pl.BlockSpec((B, CP), lambda i: (0, 0)),
        ),
        compiler_params=pltpu.CompilerParams(dimension_semantics=("arbitrary",)),
    )(X, lengths2d,
      prep["wih1"], prep["whh1"], prep["b1"],
      prep["wih2"], prep["whh2"], prep["b2"],
      prep["bn1s"], prep["bn1b"], prep["wl1"], prep["bl1"],
      prep["bn2s"], prep["bn2b"], prep["wl2"], prep["bl2"])

    return out[:, :C]


def init_params(key, D, H, H2, C=11):
    ks = jax.random.split(key, 12)
    s = 1.0 / np.sqrt(H)

    def u(k, shape, scale):
        return jax.random.uniform(k, shape, jnp.float32, -scale, scale)

    eps = 1e-5
    bn_scale = 1.0 / np.sqrt(1.0 + eps)   # eval-mode BN with running stats (0, 1)
    return dict(
        wih1=u(ks[0], (D, 4 * H), s),
        whh1=u(ks[1], (H, 4 * H), s),
        b1=u(ks[2], (1, 4 * H), s) + u(ks[3], (1, 4 * H), s),   # b_ih + b_hh
        wih2=u(ks[4], (H, 4 * H), s),
        whh2=u(ks[5], (H, 4 * H), s),
        b2=u(ks[6], (1, 4 * H), s) + u(ks[7], (1, 4 * H), s),
        bn1_scale=jnp.full((1, H), bn_scale, jnp.float32),
        bn1_shift=jnp.zeros((1, H), jnp.float32),
        wl1=u(ks[8], (H, H2), 1.0 / np.sqrt(H)),
        bl1=u(ks[9], (1, H2), 1.0 / np.sqrt(H)),
        bn2_scale=jnp.full((1, H2), bn_scale, jnp.float32),
        bn2_shift=jnp.zeros((1, H2), jnp.float32),
        wl2=u(ks[10], (H2, C), 1.0 / np.sqrt(H2)),
        bl2=u(ks[11], (1, C), 1.0 / np.sqrt(H2)),
    )


def reference(X, lengths, p):
    """Pure-JAX reference mirroring the packed-sequence LSTM + head."""
    T, B, D = X.shape
    H = p["whh1"].shape[0]
    h1 = jnp.zeros((B, H), jnp.float32)
    c1 = jnp.zeros((B, H), jnp.float32)
    h2 = jnp.zeros((B, H), jnp.float32)
    c2 = jnp.zeros((B, H), jnp.float32)

    def cell(x, h, c, wih, whh, b):
        g = x @ wih + h @ whh + b
        i, f, gg, o = jnp.split(g, 4, axis=1)
        c = jax.nn.sigmoid(f) * c + jax.nn.sigmoid(i) * jnp.tanh(gg)
        h = jax.nn.sigmoid(o) * jnp.tanh(c)
        return h, c

    for t in range(T):
        valid = (lengths > t)[:, None]
        h1n, c1n = cell(X[t], h1, c1, p["wih1"], p["whh1"], p["b1"])
        h1 = jnp.where(valid, h1n, h1)
        c1 = jnp.where(valid, c1n, c1)
        h2n, c2n = cell(h1, h2, c2, p["wih2"], p["whh2"], p["b2"])
        h2 = jnp.where(valid, h2n, h2)
        c2 = jnp.where(valid, c2n, c2)

    z = h2 * p["bn1_scale"] + p["bn1_shift"]
    z = z @ p["wl1"] + p["bl1"]
    z = z * p["bn2_scale"] + p["bn2_shift"]
    z = z @ p["wl2"] + p["bl2"]
    return jax.nn.softmax(z, axis=1)


if __name__ == "__main__":
    # Small shapes consistent with the forward: seq=8, batch=2, input=128, hidden=32.
    T, B, D, H, C = 8, 2, 128, 32, 11
    H2 = H // 2

    key = jax.random.PRNGKey(0)
    kx, kp = jax.random.split(key)
    X = jax.random.normal(kx, (T, B, D), jnp.float32)
    lengths = jnp.array([8, 5], dtype=jnp.int32)
    params = init_params(kp, D, H, H2, C)
    prep = prepare_params(params)           # one-time weight prep (not per call)

    out = jax.block_until_ready(rnn_forward(X, lengths, prep))
    ref = jax.block_until_ready(reference(X, lengths, params))

    assert out.shape == (B, C)
    np.testing.assert_allclose(np.asarray(out), np.asarray(ref), rtol=1e-3, atol=1e-3)
    np.testing.assert_allclose(np.asarray(out).sum(axis=1), np.ones(B), rtol=1e-4, atol=1e-4)
    print("KERNEL_OK")
</pallas_src>

<mosaic_0001>
module attributes {stable_mosaic.version = 11 : i64} {
  func.func @rnn_kernel(%arg0: i32, %arg1: memref<8x2x128xf32, #tpu.memory_space<vmem>>, %arg2: memref<2x1xi32, #tpu.memory_space<vmem>>, %arg3: memref<128x512xf32, #tpu.memory_space<vmem>>, %arg4: memref<128x512xf32, #tpu.memory_space<vmem>>, %arg5: memref<1x512xf32, #tpu.memory_space<vmem>>, %arg6: memref<128x512xf32, #tpu.memory_space<vmem>>, %arg7: memref<128x512xf32, #tpu.memory_space<vmem>>, %arg8: memref<1x512xf32, #tpu.memory_space<vmem>>, %arg9: memref<1x128xf32, #tpu.memory_space<vmem>>, %arg10: memref<1x128xf32, #tpu.memory_space<vmem>>, %arg11: memref<128x128xf32, #tpu.memory_space<vmem>>, %arg12: memref<1x128xf32, #tpu.memory_space<vmem>>, %arg13: memref<1x128xf32, #tpu.memory_space<vmem>>, %arg14: memref<1x128xf32, #tpu.memory_space<vmem>>, %arg15: memref<128x128xf32, #tpu.memory_space<vmem>>, %arg16: memref<1x128xf32, #tpu.memory_space<vmem>>, %arg17: memref<2x128xf32, #tpu.memory_space<vmem>>) attributes {dimension_semantics = [#tpu.dimension_semantics<arbitrary>], iteration_bounds = array<i64: 1>, scalar_prefetch = 0 : i64, scratch_operands = 0 : i64, tpu.core_type = #tpu.core_type<tc>, window_params = [{pipeline_mode = #tpu.pipeline_mode<synchronous>, transform_indices = @transform_0, window_bounds = array<i64: 8, 2, 128>}, {pipeline_mode = #tpu.pipeline_mode<synchronous>, transform_indices = @transform_1, window_bounds = array<i64: 2, 1>}, {pipeline_mode = #tpu.pipeline_mode<synchronous>, transform_indices = @transform_2, window_bounds = array<i64: 128, 512>}, {pipeline_mode = #tpu.pipeline_mode<synchronous>, transform_indices = @transform_3, window_bounds = array<i64: 128, 512>}, {pipeline_mode = #tpu.pipeline_mode<synchronous>, transform_indices = @transform_4, window_bounds = array<i64: 1, 512>}, {pipeline_mode = #tpu.pipeline_mode<synchronous>, transform_indices = @transform_5, window_bounds = array<i64: 128, 512>}, {pipeline_mode = #tpu.pipeline_mode<synchronous>, transform_indices = @transform_6, window_bounds = array<i64: 128, 512>}, {pipeline_mode = #tpu.pipeline_mode<synchronous>, transform_indices = @transform_7, window_bounds = array<i64: 1, 512>}, {pipeline_mode = #tpu.pipeline_mode<synchronous>, transform_indices = @transform_8, window_bounds = array<i64: 1, 128>}, {pipeline_mode = #tpu.pipeline_mode<synchronous>, transform_indices = @transform_9, window_bounds = array<i64: 1, 128>}, {pipeline_mode = #tpu.pipeline_mode<synchronous>, transform_indices = @transform_10, window_bounds = array<i64: 128, 128>}, {pipeline_mode = #tpu.pipeline_mode<synchronous>, transform_indices = @transform_11, window_bounds = array<i64: 1, 128>}, {pipeline_mode = #tpu.pipeline_mode<synchronous>, transform_indices = @transform_12, window_bounds = array<i64: 1, 128>}, {pipeline_mode = #tpu.pipeline_mode<synchronous>, transform_indices = @transform_13, window_bounds = array<i64: 1, 128>}, {pipeline_mode = #tpu.pipeline_mode<synchronous>, transform_indices = @transform_14, window_bounds = array<i64: 128, 128>}, {pipeline_mode = #tpu.pipeline_mode<synchronous>, transform_indices = @transform_15, window_bounds = array<i64: 1, 128>}, {pipeline_mode = #tpu.pipeline_mode<synchronous>, transform_indices = @transform_16, window_bounds = array<i64: 2, 128>}]} {
    %c0 = arith.constant 0 : index
    %c0_0 = arith.constant 0 : index
    %0 = vector.load %arg2[%c0, %c0_0] : memref<2x1xi32, #tpu.memory_space<vmem>>, vector<2x1xi32>
    %c0_1 = arith.constant 0 : index
    %c0_2 = arith.constant 0 : index
    %1 = vector.load %arg3[%c0_1, %c0_2] : memref<128x512xf32, #tpu.memory_space<vmem>>, vector<128x512xf32>
    %c0_3 = arith.constant 0 : index
    %c0_4 = arith.constant 0 : index
    %2 = vector.load %arg4[%c0_3, %c0_4] : memref<128x512xf32, #tpu.memory_space<vmem>>, vector<128x512xf32>
    %c0_5 = arith.constant 0 : index
    %c0_6 = arith.constant 0 : index
    %3 = vector.load %arg6[%c0_5, %c0_6] : memref<128x512xf32, #tpu.memory_space<vmem>>, vector<128x512xf32>
    %c0_7 = arith.constant 0 : index
    %c0_8 = arith.constant 0 : index
    %4 = vector.load %arg7[%c0_7, %c0_8] : memref<128x512xf32, #tpu.memory_space<vmem>>, vector<128x512xf32>
    %c0_9 = arith.constant 0 : index
    %c0_10 = arith.constant 0 : index
    %5 = vector.load %arg5[%c0_9, %c0_10] : memref<1x512xf32, #tpu.memory_space<vmem>>, vector<1x512xf32>
    %6 = vector.shape_cast %5 : vector<1x512xf32> to vector<1x512xf32>
    %7 = vector.broadcast %6 : vector<1x512xf32> to vector<2x512xf32>
    %c0_11 = arith.constant 0 : index
    %c0_12 = arith.constant 0 : index
    %8 = vector.load %arg8[%c0_11, %c0_12] : memref<1x512xf32, #tpu.memory_space<vmem>>, vector<1x512xf32>
    %9 = vector.shape_cast %8 : vector<1x512xf32> to vector<1x512xf32>
    %10 = vector.broadcast %9 : vector<1x512xf32> to vector<2x512xf32>
    %cst = arith.constant 0.000000e+00 : f32
    %11 = vector.broadcast %cst : f32 to vector<2x128xf32>
    %c0_i32 = arith.constant 0 : i32
    %12 = vector.broadcast %c0_i32 : i32 to vector<2x1xi32>
    %13 = arith.cmpi sgt, %0, %12 : vector<2x1xi32>
    %14 = arith.index_cast %c0_i32 : i32 to index
    %c0_13 = arith.constant 0 : index
    %c0_14 = arith.constant 0 : index
    %15 = vector.load %arg1[%14, %c0_13, %c0_14] : memref<8x2x128xf32, #tpu.memory_space<vmem>>, vector<1x2x128xf32>
    %16 = vector.shape_cast %15 : vector<1x2x128xf32> to vector<2x128xf32>
    %cst_15 = arith.constant dense<0.000000e+00> : vector<2x512xf32>
    %17 = tpu.matmul %16, %1, %cst_15 {dimension_numbers = #tpu.dot_dimension_numbers<[1], [0], [0], [1], [0, 0, 1, 1], [], []>} : vector<2x128xf32>, vector<128x512xf32>, vector<2x512xf32> -> vector<2x512xf32>
    %18 = arith.addf %17, %7 : vector<2x512xf32>
    %cst_16 = arith.constant dense<0.000000e+00> : vector<2x512xf32>
    %19 = tpu.matmul %11, %2, %cst_16 {dimension_numbers = #tpu.dot_dimension_numbers<[1], [0], [0], [1], [0, 0, 1, 1], [], []>} : vector<2x128xf32>, vector<128x512xf32>, vector<2x512xf32> -> vector<2x512xf32>
    %20 = arith.addf %18, %19 : vector<2x512xf32>
    %21 = vector.extract_strided_slice %20 {offsets = [0, 0], sizes = [2, 128], strides = [1, 1]} : vector<2x512xf32> to vector<2x128xf32>
    %22 = arith.negf %21 : vector<2x128xf32>
    %23 = math.exp %22 : vector<2x128xf32>
    %cst_17 = arith.constant 1.000000e+00 : f32
    %24 = vector.broadcast %cst_17 : f32 to vector<2x128xf32>
    %25 = arith.addf %24, %23 : vector<2x128xf32>
    %26 = arith.divf %24, %25 : vector<2x128xf32>
    %27 = vector.extract_strided_slice %20 {offsets = [0, 128], sizes = [2, 128], strides = [1, 1]} : vector<2x512xf32> to vector<2x128xf32>
    %28 = arith.negf %27 : vector<2x128xf32>
    %29 = math.exp %28 : vector<2x128xf32>
    %cst_18 = arith.constant 1.000000e+00 : f32
    %30 = vector.broadcast %cst_18 : f32 to vector<2x128xf32>
    %31 = arith.addf %30, %29 : vector<2x128xf32>
    %32 = arith.divf %30, %31 : vector<2x128xf32>
    %33 = vector.extract_strided_slice %20 {offsets = [0, 256], sizes = [2, 128], strides = [1, 1]} : vector<2x512xf32> to vector<2x128xf32>
    %34 = math.tanh %33 : vector<2x128xf32>
    %35 = vector.extract_strided_slice %20 {offsets = [0, 384], sizes = [2, 128], strides = [1, 1]} : vector<2x512xf32> to vector<2x128xf32>
    %36 = arith.negf %35 : vector<2x128xf32>
    %37 = math.exp %36 : vector<2x128xf32>
    %cst_19 = arith.constant 1.000000e+00 : f32
    %38 = vector.broadcast %cst_19 : f32 to vector<2x128xf32>
    %39 = arith.addf %38, %37 : vector<2x128xf32>
    %40 = arith.divf %38, %39 : vector<2x128xf32>
    %41 = arith.mulf %32, %11 : vector<2x128xf32>
    %42 = arith.mulf %26, %34 : vector<2x128xf32>
    %43 = arith.addf %41, %42 : vector<2x128xf32>
    %44 = math.tanh %43 : vector<2x128xf32>
    %45 = arith.mulf %40, %44 : vector<2x128xf32>
    %46 = vector.shape_cast %13 : vector<2x1xi1> to vector<2x1xi1>
    %47 = vector.broadcast %46 : vector<2x1xi1> to vector<2x128xi1>
    %48 = arith.select %47, %45, %11 : vector<2x128xi1>, vector<2x128xf32>
    %49 = vector.shape_cast %13 : vector<2x1xi1> to vector<2x1xi1>
    %50 = vector.broadcast %49 : vector<2x1xi1> to vector<2x128xi1>
    %51 = arith.select %50, %43, %11 : vector<2x128xi1>, vector<2x128xf32>
    %cst_20 = arith.constant dense<0.000000e+00> : vector<2x512xf32>
    %52 = tpu.matmul %11, %4, %cst_20 {dimension_numbers = #tpu.dot_dimension_numbers<[1], [0], [0], [1], [0, 0, 1, 1], [], []>} : vector<2x128xf32>, vector<128x512xf32>, vector<2x512xf32> -> vector<2x512xf32>
    %53 = arith.addf %52, %10 : vector<2x512xf32>
    %cst_21 = arith.constant dense<0.000000e+00> : vector<2x512xf32>
    %54 = tpu.matmul %48, %3, %cst_21 {dimension_numbers = #tpu.dot_dimension_numbers<[1], [0], [0], [1], [0, 0, 1, 1], [], []>} : vector<2x128xf32>, vector<128x512xf32>, vector<2x512xf32> -> vector<2x512xf32>
    %55 = arith.addf %53, %54 : vector<2x512xf32>
    %56 = vector.extract_strided_slice %55 {offsets = [0, 0], sizes = [2, 128], strides = [1, 1]} : vector<2x512xf32> to vector<2x128xf32>
    %57 = arith.negf %56 : vector<2x128xf32>
    %58 = math.exp %57 : vector<2x128xf32>
    %cst_22 = arith.constant 1.000000e+00 : f32
    %59 = vector.broadcast %cst_22 : f32 to vector<2x128xf32>
    %60 = arith.addf %59, %58 : vector<2x128xf32>
    %61 = arith.divf %59, %60 : vector<2x128xf32>
    %62 = vector.extract_strided_slice %55 {offsets = [0, 128], sizes = [2, 128], strides = [1, 1]} : vector<2x512xf32> to vector<2x128xf32>
    %63 = arith.negf %62 : vector<2x128xf32>
    %64 = math.exp %63 : vector<2x128xf32>
    %cst_23 = arith.constant 1.000000e+00 : f32
    %65 = vector.broadcast %cst_23 : f32 to vector<2x128xf32>
    %66 = arith.addf %65, %64 : vector<2x128xf32>
    %67 = arith.divf %65, %66 : vector<2x128xf32>
    %68 = vector.extract_strided_slice %55 {offsets = [0, 256], sizes = [2, 128], strides = [1, 1]} : vector<2x512xf32> to vector<2x128xf32>
    %69 = math.tanh %68 : vector<2x128xf32>
    %70 = vector.extract_strided_slice %55 {offsets = [0, 384], sizes = [2, 128], strides = [1, 1]} : vector<2x512xf32> to vector<2x128xf32>
    %71 = arith.negf %70 : vector<2x128xf32>
    %72 = math.exp %71 : vector<2x128xf32>
    %cst_24 = arith.constant 1.000000e+00 : f32
    %73 = vector.broadcast %cst_24 : f32 to vector<2x128xf32>
    %74 = arith.addf %73, %72 : vector<2x128xf32>
    %75 = arith.divf %73, %74 : vector<2x128xf32>
    %76 = arith.mulf %67, %11 : vector<2x128xf32>
    %77 = arith.mulf %61, %69 : vector<2x128xf32>
    %78 = arith.addf %76, %77 : vector<2x128xf32>
    %79 = math.tanh %78 : vector<2x128xf32>
    %80 = arith.mulf %75, %79 : vector<2x128xf32>
    %81 = vector.shape_cast %13 : vector<2x1xi1> to vector<2x1xi1>
    %82 = vector.broadcast %81 : vector<2x1xi1> to vector<2x128xi1>
    %83 = arith.select %82, %80, %11 : vector<2x128xi1>, vector<2x128xf32>
    %84 = vector.shape_cast %13 : vector<2x1xi1> to vector<2x1xi1>
    %85 = vector.broadcast %84 : vector<2x1xi1> to vector<2x128xi1>
    %86 = arith.select %85, %78, %11 : vector<2x128xi1>, vector<2x128xf32>
    %c1_i32 = arith.constant 1 : i32
    %87 = vector.broadcast %c1_i32 : i32 to vector<2x1xi32>
    %88 = arith.cmpi sgt, %0, %87 : vector<2x1xi32>
    %89 = arith.index_cast %c1_i32 : i32 to index
    %c0_25 = arith.constant 0 : index
    %c0_26 = arith.constant 0 : index
    %90 = vector.load %arg1[%89, %c0_25, %c0_26] : memref<8x2x128xf32, #tpu.memory_space<vmem>>, vector<1x2x128xf32>
    %91 = vector.shape_cast %90 : vector<1x2x128xf32> to vector<2x128xf32>
    %cst_27 = arith.constant dense<0.000000e+00> : vector<2x512xf32>
    %92 = tpu.matmul %91, %1, %cst_27 {dimension_numbers = #tpu.dot_dimension_numbers<[1], [0], [0], [1], [0, 0, 1, 1], [], []>} : vector<2x128xf32>, vector<128x512xf32>, vector<2x512xf32> -> vector<2x512xf32>
    %93 = arith.addf %92, %7 : vector<2x512xf32>
    %cst_28 = arith.constant dense<0.000000e+00> : vector<2x512xf32>
    %94 = tpu.matmul %48, %2, %cst_28 {dimension_numbers = #tpu.dot_dimension_numbers<[1], [0], [0], [1], [0, 0, 1, 1], [], []>} : vector<2x128xf32>, vector<128x512xf32>, vector<2x512xf32> -> vector<2x512xf32>
    %95 = arith.addf %93, %94 : vector<2x512xf32>
    %96 = vector.extract_strided_slice %95 {offsets = [0, 0], sizes = [2, 128], strides = [1, 1]} : vector<2x512xf32> to vector<2x128xf32>
    %97 = arith.negf %96 : vector<2x128xf32>
    %98 = math.exp %97 : vector<2x128xf32>
    %cst_29 = arith.constant 1.000000e+00 : f32
    %99 = vector.broadcast %cst_29 : f32 to vector<2x128xf32>
    %100 = arith.addf %99, %98 : vector<2x128xf32>
    %101 = arith.divf %99, %100 : vector<2x128xf32>
    %102 = vector.extract_strided_slice %95 {offsets = [0, 128], sizes = [2, 128], strides = [1, 1]} : vector<2x512xf32> to vector<2x128xf32>
    %103 = arith.negf %102 : vector<2x128xf32>
    %104 = math.exp %103 : vector<2x128xf32>
    %cst_30 = arith.constant 1.000000e+00 : f32
    %105 = vector.broadcast %cst_30 : f32 to vector<2x128xf32>
    %106 = arith.addf %105, %104 : vector<2x128xf32>
    %107 = arith.divf %105, %106 : vector<2x128xf32>
    %108 = vector.extract_strided_slice %95 {offsets = [0, 256], sizes = [2, 128], strides = [1, 1]} : vector<2x512xf32> to vector<2x128xf32>
    %109 = math.tanh %108 : vector<2x128xf32>
    %110 = vector.extract_strided_slice %95 {offsets = [0, 384], sizes = [2, 128], strides = [1, 1]} : vector<2x512xf32> to vector<2x128xf32>
    %111 = arith.negf %110 : vector<2x128xf32>
    %112 = math.exp %111 : vector<2x128xf32>
    %cst_31 = arith.constant 1.000000e+00 : f32
    %113 = vector.broadcast %cst_31 : f32 to vector<2x128xf32>
    %114 = arith.addf %113, %112 : vector<2x128xf32>
    %115 = arith.divf %113, %114 : vector<2x128xf32>
    %116 = arith.mulf %107, %51 : vector<2x128xf32>
    %117 = arith.mulf %101, %109 : vector<2x128xf32>
    %118 = arith.addf %116, %117 : vector<2x128xf32>
    %119 = math.tanh %118 : vector<2x128xf32>
    %120 = arith.mulf %115, %119 : vector<2x128xf32>
    %121 = vector.shape_cast %88 : vector<2x1xi1> to vector<2x1xi1>
    %122 = vector.broadcast %121 : vector<2x1xi1> to vector<2x128xi1>
    %123 = arith.select %122, %120, %48 : vector<2x128xi1>, vector<2x128xf32>
    %124 = vector.shape_cast %88 : vector<2x1xi1> to vector<2x1xi1>
    %125 = vector.broadcast %124 : vector<2x1xi1> to vector<2x128xi1>
    %126 = arith.select %125, %118, %51 : vector<2x128xi1>, vector<2x128xf32>
    %cst_32 = arith.constant dense<0.000000e+00> : vector<2x512xf32>
    %127 = tpu.matmul %83, %4, %cst_32 {dimension_numbers = #tpu.dot_dimension_numbers<[1], [0], [0], [1], [0, 0, 1, 1], [], []>} : vector<2x128xf32>, vector<128x512xf32>, vector<2x512xf32> -> vector<2x512xf32>
    %128 = arith.addf %127, %10 : vector<2x512xf32>
    %cst_33 = arith.constant dense<0.000000e+00> : vector<2x512xf32>
    %129 = tpu.matmul %123, %3, %cst_33 {dimension_numbers = #tpu.dot_dimension_numbers<[1], [0], [0], [1], [0, 0, 1, 1], [], []>} : vector<2x128xf32>, vector<128x512xf32>, vector<2x512xf32> -> vector<2x512xf32>
    %130 = arith.addf %128, %129 : vector<2x512xf32>
    %131 = vector.extract_strided_slice %130 {offsets = [0, 0], sizes = [2, 128], strides = [1, 1]} : vector<2x512xf32> to vector<2x128xf32>
    %132 = arith.negf %131 : vector<2x128xf32>
    %133 = math.exp %132 : vector<2x128xf32>
    %cst_34 = arith.constant 1.000000e+00 : f32
    %134 = vector.broadcast %cst_34 : f32 to vector<2x128xf32>
    %135 = arith.addf %134, %133 : vector<2x128xf32>
    %136 = arith.divf %134, %135 : vector<2x128xf32>
    %137 = vector.extract_strided_slice %130 {offsets = [0, 128], sizes = [2, 128], strides = [1, 1]} : vector<2x512xf32> to vector<2x128xf32>
    %138 = arith.negf %137 : vector<2x128xf32>
    %139 = math.exp %138 : vector<2x128xf32>
    %cst_35 = arith.constant 1.000000e+00 : f32
    %140 = vector.broadcast %cst_35 : f32 to vector<2x128xf32>
    %141 = arith.addf %140, %139 : vector<2x128xf32>
    %142 = arith.divf %140, %141 : vector<2x128xf32>
    %143 = vector.extract_strided_slice %130 {offsets = [0, 256], sizes = [2, 128], strides = [1, 1]} : vector<2x512xf32> to vector<2x128xf32>
    %144 = math.tanh %143 : vector<2x128xf32>
    %145 = vector.extract_strided_slice %130 {offsets = [0, 384], sizes = [2, 128], strides = [1, 1]} : vector<2x512xf32> to vector<2x128xf32>
    %146 = arith.negf %145 : vector<2x128xf32>
    %147 = math.exp %146 : vector<2x128xf32>
    %cst_36 = arith.constant 1.000000e+00 : f32
    %148 = vector.broadcast %cst_36 : f32 to vector<2x128xf32>
    %149 = arith.addf %148, %147 : vector<2x128xf32>
    %150 = arith.divf %148, %149 : vector<2x128xf32>
    %151 = arith.mulf %142, %86 : vector<2x128xf32>
    %152 = arith.mulf %136, %144 : vector<2x128xf32>
    %153 = arith.addf %151, %152 : vector<2x128xf32>
    %154 = math.tanh %153 : vector<2x128xf32>
    %155 = arith.mulf %150, %154 : vector<2x128xf32>
    %156 = vector.shape_cast %88 : vector<2x1xi1> to vector<2x1xi1>
    %157 = vector.broadcast %156 : vector<2x1xi1> to vector<2x128xi1>
    %158 = arith.select %157, %155, %83 : vector<2x128xi1>, vector<2x128xf32>
    %159 = vector.shape_cast %88 : vector<2x1xi1> to vector<2x1xi1>
    %160 = vector.broadcast %159 : vector<2x1xi1> to vector<2x128xi1>
    %161 = arith.select %160, %153, %86 : vector<2x128xi1>, vector<2x128xf32>
    %c2_i32 = arith.constant 2 : i32
    %162 = vector.broadcast %c2_i32 : i32 to vector<2x1xi32>
    %163 = arith.cmpi sgt, %0, %162 : vector<2x1xi32>
    %164 = arith.index_cast %c2_i32 : i32 to index
    %c0_37 = arith.constant 0 : index
    %c0_38 = arith.constant 0 : index
    %165 = vector.load %arg1[%164, %c0_37, %c0_38] : memref<8x2x128xf32, #tpu.memory_space<vmem>>, vector<1x2x128xf32>
    %166 = vector.shape_cast %165 : vector<1x2x128xf32> to vector<2x128xf32>
    %cst_39 = arith.constant dense<0.000000e+00> : vector<2x512xf32>
    %167 = tpu.matmul %166, %1, %cst_39 {dimension_numbers = #tpu.dot_dimension_numbers<[1], [0], [0], [1], [0, 0, 1, 1], [], []>} : vector<2x128xf32>, vector<128x512xf32>, vector<2x512xf32> -> vector<2x512xf32>
    %168 = arith.addf %167, %7 : vector<2x512xf32>
    %cst_40 = arith.constant dense<0.000000e+00> : vector<2x512xf32>
    %169 = tpu.matmul %123, %2, %cst_40 {dimension_numbers = #tpu.dot_dimension_numbers<[1], [0], [0], [1], [0, 0, 1, 1], [], []>} : vector<2x128xf32>, vector<128x512xf32>, vector<2x512xf32> -> vector<2x512xf32>
    %170 = arith.addf %168, %169 : vector<2x512xf32>
    %171 = vector.extract_strided_slice %170 {offsets = [0, 0], sizes = [2, 128], strides = [1, 1]} : vector<2x512xf32> to vector<2x128xf32>
    %172 = arith.negf %171 : vector<2x128xf32>
    %173 = math.exp %172 : vector<2x128xf32>
    %cst_41 = arith.constant 1.000000e+00 : f32
    %174 = vector.broadcast %cst_41 : f32 to vector<2x128xf32>
    %175 = arith.addf %174, %173 : vector<2x128xf32>
    %176 = arith.divf %174, %175 : vector<2x128xf32>
    %177 = vector.extract_strided_slice %170 {offsets = [0, 128], sizes = [2, 128], strides = [1, 1]} : vector<2x512xf32> to vector<2x128xf32>
    %178 = arith.negf %177 : vector<2x128xf32>
    %179 = math.exp %178 : vector<2x128xf32>
    %cst_42 = arith.constant 1.000000e+00 : f32
    %180 = vector.broadcast %cst_42 : f32 to vector<2x128xf32>
    %181 = arith.addf %180, %179 : vector<2x128xf32>
    %182 = arith.divf %180, %181 : vector<2x128xf32>
    %183 = vector.extract_strided_slice %170 {offsets = [0, 256], sizes = [2, 128], strides = [1, 1]} : vector<2x512xf32> to vector<2x128xf32>
    %184 = math.tanh %183 : vector<2x128xf32>
    %185 = vector.extract_strided_slice %170 {offsets = [0, 384], sizes = [2, 128], strides = [1, 1]} : vector<2x512xf32> to vector<2x128xf32>
    %186 = arith.negf %185 : vector<2x128xf32>
    %187 = math.exp %186 : vector<2x128xf32>
    %cst_43 = arith.constant 1.000000e+00 : f32
    %188 = vector.broadcast %cst_43 : f32 to vector<2x128xf32>
    %189 = arith.addf %188, %187 : vector<2x128xf32>
    %190 = arith.divf %188, %189 : vector<2x128xf32>
    %191 = arith.mulf %182, %126 : vector<2x128xf32>
    %192 = arith.mulf %176, %184 : vector<2x128xf32>
    %193 = arith.addf %191, %192 : vector<2x128xf32>
    %194 = math.tanh %193 : vector<2x128xf32>
    %195 = arith.mulf %190, %194 : vector<2x128xf32>
    %196 = vector.shape_cast %163 : vector<2x1xi1> to vector<2x1xi1>
    %197 = vector.broadcast %196 : vector<2x1xi1> to vector<2x128xi1>
    %198 = arith.select %197, %195, %123 : vector<2x128xi1>, vector<2x128xf32>
    %199 = vector.shape_cast %163 : vector<2x1xi1> to vector<2x1xi1>
    %200 = vector.broadcast %199 : vector<2x1xi1> to vector<2x128xi1>
    %201 = arith.select %200, %193, %126 : vector<2x128xi1>, vector<2x128xf32>
    %cst_44 = arith.constant dense<0.000000e+00> : vector<2x512xf32>
    %202 = tpu.matmul %158, %4, %cst_44 {dimension_numbers = #tpu.dot_dimension_numbers<[1], [0], [0], [1], [0, 0, 1, 1], [], []>} : vector<2x128xf32>, vector<128x512xf32>, vector<2x512xf32> -> vector<2x512xf32>
    %203 = arith.addf %202, %10 : vector<2x512xf32>
    %cst_45 = arith.constant dense<0.000000e+00> : vector<2x512xf32>
    %204 = tpu.matmul %198, %3, %cst_45 {dimension_numbers = #tpu.dot_dimension_numbers<[1], [0], [0], [1], [0, 0, 1, 1], [], []>} : vector<2x128xf32>, vector<128x512xf32>, vector<2x512xf32> -> vector<2x512xf32>
    %205 = arith.addf %203, %204 : vector<2x512xf32>
    %206 = vector.extract_strided_slice %205 {offsets = [0, 0], sizes = [2, 128], strides = [1, 1]} : vector<2x512xf32> to vector<2x128xf32>
    %207 = arith.negf %206 : vector<2x128xf32>
    %208 = math.exp %207 : vector<2x128xf32>
    %cst_46 = arith.constant 1.000000e+00 : f32
    %209 = vector.broadcast %cst_46 : f32 to vector<2x128xf32>
    %210 = arith.addf %209, %208 : vector<2x128xf32>
    %211 = arith.divf %209, %210 : vector<2x128xf32>
    %212 = vector.extract_strided_slice %205 {offsets = [0, 128], sizes = [2, 128], strides = [1, 1]} : vector<2x512xf32> to vector<2x128xf32>
    %213 = arith.negf %212 : vector<2x128xf32>
    %214 = math.exp %213 : vector<2x128xf32>
    %cst_47 = arith.constant 1.000000e+00 : f32
    %215 = vector.broadcast %cst_47 : f32 to vector<2x128xf32>
    %216 = arith.addf %215, %214 : vector<2x128xf32>
    %217 = arith.divf %215, %216 : vector<2x128xf32>
    %218 = vector.extract_strided_slice %205 {offsets = [0, 256], sizes = [2, 128], strides = [1, 1]} : vector<2x512xf32> to vector<2x128xf32>
    %219 = math.tanh %218 : vector<2x128xf32>
    %220 = vector.extract_strided_slice %205 {offsets = [0, 384], sizes = [2, 128], strides = [1, 1]} : vector<2x512xf32> to vector<2x128xf32>
    %221 = arith.negf %220 : vector<2x128xf32>
    %222 = math.exp %221 : vector<2x128xf32>
    %cst_48 = arith.constant 1.000000e+00 : f32
    %223 = vector.broadcast %cst_48 : f32 to vector<2x128xf32>
    %224 = arith.addf %223, %222 : vector<2x128xf32>
    %225 = arith.divf %223, %224 : vector<2x128xf32>
    %226 = arith.mulf %217, %161 : vector<2x128xf32>
    %227 = arith.mulf %211, %219 : vector<2x128xf32>
    %228 = arith.addf %226, %227 : vector<2x128xf32>
    %229 = math.tanh %228 : vector<2x128xf32>
    %230 = arith.mulf %225, %229 : vector<2x128xf32>
    %231 = vector.shape_cast %163 : vector<2x1xi1> to vector<2x1xi1>
    %232 = vector.broadcast %231 : vector<2x1xi1> to vector<2x128xi1>
    %233 = arith.select %232, %230, %158 : vector<2x128xi1>, vector<2x128xf32>
    %234 = vector.shape_cast %163 : vector<2x1xi1> to vector<2x1xi1>
    %235 = vector.broadcast %234 : vector<2x1xi1> to vector<2x128xi1>
    %236 = arith.select %235, %228, %161 : vector<2x128xi1>, vector<2x128xf32>
    %c3_i32 = arith.constant 3 : i32
    %237 = vector.broadcast %c3_i32 : i32 to vector<2x1xi32>
    %238 = arith.cmpi sgt, %0, %237 : vector<2x1xi32>
    %239 = arith.index_cast %c3_i32 : i32 to index
    %c0_49 = arith.constant 0 : index
    %c0_50 = arith.constant 0 : index
    %240 = vector.load %arg1[%239, %c0_49, %c0_50] : memref<8x2x128xf32, #tpu.memory_space<vmem>>, vector<1x2x128xf32>
    %241 = vector.shape_cast %240 : vector<1x2x128xf32> to vector<2x128xf32>
    %cst_51 = arith.constant dense<0.000000e+00> : vector<2x512xf32>
    %242 = tpu.matmul %241, %1, %cst_51 {dimension_numbers = #tpu.dot_dimension_numbers<[1], [0], [0], [1], [0, 0, 1, 1], [], []>} : vector<2x128xf32>, vector<128x512xf32>, vector<2x512xf32> -> vector<2x512xf32>
    %243 = arith.addf %242, %7 : vector<2x512xf32>
    %cst_52 = arith.constant dense<0.000000e+00> : vector<2x512xf32>
    %244 = tpu.matmul %198, %2, %cst_52 {dimension_numbers = #tpu.dot_dimension_numbers<[1], [0], [0], [1], [0, 0, 1, 1], [], []>} : vector<2x128xf32>, vector<128x512xf32>, vector<2x512xf32> -> vector<2x512xf32>
    %245 = arith.addf %243, %244 : vector<2x512xf32>
    %246 = vector.extract_strided_slice %245 {offsets = [0, 0], sizes = [2, 128], strides = [1, 1]} : vector<2x512xf32> to vector<2x128xf32>
    %247 = arith.negf %246 : vector<2x128xf32>
    %248 = math.exp %247 : vector<2x128xf32>
    %cst_53 = arith.constant 1.000000e+00 : f32
    %249 = vector.broadcast %cst_53 : f32 to vector<2x128xf32>
    %250 = arith.addf %249, %248 : vector<2x128xf32>
    %251 = arith.divf %249, %250 : vector<2x128xf32>
    %252 = vector.extract_strided_slice %245 {offsets = [0, 128], sizes = [2, 128], strides = [1, 1]} : vector<2x512xf32> to vector<2x128xf32>
    %253 = arith.negf %252 : vector<2x128xf32>
    %254 = math.exp %253 : vector<2x128xf32>
    %cst_54 = arith.constant 1.000000e+00 : f32
    %255 = vector.broadcast %cst_54 : f32 to vector<2x128xf32>
    %256 = arith.addf %255, %254 : vector<2x128xf32>
    %257 = arith.divf %255, %256 : vector<2x128xf32>
    %258 = vector.extract_strided_slice %245 {offsets = [0, 256], sizes = [2, 128], strides = [1, 1]} : vector<2x512xf32> to vector<2x128xf32>
    %259 = math.tanh %258 : vector<2x128xf32>
    %260 = vector.extract_strided_slice %245 {offsets = [0, 384], sizes = [2, 128], strides = [1, 1]} : vector<2x512xf32> to vector<2x128xf32>
    %261 = arith.negf %260 : vector<2x128xf32>
    %262 = math.exp %261 : vector<2x128xf32>
    %cst_55 = arith.constant 1.000000e+00 : f32
    %263 = vector.broadcast %cst_55 : f32 to vector<2x128xf32>
    %264 = arith.addf %263, %262 : vector<2x128xf32>
    %265 = arith.divf %263, %264 : vector<2x128xf32>
    %266 = arith.mulf %257, %201 : vector<2x128xf32>
    %267 = arith.mulf %251, %259 : vector<2x128xf32>
    %268 = arith.addf %266, %267 : vector<2x128xf32>
    %269 = math.tanh %268 : vector<2x128xf32>
    %270 = arith.mulf %265, %269 : vector<2x128xf32>
    %271 = vector.shape_cast %238 : vector<2x1xi1> to vector<2x1xi1>
    %272 = vector.broadcast %271 : vector<2x1xi1> to vector<2x128xi1>
    %273 = arith.select %272, %270, %198 : vector<2x128xi1>, vector<2x128xf32>
    %274 = vector.shape_cast %238 : vector<2x1xi1> to vector<2x1xi1>
    %275 = vector.broadcast %274 : vector<2x1xi1> to vector<2x128xi1>
    %276 = arith.select %275, %268, %201 : vector<2x128xi1>, vector<2x128xf32>
    %cst_56 = arith.constant dense<0.000000e+00> : vector<2x512xf32>
    %277 = tpu.matmul %233, %4, %cst_56 {dimension_numbers = #tpu.dot_dimension_numbers<[1], [0], [0], [1], [0, 0, 1, 1], [], []>} : vector<2x128xf32>, vector<128x512xf32>, vector<2x512xf32> -> vector<2x512xf32>
    %278 = arith.addf %277, %10 : vector<2x512xf32>
    %cst_57 = arith.constant dense<0.000000e+00> : vector<2x512xf32>
    %279 = tpu.matmul %273, %3, %cst_57 {dimension_numbers = #tpu.dot_dimension_numbers<[1], [0], [0], [1], [0, 0, 1, 1], [], []>} : vector<2x128xf32>, vector<128x512xf32>, vector<2x512xf32> -> vector<2x512xf32>
    %280 = arith.addf %278, %279 : vector<2x512xf32>
    %281 = vector.extract_strided_slice %280 {offsets = [0, 0], sizes = [2, 128], strides = [1, 1]} : vector<2x512xf32> to vector<2x128xf32>
    %282 = arith.negf %281 : vector<2x128xf32>
    %283 = math.exp %282 : vector<2x128xf32>
    %cst_58 = arith.constant 1.000000e+00 : f32
    %284 = vector.broadcast %cst_58 : f32 to vector<2x128xf32>
    %285 = arith.addf %284, %283 : vector<2x128xf32>
    %286 = arith.divf %284, %285 : vector<2x128xf32>
    %287 = vector.extract_strided_slice %280 {offsets = [0, 128], sizes = [2, 128], strides = [1, 1]} : vector<2x512xf32> to vector<2x128xf32>
    %288 = arith.negf %287 : vector<2x128xf32>
    %289 = math.exp %288 : vector<2x128xf32>
    %cst_59 = arith.constant 1.000000e+00 : f32
    %290 = vector.broadcast %cst_59 : f32 to vector<2x128xf32>
    %291 = arith.addf %290, %289 : vector<2x128xf32>
    %292 = arith.divf %290, %291 : vector<2x128xf32>
    %293 = vector.extract_strided_slice %280 {offsets = [0, 256], sizes = [2, 128], strides = [1, 1]} : vector<2x512xf32> to vector<2x128xf32>
    %294 = math.tanh %293 : vector<2x128xf32>
    %295 = vector.extract_strided_slice %280 {offsets = [0, 384], sizes = [2, 128], strides = [1, 1]} : vector<2x512xf32> to vector<2x128xf32>
    %296 = arith.negf %295 : vector<2x128xf32>
    %297 = math.exp %296 : vector<2x128xf32>
    %cst_60 = arith.constant 1.000000e+00 : f32
    %298 = vector.broadcast %cst_60 : f32 to vector<2x128xf32>
    %299 = arith.addf %298, %297 : vector<2x128xf32>
    %300 = arith.divf %298, %299 : vector<2x128xf32>
    %301 = arith.mulf %292, %236 : vector<2x128xf32>
    %302 = arith.mulf %286, %294 : vector<2x128xf32>
    %303 = arith.addf %301, %302 : vector<2x128xf32>
    %304 = math.tanh %303 : vector<2x128xf32>
    %305 = arith.mulf %300, %304 : vector<2x128xf32>
    %306 = vector.shape_cast %238 : vector<2x1xi1> to vector<2x1xi1>
    %307 = vector.broadcast %306 : vector<2x1xi1> to vector<2x128xi1>
    %308 = arith.select %307, %305, %233 : vector<2x128xi1>, vector<2x128xf32>
    %309 = vector.shape_cast %238 : vector<2x1xi1> to vector<2x1xi1>
    %310 = vector.broadcast %309 : vector<2x1xi1> to vector<2x128xi1>
    %311 = arith.select %310, %303, %236 : vector<2x128xi1>, vector<2x128xf32>
    %c4_i32 = arith.constant 4 : i32
    %312 = vector.broadcast %c4_i32 : i32 to vector<2x1xi32>
    %313 = arith.cmpi sgt, %0, %312 : vector<2x1xi32>
    %314 = arith.index_cast %c4_i32 : i32 to index
    %c0_61 = arith.constant 0 : index
    %c0_62 = arith.constant 0 : index
    %315 = vector.load %arg1[%314, %c0_61, %c0_62] : memref<8x2x128xf32, #tpu.memory_space<vmem>>, vector<1x2x128xf32>
    %316 = vector.shape_cast %315 : vector<1x2x128xf32> to vector<2x128xf32>
    %cst_63 = arith.constant dense<0.000000e+00> : vector<2x512xf32>
    %317 = tpu.matmul %316, %1, %cst_63 {dimension_numbers = #tpu.dot_dimension_numbers<[1], [0], [0], [1], [0, 0, 1, 1], [], []>} : vector<2x128xf32>, vector<128x512xf32>, vector<2x512xf32> -> vector<2x512xf32>
    %318 = arith.addf %317, %7 : vector<2x512xf32>
    %cst_64 = arith.constant dense<0.000000e+00> : vector<2x512xf32>
    %319 = tpu.matmul %273, %2, %cst_64 {dimension_numbers = #tpu.dot_dimension_numbers<[1], [0], [0], [1], [0, 0, 1, 1], [], []>} : vector<2x128xf32>, vector<128x512xf32>, vector<2x512xf32> -> vector<2x512xf32>
    %320 = arith.addf %318, %319 : vector<2x512xf32>
    %321 = vector.extract_strided_slice %320 {offsets = [0, 0], sizes = [2, 128], strides = [1, 1]} : vector<2x512xf32> to vector<2x128xf32>
    %322 = arith.negf %321 : vector<2x128xf32>
    %323 = math.exp %322 : vector<2x128xf32>
    %cst_65 = arith.constant 1.000000e+00 : f32
    %324 = vector.broadcast %cst_65 : f32 to vector<2x128xf32>
    %325 = arith.addf %324, %323 : vector<2x128xf32>
    %326 = arith.divf %324, %325 : vector<2x128xf32>
    %327 = vector.extract_strided_slice %320 {offsets = [0, 128], sizes = [2, 128], strides = [1, 1]} : vector<2x512xf32> to vector<2x128xf32>
    %328 = arith.negf %327 : vector<2x128xf32>
    %329 = math.exp %328 : vector<2x128xf32>
    %cst_66 = arith.constant 1.000000e+00 : f32
    %330 = vector.broadcast %cst_66 : f32 to vector<2x128xf32>
    %331 = arith.addf %330, %329 : vector<2x128xf32>
    %332 = arith.divf %330, %331 : vector<2x128xf32>
    %333 = vector.extract_strided_slice %320 {offsets = [0, 256], sizes = [2, 128], strides = [1, 1]} : vector<2x512xf32> to vector<2x128xf32>
    %334 = math.tanh %333 : vector<2x128xf32>
    %335 = vector.extract_strided_slice %320 {offsets = [0, 384], sizes = [2, 128], strides = [1, 1]} : vector<2x512xf32> to vector<2x128xf32>
    %336 = arith.negf %335 : vector<2x128xf32>
    %337 = math.exp %336 : vector<2x128xf32>
    %cst_67 = arith.constant 1.000000e+00 : f32
    %338 = vector.broadcast %cst_67 : f32 to vector<2x128xf32>
    %339 = arith.addf %338, %337 : vector<2x128xf32>
    %340 = arith.divf %338, %339 : vector<2x128xf32>
    %341 = arith.mulf %332, %276 : vector<2x128xf32>
    %342 = arith.mulf %326, %334 : vector<2x128xf32>
    %343 = arith.addf %341, %342 : vector<2x128xf32>
    %344 = math.tanh %343 : vector<2x128xf32>
    %345 = arith.mulf %340, %344 : vector<2x128xf32>
    %346 = vector.shape_cast %313 : vector<2x1xi1> to vector<2x1xi1>
    %347 = vector.broadcast %346 : vector<2x1xi1> to vector<2x128xi1>
    %348 = arith.select %347, %345, %273 : vector<2x128xi1>, vector<2x128xf32>
    %349 = vector.shape_cast %313 : vector<2x1xi1> to vector<2x1xi1>
    %350 = vector.broadcast %349 : vector<2x1xi1> to vector<2x128xi1>
    %351 = arith.select %350, %343, %276 : vector<2x128xi1>, vector<2x128xf32>
    %cst_68 = arith.constant dense<0.000000e+00> : vector<2x512xf32>
    %352 = tpu.matmul %308, %4, %cst_68 {dimension_numbers = #tpu.dot_dimension_numbers<[1], [0], [0], [1], [0, 0, 1, 1], [], []>} : vector<2x128xf32>, vector<128x512xf32>, vector<2x512xf32> -> vector<2x512xf32>
    %353 = arith.addf %352, %10 : vector<2x512xf32>
    %cst_69 = arith.constant dense<0.000000e+00> : vector<2x512xf32>
    %354 = tpu.matmul %348, %3, %cst_69 {dimension_numbers = #tpu.dot_dimension_numbers<[1], [0], [0], [1], [0, 0, 1, 1], [], []>} : vector<2x128xf32>, vector<128x512xf32>, vector<2x512xf32> -> vector<2x512xf32>
    %355 = arith.addf %353, %354 : vector<2x512xf32>
    %356 = vector.extract_strided_slice %355 {offsets = [0, 0], sizes = [2, 128], strides = [1, 1]} : vector<2x512xf32> to vector<2x128xf32>
    %357 = arith.negf %356 : vector<2x128xf32>
    %358 = math.exp %357 : vector<2x128xf32>
    %cst_70 = arith.constant 1.000000e+00 : f32
    %359 = vector.broadcast %cst_70 : f32 to vector<2x128xf32>
    %360 = arith.addf %359, %358 : vector<2x128xf32>
    %361 = arith.divf %359, %360 : vector<2x128xf32>
    %362 = vector.extract_strided_slice %355 {offsets = [0, 128], sizes = [2, 128], strides = [1, 1]} : vector<2x512xf32> to vector<2x128xf32>
    %363 = arith.negf %362 : vector<2x128xf32>
    %364 = math.exp %363 : vector<2x128xf32>
    %cst_71 = arith.constant 1.000000e+00 : f32
    %365 = vector.broadcast %cst_71 : f32 to vector<2x128xf32>
    %366 = arith.addf %365, %364 : vector<2x128xf32>
    %367 = arith.divf %365, %366 : vector<2x128xf32>
    %368 = vector.extract_strided_slice %355 {offsets = [0, 256], sizes = [2, 128], strides = [1, 1]} : vector<2x512xf32> to vector<2x128xf32>
    %369 = math.tanh %368 : vector<2x128xf32>
    %370 = vector.extract_strided_slice %355 {offsets = [0, 384], sizes = [2, 128], strides = [1, 1]} : vector<2x512xf32> to vector<2x128xf32>
    %371 = arith.negf %370 : vector<2x128xf32>
    %372 = math.exp %371 : vector<2x128xf32>
    %cst_72 = arith.constant 1.000000e+00 : f32
    %373 = vector.broadcast %cst_72 : f32 to vector<2x128xf32>
    %374 = arith.addf %373, %372 : vector<2x128xf32>
    %375 = arith.divf %373, %374 : vector<2x128xf32>
    %376 = arith.mulf %367, %311 : vector<2x128xf32>
    %377 = arith.mulf %361, %369 : vector<2x128xf32>
    %378 = arith.addf %376, %377 : vector<2x128xf32>
    %379 = math.tanh %378 : vector<2x128xf32>
    %380 = arith.mulf %375, %379 : vector<2x128xf32>
    %381 = vector.shape_cast %313 : vector<2x1xi1> to vector<2x1xi1>
    %382 = vector.broadcast %381 : vector<2x1xi1> to vector<2x128xi1>
    %383 = arith.select %382, %380, %308 : vector<2x128xi1>, vector<2x128xf32>
    %384 = vector.shape_cast %313 : vector<2x1xi1> to vector<2x1xi1>
    %385 = vector.broadcast %384 : vector<2x1xi1> to vector<2x128xi1>
    %386 = arith.select %385, %378, %311 : vector<2x128xi1>, vector<2x128xf32>
    %c5_i32 = arith.constant 5 : i32
    %387 = vector.broadcast %c5_i32 : i32 to vector<2x1xi32>
    %388 = arith.cmpi sgt, %0, %387 : vector<2x1xi32>
    %389 = arith.index_cast %c5_i32 : i32 to index
    %c0_73 = arith.constant 0 : index
    %c0_74 = arith.constant 0 : index
    %390 = vector.load %arg1[%389, %c0_73, %c0_74] : memref<8x2x128xf32, #tpu.memory_space<vmem>>, vector<1x2x128xf32>
    %391 = vector.shape_cast %390 : vector<1x2x128xf32> to vector<2x128xf32>
    %cst_75 = arith.constant dense<0.000000e+00> : vector<2x512xf32>
    %392 = tpu.matmul %391, %1, %cst_75 {dimension_numbers = #tpu.dot_dimension_numbers<[1], [0], [0], [1], [0, 0, 1, 1], [], []>} : vector<2x128xf32>, vector<128x512xf32>, vector<2x512xf32> -> vector<2x512xf32>
    %393 = arith.addf %392, %7 : vector<2x512xf32>
    %cst_76 = arith.constant dense<0.000000e+00> : vector<2x512xf32>
    %394 = tpu.matmul %348, %2, %cst_76 {dimension_numbers = #tpu.dot_dimension_numbers<[1], [0], [0], [1], [0, 0, 1, 1], [], []>} : vector<2x128xf32>, vector<128x512xf32>, vector<2x512xf32> -> vector<2x512xf32>
    %395 = arith.addf %393, %394 : vector<2x512xf32>
    %396 = vector.extract_strided_slice %395 {offsets = [0, 0], sizes = [2, 128], strides = [1, 1]} : vector<2x512xf32> to vector<2x128xf32>
    %397 = arith.negf %396 : vector<2x128xf32>
    %398 = math.exp %397 : vector<2x128xf32>
    %cst_77 = arith.constant 1.000000e+00 : f32
    %399 = vector.broadcast %cst_77 : f32 to vector<2x128xf32>
    %400 = arith.addf %399, %398 : vector<2x128xf32>
    %401 = arith.divf %399, %400 : vector<2x128xf32>
    %402 = vector.extract_strided_slice %395 {offsets = [0, 128], sizes = [2, 128], strides = [1, 1]} : vector<2x512xf32> to vector<2x128xf32>
    %403 = arith.negf %402 : vector<2x128xf32>
    %404 = math.exp %403 : vector<2x128xf32>
    %cst_78 = arith.constant 1.000000e+00 : f32
    %405 = vector.broadcast %cst_78 : f32 to vector<2x128xf32>
    %406 = arith.addf %405, %404 : vector<2x128xf32>
    %407 = arith.divf %405, %406 : vector<2x128xf32>
    %408 = vector.extract_strided_slice %395 {offsets = [0, 256], sizes = [2, 128], strides = [1, 1]} : vector<2x512xf32> to vector<2x128xf32>
    %409 = math.tanh %408 : vector<2x128xf32>
    %410 = vector.extract_strided_slice %395 {offsets = [0, 384], sizes = [2, 128], strides = [1, 1]} : vector<2x512xf32> to vector<2x128xf32>
    %411 = arith.negf %410 : vector<2x128xf32>
    %412 = math.exp %411 : vector<2x128xf32>
    %cst_79 = arith.constant 1.000000e+00 : f32
    %413 = vector.broadcast %cst_79 : f32 to vector<2x128xf32>
    %414 = arith.addf %413, %412 : vector<2x128xf32>
    %415 = arith.divf %413, %414 : vector<2x128xf32>
    %416 = arith.mulf %407, %351 : vector<2x128xf32>
    %417 = arith.mulf %401, %409 : vector<2x128xf32>
    %418 = arith.addf %416, %417 : vector<2x128xf32>
    %419 = math.tanh %418 : vector<2x128xf32>
    %420 = arith.mulf %415, %419 : vector<2x128xf32>
    %421 = vector.shape_cast %388 : vector<2x1xi1> to vector<2x1xi1>
    %422 = vector.broadcast %421 : vector<2x1xi1> to vector<2x128xi1>
    %423 = arith.select %422, %420, %348 : vector<2x128xi1>, vector<2x128xf32>
    %424 = vector.shape_cast %388 : vector<2x1xi1> to vector<2x1xi1>
    %425 = vector.broadcast %424 : vector<2x1xi1> to vector<2x128xi1>
    %426 = arith.select %425, %418, %351 : vector<2x128xi1>, vector<2x128xf32>
    %cst_80 = arith.constant dense<0.000000e+00> : vector<2x512xf32>
    %427 = tpu.matmul %383, %4, %cst_80 {dimension_numbers = #tpu.dot_dimension_numbers<[1], [0], [0], [1], [0, 0, 1, 1], [], []>} : vector<2x128xf32>, vector<128x512xf32>, vector<2x512xf32> -> vector<2x512xf32>
    %428 = arith.addf %427, %10 : vector<2x512xf32>
    %cst_81 = arith.constant dense<0.000000e+00> : vector<2x512xf32>
    %429 = tpu.matmul %423, %3, %cst_81 {dimension_numbers = #tpu.dot_dimension_numbers<[1], [0], [0], [1], [0, 0, 1, 1], [], []>} : vector<2x128xf32>, vector<128x512xf32>, vector<2x512xf32> -> vector<2x512xf32>
    %430 = arith.addf %428, %429 : vector<2x512xf32>
    %431 = vector.extract_strided_slice %430 {offsets = [0, 0], sizes = [2, 128], strides = [1, 1]} : vector<2x512xf32> to vector<2x128xf32>
    %432 = arith.negf %431 : vector<2x128xf32>
    %433 = math.exp %432 : vector<2x128xf32>
    %cst_82 = arith.constant 1.000000e+00 : f32
    %434 = vector.broadcast %cst_82 : f32 to vector<2x128xf32>
    %435 = arith.addf %434, %433 : vector<2x128xf32>
    %436 = arith.divf %434, %435 : vector<2x128xf32>
    %437 = vector.extract_strided_slice %430 {offsets = [0, 128], sizes = [2, 128], strides = [1, 1]} : vector<2x512xf32> to vector<2x128xf32>
    %438 = arith.negf %437 : vector<2x128xf32>
    %439 = math.exp %438 : vector<2x128xf32>
    %cst_83 = arith.constant 1.000000e+00 : f32
    %440 = vector.broadcast %cst_83 : f32 to vector<2x128xf32>
    %441 = arith.addf %440, %439 : vector<2x128xf32>
    %442 = arith.divf %440, %441 : vector<2x128xf32>
    %443 = vector.extract_strided_slice %430 {offsets = [0, 256], sizes = [2, 128], strides = [1, 1]} : vector<2x512xf32> to vector<2x128xf32>
    %444 = math.tanh %443 : vector<2x128xf32>
    %445 = vector.extract_strided_slice %430 {offsets = [0, 384], sizes = [2, 128], strides = [1, 1]} : vector<2x512xf32> to vector<2x128xf32>
    %446 = arith.negf %445 : vector<2x128xf32>
    %447 = math.exp %446 : vector<2x128xf32>
    %cst_84 = arith.constant 1.000000e+00 : f32
    %448 = vector.broadcast %cst_84 : f32 to vector<2x128xf32>
    %449 = arith.addf %448, %447 : vector<2x128xf32>
    %450 = arith.divf %448, %449 : vector<2x128xf32>
    %451 = arith.mulf %442, %386 : vector<2x128xf32>
    %452 = arith.mulf %436, %444 : vector<2x128xf32>
    %453 = arith.addf %451, %452 : vector<2x128xf32>
    %454 = math.tanh %453 : vector<2x128xf32>
    %455 = arith.mulf %450, %454 : vector<2x128xf32>
    %456 = vector.shape_cast %388 : vector<2x1xi1> to vector<2x1xi1>
    %457 = vector.broadcast %456 : vector<2x1xi1> to vector<2x128xi1>
    %458 = arith.select %457, %455, %383 : vector<2x128xi1>, vector<2x128xf32>
    %459 = vector.shape_cast %388 : vector<2x1xi1> to vector<2x1xi1>
    %460 = vector.broadcast %459 : vector<2x1xi1> to vector<2x128xi1>
    %461 = arith.select %460, %453, %386 : vector<2x128xi1>, vector<2x128xf32>
    %c6_i32 = arith.constant 6 : i32
    %462 = vector.broadcast %c6_i32 : i32 to vector<2x1xi32>
    %463 = arith.cmpi sgt, %0, %462 : vector<2x1xi32>
    %464 = arith.index_cast %c6_i32 : i32 to index
    %c0_85 = arith.constant 0 : index
    %c0_86 = arith.constant 0 : index
    %465 = vector.load %arg1[%464, %c0_85, %c0_86] : memref<8x2x128xf32, #tpu.memory_space<vmem>>, vector<1x2x128xf32>
    %466 = vector.shape_cast %465 : vector<1x2x128xf32> to vector<2x128xf32>
    %cst_87 = arith.constant dense<0.000000e+00> : vector<2x512xf32>
    %467 = tpu.matmul %466, %1, %cst_87 {dimension_numbers = #tpu.dot_dimension_numbers<[1], [0], [0], [1], [0, 0, 1, 1], [], []>} : vector<2x128xf32>, vector<128x512xf32>, vector<2x512xf32> -> vector<2x512xf32>
    %468 = arith.addf %467, %7 : vector<2x512xf32>
    %cst_88 = arith.constant dense<0.000000e+00> : vector<2x512xf32>
    %469 = tpu.matmul %423, %2, %cst_88 {dimension_numbers = #tpu.dot_dimension_numbers<[1], [0], [0], [1], [0, 0, 1, 1], [], []>} : vector<2x128xf32>, vector<128x512xf32>, vector<2x512xf32> -> vector<2x512xf32>
    %470 = arith.addf %468, %469 : vector<2x512xf32>
    %471 = vector.extract_strided_slice %470 {offsets = [0, 0], sizes = [2, 128], strides = [1, 1]} : vector<2x512xf32> to vector<2x128xf32>
    %472 = arith.negf %471 : vector<2x128xf32>
    %473 = math.exp %472 : vector<2x128xf32>
    %cst_89 = arith.constant 1.000000e+00 : f32
    %474 = vector.broadcast %cst_89 : f32 to vector<2x128xf32>
    %475 = arith.addf %474, %473 : vector<2x128xf32>
    %476 = arith.divf %474, %475 : vector<2x128xf32>
    %477 = vector.extract_strided_slice %470 {offsets = [0, 128], sizes = [2, 128], strides = [1, 1]} : vector<2x512xf32> to vector<2x128xf32>
    %478 = arith.negf %477 : vector<2x128xf32>
    %479 = math.exp %478 : vector<2x128xf32>
    %cst_90 = arith.constant 1.000000e+00 : f32
    %480 = vector.broadcast %cst_90 : f32 to vector<2x128xf32>
    %481 = arith.addf %480, %479 : vector<2x128xf32>
    %482 = arith.divf %480, %481 : vector<2x128xf32>
    %483 = vector.extract_strided_slice %470 {offsets = [0, 256], sizes = [2, 128], strides = [1, 1]} : vector<2x512xf32> to vector<2x128xf32>
    %484 = math.tanh %483 : vector<2x128xf32>
    %485 = vector.extract_strided_slice %470 {offsets = [0, 384], sizes = [2, 128], strides = [1, 1]} : vector<2x512xf32> to vector<2x128xf32>
    %486 = arith.negf %485 : vector<2x128xf32>
    %487 = math.exp %486 : vector<2x128xf32>
    %cst_91 = arith.constant 1.000000e+00 : f32
    %488 = vector.broadcast %cst_91 : f32 to vector<2x128xf32>
    %489 = arith.addf %488, %487 : vector<2x128xf32>
    %490 = arith.divf %488, %489 : vector<2x128xf32>
    %491 = arith.mulf %482, %426 : vector<2x128xf32>
    %492 = arith.mulf %476, %484 : vector<2x128xf32>
    %493 = arith.addf %491, %492 : vector<2x128xf32>
    %494 = math.tanh %493 : vector<2x128xf32>
    %495 = arith.mulf %490, %494 : vector<2x128xf32>
    %496 = vector.shape_cast %463 : vector<2x1xi1> to vector<2x1xi1>
    %497 = vector.broadcast %496 : vector<2x1xi1> to vector<2x128xi1>
    %498 = arith.select %497, %495, %423 : vector<2x128xi1>, vector<2x128xf32>
    %499 = vector.shape_cast %463 : vector<2x1xi1> to vector<2x1xi1>
    %500 = vector.broadcast %499 : vector<2x1xi1> to vector<2x128xi1>
    %501 = arith.select %500, %493, %426 : vector<2x128xi1>, vector<2x128xf32>
    %cst_92 = arith.constant dense<0.000000e+00> : vector<2x512xf32>
    %502 = tpu.matmul %458, %4, %cst_92 {dimension_numbers = #tpu.dot_dimension_numbers<[1], [0], [0], [1], [0, 0, 1, 1], [], []>} : vector<2x128xf32>, vector<128x512xf32>, vector<2x512xf32> -> vector<2x512xf32>
    %503 = arith.addf %502, %10 : vector<2x512xf32>
    %cst_93 = arith.constant dense<0.000000e+00> : vector<2x512xf32>
    %504 = tpu.matmul %498, %3, %cst_93 {dimension_numbers = #tpu.dot_dimension_numbers<[1], [0], [0], [1], [0, 0, 1, 1], [], []>} : vector<2x128xf32>, vector<128x512xf32>, vector<2x512xf32> -> vector<2x512xf32>
    %505 = arith.addf %503, %504 : vector<2x512xf32>
    %506 = vector.extract_strided_slice %505 {offsets = [0, 0], sizes = [2, 128], strides = [1, 1]} : vector<2x512xf32> to vector<2x128xf32>
    %507 = arith.negf %506 : vector<2x128xf32>
    %508 = math.exp %507 : vector<2x128xf32>
    %cst_94 = arith.constant 1.000000e+00 : f32
    %509 = vector.broadcast %cst_94 : f32 to vector<2x128xf32>
    %510 = arith.addf %509, %508 : vector<2x128xf32>
    %511 = arith.divf %509, %510 : vector<2x128xf32>
    %512 = vector.extract_strided_slice %505 {offsets = [0, 128], sizes = [2, 128], strides = [1, 1]} : vector<2x512xf32> to vector<2x128xf32>
    %513 = arith.negf %512 : vector<2x128xf32>
    %514 = math.exp %513 : vector<2x128xf32>
    %cst_95 = arith.constant 1.000000e+00 : f32
    %515 = vector.broadcast %cst_95 : f32 to vector<2x128xf32>
    %516 = arith.addf %515, %514 : vector<2x128xf32>
    %517 = arith.divf %515, %516 : vector<2x128xf32>
    %518 = vector.extract_strided_slice %505 {offsets = [0, 256], sizes = [2, 128], strides = [1, 1]} : vector<2x512xf32> to vector<2x128xf32>
    %519 = math.tanh %518 : vector<2x128xf32>
    %520 = vector.extract_strided_slice %505 {offsets = [0, 384], sizes = [2, 128], strides = [1, 1]} : vector<2x512xf32> to vector<2x128xf32>
    %521 = arith.negf %520 : vector<2x128xf32>
    %522 = math.exp %521 : vector<2x128xf32>
    %cst_96 = arith.constant 1.000000e+00 : f32
    %523 = vector.broadcast %cst_96 : f32 to vector<2x128xf32>
    %524 = arith.addf %523, %522 : vector<2x128xf32>
    %525 = arith.divf %523, %524 : vector<2x128xf32>
    %526 = arith.mulf %517, %461 : vector<2x128xf32>
    %527 = arith.mulf %511, %519 : vector<2x128xf32>
    %528 = arith.addf %526, %527 : vector<2x128xf32>
    %529 = math.tanh %528 : vector<2x128xf32>
    %530 = arith.mulf %525, %529 : vector<2x128xf32>
    %531 = vector.shape_cast %463 : vector<2x1xi1> to vector<2x1xi1>
    %532 = vector.broadcast %531 : vector<2x1xi1> to vector<2x128xi1>
    %533 = arith.select %532, %530, %458 : vector<2x128xi1>, vector<2x128xf32>
    %534 = vector.shape_cast %463 : vector<2x1xi1> to vector<2x1xi1>
    %535 = vector.broadcast %534 : vector<2x1xi1> to vector<2x128xi1>
    %536 = arith.select %535, %528, %461 : vector<2x128xi1>, vector<2x128xf32>
    %c7_i32 = arith.constant 7 : i32
    %537 = vector.broadcast %c7_i32 : i32 to vector<2x1xi32>
    %538 = arith.cmpi sgt, %0, %537 : vector<2x1xi32>
    %539 = arith.index_cast %c7_i32 : i32 to index
    %c0_97 = arith.constant 0 : index
    %c0_98 = arith.constant 0 : index
    %540 = vector.load %arg1[%539, %c0_97, %c0_98] : memref<8x2x128xf32, #tpu.memory_space<vmem>>, vector<1x2x128xf32>
    %541 = vector.shape_cast %540 : vector<1x2x128xf32> to vector<2x128xf32>
    %cst_99 = arith.constant dense<0.000000e+00> : vector<2x512xf32>
    %542 = tpu.matmul %541, %1, %cst_99 {dimension_numbers = #tpu.dot_dimension_numbers<[1], [0], [0], [1], [0, 0, 1, 1], [], []>} : vector<2x128xf32>, vector<128x512xf32>, vector<2x512xf32> -> vector<2x512xf32>
    %543 = arith.addf %542, %7 : vector<2x512xf32>
    %cst_100 = arith.constant dense<0.000000e+00> : vector<2x512xf32>
    %544 = tpu.matmul %498, %2, %cst_100 {dimension_numbers = #tpu.dot_dimension_numbers<[1], [0], [0], [1], [0, 0, 1, 1], [], []>} : vector<2x128xf32>, vector<128x512xf32>, vector<2x512xf32> -> vector<2x512xf32>
    %545 = arith.addf %543, %544 : vector<2x512xf32>
    %546 = vector.extract_strided_slice %545 {offsets = [0, 0], sizes = [2, 128], strides = [1, 1]} : vector<2x512xf32> to vector<2x128xf32>
    %547 = arith.negf %546 : vector<2x128xf32>
    %548 = math.exp %547 : vector<2x128xf32>
    %cst_101 = arith.constant 1.000000e+00 : f32
    %549 = vector.broadcast %cst_101 : f32 to vector<2x128xf32>
    %550 = arith.addf %549, %548 : vector<2x128xf32>
    %551 = arith.divf %549, %550 : vector<2x128xf32>
    %552 = vector.extract_strided_slice %545 {offsets = [0, 128], sizes = [2, 128], strides = [1, 1]} : vector<2x512xf32> to vector<2x128xf32>
    %553 = arith.negf %552 : vector<2x128xf32>
    %554 = math.exp %553 : vector<2x128xf32>
    %cst_102 = arith.constant 1.000000e+00 : f32
    %555 = vector.broadcast %cst_102 : f32 to vector<2x128xf32>
    %556 = arith.addf %555, %554 : vector<2x128xf32>
    %557 = arith.divf %555, %556 : vector<2x128xf32>
    %558 = vector.extract_strided_slice %545 {offsets = [0, 256], sizes = [2, 128], strides = [1, 1]} : vector<2x512xf32> to vector<2x128xf32>
    %559 = math.tanh %558 : vector<2x128xf32>
    %560 = vector.extract_strided_slice %545 {offsets = [0, 384], sizes = [2, 128], strides = [1, 1]} : vector<2x512xf32> to vector<2x128xf32>
    %561 = arith.negf %560 : vector<2x128xf32>
    %562 = math.exp %561 : vector<2x128xf32>
    %cst_103 = arith.constant 1.000000e+00 : f32
    %563 = vector.broadcast %cst_103 : f32 to vector<2x128xf32>
    %564 = arith.addf %563, %562 : vector<2x128xf32>
    %565 = arith.divf %563, %564 : vector<2x128xf32>
    %566 = arith.mulf %557, %501 : vector<2x128xf32>
    %567 = arith.mulf %551, %559 : vector<2x128xf32>
    %568 = arith.addf %566, %567 : vector<2x128xf32>
    %569 = math.tanh %568 : vector<2x128xf32>
    %570 = arith.mulf %565, %569 : vector<2x128xf32>
    %571 = vector.shape_cast %538 : vector<2x1xi1> to vector<2x1xi1>
    %572 = vector.broadcast %571 : vector<2x1xi1> to vector<2x128xi1>
    %573 = arith.select %572, %570, %498 : vector<2x128xi1>, vector<2x128xf32>
    %574 = vector.shape_cast %538 : vector<2x1xi1> to vector<2x1xi1>
    %575 = vector.broadcast %574 : vector<2x1xi1> to vector<2x128xi1>
    %576 = arith.select %575, %568, %501 : vector<2x128xi1>, vector<2x128xf32>
    %cst_104 = arith.constant dense<0.000000e+00> : vector<2x512xf32>
    %577 = tpu.matmul %533, %4, %cst_104 {dimension_numbers = #tpu.dot_dimension_numbers<[1], [0], [0], [1], [0, 0, 1, 1], [], []>} : vector<2x128xf32>, vector<128x512xf32>, vector<2x512xf32> -> vector<2x512xf32>
    %578 = arith.addf %577, %10 : vector<2x512xf32>
    %cst_105 = arith.constant dense<0.000000e+00> : vector<2x512xf32>
    %579 = tpu.matmul %573, %3, %cst_105 {dimension_numbers = #tpu.dot_dimension_numbers<[1], [0], [0], [1], [0, 0, 1, 1], [], []>} : vector<2x128xf32>, vector<128x512xf32>, vector<2x512xf32> -> vector<2x512xf32>
    %580 = arith.addf %578, %579 : vector<2x512xf32>
    %581 = vector.extract_strided_slice %580 {offsets = [0, 0], sizes = [2, 128], strides = [1, 1]} : vector<2x512xf32> to vector<2x128xf32>
    %582 = arith.negf %581 : vector<2x128xf32>
    %583 = math.exp %582 : vector<2x128xf32>
    %cst_106 = arith.constant 1.000000e+00 : f32
    %584 = vector.broadcast %cst_106 : f32 to vector<2x128xf32>
    %585 = arith.addf %584, %583 : vector<2x128xf32>
    %586 = arith.divf %584, %585 : vector<2x128xf32>
    %587 = vector.extract_strided_slice %580 {offsets = [0, 128], sizes = [2, 128], strides = [1, 1]} : vector<2x512xf32> to vector<2x128xf32>
    %588 = arith.negf %587 : vector<2x128xf32>
    %589 = math.exp %588 : vector<2x128xf32>
    %cst_107 = arith.constant 1.000000e+00 : f32
    %590 = vector.broadcast %cst_107 : f32 to vector<2x128xf32>
    %591 = arith.addf %590, %589 : vector<2x128xf32>
    %592 = arith.divf %590, %591 : vector<2x128xf32>
    %593 = vector.extract_strided_slice %580 {offsets = [0, 256], sizes = [2, 128], strides = [1, 1]} : vector<2x512xf32> to vector<2x128xf32>
    %594 = math.tanh %593 : vector<2x128xf32>
    %595 = vector.extract_strided_slice %580 {offsets = [0, 384], sizes = [2, 128], strides = [1, 1]} : vector<2x512xf32> to vector<2x128xf32>
    %596 = arith.negf %595 : vector<2x128xf32>
    %597 = math.exp %596 : vector<2x128xf32>
    %cst_108 = arith.constant 1.000000e+00 : f32
    %598 = vector.broadcast %cst_108 : f32 to vector<2x128xf32>
    %599 = arith.addf %598, %597 : vector<2x128xf32>
    %600 = arith.divf %598, %599 : vector<2x128xf32>
    %601 = arith.mulf %592, %536 : vector<2x128xf32>
    %602 = arith.mulf %586, %594 : vector<2x128xf32>
    %603 = arith.addf %601, %602 : vector<2x128xf32>
    %604 = math.tanh %603 : vector<2x128xf32>
    %605 = arith.mulf %600, %604 : vector<2x128xf32>
    %606 = vector.shape_cast %538 : vector<2x1xi1> to vector<2x1xi1>
    %607 = vector.broadcast %606 : vector<2x1xi1> to vector<2x128xi1>
    %608 = arith.select %607, %605, %533 : vector<2x128xi1>, vector<2x128xf32>
    %609 = vector.shape_cast %538 : vector<2x1xi1> to vector<2x1xi1>
    %610 = vector.broadcast %609 : vector<2x1xi1> to vector<2x128xi1>
    %611 = arith.select %610, %603, %536 : vector<2x128xi1>, vector<2x128xf32>
    %c8_i32 = arith.constant 8 : i32
    %c0_109 = arith.constant 0 : index
    %c0_110 = arith.constant 0 : index
    %612 = vector.load %arg9[%c0_109, %c0_110] : memref<1x128xf32, #tpu.memory_space<vmem>>, vector<1x128xf32>
    %613 = vector.broadcast %612 : vector<1x128xf32> to vector<2x128xf32>
    %614 = arith.mulf %608, %613 : vector<2x128xf32>
    %c0_111 = arith.constant 0 : index
    %c0_112 = arith.constant 0 : index
    %615 = vector.load %arg10[%c0_111, %c0_112] : memref<1x128xf32, #tpu.memory_space<vmem>>, vector<1x128xf32>
    %616 = vector.broadcast %615 : vector<1x128xf32> to vector<2x128xf32>
    %617 = arith.addf %614, %616 : vector<2x128xf32>
    %c0_113 = arith.constant 0 : index
    %c0_114 = arith.constant 0 : index
    %618 = vector.load %arg11[%c0_113, %c0_114] : memref<128x128xf32, #tpu.memory_space<vmem>>, vector<128x128xf32>
    %cst_115 = arith.constant dense<0.000000e+00> : vector<2x128xf32>
    %619 = tpu.matmul %617, %618, %cst_115 {dimension_numbers = #tpu.dot_dimension_numbers<[1], [0], [0], [1], [0, 0, 1, 1], [], []>} : vector<2x128xf32>, vector<128x128xf32>, vector<2x128xf32> -> vector<2x128xf32>
    %c0_116 = arith.constant 0 : index
    %c0_117 = arith.constant 0 : index
    %620 = vector.load %arg12[%c0_116, %c0_117] : memref<1x128xf32, #tpu.memory_space<vmem>>, vector<1x128xf32>
    %621 = vector.broadcast %620 : vector<1x128xf32> to vector<2x128xf32>
    %622 = arith.addf %619, %621 : vector<2x128xf32>
    %c0_118 = arith.constant 0 : index
    %c0_119 = arith.constant 0 : index
    %623 = vector.load %arg13[%c0_118, %c0_119] : memref<1x128xf32, #tpu.memory_space<vmem>>, vector<1x128xf32>
    %624 = vector.broadcast %623 : vector<1x128xf32> to vector<2x128xf32>
    %625 = arith.mulf %622, %624 : vector<2x128xf32>
    %c0_120 = arith.constant 0 : index
    %c0_121 = arith.constant 0 : index
    %626 = vector.load %arg14[%c0_120, %c0_121] : memref<1x128xf32, #tpu.memory_space<vmem>>, vector<1x128xf32>
    %627 = vector.broadcast %626 : vector<1x128xf32> to vector<2x128xf32>
    %628 = arith.addf %625, %627 : vector<2x128xf32>
    %c0_122 = arith.constant 0 : index
    %c0_123 = arith.constant 0 : index
    %629 = vector.load %arg15[%c0_122, %c0_123] : memref<128x128xf32, #tpu.memory_space<vmem>>, vector<128x128xf32>
    %cst_124 = arith.constant dense<0.000000e+00> : vector<2x128xf32>
    %630 = tpu.matmul %628, %629, %cst_124 {dimension_numbers = #tpu.dot_dimension_numbers<[1], [0], [0], [1], [0, 0, 1, 1], [], []>} : vector<2x128xf32>, vector<128x128xf32>, vector<2x128xf32> -> vector<2x128xf32>
    %c0_125 = arith.constant 0 : index
    %c0_126 = arith.constant 0 : index
    %631 = vector.load %arg16[%c0_125, %c0_126] : memref<1x128xf32, #tpu.memory_space<vmem>>, vector<1x128xf32>
    %632 = vector.broadcast %631 : vector<1x128xf32> to vector<2x128xf32>
    %633 = arith.addf %630, %632 : vector<2x128xf32>
    %cst_127 = arith.constant dense<0xFF800000> : vector<2xf32>
    %634 = vector.multi_reduction <maximumf>, %633, %cst_127 [1] : vector<2x128xf32> to vector<2xf32>
    %635 = vector.shape_cast %634 : vector<2xf32> to vector<2x1xf32>
    %636 = vector.broadcast %635 : vector<2x1xf32> to vector<2x128xf32>
    %637 = arith.subf %633, %636 : vector<2x128xf32>
    %638 = math.exp %637 : vector<2x128xf32>
    %cst_128 = arith.constant dense<0.000000e+00> : vector<2xf32>
    %639 = vector.multi_reduction <add>, %638, %cst_128 [1] : vector<2x128xf32> to vector<2xf32>
    %640 = vector.shape_cast %639 : vector<2xf32> to vector<2x1xf32>
    %641 = vector.broadcast %640 : vector<2x1xf32> to vector<2x128xf32>
    %642 = arith.divf %638, %641 : vector<2x128xf32>
    %c0_129 = arith.constant 0 : index
    %c0_130 = arith.constant 0 : index
    %643 = vector.load %arg17[%c0_129, %c0_130] : memref<2x128xf32, #tpu.memory_space<vmem>>, vector<2x128xf32>
    tpu.vector_store %arg17[%c0_129, %c0_130], %642 {strides = array<i32>} : memref<2x128xf32, #tpu.memory_space<vmem>>, vector<2x128xf32>,
    return
  }
  func.func @transform_0(%arg0: i32) -> (i32, i32, i32) {
    %c0_i32 = arith.constant 0 : i32
    %c0_i32_0 = arith.constant 0 : i32
    %c0_i32_1 = arith.constant 0 : i32
    %c0_i32_2 = arith.constant 0 : i32
    return %c0_i32, %c0_i32_0, %c0_i32_1 : i32, i32, i32
  }
  func.func @transform_1(%arg0: i32) -> (i32, i32) {
    %c0_i32 = arith.constant 0 : i32
    %c0_i32_0 = arith.constant 0 : i32
    %c0_i32_1 = arith.constant 0 : i32
    return %c0_i32, %c0_i32_0 : i32, i32
  }
  func.func @transform_2(%arg0: i32) -> (i32, i32) {
    %c0_i32 = arith.constant 0 : i32
    %c0_i32_0 = arith.constant 0 : i32
    %c0_i32_1 = arith.constant 0 : i32
    return %c0_i32, %c0_i32_0 : i32, i32
  }
  func.func @transform_3(%arg0: i32) -> (i32, i32) {
    %c0_i32 = arith.constant 0 : i32
    %c0_i32_0 = arith.constant 0 : i32
    %c0_i32_1 = arith.constant 0 : i32
    return %c0_i32, %c0_i32_0 : i32, i32
  }
  func.func @transform_4(%arg0: i32) -> (i32, i32) {
    %c0_i32 = arith.constant 0 : i32
    %c0_i32_0 = arith.constant 0 : i32
    %c0_i32_1 = arith.constant 0 : i32
    return %c0_i32, %c0_i32_0 : i32, i32
  }
  func.func @transform_5(%arg0: i32) -> (i32, i32) {
    %c0_i32 = arith.constant 0 : i32
    %c0_i32_0 = arith.constant 0 : i32
    %c0_i32_1 = arith.constant 0 : i32
    return %c0_i32, %c0_i32_0 : i32, i32
  }
  func.func @transform_6(%arg0: i32) -> (i32, i32) {
    %c0_i32 = arith.constant 0 : i32
    %c0_i32_0 = arith.constant 0 : i32
    %c0_i32_1 = arith.constant 0 : i32
    return %c0_i32, %c0_i32_0 : i32, i32
  }
  func.func @transform_7(%arg0: i32) -> (i32, i32) {
    %c0_i32 = arith.constant 0 : i32
    %c0_i32_0 = arith.constant 0 : i32
    %c0_i32_1 = arith.constant 0 : i32
    return %c0_i32, %c0_i32_0 : i32, i32
  }
  func.func @transform_8(%arg0: i32) -> (i32, i32) {
    %c0_i32 = arith.constant 0 : i32
    %c0_i32_0 = arith.constant 0 : i32
    %c0_i32_1 = arith.constant 0 : i32
    return %c0_i32, %c0_i32_0 : i32, i32
  }
  func.func @transform_9(%arg0: i32) -> (i32, i32) {
    %c0_i32 = arith.constant 0 : i32
    %c0_i32_0 = arith.constant 0 : i32
    %c0_i32_1 = arith.constant 0 : i32
    return %c0_i32, %c0_i32_0 : i32, i32
  }
  func.func @transform_10(%arg0: i32) -> (i32, i32) {
    %c0_i32 = arith.constant 0 : i32
    %c0_i32_0 = arith.constant 0 : i32
    %c0_i32_1 = arith.constant 0 : i32
    return %c0_i32, %c0_i32_0 : i32, i32
  }
  func.func @transform_11(%arg0: i32) -> (i32, i32) {
    %c0_i32 = arith.constant 0 : i32
    %c0_i32_0 = arith.constant 0 : i32
    %c0_i32_1 = arith.constant 0 : i32
    return %c0_i32, %c0_i32_0 : i32, i32
  }
  func.func @transform_12(%arg0: i32) -> (i32, i32) {
    %c0_i32 = arith.constant 0 : i32
    %c0_i32_0 = arith.constant 0 : i32
    %c0_i32_1 = arith.constant 0 : i32
    return %c0_i32, %c0_i32_0 : i32, i32
  }
  func.func @transform_13(%arg0: i32) -> (i32, i32) {
    %c0_i32 = arith.constant 0 : i32
    %c0_i32_0 = arith.constant 0 : i32
    %c0_i32_1 = arith.constant 0 : i32
    return %c0_i32, %c0_i32_0 : i32, i32
  }
  func.func @transform_14(%arg0: i32) -> (i32, i32) {
    %c0_i32 = arith.constant 0 : i32
    %c0_i32_0 = arith.constant 0 : i32
    %c0_i32_1 = arith.constant 0 : i32
    return %c0_i32, %c0_i32_0 : i32, i32
  }
  func.func @transform_15(%arg0: i32) -> (i32, i32) {
    %c0_i32 = arith.constant 0 : i32
    %c0_i32_0 = arith.constant 0 : i32
    %c0_i32_1 = arith.constant 0 : i32
    return %c0_i32, %c0_i32_0 : i32, i32
  }
  func.func @transform_16(%arg0: i32) -> (i32, i32) {
    %c0_i32 = arith.constant 0 : i32
    %c0_i32_0 = arith.constant 0 : i32
    %c0_i32_1 = arith.constant 0 : i32
    return %c0_i32, %c0_i32_0 : i32, i32
  }
}

</mosaic_0001>

<llo_original>
// kernel: tpu_custom_call.1
$region0: #{tpu_custom_call.1}
  #allocation0 [shape = 'u32[]', space=smem, size = 0x4, offset = 0x4, fixed_abs, tag = 'smem constant byte address 0x4 - core index']
  #allocation1 [shape = 'u32[144,128]{1,0:T(1,128)}', space=vmem, size = 0x12000, scoped, tag = 'internal scratch']
  %s0 = inlined_call_operand.hbm [shape: f32[8,2,128], index: 0, kind: input, shape index: {}]
  %s1 = inlined_call_operand.vmem [shape: s32[2,1], index: 1, kind: input, shape index: {}]
  %s2 = inlined_call_operand.hbm [shape: f32[128,512], index: 2, kind: input, shape index: {}]
  %s3 = inlined_call_operand.hbm [shape: f32[128,512], index: 3, kind: input, shape index: {}]
  %s4 = inlined_call_operand.vmem [shape: f32[1,512], index: 4, kind: input, shape index: {}]
  %s5 = inlined_call_operand.hbm [shape: f32[128,512], index: 5, kind: input, shape index: {}]
  %s6 = inlined_call_operand.hbm [shape: f32[128,512], index: 6, kind: input, shape index: {}]
  %s7 = inlined_call_operand.vmem [shape: f32[1,512], index: 7, kind: input, shape index: {}]
  %s8 = inlined_call_operand.vmem [shape: f32[1,128], index: 8, kind: input, shape index: {}]
  %s9 = inlined_call_operand.vmem [shape: f32[1,128], index: 9, kind: input, shape index: {}]
  %s10 = inlined_call_operand.hbm [shape: f32[128,128], index: 10, kind: input, shape index: {}]
  %s11 = inlined_call_operand.vmem [shape: f32[1,128], index: 11, kind: input, shape index: {}]
  %s12 = inlined_call_operand.vmem [shape: f32[1,128], index: 12, kind: input, shape index: {}]
  %s13 = inlined_call_operand.vmem [shape: f32[1,128], index: 13, kind: input, shape index: {}]
  %s14 = inlined_call_operand.hbm [shape: f32[128,128], index: 14, kind: input, shape index: {}]
  %s15 = inlined_call_operand.vmem [shape: f32[1,128], index: 15, kind: input, shape index: {}]
  %s16 = inlined_call_operand.hbm [shape: f32[2,128], index: 16, kind: output, shape index: {}]
  %s17 = sld [smem:[#allocation0]]
  $region102: #{tpu_custom_call.1} parent=0
    _
  %s19 = ssub.s32 1, %s17
  %s20 = scalar_select 0, %s19, %s17
  $region1: #{tpu_custom_call.1} parent=0
    #allocation2 [shape = 'u8[8192]{0}', space=vmem, size = 0x2000, scoped, tag = 'input window, operand 0, single buffered']
    #allocation3 [shape = 's32[1]{0}', space=sflag, size = 0x4, scoped, tag = 'scoped memory for tpu_custom_call.1']
    #allocation4 [shape = 's32[1]{0}', space=sflag, size = 0x4, scoped, tag = 'scoped memory for tpu_custom_call.1']
    #allocation5 [shape = 'u8[262144]{0}', space=vmem, size = 0x40000, scoped, tag = 'input window, operand 2, single buffered']
    #allocation6 [shape = 's32[1]{0}', space=sflag, size = 0x4, scoped, tag = 'scoped memory for tpu_custom_call.1']
    #allocation7 [shape = 'u8[262144]{0}', space=vmem, size = 0x40000, scoped, tag = 'input window, operand 3, single buffered']
    #allocation8 [shape = 'u8[262144]{0}', space=vmem, size = 0x40000, scoped, tag = 'input window, operand 5, single buffered']
    #allocation9 [shape = 's32[1]{0}', space=sflag, size = 0x4, scoped, tag = 'scoped memory for tpu_custom_call.1']
    #allocation10 [shape = 'u8[262144]{0}', space=vmem, size = 0x40000, scoped, tag = 'input window, operand 6, single buffered']
    #allocation11 [shape = 'u8[65536]{0}', space=vmem, size = 0x10000, scoped, tag = 'input window, operand 10, single buffered']
    #allocation12 [shape = 's32[1]{0}', space=sflag, size = 0x4, scoped, tag = 'scoped memory for tpu_custom_call.1']
    #allocation13 [shape = 'u8[65536]{0}', space=vmem, size = 0x10000, scoped, tag = 'input window, operand 14, single buffered']
    #allocation14 [shape = 'u8[1024]{0}', space=vmem, size = 0x400, scoped, tag = 'output window, operand 0, single buffered']
    %21 = vsyncpa [#allocation3], 0
    %22 = vsyncpa [#allocation6], 0
    %23 = vsyncpa [#allocation9], 0
    %24 = vsyncpa [#allocation12], 0
    %25 = vsyncpa [#allocation4], 0
    // Predicated region
    $region2: #{tpu_custom_call.1} parent=1 // pred_check
      _
    $region3: #{tpu_custom_call.1} parent=1 // pred_check_branch
      %27 = sbr.rel (0) target = $region5
    $region4: #{tpu_custom_call.1} parent=1 // pred_region
      %s29 = ssub.s32 256, 256
      %30 = vsyncadd [#allocation3], %s29
      %s31 = sshll.u32 [#allocation2], 4
      %s32 = int_to_ptr.vmem [resolvable:$true] %s31
      %37 = dma.hbm_to_vmem [thread:$0]  %s0, 256, %s32, [#allocation3], 32, 32, 2
    $region5: #{tpu_custom_call.1} parent=1 // pred_fallthru
      _
    // Predicated region
    $region6: #{tpu_custom_call.1} parent=1 // pred_check
      _
    $region7: #{tpu_custom_call.1} parent=1 // pred_check_branch
      %39 = sbr.rel (0) target = $region9
    $region8: #{tpu_custom_call.1} parent=1 // pred_region
      _
    $region9: #{tpu_custom_call.1} parent=1 // pred_fallthru
      _
    // Predicated region
    $region10: #{tpu_custom_call.1} parent=1 // pred_check
      _
    $region11: #{tpu_custom_call.1} parent=1 // pred_check_branch
      %41 = sbr.rel (0) target = $region13
    $region12: #{tpu_custom_call.1} parent=1 // pred_region
      %s43 = ssub.s32 8192, 8192
      %44 = vsyncadd [#allocation6], %s43
      %s45 = sshll.u32 [#allocation5], 4
      %s46 = int_to_ptr.vmem [resolvable:$true] %s45
      %51 = dma.hbm_to_vmem [thread:$0]  %s2, 8192, %s46, [#allocation6], 512, 512, 32
    $region13: #{tpu_custom_call.1} parent=1 // pred_fallthru
      _
    // Predicated region
    $region14: #{tpu_custom_call.1} parent=1 // pred_check
      _
    $region15: #{tpu_custom_call.1} parent=1 // pred_check_branch
      %53 = sbr.rel (0) target = $region17
    $region16: #{tpu_custom_call.1} parent=1 // pred_region
      %s55 = ssub.s32 8192, 8192
      %56 = vsyncadd [#allocation6], %s55
      %s57 = sshll.u32 [#allocation7], 4
      %s58 = int_to_ptr.vmem [resolvable:$true] %s57
      %63 = dma.hbm_to_vmem [thread:$0]  %s3, 8192, %s58, [#allocation6], 512, 512, 32
    $region17: #{tpu_custom_call.1} parent=1 // pred_fallthru
      _
    // Predicated region
    $region18: #{tpu_custom_call.1} parent=1 // pred_check
      _
    $region19: #{tpu_custom_call.1} parent=1 // pred_check_branch
      %65 = sbr.rel (0) target = $region21
    $region20: #{tpu_custom_call.1} parent=1 // pred_region
      _
    $region21: #{tpu_custom_call.1} parent=1 // pred_fallthru
      _
    // Predicated region
    $region22: #{tpu_custom_call.1} parent=1 // pred_check
      _
    $region23: #{tpu_custom_call.1} parent=1 // pred_check_branch
      %67 = sbr.rel (0) target = $region25
    $region24: #{tpu_custom_call.1} parent=1 // pred_region
      %s69 = ssub.s32 8192, 8192
      %70 = vsyncadd [#allocation9], %s69
      %s71 = sshll.u32 [#allocation8], 4
      %s72 = int_to_ptr.vmem [resolvable:$true] %s71
      %77 = dma.hbm_to_vmem [thread:$0]  %s5, 8192, %s72, [#allocation9], 512, 512, 32
    $region25: #{tpu_custom_call.1} parent=1 // pred_fallthru
      _
    // Predicated region
    $region26: #{tpu_custom_call.1} parent=1 // pred_check
      _
    $region27: #{tpu_custom_call.1} parent=1 // pred_check_branch
      %79 = sbr.rel (0) target = $region29
    $region28: #{tpu_custom_call.1} parent=1 // pred_region
      %s81 = ssub.s32 8192, 8192
      %82 = vsyncadd [#allocation9], %s81
      %s83 = sshll.u32 [#allocation10], 4
      %s84 = int_to_ptr.vmem [resolvable:$true] %s83
      %89 = dma.hbm_to_vmem [thread:$0]  %s6, 8192, %s84, [#allocation9], 512, 512, 32
    $region29: #{tpu_custom_call.1} parent=1 // pred_fallthru
      _
    // Predicated region
    $region30: #{tpu_custom_call.1} parent=1 // pred_check
      _
    $region31: #{tpu_custom_call.1} parent=1 // pred_check_branch
      %91 = sbr.rel (0) target = $region33
    $region32: #{tpu_custom_call.1} parent=1 // pred_region
      _
    $region33: #{tpu_custom_call.1} parent=1 // pred_fallthru
      _
    // Predicated region
    $region34: #{tpu_custom_call.1} parent=1 // pred_check
      _
    $region35: #{tpu_custom_call.1} parent=1 // pred_check_branch
      %93 = sbr.rel (0) target = $region37
    $region36: #{tpu_custom_call.1} parent=1 // pred_region
      _
    $region37: #{tpu_custom_call.1} parent=1 // pred_fallthru
      _
    // Predicated region
    $region38: #{tpu_custom_call.1} parent=1 // pred_check
      _
    $region39: #{tpu_custom_call.1} parent=1 // pred_check_branch
      %95 = sbr.rel (0) target = $region41
    $region40: #{tpu_custom_call.1} parent=1 // pred_region
      _
    $region41: #{tpu_custom_call.1} parent=1 // pred_fallthru
      _
    // Predicated region
    $region42: #{tpu_custom_call.1} parent=1 // pred_check
      _
    $region43: #{tpu_custom_call.1} parent=1 // pred_check_branch
      %97 = sbr.rel (0) target = $region45
    $region44: #{tpu_custom_call.1} parent=1 // pred_region
      %s99 = ssub.s32 2048, 2048
      %100 = vsyncadd [#allocation12], %s99
      %s101 = sshll.u32 [#allocation11], 4
      %s102 = int_to_ptr.vmem [resolvable:$true] %s101
      %107 = dma.hbm_to_vmem [thread:$0]  %s10, 2048, %s102, [#allocation12], 128, 128, 8
    $region45: #{tpu_custom_call.1} parent=1 // pred_fallthru
      _
    // Predicated region
    $region46: #{tpu_custom_call.1} parent=1 // pred_check
      _
    $region47: #{tpu_custom_call.1} parent=1 // pred_check_branch
      %109 = sbr.rel (0) target = $region49
    $region48: #{tpu_custom_call.1} parent=1 // pred_region
      _
    $region49: #{tpu_custom_call.1} parent=1 // pred_fallthru
      _
    // Predicated region
    $region50: #{tpu_custom_call.1} parent=1 // pred_check
      _
    $region51: #{tpu_custom_call.1} parent=1 // pred_check_branch
      %111 = sbr.rel (0) target = $region53
    $region52: #{tpu_custom_call.1} parent=1 // pred_region
      _
    $region53: #{tpu_custom_call.1} parent=1 // pred_fallthru
      _
    // Predicated region
    $region54: #{tpu_custom_call.1} parent=1 // pred_check
      _
    $region55: #{tpu_custom_call.1} parent=1 // pred_check_branch
      %113 = sbr.rel (0) target = $region57
    $region56: #{tpu_custom_call.1} parent=1 // pred_region
      _
    $region57: #{tpu_custom_call.1} parent=1 // pred_fallthru
      _
    // Predicated region
    $region58: #{tpu_custom_call.1} parent=1 // pred_check
      _
    $region59: #{tpu_custom_call.1} parent=1 // pred_check_branch
      %115 = sbr.rel (0) target = $region61
    $region60: #{tpu_custom_call.1} parent=1 // pred_region
      %s117 = ssub.s32 2048, 2048
      %118 = vsyncadd [#allocation12], %s117
      %s119 = sshll.u32 [#allocation13], 4
      %s120 = int_to_ptr.vmem [resolvable:$true] %s119
      %125 = dma.hbm_to_vmem [thread:$0]  %s14, 2048, %s120, [#allocation12], 128, 128, 8
    $region61: #{tpu_custom_call.1} parent=1 // pred_fallthru
      _
    // Predicated region
    $region62: #{tpu_custom_call.1} parent=1 // pred_check
      _
    $region63: #{tpu_custom_call.1} parent=1 // pred_check_branch
      %127 = sbr.rel (0) target = $region65
    $region64: #{tpu_custom_call.1} parent=1 // pred_region
      _
    $region65: #{tpu_custom_call.1} parent=1 // pred_fallthru
      _
    // Predicated region
    $region66: #{tpu_custom_call.1} parent=1 // pred_check
      _
    $region67: #{tpu_custom_call.1} parent=1 // pred_check_branch
      %129 = sbr.rel (0) target = $region69
    $region68: #{tpu_custom_call.1} parent=1 // pred_region
      %130 = dma.done [#allocation3], 256
    $region69: #{tpu_custom_call.1} parent=1 // pred_fallthru
      _
    // Predicated region
    $region70: #{tpu_custom_call.1} parent=1 // pred_check
      _
    $region71: #{tpu_custom_call.1} parent=1 // pred_check_branch
      %132 = sbr.rel (0) target = $region73
    $region72: #{tpu_custom_call.1} parent=1 // pred_region
      %133 = dma.done [#allocation6], 8192
    $region73: #{tpu_custom_call.1} parent=1 // pred_fallthru
      _
    // Predicated region
    $region74: #{tpu_custom_call.1} parent=1 // pred_check
      _
    $region75: #{tpu_custom_call.1} parent=1 // pred_check_branch
      %135 = sbr.rel (0) target = $region77
    $region76: #{tpu_custom_call.1} parent=1 // pred_region
      %136 = dma.done [#allocation6], 8192
    $region77: #{tpu_custom_call.1} parent=1 // pred_fallthru
      _
    // Predicated region
    $region78: #{tpu_custom_call.1} parent=1 // pred_check
      _
    $region79: #{tpu_custom_call.1} parent=1 // pred_check_branch
      %138 = sbr.rel (0) target = $region81
    $region80: #{tpu_custom_call.1} parent=1 // pred_region
      %139 = dma.done [#allocation9], 8192
    $region81: #{tpu_custom_call.1} parent=1 // pred_fallthru
      _
    // Predicated region
    $region82: #{tpu_custom_call.1} parent=1 // pred_check
      _
    $region83: #{tpu_custom_call.1} parent=1 // pred_check_branch
      %141 = sbr.rel (0) target = $region85
    $region84: #{tpu_custom_call.1} parent=1 // pred_region
      %142 = dma.done [#allocation9], 8192
    $region85: #{tpu_custom_call.1} parent=1 // pred_fallthru
      _
    // Predicated region
    $region86: #{tpu_custom_call.1} parent=1 // pred_check
      _
    $region87: #{tpu_custom_call.1} parent=1 // pred_check_branch
      %144 = sbr.rel (0) target = $region89
    $region88: #{tpu_custom_call.1} parent=1 // pred_region
      %145 = dma.done [#allocation12], 2048
    $region89: #{tpu_custom_call.1} parent=1 // pred_fallthru
      _
    // Predicated region
    $region90: #{tpu_custom_call.1} parent=1 // pred_check
      _
    $region91: #{tpu_custom_call.1} parent=1 // pred_check_branch
      %147 = sbr.rel (0) target = $region93
    $region92: #{tpu_custom_call.1} parent=1 // pred_region
      %148 = dma.done [#allocation12], 2048
    $region93: #{tpu_custom_call.1} parent=1 // pred_fallthru
      _
    %v149 = vld [vmem:[%s1] sm:$0x3]
    %v150 = vld [vmem:[#allocation5] sm:$0xff]
    %v151 = vld [vmem:[#allocation5 + $0x8] sm:$0xff]
    %v152 = vld [vmem:[#allocation5 + $0x10] sm:$0xff]
    %v153 = vld [vmem:[#allocation5 + $0x18] sm:$0xff]
    %v154 = vld [vmem:[#allocation5 + $0x20] sm:$0xff]
    %v155 = vld [vmem:[#allocation5 + $0x28] sm:$0xff]
    %v156 = vld [vmem:[#allocation5 + $0x30] sm:$0xff]
    %v157 = vld [vmem:[#allocation5 + $0x38] sm:$0xff]
    %v158 = vld [vmem:[#allocation5 + $0x40] sm:$0xff]
    %v159 = vld [vmem:[#allocation5 + $0x48] sm:$0xff]
    %v160 = vld [vmem:[#allocation5 + $0x50] sm:$0xff]
    %v161 = vld [vmem:[#allocation5 + $0x58] sm:$0xff]
    %v162 = vld [vmem:[#allocation5 + $0x60] sm:$0xff]
    %v163 = vld [vmem:[#allocation5 + $0x68] sm:$0xff]
    %v164 = vld [vmem:[#allocation5 + $0x70] sm:$0xff]
    %v165 = vld [vmem:[#allocation5 + $0x78] sm:$0xff]
    %v166 = vld [vmem:[#allocation5 + $0x80] sm:$0xff]
    %v167 = vld [vmem:[#allocation5 + $0x88] sm:$0xff]
    %v168 = vld [vmem:[#allocation5 + $0x90] sm:$0xff]
    %v169 = vld [vmem:[#allocation5 + $0x98] sm:$0xff]
    %v170 = vld [vmem:[#allocation5 + $0xa0] sm:$0xff]
    %v171 = vld [vmem:[#allocation5 + $0xa8] sm:$0xff]
    %v172 = vld [vmem:[#allocation5 + $0xb0] sm:$0xff]
    %v173 = vld [vmem:[#allocation5 + $0xb8] sm:$0xff]
    %v174 = vld [vmem:[#allocation5 + $0xc0] sm:$0xff]
    %v175 = vld [vmem:[#allocation5 + $0xc8] sm:$0xff]
    %v176 = vld [vmem:[#allocation5 + $0xd0] sm:$0xff]
    %v177 = vld [vmem:[#allocation5 + $0xd8] sm:$0xff]
    %v178 = vld [vmem:[#allocation5 + $0xe0] sm:$0xff]
    %v179 = vld [vmem:[#allocation5 + $0xe8] sm:$0xff]
    %v180 = vld [vmem:[#allocation5 + $0xf0] sm:$0xff]
    %v181 = vld [vmem:[#allocation5 + $0xf8] sm:$0xff]
    %v182 = vld [vmem:[#allocation5 + $0x100] sm:$0xff]
    %v183 = vld [vmem:[#allocation5 + $0x108] sm:$0xff]
    %v184 = vld [vmem:[#allocation5 + $0x110] sm:$0xff]
    %v185 = vld [vmem:[#allocation5 + $0x118] sm:$0xff]
    %v186 = vld [vmem:[#allocation5 + $0x120] sm:$0xff]
    %v187 = vld [vmem:[#allocation5 + $0x128] sm:$0xff]
    %v188 = vld [vmem:[#allocation5 + $0x130] sm:$0xff]
    %v189 = vld [vmem:[#allocation5 + $0x138] sm:$0xff]
    %v190 = vld [vmem:[#allocation5 + $0x140] sm:$0xff]
    %v191 = vld [vmem:[#allocation5 + $0x148] sm:$0xff]
    %v192 = vld [vmem:[#allocation5 + $0x150] sm:$0xff]
    %v193 = vld [vmem:[#allocation5 + $0x158] sm:$0xff]
    %v194 = vld [vmem:[#allocation5 + $0x160] sm:$0xff]
    %v195 = vld [vmem:[#allocation5 + $0x168] sm:$0xff]
    %v196 = vld [vmem:[#allocation5 + $0x170] sm:$0xff]
    %v197 = vld [vmem:[#allocation5 + $0x178] sm:$0xff]
    %v198 = vld [vmem:[#allocation5 + $0x180] sm:$0xff]
    %v199 = vld [vmem:[#allocation5 + $0x188] sm:$0xff]
    %v200 = vld [vmem:[#allocation5 + $0x190] sm:$0xff]
    %v201 = vld [vmem:[#allocation5 + $0x198] sm:$0xff]
    %v202 = vld [vmem:[#allocation5 + $0x1a0] sm:$0xff]
    %v203 = vld [vmem:[#allocation5 + $0x1a8] sm:$0xff]
    %v204 = vld [vmem:[#allocation5 + $0x1b0] sm:$0xff]
    %v205 = vld [vmem:[#allocation5 + $0x1b8] sm:$0xff]
    %v206 = vld [vmem:[#allocation5 + $0x1c0] sm:$0xff]
    %v207 = vld [vmem:[#allocation5 + $0x1c8] sm:$0xff]
    %v208 = vld [vmem:[#allocation5 + $0x1d0] sm:$0xff]
    %v209 = vld [vmem:[#allocation5 + $0x1d8] sm:$0xff]
    %v210 = vld [vmem:[#allocation5 + $0x1e0] sm:$0xff]
    %v211 = vld [vmem:[#allocation5 + $0x1e8] sm:$0xff]
    %v212 = vld [vmem:[#allocation5 + $0x1f0] sm:$0xff]
    %v213 = vld [vmem:[#allocation5 + $0x1f8] sm:$0xff]
    %v214 = vld [vmem:[#allocation7] sm:$0xff]
    %v215 = vld [vmem:[#allocation7 + $0x8] sm:$0xff]
    %v216 = vld [vmem:[#allocation7 + $0x10] sm:$0xff]
    %v217 = vld [vmem:[#allocation7 + $0x18] sm:$0xff]
    %v218 = vld [vmem:[#allocation7 + $0x20] sm:$0xff]
    %v219 = vld [vmem:[#allocation7 + $0x28] sm:$0xff]
    %v220 = vld [vmem:[#allocation7 + $0x30] sm:$0xff]
    %v221 = vld [vmem:[#allocation7 + $0x38] sm:$0xff]
    %v222 = vld [vmem:[#allocation7 + $0x40] sm:$0xff]
    %v223 = vld [vmem:[#allocation7 + $0x48] sm:$0xff]
    %v224 = vld [vmem:[#allocation7 + $0x50] sm:$0xff]
    %v225 = vld [vmem:[#allocation7 + $0x58] sm:$0xff]
    %v226 = vld [vmem:[#allocation7 + $0x60] sm:$0xff]
    %v227 = vld [vmem:[#allocation7 + $0x68] sm:$0xff]
    %v228 = vld [vmem:[#allocation7 + $0x70] sm:$0xff]
    %v229 = vld [vmem:[#allocation7 + $0x78] sm:$0xff]
    %v230 = vld [vmem:[#allocation7 + $0x80] sm:$0xff]
    %v231 = vld [vmem:[#allocation7 + $0x88] sm:$0xff]
    %v232 = vld [vmem:[#allocation7 + $0x90] sm:$0xff]
    %v233 = vld [vmem:[#allocation7 + $0x98] sm:$0xff]
    %v234 = vld [vmem:[#allocation7 + $0xa0] sm:$0xff]
    %v235 = vld [vmem:[#allocation7 + $0xa8] sm:$0xff]
    %v236 = vld [vmem:[#allocation7 + $0xb0] sm:$0xff]
    %v237 = vld [vmem:[#allocation7 + $0xb8] sm:$0xff]
    %v238 = vld [vmem:[#allocation7 + $0xc0] sm:$0xff]
    %v239 = vld [vmem:[#allocation7 + $0xc8] sm:$0xff]
    %v240 = vld [vmem:[#allocation7 + $0xd0] sm:$0xff]
    %v241 = vld [vmem:[#allocation7 + $0xd8] sm:$0xff]
    %v242 = vld [vmem:[#allocation7 + $0xe0] sm:$0xff]
    %v243 = vld [vmem:[#allocation7 + $0xe8] sm:$0xff]
    %v244 = vld [vmem:[#allocation7 + $0xf0] sm:$0xff]
    %v245 = vld [vmem:[#allocation7 + $0xf8] sm:$0xff]
    %v246 = vld [vmem:[#allocation7 + $0x100] sm:$0xff]
    %v247 = vld [vmem:[#allocation7 + $0x108] sm:$0xff]
    %v248 = vld [vmem:[#allocation7 + $0x110] sm:$0xff]
    %v249 = vld [vmem:[#allocation7 + $0x118] sm:$0xff]
    %v250 = vld [vmem:[#allocation7 + $0x120] sm:$0xff]
    %v251 = vld [vmem:[#allocation7 + $0x128] sm:$0xff]
    %v252 = vld [vmem:[#allocation7 + $0x130] sm:$0xff]
    %v253 = vld [vmem:[#allocation7 + $0x138] sm:$0xff]
    %v254 = vld [vmem:[#allocation7 + $0x140] sm:$0xff]
    %v255 = vld [vmem:[#allocation7 + $0x148] sm:$0xff]
    %v256 = vld [vmem:[#allocation7 + $0x150] sm:$0xff]
    %v257 = vld [vmem:[#allocation7 + $0x158] sm:$0xff]
    %v258 = vld [vmem:[#allocation7 + $0x160] sm:$0xff]
    %v259 = vld [vmem:[#allocation7 + $0x168] sm:$0xff]
    %v260 = vld [vmem:[#allocation7 + $0x170] sm:$0xff]
    %v261 = vld [vmem:[#allocation7 + $0x178] sm:$0xff]
    %v262 = vld [vmem:[#allocation7 + $0x180] sm:$0xff]
    %v263 = vld [vmem:[#allocation7 + $0x188] sm:$0xff]
    %v264 = vld [vmem:[#allocation7 + $0x190] sm:$0xff]
    %v265 = vld [vmem:[#allocation7 + $0x198] sm:$0xff]
    %v266 = vld [vmem:[#allocation7 + $0x1a0] sm:$0xff]
    %v267 = vld [vmem:[#allocation7 + $0x1a8] sm:$0xff]
    %v268 = vld [vmem:[#allocation7 + $0x1b0] sm:$0xff]
    %v269 = vld [vmem:[#allocation7 + $0x1b8] sm:$0xff]
    %v270 = vld [vmem:[#allocation7 + $0x1c0] sm:$0xff]
    %v271 = vld [vmem:[#allocation7 + $0x1c8] sm:$0xff]
    %v272 = vld [vmem:[#allocation7 + $0x1d0] sm:$0xff]
    %v273 = vld [vmem:[#allocation7 + $0x1d8] sm:$0xff]
    %v274 = vld [vmem:[#allocation7 + $0x1e0] sm:$0xff]
    %v275 = vld [vmem:[#allocation7 + $0x1e8] sm:$0xff]
    %v276 = vld [vmem:[#allocation7 + $0x1f0] sm:$0xff]
    %v277 = vld [vmem:[#allocation7 + $0x1f8] sm:$0xff]
    %v278 = vld [vmem:[#allocation8] sm:$0xff]
    %v279 = vld [vmem:[#allocation8 + $0x8] sm:$0xff]
    %v280 = vld [vmem:[#allocation8 + $0x10] sm:$0xff]
    %v281 = vld [vmem:[#allocation8 + $0x18] sm:$0xff]
    %v282 = vld [vmem:[#allocation8 + $0x20] sm:$0xff]
    %v283 = vld [vmem:[#allocation8 + $0x28] sm:$0xff]
    %v284 = vld [vmem:[#allocation8 + $0x30] sm:$0xff]
    %v285 = vld [vmem:[#allocation8 + $0x38] sm:$0xff]
    %v286 = vld [vmem:[#allocation8 + $0x40] sm:$0xff]
    %v287 = vld [vmem:[#allocation8 + $0x48] sm:$0xff]
    %v288 = vld [vmem:[#allocation8 + $0x50] sm:$0xff]
    %v289 = vld [vmem:[#allocation8 + $0x58] sm:$0xff]
    %v290 = vld [vmem:[#allocation8 + $0x60] sm:$0xff]
    %v291 = vld [vmem:[#allocation8 + $0x68] sm:$0xff]
    %v292 = vld [vmem:[#allocation8 + $0x70] sm:$0xff]
    %v293 = vld [vmem:[#allocation8 + $0x78] sm:$0xff]
    %v294 = vld [vmem:[#allocation8 + $0x80] sm:$0xff]
    %v295 = vld [vmem:[#allocation8 + $0x88] sm:$0xff]
    %v296 = vld [vmem:[#allocation8 + $0x90] sm:$0xff]
    %v297 = vld [vmem:[#allocation8 + $0x98] sm:$0xff]
    %v298 = vld [vmem:[#allocation8 + $0xa0] sm:$0xff]
    %v299 = vld [vmem:[#allocation8 + $0xa8] sm:$0xff]
    %v300 = vld [vmem:[#allocation8 + $0xb0] sm:$0xff]
    %v301 = vld [vmem:[#allocation8 + $0xb8] sm:$0xff]
    %v302 = vld [vmem:[#allocation8 + $0xc0] sm:$0xff]
    %v303 = vld [vmem:[#allocation8 + $0xc8] sm:$0xff]
    %v304 = vld [vmem:[#allocation8 + $0xd0] sm:$0xff]
    %v305 = vld [vmem:[#allocation8 + $0xd8] sm:$0xff]
    %v306 = vld [vmem:[#allocation8 + $0xe0] sm:$0xff]
    %v307 = vld [vmem:[#allocation8 + $0xe8] sm:$0xff]
    %v308 = vld [vmem:[#allocation8 + $0xf0] sm:$0xff]
    %v309 = vld [vmem:[#allocation8 + $0xf8] sm:$0xff]
    %v310 = vld [vmem:[#allocation8 + $0x100] sm:$0xff]
    %v311 = vld [vmem:[#allocation8 + $0x108] sm:$0xff]
    %v312 = vld [vmem:[#allocation8 + $0x110] sm:$0xff]
    %v313 = vld [vmem:[#allocation8 + $0x118] sm:$0xff]
    %v314 = vld [vmem:[#allocation8 + $0x120] sm:$0xff]
    %v315 = vld [vmem:[#allocation8 + $0x128] sm:$0xff]
    %v316 = vld [vmem:[#allocation8 + $0x130] sm:$0xff]
    %v317 = vld [vmem:[#allocation8 + $0x138] sm:$0xff]
    %v318 = vld [vmem:[#allocation8 + $0x140] sm:$0xff]
    %v319 = vld [vmem:[#allocation8 + $0x148] sm:$0xff]
    %v320 = vld [vmem:[#allocation8 + $0x150] sm:$0xff]
    %v321 = vld [vmem:[#allocation8 + $0x158] sm:$0xff]
    %v322 = vld [vmem:[#allocation8 + $0x160] sm:$0xff]
    %v323 = vld [vmem:[#allocation8 + $0x168] sm:$0xff]
    %v324 = vld [vmem:[#allocation8 + $0x170] sm:$0xff]
    %v325 = vld [vmem:[#allocation8 + $0x178] sm:$0xff]
    %v326 = vld [vmem:[#allocation8 + $0x180] sm:$0xff]
    %v327 = vld [vmem:[#allocation8 + $0x188] sm:$0xff]
    %v328 = vld [vmem:[#allocation8 + $0x190] sm:$0xff]
    %v329 = vld [vmem:[#allocation8 + $0x198] sm:$0xff]
    %v330 = vld [vmem:[#allocation8 + $0x1a0] sm:$0xff]
    %v331 = vld [vmem:[#allocation8 + $0x1a8] sm:$0xff]
    %v332 = vld [vmem:[#allocation8 + $0x1b0] sm:$0xff]
    %v333 = vld [vmem:[#allocation8 + $0x1b8] sm:$0xff]
    %v334 = vld [vmem:[#allocation8 + $0x1c0] sm:$0xff]
    %v335 = vld [vmem:[#allocation8 + $0x1c8] sm:$0xff]
    %v336 = vld [vmem:[#allocation8 + $0x1d0] sm:$0xff]
    %v337 = vld [vmem:[#allocation8 + $0x1d8] sm:$0xff]
    %v338 = vld [vmem:[#allocation8 + $0x1e0] sm:$0xff]
    %v339 = vld [vmem:[#allocation8 + $0x1e8] sm:$0xff]
    %v340 = vld [vmem:[#allocation8 + $0x1f0] sm:$0xff]
    %v341 = vld [vmem:[#allocation8 + $0x1f8] sm:$0xff]
    %v342 = vld [vmem:[#allocation10] sm:$0xff]
    %v343 = vld [vmem:[#allocation10 + $0x8] sm:$0xff]
    %v344 = vld [vmem:[#allocation10 + $0x10] sm:$0xff]
    %v345 = vld [vmem:[#allocation10 + $0x18] sm:$0xff]
    %v346 = vld [vmem:[#allocation10 + $0x20] sm:$0xff]
    %v347 = vld [vmem:[#allocation10 + $0x28] sm:$0xff]
    %v348 = vld [vmem:[#allocation10 + $0x30] sm:$0xff]
    %v349 = vld [vmem:[#allocation10 + $0x38] sm:$0xff]
    %v350 = vld [vmem:[#allocation10 + $0x40] sm:$0xff]
    %v351 = vld [vmem:[#allocation10 + $0x48] sm:$0xff]
    %v352 = vld [vmem:[#allocation10 + $0x50] sm:$0xff]
    %v353 = vld [vmem:[#allocation10 + $0x58] sm:$0xff]
    %v354 = vld [vmem:[#allocation10 + $0x60] sm:$0xff]
    %v355 = vld [vmem:[#allocation10 + $0x68] sm:$0xff]
    %v356 = vld [vmem:[#allocation10 + $0x70] sm:$0xff]
    %v357 = vld [vmem:[#allocation10 + $0x78] sm:$0xff]
    %v358 = vld [vmem:[#allocation10 + $0x80] sm:$0xff]
    %v359 = vld [vmem:[#allocation10 + $0x88] sm:$0xff]
    %v360 = vld [vmem:[#allocation10 + $0x90] sm:$0xff]
    %v361 = vld [vmem:[#allocation10 + $0x98] sm:$0xff]
    %v362 = vld [vmem:[#allocation10 + $0xa0] sm:$0xff]
    %v363 = vld [vmem:[#allocation10 + $0xa8] sm:$0xff]
    %v364 = vld [vmem:[#allocation10 + $0xb0] sm:$0xff]
    %v365 = vld [vmem:[#allocation10 + $0xb8] sm:$0xff]
    %v366 = vld [vmem:[#allocation10 + $0xc0] sm:$0xff]
    %v367 = vld [vmem:[#allocation10 + $0xc8] sm:$0xff]
    %v368 = vld [vmem:[#allocation10 + $0xd0] sm:$0xff]
    %v369 = vld [vmem:[#allocation10 + $0xd8] sm:$0xff]
    %v370 = vld [vmem:[#allocation10 + $0xe0] sm:$0xff]
    %v371 = vld [vmem:[#allocation10 + $0xe8] sm:$0xff]
    %v372 = vld [vmem:[#allocation10 + $0xf0] sm:$0xff]
    %v373 = vld [vmem:[#allocation10 + $0xf8] sm:$0xff]
    %v374 = vld [vmem:[#allocation10 + $0x100] sm:$0xff]
    %v375 = vld [vmem:[#allocation10 + $0x108] sm:$0xff]
    %v376 = vld [vmem:[#allocation10 + $0x110] sm:$0xff]
    %v377 = vld [vmem:[#allocation10 + $0x118] sm:$0xff]
    %v378 = vld [vmem:[#allocation10 + $0x120] sm:$0xff]
    %v379 = vld [vmem:[#allocation10 + $0x128] sm:$0xff]
    %v380 = vld [vmem:[#allocation10 + $0x130] sm:$0xff]
    %v381 = vld [vmem:[#allocation10 + $0x138] sm:$0xff]
    %v382 = vld [vmem:[#allocation10 + $0x140] sm:$0xff]
    %v383 = vld [vmem:[#allocation10 + $0x148] sm:$0xff]
    %v384 = vld [vmem:[#allocation10 + $0x150] sm:$0xff]
    %v385 = vld [vmem:[#allocation10 + $0x158] sm:$0xff]
    %v386 = vld [vmem:[#allocation10 + $0x160] sm:$0xff]
    %v387 = vld [vmem:[#allocation10 + $0x168] sm:$0xff]
    %v388 = vld [vmem:[#allocation10 + $0x170] sm:$0xff]
    %v389 = vld [vmem:[#allocation10 + $0x178] sm:$0xff]
    %v390 = vld [vmem:[#allocation10 + $0x180] sm:$0xff]
    %v391 = vld [vmem:[#allocation10 + $0x188] sm:$0xff]
    %v392 = vld [vmem:[#allocation10 + $0x190] sm:$0xff]
    %v393 = vld [vmem:[#allocation10 + $0x198] sm:$0xff]
    %v394 = vld [vmem:[#allocation10 + $0x1a0] sm:$0xff]
    %v395 = vld [vmem:[#allocation10 + $0x1a8] sm:$0xff]
    %v396 = vld [vmem:[#allocation10 + $0x1b0] sm:$0xff]
    %v397 = vld [vmem:[#allocation10 + $0x1b8] sm:$0xff]
    %v398 = vld [vmem:[#allocation10 + $0x1c0] sm:$0xff]
    %v399 = vld [vmem:[#allocation10 + $0x1c8] sm:$0xff]
    %v400 = vld [vmem:[#allocation10 + $0x1d0] sm:$0xff]
    %v401 = vld [vmem:[#allocation10 + $0x1d8] sm:$0xff]
    %v402 = vld [vmem:[#allocation10 + $0x1e0] sm:$0xff]
    %v403 = vld [vmem:[#allocation10 + $0x1e8] sm:$0xff]
    %v404 = vld [vmem:[#allocation10 + $0x1f0] sm:$0xff]
    %v405 = vld [vmem:[#allocation10 + $0x1f8] sm:$0xff]
    %v406 = vld [vmem:[%s4] sm:$0xf]
    %v408 = vlaneseq
    %v409 = vshrl.u32 %v408, 7
    %v410 = vsub.s32 0, %v409
    %v411 = vrot.slane %v406, %v410
    %v412 = vlaneseq
    %v413 = vshrl.u32 %v412, 7
    %v414 = vsub.s32 1, %v413
    %v415 = vrot.slane %v406, %v414
    %v416 = vlaneseq
    %v417 = vshrl.u32 %v416, 7
    %v418 = vsub.s32 2, %v417
    %v419 = vrot.slane %v406, %v418
    %v420 = vlaneseq
    %v421 = vshrl.u32 %v420, 7
    %v422 = vsub.s32 3, %v421
    %v423 = vrot.slane %v406, %v422
    %v428 = vld [vmem:[%s7] sm:$0xf]
    %v430 = vlaneseq
    %v431 = vshrl.u32 %v430, 7
    %v432 = vsub.s32 0, %v431
    %v433 = vrot.slane %v428, %v432
    %v434 = vlaneseq
    %v435 = vshrl.u32 %v434, 7
    %v436 = vsub.s32 1, %v435
    %v437 = vrot.slane %v428, %v436
    %v438 = vlaneseq
    %v439 = vshrl.u32 %v438, 7
    %v440 = vsub.s32 2, %v439
    %v441 = vrot.slane %v428, %v440
    %v442 = vlaneseq
    %v443 = vshrl.u32 %v442, 7
    %v444 = vsub.s32 3, %v443
    %v445 = vrot.slane %v428, %v444
    %vm450 = vcmp.gt.s32.totalorder %v149, 0
    %v451 = vld [vmem:[#allocation2] sm:$0x3]
    %452 = vmatprep.subr.mxu0 %v151
    %453 = vmatpush1.msra.mxu0 %v150
    %454 = vmatprep.subr.mxu0 %v155
    %455 = vmatpush1.msra.mxu0 %v154
    %456 = vmatprep.subr.mxu0 %v159
    %457 = vmatpush1.msra.mxu0 %v158
    %458 = vmatprep.subr.mxu0 %v163
    %459 = vmatpush1.msra.mxu0 %v162
    %460 = vmatprep.subr.mxu0 %v167
    %461 = vmatpush1.msra.mxu0 %v166
    %462 = vmatprep.subr.mxu0 %v171
    %463 = vmatpush1.msra.mxu0 %v170
    %464 = vmatprep.subr.mxu0 %v175
    %465 = vmatpush1.msra.mxu0 %v174
    %466 = vmatprep.subr.mxu0 %v179
    %467 = vmatpush1.msra.mxu0 %v178
    %468 = vmatprep.subr.mxu0 %v183
    %469 = vmatpush1.msra.mxu0 %v182
    %470 = vmatprep.subr.mxu0 %v187
    %471 = vmatpush1.msra.mxu0 %v186
    %472 = vmatprep.subr.mxu0 %v191
    %473 = vmatpush1.msra.mxu0 %v190
    %474 = vmatprep.subr.mxu0 %v195
    %475 = vmatpush1.msra.mxu0 %v194
    %476 = vmatprep.subr.mxu0 %v199
    %477 = vmatpush1.msra.mxu0 %v198
    %478 = vmatprep.subr.mxu0 %v203
    %479 = vmatpush1.msra.mxu0 %v202
    %480 = vmatprep.subr.mxu0 %v207
    %481 = vmatpush1.msra.mxu0 %v206
    %482 = vmatprep.subr.mxu0 %v211
    %483 = vmatpush1.msra.mxu0 %v210
    %484 = vmatprep.subr.mxu0 0.0
    %485 = vmatpush1.msra.mxu0 0.0
    %486 = vmatprep.subr.mxu0 0.0
    %487 = vmatpush1.msra.mxu0 0.0
    %488 = vmatprep.subr.mxu0 0.0
    %489 = vmatpush1.msra.mxu0 0.0
    %490 = vmatprep.subr.mxu0 0.0
    %491 = vmatpush1.msra.mxu0 0.0
    %492 = vmatprep.subr.mxu0 0.0
    %493 = vmatpush1.msra.mxu0 0.0
    %494 = vmatprep.subr.mxu0 0.0
    %495 = vmatpush1.msra.mxu0 0.0
    %496 = vmatprep.subr.mxu0 0.0
    %497 = vmatpush1.msra.mxu0 0.0
    %498 = vmatprep.subr.mxu0 0.0
    %499 = vmatpush1.msra.mxu0 0.0
    %500 = vmatprep.subr.mxu0 0.0
    %501 = vmatpush1.msra.mxu0 0.0
    %502 = vmatprep.subr.mxu0 0.0
    %503 = vmatpush1.msra.mxu0 0.0
    %504 = vmatprep.subr.mxu0 0.0
    %505 = vmatpush1.msra.mxu0 0.0
    %506 = vmatprep.subr.mxu0 0.0
    %507 = vmatpush1.msra.mxu0 0.0
    %508 = vmatprep.subr.mxu0 0.0
    %509 = vmatpush1.msra.mxu0 0.0
    %510 = vmatprep.subr.mxu0 0.0
    %511 = vmatpush1.msra.mxu0 0.0
    %512 = vmatprep.subr.mxu0 0.0
    %513 = vmatpush1.msra.mxu0 0.0
    %514 = vmatprep.subr.mxu0 0.0
    %515 = vmatpush1.msra.mxu0 0.0
    %516 = vmatprep.mubr.f32.mxu0 0.0
    %517 = vmatmul.mubr.f32.gmra.mrb[0].mxu0 %v451
    %v518 = vpop.f32.mrb[0].mxu0
    %v519 = vadd.f32 %v411, %v518
    %v520 = vpop.f32.mrb[0].mxu0
    %v521 = vadd.f32 %v415, %v520
    %522 = vdwg.mxu0
    %523 = vmatprep.subr.mxu0 %v153
    %524 = vmatpush1.msra.mxu0 %v152
    %525 = vmatprep.subr.mxu0 %v157
    %526 = vmatpush1.msra.mxu0 %v156
    %527 = vmatprep.subr.mxu0 %v161
    %528 = vmatpush1.msra.mxu0 %v160
    %529 = vmatprep.subr.mxu0 %v165
    %530 = vmatpush1.msra.mxu0 %v164
    %531 = vmatprep.subr.mxu0 %v169
    %532 = vmatpush1.msra.mxu0 %v168
    %533 = vmatprep.subr.mxu0 %v173
    %534 = vmatpush1.msra.mxu0 %v172
    %535 = vmatprep.subr.mxu0 %v177
    %536 = vmatpush1.msra.mxu0 %v176
    %537 = vmatprep.subr.mxu0 %v181
    %538 = vmatpush1.msra.mxu0 %v180
    %539 = vmatprep.subr.mxu0 %v185
    %540 = vmatpush1.msra.mxu0 %v184
    %541 = vmatprep.subr.mxu0 %v189
    %542 = vmatpush1.msra.mxu0 %v188
    %543 = vmatprep.subr.mxu0 %v193
    %544 = vmatpush1.msra.mxu0 %v192
    %545 = vmatprep.subr.mxu0 %v197
    %546 = vmatpush1.msra.mxu0 %v196
    %547 = vmatprep.subr.mxu0 %v201
    %548 = vmatpush1.msra.mxu0 %v200
    %549 = vmatprep.subr.mxu0 %v205
    %550 = vmatpush1.msra.mxu0 %v204
    %551 = vmatprep.subr.mxu0 %v209
    %552 = vmatpush1.msra.mxu0 %v208
    %553 = vmatprep.subr.mxu0 %v213
    %554 = vmatpush1.msra.mxu0 %v212
    %555 = vmatprep.subr.mxu0 0.0
    %556 = vmatpush1.msra.mxu0 0.0
    %557 = vmatprep.subr.mxu0 0.0
    %558 = vmatpush1.msra.mxu0 0.0
    %559 = vmatprep.subr.mxu0 0.0
    %560 = vmatpush1.msra.mxu0 0.0
    %561 = vmatprep.subr.mxu0 0.0
    %562 = vmatpush1.msra.mxu0 0.0
    %563 = vmatprep.subr.mxu0 0.0
    %564 = vmatpush1.msra.mxu0 0.0
    %565 = vmatprep.subr.mxu0 0.0
    %566 = vmatpush1.msra.mxu0 0.0
    %567 = vmatprep.subr.mxu0 0.0
    %568 = vmatpush1.msra.mxu0 0.0
    %569 = vmatprep.subr.mxu0 0.0
    %570 = vmatpush1.msra.mxu0 0.0
    %571 = vmatprep.subr.mxu0 0.0
    %572 = vmatpush1.msra.mxu0 0.0
    %573 = vmatprep.subr.mxu0 0.0
    %574 = vmatpush1.msra.mxu0 0.0
    %575 = vmatprep.subr.mxu0 0.0
    %576 = vmatpush1.msra.mxu0 0.0
    %577 = vmatprep.subr.mxu0 0.0
    %578 = vmatpush1.msra.mxu0 0.0
    %579 = vmatprep.subr.mxu0 0.0
    %580 = vmatpush1.msra.mxu0 0.0
    %581 = vmatprep.subr.mxu0 0.0
    %582 = vmatpush1.msra.mxu0 0.0
    %583 = vmatprep.subr.mxu0 0.0
    %584 = vmatpush1.msra.mxu0 0.0
    %585 = vmatprep.subr.mxu0 0.0
    %586 = vmatpush1.msra.mxu0 0.0
    %587 = vmatprep.mubr.f32.mxu0 0.0
    %588 = vmatmul.mubr.f32.gmra.mrb[0].mxu0 %v451
    %v589 = vpop.f32.mrb[0].mxu0
    %v590 = vadd.f32 %v419, %v589
    %v591 = vpop.f32.mrb[0].mxu0
    %v592 = vadd.f32 %v423, %v591
    %593 = vdwg.mxu0
    %594 = vmatprep.subr.mxu0 %v215
    %595 = vmatpush1.msra.mxu0 %v214
    %596 = vmatprep.subr.mxu0 %v219
    %597 = vmatpush1.msra.mxu0 %v218
    %598 = vmatprep.subr.mxu0 %v223
    %599 = vmatpush1.msra.mxu0 %v222
    %600 = vmatprep.subr.mxu0 %v227
    %601 = vmatpush1.msra.mxu0 %v226
    %602 = vmatprep.subr.mxu0 %v231
    %603 = vmatpush1.msra.mxu0 %v230
    %604 = vmatprep.subr.mxu0 %v235
    %605 = vmatpush1.msra.mxu0 %v234
    %606 = vmatprep.subr.mxu0 %v239
    %607 = vmatpush1.msra.mxu0 %v238
    %608 = vmatprep.subr.mxu0 %v243
    %609 = vmatpush1.msra.mxu0 %v242
    %610 = vmatprep.subr.mxu0 %v247
    %611 = vmatpush1.msra.mxu0 %v246
    %612 = vmatprep.subr.mxu0 %v251
    %613 = vmatpush1.msra.mxu0 %v250
    %614 = vmatprep.subr.mxu0 %v255
    %615 = vmatpush1.msra.mxu0 %v254
    %616 = vmatprep.subr.mxu0 %v259
    %617 = vmatpush1.msra.mxu0 %v258
    %618 = vmatprep.subr.mxu0 %v263
    %619 = vmatpush1.msra.mxu0 %v262
    %620 = vmatprep.subr.mxu0 %v267
    %621 = vmatpush1.msra.mxu0 %v266
    %622 = vmatprep.subr.mxu0 %v271
    %623 = vmatpush1.msra.mxu0 %v270
    %624 = vmatprep.subr.mxu0 %v275
    %625 = vmatpush1.msra.mxu0 %v274
    %626 = vmatprep.subr.mxu0 0.0
    %627 = vmatpush1.msra.mxu0 0.0
    %628 = vmatprep.subr.mxu0 0.0
    %629 = vmatpush1.msra.mxu0 0.0
    %630 = vmatprep.subr.mxu0 0.0
    %631 = vmatpush1.msra.mxu0 0.0
    %632 = vmatprep.subr.mxu0 0.0
    %633 = vmatpush1.msra.mxu0 0.0
    %634 = vmatprep.subr.mxu0 0.0
    %635 = vmatpush1.msra.mxu0 0.0
    %636 = vmatprep.subr.mxu0 0.0
    %637 = vmatpush1.msra.mxu0 0.0
    %638 = vmatprep.subr.mxu0 0.0
    %639 = vmatpush1.msra.mxu0 0.0
    %640 = vmatprep.subr.mxu0 0.0
    %641 = vmatpush1.msra.mxu0 0.0
    %642 = vmatprep.subr.mxu0 0.0
    %643 = vmatpush1.msra.mxu0 0.0
    %644 = vmatprep.subr.mxu0 0.0
    %645 = vmatpush1.msra.mxu0 0.0
    %646 = vmatprep.subr.mxu0 0.0
    %647 = vmatpush1.msra.mxu0 0.0
    %648 = vmatprep.subr.mxu0 0.0
    %649 = vmatpush1.msra.mxu0 0.0
    %650 = vmatprep.subr.mxu0 0.0
    %651 = vmatpush1.msra.mxu0 0.0
    %652 = vmatprep.subr.mxu0 0.0
    %653 = vmatpush1.msra.mxu0 0.0
    %654 = vmatprep.subr.mxu0 0.0
    %655 = vmatpush1.msra.mxu0 0.0
    %656 = vmatprep.subr.mxu0 0.0
    %657 = vmatpush1.msra.mxu0 0.0
    %658 = vmatprep.mubr.f32.mxu0 0.0
    %659 = vmatmul.mubr.f32.gmra.mrb[0].mxu0 0.0
    %v660 = vpop.f32.mrb[0].mxu0
    %v661 = vadd.f32 0.0, %v660
    %v662 = vpop.f32.mrb[0].mxu0
    %v663 = vadd.f32 0.0, %v662
    %664 = vdwg.mxu0
    %665 = vmatprep.subr.mxu0 %v217
    %666 = vmatpush1.msra.mxu0 %v216
    %667 = vmatprep.subr.mxu0 %v221
    %668 = vmatpush1.msra.mxu0 %v220
    %669 = vmatprep.subr.mxu0 %v225
    %670 = vmatpush1.msra.mxu0 %v224
    %671 = vmatprep.subr.mxu0 %v229
    %672 = vmatpush1.msra.mxu0 %v228
    %673 = vmatprep.subr.mxu0 %v233
    %674 = vmatpush1.msra.mxu0 %v232
    %675 = vmatprep.subr.mxu0 %v237
    %676 = vmatpush1.msra.mxu0 %v236
    %677 = vmatprep.subr.mxu0 %v241
    %678 = vmatpush1.msra.mxu0 %v240
    %679 = vmatprep.subr.mxu0 %v245
    %680 = vmatpush1.msra.mxu0 %v244
    %681 = vmatprep.subr.mxu0 %v249
    %682 = vmatpush1.msra.mxu0 %v248
    %683 = vmatprep.subr.mxu0 %v253
    %684 = vmatpush1.msra.mxu0 %v252
    %685 = vmatprep.subr.mxu0 %v257
    %686 = vmatpush1.msra.mxu0 %v256
    %687 = vmatprep.subr.mxu0 %v261
    %688 = vmatpush1.msra.mxu0 %v260
    %689 = vmatprep.subr.mxu0 %v265
    %690 = vmatpush1.msra.mxu0 %v264
    %691 = vmatprep.subr.mxu0 %v269
    %692 = vmatpush1.msra.mxu0 %v268
    %693 = vmatprep.subr.mxu0 %v273
    %694 = vmatpush1.msra.mxu0 %v272
    %695 = vmatprep.subr.mxu0 %v277
    %696 = vmatpush1.msra.mxu0 %v276
    %697 = vmatprep.subr.mxu0 0.0
    %698 = vmatpush1.msra.mxu0 0.0
    %699 = vmatprep.subr.mxu0 0.0
    %700 = vmatpush1.msra.mxu0 0.0
    %701 = vmatprep.subr.mxu0 0.0
    %702 = vmatpush1.msra.mxu0 0.0
    %703 = vmatprep.subr.mxu0 0.0
    %704 = vmatpush1.msra.mxu0 0.0
    %705 = vmatprep.subr.mxu0 0.0
    %706 = vmatpush1.msra.mxu0 0.0
    %707 = vmatprep.subr.mxu0 0.0
    %708 = vmatpush1.msra.mxu0 0.0
    %709 = vmatprep.subr.mxu0 0.0
    %710 = vmatpush1.msra.mxu0 0.0
    %711 = vmatprep.subr.mxu0 0.0
    %712 = vmatpush1.msra.mxu0 0.0
    %713 = vmatprep.subr.mxu0 0.0
    %714 = vmatpush1.msra.mxu0 0.0
    %715 = vmatprep.subr.mxu0 0.0
    %716 = vmatpush1.msra.mxu0 0.0
    %717 = vmatprep.subr.mxu0 0.0
    %718 = vmatpush1.msra.mxu0 0.0
    %719 = vmatprep.subr.mxu0 0.0
    %720 = vmatpush1.msra.mxu0 0.0
    %721 = vmatprep.subr.mxu0 0.0
    %722 = vmatpush1.msra.mxu0 0.0
    %723 = vmatprep.subr.mxu0 0.0
    %724 = vmatpush1.msra.mxu0 0.0
    %725 = vmatprep.subr.mxu0 0.0
    %726 = vmatpush1.msra.mxu0 0.0
    %727 = vmatprep.subr.mxu0 0.0
    %728 = vmatpush1.msra.mxu0 0.0
    %729 = vmatprep.mubr.f32.mxu0 0.0
    %730 = vmatmul.mubr.f32.gmra.mrb[0].mxu0 0.0
    %v731 = vpop.f32.mrb[0].mxu0
    %v732 = vadd.f32 0.0, %v731
    %v733 = vpop.f32.mrb[0].mxu0
    %v734 = vadd.f32 0.0, %v733
    %735 = vdwg.mxu0
    %v736 = vadd.f32 %v519, %v661
    %v737 = vadd.f32 %v521, %v663
    %v738 = vadd.f32 %v590, %v732
    %v739 = vadd.f32 %v592, %v734
    %v740 = vxor.u32 %v736, 2147483648
    %v741 = vmul.f32 %v740, 1.442695
    %v742 = vpow.pop %v741
    %v743 = vadd.f32 %v742, 1.0
    %v744 = vrcp.pop %v743
    %v745 = vmul.f32 1.0, %v744
    %v746 = vxor.u32 %v737, 2147483648
    %v747 = vmul.f32 %v746, 1.442695
    %v748 = vpow.pop %v747
    %v749 = vadd.f32 %v748, 1.0
    %v750 = vrcp.pop %v749
    %v751 = vmul.f32 1.0, %v750
    %v752 = vtanh.pop %v738
    %v753 = vxor.u32 %v739, 2147483648
    %v754 = vmul.f32 %v753, 1.442695
    %v755 = vpow.pop %v754
    %v756 = vadd.f32 %v755, 1.0
    %v757 = vrcp.pop %v756
    %v758 = vmul.f32 1.0, %v757
    %v759 = vmul.f32 %v751, 0.0
    %v760 = vmul.f32 %v745, %v752
    %v761 = vadd.f32 %v759, %v760
    %v762 = vtanh.pop %v761
    %v763 = vmul.f32 %v758, %v762
    %v764 = vsel %vm450, 1, 0
    %765 = vset.pattern.permute.xlu0 0
    %766 = vperm.xlu0 %765, %v764
    %v767 = vpop.permute.xlu0 %766
    %vm768 = vcmp.eq.s32.totalorder %v767, 1
    %v769 = vsel %vm768, %v763, 0.0
    %v770 = vsel %vm768, %v761, 0.0
    %771 = vmatprep.subr.mxu0 %v343
    %772 = vmatpush1.msra.mxu0 %v342
    %773 = vmatprep.subr.mxu0 %v347
    %774 = vmatpush1.msra.mxu0 %v346
    %775 = vmatprep.subr.mxu0 %v351
    %776 = vmatpush1.msra.mxu0 %v350
    %777 = vmatprep.subr.mxu0 %v355
    %778 = vmatpush1.msra.mxu0 %v354
    %779 = vmatprep.subr.mxu0 %v359
    %780 = vmatpush1.msra.mxu0 %v358
    %781 = vmatprep.subr.mxu0 %v363
    %782 = vmatpush1.msra.mxu0 %v362
    %783 = vmatprep.subr.mxu0 %v367
    %784 = vmatpush1.msra.mxu0 %v366
    %785 = vmatprep.subr.mxu0 %v371
    %786 = vmatpush1.msra.mxu0 %v370
    %787 = vmatprep.subr.mxu0 %v375
    %788 = vmatpush1.msra.mxu0 %v374
    %789 = vmatprep.subr.mxu0 %v379
    %790 = vmatpush1.msra.mxu0 %v378
    %791 = vmatprep.subr.mxu0 %v383
    %792 = vmatpush1.msra.mxu0 %v382
    %793 = vmatprep.subr.mxu0 %v387
    %794 = vmatpush1.msra.mxu0 %v386
    %795 = vmatprep.subr.mxu0 %v391
    %796 = vmatpush1.msra.mxu0 %v390
    %797 = vmatprep.subr.mxu0 %v395
    %798 = vmatpush1.msra.mxu0 %v394
    %799 = vmatprep.subr.mxu0 %v399
    %800 = vmatpush1.msra.mxu0 %v398
    %801 = vmatprep.subr.mxu0 %v403
    %802 = vmatpush1.msra.mxu0 %v402
    %803 = vmatprep.subr.mxu0 0.0
    %804 = vmatpush1.msra.mxu0 0.0
    %805 = vmatprep.subr.mxu0 0.0
    %806 = vmatpush1.msra.mxu0 0.0
    %807 = vmatprep.subr.mxu0 0.0
    %808 = vmatpush1.msra.mxu0 0.0
    %809 = vmatprep.subr.mxu0 0.0
    %810 = vmatpush1.msra.mxu0 0.0
    %811 = vmatprep.subr.mxu0 0.0
    %812 = vmatpush1.msra.mxu0 0.0
    %813 = vmatprep.subr.mxu0 0.0
    %814 = vmatpush1.msra.mxu0 0.0
    %815 = vmatprep.subr.mxu0 0.0
    %816 = vmatpush1.msra.mxu0 0.0
    %817 = vmatprep.subr.mxu0 0.0
    %818 = vmatpush1.msra.mxu0 0.0
    %819 = vmatprep.subr.mxu0 0.0
    %820 = vmatpush1.msra.mxu0 0.0
    %821 = vmatprep.subr.mxu0 0.0
    %822 = vmatpush1.msra.mxu0 0.0
    %823 = vmatprep.subr.mxu0 0.0
    %824 = vmatpush1.msra.mxu0 0.0
    %825 = vmatprep.subr.mxu0 0.0
    %826 = vmatpush1.msra.mxu0 0.0
    %827 = vmatprep.subr.mxu0 0.0
    %828 = vmatpush1.msra.mxu0 0.0
    %829 = vmatprep.subr.mxu0 0.0
    %830 = vmatpush1.msra.mxu0 0.0
    %831 = vmatprep.subr.mxu0 0.0
    %832 = vmatpush1.msra.mxu0 0.0
    %833 = vmatprep.subr.mxu0 0.0
    %834 = vmatpush1.msra.mxu0 0.0
    %835 = vmatprep.mubr.f32.mxu0 0.0
    %836 = vmatmul.mubr.f32.gmra.mrb[0].mxu0 0.0
    %v837 = vpop.f32.mrb[0].mxu0
    %v838 = vadd.f32 %v433, %v837
    %v839 = vpop.f32.mrb[0].mxu0
    %v840 = vadd.f32 %v437, %v839
    %841 = vdwg.mxu0
    %842 = vmatprep.subr.mxu0 %v345
    %843 = vmatpush1.msra.mxu0 %v344
    %844 = vmatprep.subr.mxu0 %v349
    %845 = vmatpush1.msra.mxu0 %v348
    %846 = vmatprep.subr.mxu0 %v353
    %847 = vmatpush1.msra.mxu0 %v352
    %848 = vmatprep.subr.mxu0 %v357
    %849 = vmatpush1.msra.mxu0 %v356
    %850 = vmatprep.subr.mxu0 %v361
    %851 = vmatpush1.msra.mxu0 %v360
    %852 = vmatprep.subr.mxu0 %v365
    %853 = vmatpush1.msra.mxu0 %v364
    %854 = vmatprep.subr.mxu0 %v369
    %855 = vmatpush1.msra.mxu0 %v368
    %856 = vmatprep.subr.mxu0 %v373
    %857 = vmatpush1.msra.mxu0 %v372
    %858 = vmatprep.subr.mxu0 %v377
    %859 = vmatpush1.msra.mxu0 %v376
    %860 = vmatprep.subr.mxu0 %v381
    %861 = vmatpush1.msra.mxu0 %v380
    %862 = vmatprep.subr.mxu0 %v385
    %863 = vmatpush1.msra.mxu0 %v384
    %864 = vmatprep.subr.mxu0 %v389
    %865 = vmatpush1.msra.mxu0 %v388
    %866 = vmatprep.subr.mxu0 %v393
    %867 = vmatpush1.msra.mxu0 %v392
    %868 = vmatprep.subr.mxu0 %v397
    %869 = vmatpush1.msra.mxu0 %v396
    %870 = vmatprep.subr.mxu0 %v401
    %871 = vmatpush1.msra.mxu0 %v400
    %872 = vmatprep.subr.mxu0 %v405
    %873 = vmatpush1.msra.mxu0 %v404
    %874 = vmatprep.subr.mxu0 0.0
    %875 = vmatpush1.msra.mxu0 0.0
    %876 = vmatprep.subr.mxu0 0.0
    %877 = vmatpush1.msra.mxu0 0.0
    %878 = vmatprep.subr.mxu0 0.0
    %879 = vmatpush1.msra.mxu0 0.0
    %880 = vmatprep.subr.mxu0 0.0
    %881 = vmatpush1.msra.mxu0 0.0
    %882 = vmatprep.subr.mxu0 0.0
    %883 = vmatpush1.msra.mxu0 0.0
    %884 = vmatprep.subr.mxu0 0.0
    %885 = vmatpush1.msra.mxu0 0.0
    %886 = vmatprep.subr.mxu0 0.0
    %887 = vmatpush1.msra.mxu0 0.0
    %888 = vmatprep.subr.mxu0 0.0
    %889 = vmatpush1.msra.mxu0 0.0
    %890 = vmatprep.subr.mxu0 0.0
    %891 = vmatpush1.msra.mxu0 0.0
    %892 = vmatprep.subr.mxu0 0.0
    %893 = vmatpush1.msra.mxu0 0.0
    %894 = vmatprep.subr.mxu0 0.0
    %895 = vmatpush1.msra.mxu0 0.0
    %896 = vmatprep.subr.mxu0 0.0
    %897 = vmatpush1.msra.mxu0 0.0
    %898 = vmatprep.subr.mxu0 0.0
    %899 = vmatpush1.msra.mxu0 0.0
    %900 = vmatprep.subr.mxu0 0.0
    %901 = vmatpush1.msra.mxu0 0.0
    %902 = vmatprep.subr.mxu0 0.0
    %903 = vmatpush1.msra.mxu0 0.0
    %904 = vmatprep.subr.mxu0 0.0
    %905 = vmatpush1.msra.mxu0 0.0
    %906 = vmatprep.mubr.f32.mxu0 0.0
    %907 = vmatmul.mubr.f32.gmra.mrb[0].mxu0 0.0
    %v908 = vpop.f32.mrb[0].mxu0
    %v909 = vadd.f32 %v441, %v908
    %v910 = vpop.f32.mrb[0].mxu0
    %v911 = vadd.f32 %v445, %v910
    %912 = vdwg.mxu0
    %913 = vmatprep.subr.mxu0 %v279
    %914 = vmatpush1.msra.mxu0 %v278
    %915 = vmatprep.subr.mxu0 %v283
    %916 = vmatpush1.msra.mxu0 %v282
    %917 = vmatprep.subr.mxu0 %v287
    %918 = vmatpush1.msra.mxu0 %v286
    %919 = vmatprep.subr.mxu0 %v291
    %920 = vmatpush1.msra.mxu0 %v290
    %921 = vmatprep.subr.mxu0 %v295
    %922 = vmatpush1.msra.mxu0 %v294
    %923 = vmatprep.subr.mxu0 %v299
    %924 = vmatpush1.msra.mxu0 %v298
    %925 = vmatprep.subr.mxu0 %v303
    %926 = vmatpush1.msra.mxu0 %v302
    %927 = vmatprep.subr.mxu0 %v307
    %928 = vmatpush1.msra.mxu0 %v306
    %929 = vmatprep.subr.mxu0 %v311
    %930 = vmatpush1.msra.mxu0 %v310
    %931 = vmatprep.subr.mxu0 %v315
    %932 = vmatpush1.msra.mxu0 %v314
    %933 = vmatprep.subr.mxu0 %v319
    %934 = vmatpush1.msra.mxu0 %v318
    %935 = vmatprep.subr.mxu0 %v323
    %936 = vmatpush1.msra.mxu0 %v322
    %937 = vmatprep.subr.mxu0 %v327
    %938 = vmatpush1.msra.mxu0 %v326
    %939 = vmatprep.subr.mxu0 %v331
    %940 = vmatpush1.msra.mxu0 %v330
    %941 = vmatprep.subr.mxu0 %v335
    %942 = vmatpush1.msra.mxu0 %v334
    %943 = vmatprep.subr.mxu0 %v339
    %944 = vmatpush1.msra.mxu0 %v338
    %945 = vmatprep.subr.mxu0 0.0
    %946 = vmatpush1.msra.mxu0 0.0
    %947 = vmatprep.subr.mxu0 0.0
    %948 = vmatpush1.msra.mxu0 0.0
    %949 = vmatprep.subr.mxu0 0.0
    %950 = vmatpush1.msra.mxu0 0.0
    %951 = vmatprep.subr.mxu0 0.0
    %952 = vmatpush1.msra.mxu0 0.0
    %953 = vmatprep.subr.mxu0 0.0
    %954 = vmatpush1.msra.mxu0 0.0
    %955 = vmatprep.subr.mxu0 0.0
    %956 = vmatpush1.msra.mxu0 0.0
    %957 = vmatprep.subr.mxu0 0.0
    %958 = vmatpush1.msra.mxu0 0.0
    %959 = vmatprep.subr.mxu0 0.0
    %960 = vmatpush1.msra.mxu0 0.0
    %961 = vmatprep.subr.mxu0 0.0
    %962 = vmatpush1.msra.mxu0 0.0
    %963 = vmatprep.subr.mxu0 0.0
    %964 = vmatpush1.msra.mxu0 0.0
    %965 = vmatprep.subr.mxu0 0.0
    %966 = vmatpush1.msra.mxu0 0.0
    %967 = vmatprep.subr.mxu0 0.0
    %968 = vmatpush1.msra.mxu0 0.0
    %969 = vmatprep.subr.mxu0 0.0
    %970 = vmatpush1.msra.mxu0 0.0
    %971 = vmatprep.subr.mxu0 0.0
    %972 = vmatpush1.msra.mxu0 0.0
    %973 = vmatprep.subr.mxu0 0.0
    %974 = vmatpush1.msra.mxu0 0.0
    %975 = vmatprep.subr.mxu0 0.0
    %976 = vmatpush1.msra.mxu0 0.0
    %977 = vmatprep.mubr.f32.mxu0 0.0
    %978 = vmatmul.mubr.f32.gmra.mrb[0].mxu0 %v769
    %v979 = vpop.f32.mrb[0].mxu0
    %v980 = vadd.f32 0.0, %v979
    %v981 = vpop.f32.mrb[0].mxu0
    %v982 = vadd.f32 0.0, %v981
    %983 = vdwg.mxu0
    %984 = vmatprep.subr.mxu0 %v281
    %985 = vmatpush1.msra.mxu0 %v280
    %986 = vmatprep.subr.mxu0 %v285
    %987 = vmatpush1.msra.mxu0 %v284
    %988 = vmatprep.subr.mxu0 %v289
    %989 = vmatpush1.msra.mxu0 %v288
    %990 = vmatprep.subr.mxu0 %v293
    %991 = vmatpush1.msra.mxu0 %v292
    %992 = vmatprep.subr.mxu0 %v297
    %993 = vmatpush1.msra.mxu0 %v296
    %994 = vmatprep.subr.mxu0 %v301
    %995 = vmatpush1.msra.mxu0 %v300
    %996 = vmatprep.subr.mxu0 %v305
    %997 = vmatpush1.msra.mxu0 %v304
    %998 = vmatprep.subr.mxu0 %v309
    %999 = vmatpush1.msra.mxu0 %v308
    %1000 = vmatprep.subr.mxu0 %v313
    %1001 = vmatpush1.msra.mxu0 %v312
    %1002 = vmatprep.subr.mxu0 %v317
    %1003 = vmatpush1.msra.mxu0 %v316
    %1004 = vmatprep.subr.mxu0 %v321
    %1005 = vmatpush1.msra.mxu0 %v320
    %1006 = vmatprep.subr.mxu0 %v325
    %1007 = vmatpush1.msra.mxu0 %v324
    %1008 = vmatprep.subr.mxu0 %v329
    %1009 = vmatpush1.msra.mxu0 %v328
    %1010 = vmatprep.subr.mxu0 %v333
    %1011 = vmatpush1.msra.mxu0 %v332
    %1012 = vmatprep.subr.mxu0 %v337
    %1013 = vmatpush1.msra.mxu0 %v336
    %1014 = vmatprep.subr.mxu0 %v341
    %1015 = vmatpush1.msra.mxu0 %v340
    %1016 = vmatprep.subr.mxu0 0.0
    %1017 = vmatpush1.msra.mxu0 0.0
    %1018 = vmatprep.subr.mxu0 0.0
    %1019 = vmatpush1.msra.mxu0 0.0
    %1020 = vmatprep.subr.mxu0 0.0
    %1021 = vmatpush1.msra.mxu0 0.0
    %1022 = vmatprep.subr.mxu0 0.0
    %1023 = vmatpush1.msra.mxu0 0.0
    %1024 = vmatprep.subr.mxu0 0.0
    %1025 = vmatpush1.msra.mxu0 0.0
    %1026 = vmatprep.subr.mxu0 0.0
    %1027 = vmatpush1.msra.mxu0 0.0
    %1028 = vmatprep.subr.mxu0 0.0
    %1029 = vmatpush1.msra.mxu0 0.0
    %1030 = vmatprep.subr.mxu0 0.0
    %1031 = vmatpush1.msra.mxu0 0.0
    %1032 = vmatprep.subr.mxu0 0.0
    %1033 = vmatpush1.msra.mxu0 0.0
    %1034 = vmatprep.subr.mxu0 0.0
    %1035 = vmatpush1.msra.mxu0 0.0
    %1036 = vmatprep.subr.mxu0 0.0
    %1037 = vmatpush1.msra.mxu0 0.0
    %1038 = vmatprep.subr.mxu0 0.0
    %1039 = vmatpush1.msra.mxu0 0.0
    %1040 = vmatprep.subr.mxu0 0.0
    %1041 = vmatpush1.msra.mxu0 0.0
    %1042 = vmatprep.subr.mxu0 0.0
    %1043 = vmatpush1.msra.mxu0 0.0
    %1044 = vmatprep.subr.mxu0 0.0
    %1045 = vmatpush1.msra.mxu0 0.0
    %1046 = vmatprep.subr.mxu0 0.0
    %1047 = vmatpush1.msra.mxu0 0.0
    %1048 = vmatprep.mubr.f32.mxu0 0.0
    %1049 = vmatmul.mubr.f32.gmra.mrb[0].mxu0 %v769
    %v1050 = vpop.f32.mrb[0].mxu0
    %v1051 = vadd.f32 0.0, %v1050
    %v1052 = vpop.f32.mrb[0].mxu0
    %v1053 = vadd.f32 0.0, %v1052
    %1054 = vdwg.mxu0
    %v1055 = vadd.f32 %v838, %v980
    %v1056 = vadd.f32 %v840, %v982
    %v1057 = vadd.f32 %v909, %v1051
    %v1058 = vadd.f32 %v911, %v1053
    %v1059 = vxor.u32 %v1055, 2147483648
    %v1060 = vmul.f32 %v1059, 1.442695
    %v1061 = vpow.pop %v1060
    %v1062 = vadd.f32 %v1061, 1.0
    %v1063 = vrcp.pop %v1062
    %v1064 = vmul.f32 1.0, %v1063
    %v1065 = vxor.u32 %v1056, 2147483648
    %v1066 = vmul.f32 %v1065, 1.442695
    %v1067 = vpow.pop %v1066
    %v1068 = vadd.f32 %v1067, 1.0
    %v1069 = vrcp.pop %v1068
    %v1070 = vmul.f32 1.0, %v1069
    %v1071 = vtanh.pop %v1057
    %v1072 = vxor.u32 %v1058, 2147483648
    %v1073 = vmul.f32 %v1072, 1.442695
    %v1074 = vpow.pop %v1073
    %v1075 = vadd.f32 %v1074, 1.0
    %v1076 = vrcp.pop %v1075
    %v1077 = vmul.f32 1.0, %v1076
    %v1078 = vmul.f32 %v1070, 0.0
    %v1079 = vmul.f32 %v1064, %v1071
    %v1080 = vadd.f32 %v1078, %v1079
    %v1081 = vtanh.pop %v1080
    %v1082 = vmul.f32 %v1077, %v1081
    %v1083 = vsel %vm768, %v1082, 0.0
    %v1084 = vsel %vm768, %v1080, 0.0
    %vm1085 = vcmp.gt.s32.totalorder %v149, 1
    %s1086 = scalar_lea.vmem [#allocation2], 2
    %v1087 = vld [vmem:[%s1086] sm:$0x3]
    %1088 = vmatprep.subr.mxu0 %v151
    %1089 = vmatpush1.msra.mxu0 %v150
    %1090 = vmatprep.subr.mxu0 %v155
    %1091 = vmatpush1.msra.mxu0 %v154
    %1092 = vmatprep.subr.mxu0 %v159
    %1093 = vmatpush1.msra.mxu0 %v158
    %1094 = vmatprep.subr.mxu0 %v163
    %1095 = vmatpush1.msra.mxu0 %v162
    %1096 = vmatprep.subr.mxu0 %v167
    %1097 = vmatpush1.msra.mxu0 %v166
    %1098 = vmatprep.subr.mxu0 %v171
    %1099 = vmatpush1.msra.mxu0 %v170
    %1100 = vmatprep.subr.mxu0 %v175
    %1101 = vmatpush1.msra.mxu0 %v174
    %1102 = vmatprep.subr.mxu0 %v179
    %1103 = vmatpush1.msra.mxu0 %v178
    %1104 = vmatprep.subr.mxu0 %v183
    %1105 = vmatpush1.msra.mxu0 %v182
    %1106 = vmatprep.subr.mxu0 %v187
    %1107 = vmatpush1.msra.mxu0 %v186
    %1108 = vmatprep.subr.mxu0 %v191
    %1109 = vmatpush1.msra.mxu0 %v190
    %1110 = vmatprep.subr.mxu0 %v195
    %1111 = vmatpush1.msra.mxu0 %v194
    %1112 = vmatprep.subr.mxu0 %v199
    %1113 = vmatpush1.msra.mxu0 %v198
    %1114 = vmatprep.subr.mxu0 %v203
    %1115 = vmatpush1.msra.mxu0 %v202
    %1116 = vmatprep.subr.mxu0 %v207
    %1117 = vmatpush1.msra.mxu0 %v206
    %1118 = vmatprep.subr.mxu0 %v211
    %1119 = vmatpush1.msra.mxu0 %v210
    %1120 = vmatprep.subr.mxu0 0.0
    %1121 = vmatpush1.msra.mxu0 0.0
    %1122 = vmatprep.subr.mxu0 0.0
    %1123 = vmatpush1.msra.mxu0 0.0
    %1124 = vmatprep.subr.mxu0 0.0
    %1125 = vmatpush1.msra.mxu0 0.0
    %1126 = vmatprep.subr.mxu0 0.0
    %1127 = vmatpush1.msra.mxu0 0.0
    %1128 = vmatprep.subr.mxu0 0.0
    %1129 = vmatpush1.msra.mxu0 0.0
    %1130 = vmatprep.subr.mxu0 0.0
    %1131 = vmatpush1.msra.mxu0 0.0
    %1132 = vmatprep.subr.mxu0 0.0
    %1133 = vmatpush1.msra.mxu0 0.0
    %1134 = vmatprep.subr.mxu0 0.0
    %1135 = vmatpush1.msra.mxu0 0.0
    %1136 = vmatprep.subr.mxu0 0.0
    %1137 = vmatpush1.msra.mxu0 0.0
    %1138 = vmatprep.subr.mxu0 0.0
    %1139 = vmatpush1.msra.mxu0 0.0
    %1140 = vmatprep.subr.mxu0 0.0
    %1141 = vmatpush1.msra.mxu0 0.0
    %1142 = vmatprep.subr.mxu0 0.0
    %1143 = vmatpush1.msra.mxu0 0.0
    %1144 = vmatprep.subr.mxu0 0.0
    %1145 = vmatpush1.msra.mxu0 0.0
    %1146 = vmatprep.subr.mxu0 0.0
    %1147 = vmatpush1.msra.mxu0 0.0
    %1148 = vmatprep.subr.mxu0 0.0
    %1149 = vmatpush1.msra.mxu0 0.0
    %1150 = vmatprep.subr.mxu0 0.0
    %1151 = vmatpush1.msra.mxu0 0.0
    %1152 = vmatprep.mubr.f32.mxu0 0.0
    %1153 = vmatmul.mubr.f32.gmra.mrb[0].mxu0 %v1087
    %v1154 = vpop.f32.mrb[0].mxu0
    %v1155 = vadd.f32 %v411, %v1154
    %v1156 = vpop.f32.mrb[0].mxu0
    %v1157 = vadd.f32 %v415, %v1156
    %1158 = vdwg.mxu0
    %1159 = vmatprep.subr.mxu0 %v153
    %1160 = vmatpush1.msra.mxu0 %v152
    %1161 = vmatprep.subr.mxu0 %v157
    %1162 = vmatpush1.msra.mxu0 %v156
    %1163 = vmatprep.subr.mxu0 %v161
    %1164 = vmatpush1.msra.mxu0 %v160
    %1165 = vmatprep.subr.mxu0 %v165
    %1166 = vmatpush1.msra.mxu0 %v164
    %1167 = vmatprep.subr.mxu0 %v169
    %1168 = vmatpush1.msra.mxu0 %v168
    %1169 = vmatprep.subr.mxu0 %v173
    %1170 = vmatpush1.msra.mxu0 %v172
    %1171 = vmatprep.subr.mxu0 %v177
    %1172 = vmatpush1.msra.mxu0 %v176
    %1173 = vmatprep.subr.mxu0 %v181
    %1174 = vmatpush1.msra.mxu0 %v180
    %1175 = vmatprep.subr.mxu0 %v185
    %1176 = vmatpush1.msra.mxu0 %v184
    %1177 = vmatprep.subr.mxu0 %v189
    %1178 = vmatpush1.msra.mxu0 %v188
    %1179 = vmatprep.subr.mxu0 %v193
    %1180 = vmatpush1.msra.mxu0 %v192
    %1181 = vmatprep.subr.mxu0 %v197
    %1182 = vmatpush1.msra.mxu0 %v196
    %1183 = vmatprep.subr.mxu0 %v201
    %1184 = vmatpush1.msra.mxu0 %v200
    %1185 = vmatprep.subr.mxu0 %v205
    %1186 = vmatpush1.msra.mxu0 %v204
    %1187 = vmatprep.subr.mxu0 %v209
    %1188 = vmatpush1.msra.mxu0 %v208
    %1189 = vmatprep.subr.mxu0 %v213
    %1190 = vmatpush1.msra.mxu0 %v212
    %1191 = vmatprep.subr.mxu0 0.0
    %1192 = vmatpush1.msra.mxu0 0.0
    %1193 = vmatprep.subr.mxu0 0.0
    %1194 = vmatpush1.msra.mxu0 0.0
    %1195 = vmatprep.subr.mxu0 0.0
    %1196 = vmatpush1.msra.mxu0 0.0
    %1197 = vmatprep.subr.mxu0 0.0
    %1198 = vmatpush1.msra.mxu0 0.0
    %1199 = vmatprep.subr.mxu0 0.0
    %1200 = vmatpush1.msra.mxu0 0.0
    %1201 = vmatprep.subr.mxu0 0.0
    %1202 = vmatpush1.msra.mxu0 0.0
    %1203 = vmatprep.subr.mxu0 0.0
    %1204 = vmatpush1.msra.mxu0 0.0
    %1205 = vmatprep.subr.mxu0 0.0
    %1206 = vmatpush1.msra.mxu0 0.0
    %1207 = vmatprep.subr.mxu0 0.0
    %1208 = vmatpush1.msra.mxu0 0.0
    %1209 = vmatprep.subr.mxu0 0.0
    %1210 = vmatpush1.msra.mxu0 0.0
    %1211 = vmatprep.subr.mxu0 0.0
    %1212 = vmatpush1.msra.mxu0 0.0
    %1213 = vmatprep.subr.mxu0 0.0
    %1214 = vmatpush1.msra.mxu0 0.0
    %1215 = vmatprep.subr.mxu0 0.0
    %1216 = vmatpush1.msra.mxu0 0.0
    %1217 = vmatprep.subr.mxu0 0.0
    %1218 = vmatpush1.msra.mxu0 0.0
    %1219 = vmatprep.subr.mxu0 0.0
    %1220 = vmatpush1.msra.mxu0 0.0
    %1221 = vmatprep.subr.mxu0 0.0
    %1222 = vmatpush1.msra.mxu0 0.0
    %1223 = vmatprep.mubr.f32.mxu0 0.0
    %1224 = vmatmul.mubr.f32.gmra.mrb[0].mxu0 %v1087
    %v1225 = vpop.f32.mrb[0].mxu0
    %v1226 = vadd.f32 %v419, %v1225
    %v1227 = vpop.f32.mrb[0].mxu0
    %v1228 = vadd.f32 %v423, %v1227
    %1229 = vdwg.mxu0
    %1230 = vmatprep.subr.mxu0 %v215
    %1231 = vmatpush1.msra.mxu0 %v214
    %1232 = vmatprep.subr.mxu0 %v219
    %1233 = vmatpush1.msra.mxu0 %v218
    %1234 = vmatprep.subr.mxu0 %v223
    %1235 = vmatpush1.msra.mxu0 %v222
    %1236 = vmatprep.subr.mxu0 %v227
    %1237 = vmatpush1.msra.mxu0 %v226
    %1238 = vmatprep.subr.mxu0 %v231
    %1239 = vmatpush1.msra.mxu0 %v230
    %1240 = vmatprep.subr.mxu0 %v235
    %1241 = vmatpush1.msra.mxu0 %v234
    %1242 = vmatprep.subr.mxu0 %v239
    %1243 = vmatpush1.msra.mxu0 %v238
    %1244 = vmatprep.subr.mxu0 %v243
    %1245 = vmatpush1.msra.mxu0 %v242
    %1246 = vmatprep.subr.mxu0 %v247
    %1247 = vmatpush1.msra.mxu0 %v246
    %1248 = vmatprep.subr.mxu0 %v251
    %1249 = vmatpush1.msra.mxu0 %v250
    %1250 = vmatprep.subr.mxu0 %v255
    %1251 = vmatpush1.msra.mxu0 %v254
    %1252 = vmatprep.subr.mxu0 %v259
    %1253 = vmatpush1.msra.mxu0 %v258
    %1254 = vmatprep.subr.mxu0 %v263
    %1255 = vmatpush1.msra.mxu0 %v262
    %1256 = vmatprep.subr.mxu0 %v267
    %1257 = vmatpush1.msra.mxu0 %v266
    %1258 = vmatprep.subr.mxu0 %v271
    %1259 = vmatpush1.msra.mxu0 %v270
    %1260 = vmatprep.subr.mxu0 %v275
    %1261 = vmatpush1.msra.mxu0 %v274
    %1262 = vmatprep.subr.mxu0 0.0
    %1263 = vmatpush1.msra.mxu0 0.0
    %1264 = vmatprep.subr.mxu0 0.0
    %1265 = vmatpush1.msra.mxu0 0.0
    %1266 = vmatprep.subr.mxu0 0.0
    %1267 = vmatpush1.msra.mxu0 0.0
    %1268 = vmatprep.subr.mxu0 0.0
    %1269 = vmatpush1.msra.mxu0 0.0
    %1270 = vmatprep.subr.mxu0 0.0
    %1271 = vmatpush1.msra.mxu0 0.0
    %1272 = vmatprep.subr.mxu0 0.0
    %1273 = vmatpush1.msra.mxu0 0.0
    %1274 = vmatprep.subr.mxu0 0.0
    %1275 = vmatpush1.msra.mxu0 0.0
    %1276 = vmatprep.subr.mxu0 0.0
    %1277 = vmatpush1.msra.mxu0 0.0
    %1278 = vmatprep.subr.mxu0 0.0
    %1279 = vmatpush1.msra.mxu0 0.0
    %1280 = vmatprep.subr.mxu0 0.0
    %1281 = vmatpush1.msra.mxu0 0.0
    %1282 = vmatprep.subr.mxu0 0.0
    %1283 = vmatpush1.msra.mxu0 0.0
    %1284 = vmatprep.subr.mxu0 0.0
    %1285 = vmatpush1.msra.mxu0 0.0
    %1286 = vmatprep.subr.mxu0 0.0
    %1287 = vmatpush1.msra.mxu0 0.0
    %1288 = vmatprep.subr.mxu0 0.0
    %1289 = vmatpush1.msra.mxu0 0.0
    %1290 = vmatprep.subr.mxu0 0.0
    %1291 = vmatpush1.msra.mxu0 0.0
    %1292 = vmatprep.subr.mxu0 0.0
    %1293 = vmatpush1.msra.mxu0 0.0
    %1294 = vmatprep.mubr.f32.mxu0 0.0
    %1295 = vmatmul.mubr.f32.gmra.mrb[0].mxu0 %v769
    %v1296 = vpop.f32.mrb[0].mxu0
    %v1297 = vadd.f32 0.0, %v1296
    %v1298 = vpop.f32.mrb[0].mxu0
    %v1299 = vadd.f32 0.0, %v1298
    %1300 = vdwg.mxu0
    %1301 = vmatprep.subr.mxu0 %v217
    %1302 = vmatpush1.msra.mxu0 %v216
    %1303 = vmatprep.subr.mxu0 %v221
    %1304 = vmatpush1.msra.mxu0 %v220
    %1305 = vmatprep.subr.mxu0 %v225
    %1306 = vmatpush1.msra.mxu0 %v224
    %1307 = vmatprep.subr.mxu0 %v229
    %1308 = vmatpush1.msra.mxu0 %v228
    %1309 = vmatprep.subr.mxu0 %v233
    %1310 = vmatpush1.msra.mxu0 %v232
    %1311 = vmatprep.subr.mxu0 %v237
    %1312 = vmatpush1.msra.mxu0 %v236
    %1313 = vmatprep.subr.mxu0 %v241
    %1314 = vmatpush1.msra.mxu0 %v240
    %1315 = vmatprep.subr.mxu0 %v245
    %1316 = vmatpush1.msra.mxu0 %v244
    %1317 = vmatprep.subr.mxu0 %v249
    %1318 = vmatpush1.msra.mxu0 %v248
    %1319 = vmatprep.subr.mxu0 %v253
    %1320 = vmatpush1.msra.mxu0 %v252
    %1321 = vmatprep.subr.mxu0 %v257
    %1322 = vmatpush1.msra.mxu0 %v256
    %1323 = vmatprep.subr.mxu0 %v261
    %1324 = vmatpush1.msra.mxu0 %v260
    %1325 = vmatprep.subr.mxu0 %v265
    %1326 = vmatpush1.msra.mxu0 %v264
    %1327 = vmatprep.subr.mxu0 %v269
    %1328 = vmatpush1.msra.mxu0 %v268
    %1329 = vmatprep.subr.mxu0 %v273
    %1330 = vmatpush1.msra.mxu0 %v272
    %1331 = vmatprep.subr.mxu0 %v277
    %1332 = vmatpush1.msra.mxu0 %v276
    %1333 = vmatprep.subr.mxu0 0.0
    %1334 = vmatpush1.msra.mxu0 0.0
    %1335 = vmatprep.subr.mxu0 0.0
    %1336 = vmatpush1.msra.mxu0 0.0
    %1337 = vmatprep.subr.mxu0 0.0
    %1338 = vmatpush1.msra.mxu0 0.0
    %1339 = vmatprep.subr.mxu0 0.0
    %1340 = vmatpush1.msra.mxu0 0.0
    %1341 = vmatprep.subr.mxu0 0.0
    %1342 = vmatpush1.msra.mxu0 0.0
    %1343 = vmatprep.subr.mxu0 0.0
    %1344 = vmatpush1.msra.mxu0 0.0
    %1345 = vmatprep.subr.mxu0 0.0
    %1346 = vmatpush1.msra.mxu0 0.0
    %1347 = vmatprep.subr.mxu0 0.0
    %1348 = vmatpush1.msra.mxu0 0.0
    %1349 = vmatprep.subr.mxu0 0.0
    %1350 = vmatpush1.msra.mxu0 0.0
    %1351 = vmatprep.subr.mxu0 0.0
    %1352 = vmatpush1.msra.mxu0 0.0
    %1353 = vmatprep.subr.mxu0 0.0
    %1354 = vmatpush1.msra.mxu0 0.0
    %1355 = vmatprep.subr.mxu0 0.0
    %1356 = vmatpush1.msra.mxu0 0.0
    %1357 = vmatprep.subr.mxu0 0.0
    %1358 = vmatpush1.msra.mxu0 0.0
    %1359 = vmatprep.subr.mxu0 0.0
    %1360 = vmatpush1.msra.mxu0 0.0
    %1361 = vmatprep.subr.mxu0 0.0
    %1362 = vmatpush1.msra.mxu0 0.0
    %1363 = vmatprep.subr.mxu0 0.0
    %1364 = vmatpush1.msra.mxu0 0.0
    %1365 = vmatprep.mubr.f32.mxu0 0.0
    %1366 = vmatmul.mubr.f32.gmra.mrb[0].mxu0 %v769
    %v1367 = vpop.f32.mrb[0].mxu0
    %v1368 = vadd.f32 0.0, %v1367
    %v1369 = vpop.f32.mrb[0].mxu0
    %v1370 = vadd.f32 0.0, %v1369
    %1371 = vdwg.mxu0
    %v1372 = vadd.f32 %v1155, %v1297
    %v1373 = vadd.f32 %v1157, %v1299
    %v1374 = vadd.f32 %v1226, %v1368
    %v1375 = vadd.f32 %v1228, %v1370
    %v1376 = vxor.u32 %v1372, 2147483648
    %v1377 = vmul.f32 %v1376, 1.442695
    %v1378 = vpow.pop %v1377
    %v1379 = vadd.f32 %v1378, 1.0
    %v1380 = vrcp.pop %v1379
    %v1381 = vmul.f32 1.0, %v1380
    %v1382 = vxor.u32 %v1373, 2147483648
    %v1383 = vmul.f32 %v1382, 1.442695
    %v1384 = vpow.pop %v1383
    %v1385 = vadd.f32 %v1384, 1.0
    %v1386 = vrcp.pop %v1385
    %v1387 = vmul.f32 1.0, %v1386
    %v1388 = vtanh.pop %v1374
    %v1389 = vxor.u32 %v1375, 2147483648
    %v1390 = vmul.f32 %v1389, 1.442695
    %v1391 = vpow.pop %v1390
    %v1392 = vadd.f32 %v1391, 1.0
    %v1393 = vrcp.pop %v1392
    %v1394 = vmul.f32 1.0, %v1393
    %v1395 = vmul.f32 %v1387, %v770
    %v1396 = vmul.f32 %v1381, %v1388
    %v1397 = vadd.f32 %v1395, %v1396
    %v1398 = vtanh.pop %v1397
    %v1399 = vmul.f32 %v1394, %v1398
    %v1400 = vsel %vm1085, 1, 0
    %1401 = vset.pattern.permute.xlu0 0
    %1402 = vperm.xlu0 %1401, %v1400
    %v1403 = vpop.permute.xlu0 %1402
    %vm1404 = vcmp.eq.s32.totalorder %v1403, 1
    %v1405 = vsel %vm1404, %v1399, %v769
    %v1406 = vsel %vm1404, %v1397, %v770
    %1407 = vmatprep.subr.mxu0 %v343
    %1408 = vmatpush1.msra.mxu0 %v342
    %1409 = vmatprep.subr.mxu0 %v347
    %1410 = vmatpush1.msra.mxu0 %v346
    %1411 = vmatprep.subr.mxu0 %v351
    %1412 = vmatpush1.msra.mxu0 %v350
    %1413 = vmatprep.subr.mxu0 %v355
    %1414 = vmatpush1.msra.mxu0 %v354
    %1415 = vmatprep.subr.mxu0 %v359
    %1416 = vmatpush1.msra.mxu0 %v358
    %1417 = vmatprep.subr.mxu0 %v363
    %1418 = vmatpush1.msra.mxu0 %v362
    %1419 = vmatprep.subr.mxu0 %v367
    %1420 = vmatpush1.msra.mxu0 %v366
    %1421 = vmatprep.subr.mxu0 %v371
    %1422 = vmatpush1.msra.mxu0 %v370
    %1423 = vmatprep.subr.mxu0 %v375
    %1424 = vmatpush1.msra.mxu0 %v374
    %1425 = vmatprep.subr.mxu0 %v379
    %1426 = vmatpush1.msra.mxu0 %v378
    %1427 = vmatprep.subr.mxu0 %v383
    %1428 = vmatpush1.msra.mxu0 %v382
    %1429 = vmatprep.subr.mxu0 %v387
    %1430 = vmatpush1.msra.mxu0 %v386
    %1431 = vmatprep.subr.mxu0 %v391
    %1432 = vmatpush1.msra.mxu0 %v390
    %1433 = vmatprep.subr.mxu0 %v395
    %1434 = vmatpush1.msra.mxu0 %v394
    %1435 = vmatprep.subr.mxu0 %v399
    %1436 = vmatpush1.msra.mxu0 %v398
    %1437 = vmatprep.subr.mxu0 %v403
    %1438 = vmatpush1.msra.mxu0 %v402
    %1439 = vmatprep.subr.mxu0 0.0
    %1440 = vmatpush1.msra.mxu0 0.0
    %1441 = vmatprep.subr.mxu0 0.0
    %1442 = vmatpush1.msra.mxu0 0.0
    %1443 = vmatprep.subr.mxu0 0.0
    %1444 = vmatpush1.msra.mxu0 0.0
    %1445 = vmatprep.subr.mxu0 0.0
    %1446 = vmatpush1.msra.mxu0 0.0
    %1447 = vmatprep.subr.mxu0 0.0
    %1448 = vmatpush1.msra.mxu0 0.0
    %1449 = vmatprep.subr.mxu0 0.0
    %1450 = vmatpush1.msra.mxu0 0.0
    %1451 = vmatprep.subr.mxu0 0.0
    %1452 = vmatpush1.msra.mxu0 0.0
    %1453 = vmatprep.subr.mxu0 0.0
    %1454 = vmatpush1.msra.mxu0 0.0
    %1455 = vmatprep.subr.mxu0 0.0
    %1456 = vmatpush1.msra.mxu0 0.0
    %1457 = vmatprep.subr.mxu0 0.0
    %1458 = vmatpush1.msra.mxu0 0.0
    %1459 = vmatprep.subr.mxu0 0.0
    %1460 = vmatpush1.msra.mxu0 0.0
    %1461 = vmatprep.subr.mxu0 0.0
    %1462 = vmatpush1.msra.mxu0 0.0
    %1463 = vmatprep.subr.mxu0 0.0
    %1464 = vmatpush1.msra.mxu0 0.0
    %1465 = vmatprep.subr.mxu0 0.0
    %1466 = vmatpush1.msra.mxu0 0.0
    %1467 = vmatprep.subr.mxu0 0.0
    %1468 = vmatpush1.msra.mxu0 0.0
    %1469 = vmatprep.subr.mxu0 0.0
    %1470 = vmatpush1.msra.mxu0 0.0
    %1471 = vmatprep.mubr.f32.mxu0 0.0
    %1472 = vmatmul.mubr.f32.gmra.mrb[0].mxu0 %v1083
    %v1473 = vpop.f32.mrb[0].mxu0
    %v1474 = vadd.f32 %v433, %v1473
    %v1475 = vpop.f32.mrb[0].mxu0
    %v1476 = vadd.f32 %v437, %v1475
    %1477 = vdwg.mxu0
    %1478 = vmatprep.subr.mxu0 %v345
    %1479 = vmatpush1.msra.mxu0 %v344
    %1480 = vmatprep.subr.mxu0 %v349
    %1481 = vmatpush1.msra.mxu0 %v348
    %1482 = vmatprep.subr.mxu0 %v353
    %1483 = vmatpush1.msra.mxu0 %v352
    %1484 = vmatprep.subr.mxu0 %v357
    %1485 = vmatpush1.msra.mxu0 %v356
    %1486 = vmatprep.subr.mxu0 %v361
    %1487 = vmatpush1.msra.mxu0 %v360
    %1488 = vmatprep.subr.mxu0 %v365
    %1489 = vmatpush1.msra.mxu0 %v364
    %1490 = vmatprep.subr.mxu0 %v369
    %1491 = vmatpush1.msra.mxu0 %v368
    %1492 = vmatprep.subr.mxu0 %v373
    %1493 = vmatpush1.msra.mxu0 %v372
    %1494 = vmatprep.subr.mxu0 %v377
    %1495 = vmatpush1.msra.mxu0 %v376
    %1496 = vmatprep.subr.mxu0 %v381
    %1497 = vmatpush1.msra.mxu0 %v380
    %1498 = vmatprep.subr.mxu0 %v385
    %1499 = vmatpush1.msra.mxu0 %v384
    %1500 = vmatprep.subr.mxu0 %v389
    %1501 = vmatpush1.msra.mxu0 %v388
    %1502 = vmatprep.subr.mxu0 %v393
    %1503 = vmatpush1.msra.mxu0 %v392
    %1504 = vmatprep.subr.mxu0 %v397
    %1505 = vmatpush1.msra.mxu0 %v396
    %1506 = vmatprep.subr.mxu0 %v401
    %1507 = vmatpush1.msra.mxu0 %v400
    %1508 = vmatprep.subr.mxu0 %v405
    %1509 = vmatpush1.msra.mxu0 %v404
    %1510 = vmatprep.subr.mxu0 0.0
    %1511 = vmatpush1.msra.mxu0 0.0
    %1512 = vmatprep.subr.mxu0 0.0
    %1513 = vmatpush1.msra.mxu0 0.0
    %1514 = vmatprep.subr.mxu0 0.0
    %1515 = vmatpush1.msra.mxu0 0.0
    %1516 = vmatprep.subr.mxu0 0.0
    %1517 = vmatpush1.msra.mxu0 0.0
    %1518 = vmatprep.subr.mxu0 0.0
    %1519 = vmatpush1.msra.mxu0 0.0
    %1520 = vmatprep.subr.mxu0 0.0
    %1521 = vmatpush1.msra.mxu0 0.0
    %1522 = vmatprep.subr.mxu0 0.0
    %1523 = vmatpush1.msra.mxu0 0.0
    %1524 = vmatprep.subr.mxu0 0.0
    %1525 = vmatpush1.msra.mxu0 0.0
    %1526 = vmatprep.subr.mxu0 0.0
    %1527 = vmatpush1.msra.mxu0 0.0
    %1528 = vmatprep.subr.mxu0 0.0
    %1529 = vmatpush1.msra.mxu0 0.0
    %1530 = vmatprep.subr.mxu0 0.0
    %1531 = vmatpush1.msra.mxu0 0.0
    %1532 = vmatprep.subr.mxu0 0.0
    %1533 = vmatpush1.msra.mxu0 0.0
    %1534 = vmatprep.subr.mxu0 0.0
    %1535 = vmatpush1.msra.mxu0 0.0
    %1536 = vmatprep.subr.mxu0 0.0
    %1537 = vmatpush1.msra.mxu0 0.0
    %1538 = vmatprep.subr.mxu0 0.0
    %1539 = vmatpush1.msra.mxu0 0.0
    %1540 = vmatprep.subr.mxu0 0.0
    %1541 = vmatpush1.msra.mxu0 0.0
    %1542 = vmatprep.mubr.f32.mxu0 0.0
    %1543 = vmatmul.mubr.f32.gmra.mrb[0].mxu0 %v1083
    %v1544 = vpop.f32.mrb[0].mxu0
    %v1545 = vadd.f32 %v441, %v1544
    %v1546 = vpop.f32.mrb[0].mxu0
    %v1547 = vadd.f32 %v445, %v1546
    %1548 = vdwg.mxu0
    %1549 = vmatprep.subr.mxu0 %v279
    %1550 = vmatpush1.msra.mxu0 %v278
    %1551 = vmatprep.subr.mxu0 %v283
    %1552 = vmatpush1.msra.mxu0 %v282
    %1553 = vmatprep.subr.mxu0 %v287
    %1554 = vmatpush1.msra.mxu0 %v286
    %1555 = vmatprep.subr.mxu0 %v291
    %1556 = vmatpush1.msra.mxu0 %v290
    %1557 = vmatprep.subr.mxu0 %v295
    %1558 = vmatpush1.msra.mxu0 %v294
    %1559 = vmatprep.subr.mxu0 %v299
    %1560 = vmatpush1.msra.mxu0 %v298
    %1561 = vmatprep.subr.mxu0 %v303
    %1562 = vmatpush1.msra.mxu0 %v302
    %1563 = vmatprep.subr.mxu0 %v307
    %1564 = vmatpush1.msra.mxu0 %v306
    %1565 = vmatprep.subr.mxu0 %v311
    %1566 = vmatpush1.msra.mxu0 %v310
    %1567 = vmatprep.subr.mxu0 %v315
    %1568 = vmatpush1.msra.mxu0 %v314
    %1569 = vmatprep.subr.mxu0 %v319
    %1570 = vmatpush1.msra.mxu0 %v318
    %1571 = vmatprep.subr.mxu0 %v323
    %1572 = vmatpush1.msra.mxu0 %v322
    %1573 = vmatprep.subr.mxu0 %v327
    %1574 = vmatpush1.msra.mxu0 %v326
    %1575 = vmatprep.subr.mxu0 %v331
    %1576 = vmatpush1.msra.mxu0 %v330
    %1577 = vmatprep.subr.mxu0 %v335
    %1578 = vmatpush1.msra.mxu0 %v334
    %1579 = vmatprep.subr.mxu0 %v339
    %1580 = vmatpush1.msra.mxu0 %v338
    %1581 = vmatprep.subr.mxu0 0.0
    %1582 = vmatpush1.msra.mxu0 0.0
    %1583 = vmatprep.subr.mxu0 0.0
    %1584 = vmatpush1.msra.mxu0 0.0
    %1585 = vmatprep.subr.mxu0 0.0
    %1586 = vmatpush1.msra.mxu0 0.0
    %1587 = vmatprep.subr.mxu0 0.0
    %1588 = vmatpush1.msra.mxu0 0.0
    %1589 = vmatprep.subr.mxu0 0.0
    %1590 = vmatpush1.msra.mxu0 0.0
    %1591 = vmatprep.subr.mxu0 0.0
    %1592 = vmatpush1.msra.mxu0 0.0
    %1593 = vmatprep.subr.mxu0 0.0
    %1594 = vmatpush1.msra.mxu0 0.0
    %1595 = vmatprep.subr.mxu0 0.0
    %1596 = vmatpush1.msra.mxu0 0.0
    %1597 = vmatprep.subr.mxu0 0.0
    %1598 = vmatpush1.msra.mxu0 0.0
    %1599 = vmatprep.subr.mxu0 0.0
    %1600 = vmatpush1.msra.mxu0 0.0
    %1601 = vmatprep.subr.mxu0 0.0
    %1602 = vmatpush1.msra.mxu0 0.0
    %1603 = vmatprep.subr.mxu0 0.0
    %1604 = vmatpush1.msra.mxu0 0.0
    %1605 = vmatprep.subr.mxu0 0.0
    %1606 = vmatpush1.msra.mxu0 0.0
    %1607 = vmatprep.subr.mxu0 0.0
    %1608 = vmatpush1.msra.mxu0 0.0
    %1609 = vmatprep.subr.mxu0 0.0
    %1610 = vmatpush1.msra.mxu0 0.0
    %1611 = vmatprep.subr.mxu0 0.0
    %1612 = vmatpush1.msra.mxu0 0.0
    %1613 = vmatprep.mubr.f32.mxu0 0.0
    %1614 = vmatmul.mubr.f32.gmra.mrb[0].mxu0 %v1405
    %v1615 = vpop.f32.mrb[0].mxu0
    %v1616 = vadd.f32 0.0, %v1615
    %v1617 = vpop.f32.mrb[0].mxu0
    %v1618 = vadd.f32 0.0, %v1617
    %1619 = vdwg.mxu0
    %1620 = vmatprep.subr.mxu0 %v281
    %1621 = vmatpush1.msra.mxu0 %v280
    %1622 = vmatprep.subr.mxu0 %v285
    %1623 = vmatpush1.msra.mxu0 %v284
    %1624 = vmatprep.subr.mxu0 %v289
    %1625 = vmatpush1.msra.mxu0 %v288
    %1626 = vmatprep.subr.mxu0 %v293
    %1627 = vmatpush1.msra.mxu0 %v292
    %1628 = vmatprep.subr.mxu0 %v297
    %1629 = vmatpush1.msra.mxu0 %v296
    %1630 = vmatprep.subr.mxu0 %v301
    %1631 = vmatpush1.msra.mxu0 %v300
    %1632 = vmatprep.subr.mxu0 %v305
    %1633 = vmatpush1.msra.mxu0 %v304
    %1634 = vmatprep.subr.mxu0 %v309
    %1635 = vmatpush1.msra.mxu0 %v308
    %1636 = vmatprep.subr.mxu0 %v313
    %1637 = vmatpush1.msra.mxu0 %v312
    %1638 = vmatprep.subr.mxu0 %v317
    %1639 = vmatpush1.msra.mxu0 %v316
    %1640 = vmatprep.subr.mxu0 %v321
    %1641 = vmatpush1.msra.mxu0 %v320
    %1642 = vmatprep.subr.mxu0 %v325
    %1643 = vmatpush1.msra.mxu0 %v324
    %1644 = vmatprep.subr.mxu0 %v329
    %1645 = vmatpush1.msra.mxu0 %v328
    %1646 = vmatprep.subr.mxu0 %v333
    %1647 = vmatpush1.msra.mxu0 %v332
    %1648 = vmatprep.subr.mxu0 %v337
    %1649 = vmatpush1.msra.mxu0 %v336
    %1650 = vmatprep.subr.mxu0 %v341
    %1651 = vmatpush1.msra.mxu0 %v340
    %1652 = vmatprep.subr.mxu0 0.0
    %1653 = vmatpush1.msra.mxu0 0.0
    %1654 = vmatprep.subr.mxu0 0.0
    %1655 = vmatpush1.msra.mxu0 0.0
    %1656 = vmatprep.subr.mxu0 0.0
    %1657 = vmatpush1.msra.mxu0 0.0
    %1658 = vmatprep.subr.mxu0 0.0
    %1659 = vmatpush1.msra.mxu0 0.0
    %1660 = vmatprep.subr.mxu0 0.0
    %1661 = vmatpush1.msra.mxu0 0.0
    %1662 = vmatprep.subr.mxu0 0.0
    %1663 = vmatpush1.msra.mxu0 0.0
    %1664 = vmatprep.subr.mxu0 0.0
    %1665 = vmatpush1.msra.mxu0 0.0
    %1666 = vmatprep.subr.mxu0 0.0
    %1667 = vmatpush1.msra.mxu0 0.0
    %1668 = vmatprep.subr.mxu0 0.0
    %1669 = vmatpush1.msra.mxu0 0.0
    %1670 = vmatprep.subr.mxu0 0.0
    %1671 = vmatpush1.msra.mxu0 0.0
    %1672 = vmatprep.subr.mxu0 0.0
    %1673 = vmatpush1.msra.mxu0 0.0
    %1674 = vmatprep.subr.mxu0 0.0
    %1675 = vmatpush1.msra.mxu0 0.0
    %1676 = vmatprep.subr.mxu0 0.0
    %1677 = vmatpush1.msra.mxu0 0.0
    %1678 = vmatprep.subr.mxu0 0.0
    %1679 = vmatpush1.msra.mxu0 0.0
    %1680 = vmatprep.subr.mxu0 0.0
    %1681 = vmatpush1.msra.mxu0 0.0
    %1682 = vmatprep.subr.mxu0 0.0
    %1683 = vmatpush1.msra.mxu0 0.0
    %1684 = vmatprep.mubr.f32.mxu0 0.0
    %1685 = vmatmul.mubr.f32.gmra.mrb[0].mxu0 %v1405
    %v1686 = vpop.f32.mrb[0].mxu0
    %v1687 = vadd.f32 0.0, %v1686
    %v1688 = vpop.f32.mrb[0].mxu0
    %v1689 = vadd.f32 0.0, %v1688
    %1690 = vdwg.mxu0
    %v1691 = vadd.f32 %v1474, %v1616
    %v1692 = vadd.f32 %v1476, %v1618
    %v1693 = vadd.f32 %v1545, %v1687
    %v1694 = vadd.f32 %v1547, %v1689
    %v1695 = vxor.u32 %v1691, 2147483648
    %v1696 = vmul.f32 %v1695, 1.442695
    %v1697 = vpow.pop %v1696
    %v1698 = vadd.f32 %v1697, 1.0
    %v1699 = vrcp.pop %v1698
    %v1700 = vmul.f32 1.0, %v1699
    %v1701 = vxor.u32 %v1692, 2147483648
    %v1702 = vmul.f32 %v1701, 1.442695
    %v1703 = vpow.pop %v1702
    %v1704 = vadd.f32 %v1703, 1.0
    %v1705 = vrcp.pop %v1704
    %v1706 = vmul.f32 1.0, %v1705
    %v1707 = vtanh.pop %v1693
    %v1708 = vxor.u32 %v1694, 2147483648
    %v1709 = vmul.f32 %v1708, 1.442695
    %v1710 = vpow.pop %v1709
    %v1711 = vadd.f32 %v1710, 1.0
    %v1712 = vrcp.pop %v1711
    %v1713 = vmul.f32 1.0, %v1712
    %v1714 = vmul.f32 %v1706, %v1084
    %v1715 = vmul.f32 %v1700, %v1707
    %v1716 = vadd.f32 %v1714, %v1715
    %v1717 = vtanh.pop %v1716
    %v1718 = vmul.f32 %v1713, %v1717
    %v1719 = vsel %vm1404, %v1718, %v1083
    %v1720 = vsel %vm1404, %v1716, %v1084
    %vm1721 = vcmp.gt.s32.totalorder %v149, 2
    %s1722 = scalar_lea.vmem [#allocation2], 4
    %v1723 = vld [vmem:[%s1722] sm:$0x3]
    %1724 = vmatprep.subr.mxu0 %v151
    %1725 = vmatpush1.msra.mxu0 %v150
    %1726 = vmatprep.subr.mxu0 %v155
    %1727 = vmatpush1.msra.mxu0 %v154
    %1728 = vmatprep.subr.mxu0 %v159
    %1729 = vmatpush1.msra.mxu0 %v158
    %1730 = vmatprep.subr.mxu0 %v163
    %1731 = vmatpush1.msra.mxu0 %v162
    %1732 = vmatprep.subr.mxu0 %v167
    %1733 = vmatpush1.msra.mxu0 %v166
    %1734 = vmatprep.subr.mxu0 %v171
    %1735 = vmatpush1.msra.mxu0 %v170
    %1736 = vmatprep.subr.mxu0 %v175
    %1737 = vmatpush1.msra.mxu0 %v174
    %1738 = vmatprep.subr.mxu0 %v179
    %1739 = vmatpush1.msra.mxu0 %v178
    %1740 = vmatprep.subr.mxu0 %v183
    %1741 = vmatpush1.msra.mxu0 %v182
    %1742 = vmatprep.subr.mxu0 %v187
    %1743 = vmatpush1.msra.mxu0 %v186
    %1744 = vmatprep.subr.mxu0 %v191
    %1745 = vmatpush1.msra.mxu0 %v190
    %1746 = vmatprep.subr.mxu0 %v195
    %1747 = vmatpush1.msra.mxu0 %v194
    %1748 = vmatprep.subr.mxu0 %v199
    %1749 = vmatpush1.msra.mxu0 %v198
    %1750 = vmatprep.subr.mxu0 %v203
    %1751 = vmatpush1.msra.mxu0 %v202
    %1752 = vmatprep.subr.mxu0 %v207
    %1753 = vmatpush1.msra.mxu0 %v206
    %1754 = vmatprep.subr.mxu0 %v211
    %1755 = vmatpush1.msra.mxu0 %v210
    %1756 = vmatprep.subr.mxu0 0.0
    %1757 = vmatpush1.msra.mxu0 0.0
    %1758 = vmatprep.subr.mxu0 0.0
    %1759 = vmatpush1.msra.mxu0 0.0
    %1760 = vmatprep.subr.mxu0 0.0
    %1761 = vmatpush1.msra.mxu0 0.0
    %1762 = vmatprep.subr.mxu0 0.0
    %1763 = vmatpush1.msra.mxu0 0.0
    %1764 = vmatprep.subr.mxu0 0.0
    %1765 = vmatpush1.msra.mxu0 0.0
    %1766 = vmatprep.subr.mxu0 0.0
    %1767 = vmatpush1.msra.mxu0 0.0
    %1768 = vmatprep.subr.mxu0 0.0
    %1769 = vmatpush1.msra.mxu0 0.0
    %1770 = vmatprep.subr.mxu0 0.0
    %1771 = vmatpush1.msra.mxu0 0.0
    %1772 = vmatprep.subr.mxu0 0.0
    %1773 = vmatpush1.msra.mxu0 0.0
    %1774 = vmatprep.subr.mxu0 0.0
    %1775 = vmatpush1.msra.mxu0 0.0
    %1776 = vmatprep.subr.mxu0 0.0
    %1777 = vmatpush1.msra.mxu0 0.0
    %1778 = vmatprep.subr.mxu0 0.0
    %1779 = vmatpush1.msra.mxu0 0.0
    %1780 = vmatprep.subr.mxu0 0.0
    %1781 = vmatpush1.msra.mxu0 0.0
    %1782 = vmatprep.subr.mxu0 0.0
    %1783 = vmatpush1.msra.mxu0 0.0
    %1784 = vmatprep.subr.mxu0 0.0
    %1785 = vmatpush1.msra.mxu0 0.0
    %1786 = vmatprep.subr.mxu0 0.0
    %1787 = vmatpush1.msra.mxu0 0.0
    %1788 = vmatprep.mubr.f32.mxu0 0.0
    %1789 = vmatmul.mubr.f32.gmra.mrb[0].mxu0 %v1723
    %v1790 = vpop.f32.mrb[0].mxu0
    %v1791 = vadd.f32 %v411, %v1790
    %v1792 = vpop.f32.mrb[0].mxu0
    %v1793 = vadd.f32 %v415, %v1792
    %1794 = vdwg.mxu0
    %1795 = vmatprep.subr.mxu0 %v153
    %1796 = vmatpush1.msra.mxu0 %v152
    %1797 = vmatprep.subr.mxu0 %v157
    %1798 = vmatpush1.msra.mxu0 %v156
    %1799 = vmatprep.subr.mxu0 %v161
    %1800 = vmatpush1.msra.mxu0 %v160
    %1801 = vmatprep.subr.mxu0 %v165
    %1802 = vmatpush1.msra.mxu0 %v164
    %1803 = vmatprep.subr.mxu0 %v169
    %1804 = vmatpush1.msra.mxu0 %v168
    %1805 = vmatprep.subr.mxu0 %v173
    %1806 = vmatpush1.msra.mxu0 %v172
    %1807 = vmatprep.subr.mxu0 %v177
    %1808 = vmatpush1.msra.mxu0 %v176
    %1809 = vmatprep.subr.mxu0 %v181
    %1810 = vmatpush1.msra.mxu0 %v180
    %1811 = vmatprep.subr.mxu0 %v185
    %1812 = vmatpush1.msra.mxu0 %v184
    %1813 = vmatprep.subr.mxu0 %v189
    %1814 = vmatpush1.msra.mxu0 %v188
    %1815 = vmatprep.subr.mxu0 %v193
    %1816 = vmatpush1.msra.mxu0 %v192
    %1817 = vmatprep.subr.mxu0 %v197
    %1818 = vmatpush1.msra.mxu0 %v196
    %1819 = vmatprep.subr.mxu0 %v201
    %1820 = vmatpush1.msra.mxu0 %v200
    %1821 = vmatprep.subr.mxu0 %v205
    %1822 = vmatpush1.msra.mxu0 %v204
    %1823 = vmatprep.subr.mxu0 %v209
    %1824 = vmatpush1.msra.mxu0 %v208
    %1825 = vmatprep.subr.mxu0 %v213
    %1826 = vmatpush1.msra.mxu0 %v212
    %1827 = vmatprep.subr.mxu0 0.0
    %1828 = vmatpush1.msra.mxu0 0.0
    %1829 = vmatprep.subr.mxu0 0.0
    %1830 = vmatpush1.msra.mxu0 0.0
    %1831 = vmatprep.subr.mxu0 0.0
    %1832 = vmatpush1.msra.mxu0 0.0
    %1833 = vmatprep.subr.mxu0 0.0
    %1834 = vmatpush1.msra.mxu0 0.0
    %1835 = vmatprep.subr.mxu0 0.0
    %1836 = vmatpush1.msra.mxu0 0.0
    %1837 = vmatprep.subr.mxu0 0.0
    %1838 = vmatpush1.msra.mxu0 0.0
    %1839 = vmatprep.subr.mxu0 0.0
    %1840 = vmatpush1.msra.mxu0 0.0
    %1841 = vmatprep.subr.mxu0 0.0
    %1842 = vmatpush1.msra.mxu0 0.0
    %1843 = vmatprep.subr.mxu0 0.0
    %1844 = vmatpush1.msra.mxu0 0.0
    %1845 = vmatprep.subr.mxu0 0.0
    %1846 = vmatpush1.msra.mxu0 0.0
    %1847 = vmatprep.subr.mxu0 0.0
    %1848 = vmatpush1.msra.mxu0 0.0
    %1849 = vmatprep.subr.mxu0 0.0
    %1850 = vmatpush1.msra.mxu0 0.0
    %1851 = vmatprep.subr.mxu0 0.0
    %1852 = vmatpush1.msra.mxu0 0.0
    %1853 = vmatprep.subr.mxu0 0.0
    %1854 = vmatpush1.msra.mxu0 0.0
    %1855 = vmatprep.subr.mxu0 0.0
    %1856 = vmatpush1.msra.mxu0 0.0
    %1857 = vmatprep.subr.mxu0 0.0
    %1858 = vmatpush1.msra.mxu0 0.0
    %1859 = vmatprep.mubr.f32.mxu0 0.0
    %1860 = vmatmul.mubr.f32.gmra.mrb[0].mxu0 %v1723
    %v1861 = vpop.f32.mrb[0].mxu0
    %v1862 = vadd.f32 %v419, %v1861
    %v1863 = vpop.f32.mrb[0].mxu0
    %v1864 = vadd.f32 %v423, %v1863
    %1865 = vdwg.mxu0
    %1866 = vmatprep.subr.mxu0 %v215
    %1867 = vmatpush1.msra.mxu0 %v214
    %1868 = vmatprep.subr.mxu0 %v219
    %1869 = vmatpush1.msra.mxu0 %v218
    %1870 = vmatprep.subr.mxu0 %v223
    %1871 = vmatpush1.msra.mxu0 %v222
    %1872 = vmatprep.subr.mxu0 %v227
    %1873 = vmatpush1.msra.mxu0 %v226
    %1874 = vmatprep.subr.mxu0 %v231
    %1875 = vmatpush1.msra.mxu0 %v230
    %1876 = vmatprep.subr.mxu0 %v235
    %1877 = vmatpush1.msra.mxu0 %v234
    %1878 = vmatprep.subr.mxu0 %v239
    %1879 = vmatpush1.msra.mxu0 %v238
    %1880 = vmatprep.subr.mxu0 %v243
    %1881 = vmatpush1.msra.mxu0 %v242
    %1882 = vmatprep.subr.mxu0 %v247
    %1883 = vmatpush1.msra.mxu0 %v246
    %1884 = vmatprep.subr.mxu0 %v251
    %1885 = vmatpush1.msra.mxu0 %v250
    %1886 = vmatprep.subr.mxu0 %v255
    %1887 = vmatpush1.msra.mxu0 %v254
    %1888 = vmatprep.subr.mxu0 %v259
    %1889 = vmatpush1.msra.mxu0 %v258
    %1890 = vmatprep.subr.mxu0 %v263
    %1891 = vmatpush1.msra.mxu0 %v262
    %1892 = vmatprep.subr.mxu0 %v267
    %1893 = vmatpush1.msra.mxu0 %v266
    %1894 = vmatprep.subr.mxu0 %v271
    %1895 = vmatpush1.msra.mxu0 %v270
    %1896 = vmatprep.subr.mxu0 %v275
    %1897 = vmatpush1.msra.mxu0 %v274
    %1898 = vmatprep.subr.mxu0 0.0
    %1899 = vmatpush1.msra.mxu0 0.0
    %1900 = vmatprep.subr.mxu0 0.0
    %1901 = vmatpush1.msra.mxu0 0.0
    %1902 = vmatprep.subr.mxu0 0.0
    %1903 = vmatpush1.msra.mxu0 0.0
    %1904 = vmatprep.subr.mxu0 0.0
    %1905 = vmatpush1.msra.mxu0 0.0
    %1906 = vmatprep.subr.mxu0 0.0
    %1907 = vmatpush1.msra.mxu0 0.0
    %1908 = vmatprep.subr.mxu0 0.0
    %1909 = vmatpush1.msra.mxu0 0.0
    %1910 = vmatprep.subr.mxu0 0.0
    %1911 = vmatpush1.msra.mxu0 0.0
    %1912 = vmatprep.subr.mxu0 0.0
    %1913 = vmatpush1.msra.mxu0 0.0
    %1914 = vmatprep.subr.mxu0 0.0
    %1915 = vmatpush1.msra.mxu0 0.0
    %1916 = vmatprep.subr.mxu0 0.0
    %1917 = vmatpush1.msra.mxu0 0.0
    %1918 = vmatprep.subr.mxu0 0.0
    %1919 = vmatpush1.msra.mxu0 0.0
    %1920 = vmatprep.subr.mxu0 0.0
    %1921 = vmatpush1.msra.mxu0 0.0
    %1922 = vmatprep.subr.mxu0 0.0
    %1923 = vmatpush1.msra.mxu0 0.0
    %1924 = vmatprep.subr.mxu0 0.0
    %1925 = vmatpush1.msra.mxu0 0.0
    %1926 = vmatprep.subr.mxu0 0.0
    %1927 = vmatpush1.msra.mxu0 0.0
    %1928 = vmatprep.subr.mxu0 0.0
    %1929 = vmatpush1.msra.mxu0 0.0
    %1930 = vmatprep.mubr.f32.mxu0 0.0
    %1931 = vmatmul.mubr.f32.gmra.mrb[0].mxu0 %v1405
    %v1932 = vpop.f32.mrb[0].mxu0
    %v1933 = vadd.f32 0.0, %v1932
    %v1934 = vpop.f32.mrb[0].mxu0
    %v1935 = vadd.f32 0.0, %v1934
    %1936 = vdwg.mxu0
    %1937 = vmatprep.subr.mxu0 %v217
    %1938 = vmatpush1.msra.mxu0 %v216
    %1939 = vmatprep.subr.mxu0 %v221
    %1940 = vmatpush1.msra.mxu0 %v220
    %1941 = vmatprep.subr.mxu0 %v225
    %1942 = vmatpush1.msra.mxu0 %v224
    %1943 = vmatprep.subr.mxu0 %v229
    %1944 = vmatpush1.msra.mxu0 %v228
    %1945 = vmatprep.subr.mxu0 %v233
    %1946 = vmatpush1.msra.mxu0 %v232
    %1947 = vmatprep.subr.mxu0 %v237
    %1948 = vmatpush1.msra.mxu0 %v236
    %1949 = vmatprep.subr.mxu0 %v241
    %1950 = vmatpush1.msra.mxu0 %v240
    %1951 = vmatprep.subr.mxu0 %v245
    %1952 = vmatpush1.msra.mxu0 %v244
    %1953 = vmatprep.subr.mxu0 %v249
    %1954 = vmatpush1.msra.mxu0 %v248
    %1955 = vmatprep.subr.mxu0 %v253
    %1956 = vmatpush1.msra.mxu0 %v252
    %1957 = vmatprep.subr.mxu0 %v257
    %1958 = vmatpush1.msra.mxu0 %v256
    %1959 = vmatprep.subr.mxu0 %v261
    %1960 = vmatpush1.msra.mxu0 %v260
    %1961 = vmatprep.subr.mxu0 %v265
    %1962 = vmatpush1.msra.mxu0 %v264
    %1963 = vmatprep.subr.mxu0 %v269
    %1964 = vmatpush1.msra.mxu0 %v268
    %1965 = vmatprep.subr.mxu0 %v273
    %1966 = vmatpush1.msra.mxu0 %v272
    %1967 = vmatprep.subr.mxu0 %v277
    %1968 = vmatpush1.msra.mxu0 %v276
    %1969 = vmatprep.subr.mxu0 0.0
    %1970 = vmatpush1.msra.mxu0 0.0
    %1971 = vmatprep.subr.mxu0 0.0
    %1972 = vmatpush1.msra.mxu0 0.0
    %1973 = vmatprep.subr.mxu0 0.0
    %1974 = vmatpush1.msra.mxu0 0.0
    %1975 = vmatprep.subr.mxu0 0.0
    %1976 = vmatpush1.msra.mxu0 0.0
    %1977 = vmatprep.subr.mxu0 0.0
    %1978 = vmatpush1.msra.mxu0 0.0
    %1979 = vmatprep.subr.mxu0 0.0
    %1980 = vmatpush1.msra.mxu0 0.0
    %1981 = vmatprep.subr.mxu0 0.0
    %1982 = vmatpush1.msra.mxu0 0.0
    %1983 = vmatprep.subr.mxu0 0.0
    %1984 = vmatpush1.msra.mxu0 0.0
    %1985 = vmatprep.subr.mxu0 0.0
    %1986 = vmatpush1.msra.mxu0 0.0
    %1987 = vmatprep.subr.mxu0 0.0
    %1988 = vmatpush1.msra.mxu0 0.0
    %1989 = vmatprep.subr.mxu0 0.0
    %1990 = vmatpush1.msra.mxu0 0.0
    %1991 = vmatprep.subr.mxu0 0.0
    %1992 = vmatpush1.msra.mxu0 0.0
    %1993 = vmatprep.subr.mxu0 0.0
    %1994 = vmatpush1.msra.mxu0 0.0
    %1995 = vmatprep.subr.mxu0 0.0
    %1996 = vmatpush1.msra.mxu0 0.0
    %1997 = vmatprep.subr.mxu0 0.0
    %1998 = vmatpush1.msra.mxu0 0.0
    %1999 = vmatprep.subr.mxu0 0.0
    %2000 = vmatpush1.msra.mxu0 0.0
    %2001 = vmatprep.mubr.f32.mxu0 0.0
    %2002 = vmatmul.mubr.f32.gmra.mrb[0].mxu0 %v1405
    %v2003 = vpop.f32.mrb[0].mxu0
    %v2004 = vadd.f32 0.0, %v2003
    %v2005 = vpop.f32.mrb[0].mxu0
    %v2006 = vadd.f32 0.0, %v2005
    %2007 = vdwg.mxu0
    %v2008 = vadd.f32 %v1791, %v1933
    %v2009 = vadd.f32 %v1793, %v1935
    %v2010 = vadd.f32 %v1862, %v2004
    %v2011 = vadd.f32 %v1864, %v2006
    %v2012 = vxor.u32 %v2008, 2147483648
    %v2013 = vmul.f32 %v2012, 1.442695
    %v2014 = vpow.pop %v2013
    %v2015 = vadd.f32 %v2014, 1.0
    %v2016 = vrcp.pop %v2015
    %v2017 = vmul.f32 1.0, %v2016
    %v2018 = vxor.u32 %v2009, 2147483648
    %v2019 = vmul.f32 %v2018, 1.442695
    %v2020 = vpow.pop %v2019
    %v2021 = vadd.f32 %v2020, 1.0
    %v2022 = vrcp.pop %v2021
    %v2023 = vmul.f32 1.0, %v2022
    %v2024 = vtanh.pop %v2010
    %v2025 = vxor.u32 %v2011, 2147483648
    %v2026 = vmul.f32 %v2025, 1.442695
    %v2027 = vpow.pop %v2026
    %v2028 = vadd.f32 %v2027, 1.0
    %v2029 = vrcp.pop %v2028
    %v2030 = vmul.f32 1.0, %v2029
    %v2031 = vmul.f32 %v2023, %v1406
    %v2032 = vmul.f32 %v2017, %v2024
    %v2033 = vadd.f32 %v2031, %v2032
    %v2034 = vtanh.pop %v2033
    %v2035 = vmul.f32 %v2030, %v2034
    %v2036 = vsel %vm1721, 1, 0
    %2037 = vset.pattern.permute.xlu0 0
    %2038 = vperm.xlu0 %2037, %v2036
    %v2039 = vpop.permute.xlu0 %2038
    %vm2040 = vcmp.eq.s32.totalorder %v2039, 1
    %v2041 = vsel %vm2040, %v2035, %v1405
    %v2042 = vsel %vm2040, %v2033, %v1406
    %2043 = vmatprep.subr.mxu0 %v343
    %2044 = vmatpush1.msra.mxu0 %v342
    %2045 = vmatprep.subr.mxu0 %v347
    %2046 = vmatpush1.msra.mxu0 %v346
    %2047 = vmatprep.subr.mxu0 %v351
    %2048 = vmatpush1.msra.mxu0 %v350
    %2049 = vmatprep.subr.mxu0 %v355
    %2050 = vmatpush1.msra.mxu0 %v354
    %2051 = vmatprep.subr.mxu0 %v359
    %2052 = vmatpush1.msra.mxu0 %v358
    %2053 = vmatprep.subr.mxu0 %v363
    %2054 = vmatpush1.msra.mxu0 %v362
    %2055 = vmatprep.subr.mxu0 %v367
    %2056 = vmatpush1.msra.mxu0 %v366
    %2057 = vmatprep.subr.mxu0 %v371
    %2058 = vmatpush1.msra.mxu0 %v370
    %2059 = vmatprep.subr.mxu0 %v375
    %2060 = vmatpush1.msra.mxu0 %v374
    %2061 = vmatprep.subr.mxu0 %v379
    %2062 = vmatpush1.msra.mxu0 %v378
    %2063 = vmatprep.subr.mxu0 %v383
    %2064 = vmatpush1.msra.mxu0 %v382
    %2065 = vmatprep.subr.mxu0 %v387
    %2066 = vmatpush1.msra.mxu0 %v386
    %2067 = vmatprep.subr.mxu0 %v391
    %2068 = vmatpush1.msra.mxu0 %v390
    %2069 = vmatprep.subr.mxu0 %v395
    %2070 = vmatpush1.msra.mxu0 %v394
    %2071 = vmatprep.subr.mxu0 %v399
    %2072 = vmatpush1.msra.mxu0 %v398
    %2073 = vmatprep.subr.mxu0 %v403
    %2074 = vmatpush1.msra.mxu0 %v402
    %2075 = vmatprep.subr.mxu0 0.0
    %2076 = vmatpush1.msra.mxu0 0.0
    %2077 = vmatprep.subr.mxu0 0.0
    %2078 = vmatpush1.msra.mxu0 0.0
    %2079 = vmatprep.subr.mxu0 0.0
    %2080 = vmatpush1.msra.mxu0 0.0
    %2081 = vmatprep.subr.mxu0 0.0
    %2082 = vmatpush1.msra.mxu0 0.0
    %2083 = vmatprep.subr.mxu0 0.0
    %2084 = vmatpush1.msra.mxu0 0.0
    %2085 = vmatprep.subr.mxu0 0.0
    %2086 = vmatpush1.msra.mxu0 0.0
    %2087 = vmatprep.subr.mxu0 0.0
    %2088 = vmatpush1.msra.mxu0 0.0
    %2089 = vmatprep.subr.mxu0 0.0
    %2090 = vmatpush1.msra.mxu0 0.0
    %2091 = vmatprep.subr.mxu0 0.0
    %2092 = vmatpush1.msra.mxu0 0.0
    %2093 = vmatprep.subr.mxu0 0.0
    %2094 = vmatpush1.msra.mxu0 0.0
    %2095 = vmatprep.subr.mxu0 0.0
    %2096 = vmatpush1.msra.mxu0 0.0
    %2097 = vmatprep.subr.mxu0 0.0
    %2098 = vmatpush1.msra.mxu0 0.0
    %2099 = vmatprep.subr.mxu0 0.0
    %2100 = vmatpush1.msra.mxu0 0.0
    %2101 = vmatprep.subr.mxu0 0.0
    %2102 = vmatpush1.msra.mxu0 0.0
    %2103 = vmatprep.subr.mxu0 0.0
    %2104 = vmatpush1.msra.mxu0 0.0
    %2105 = vmatprep.subr.mxu0 0.0
    %2106 = vmatpush1.msra.mxu0 0.0
    %2107 = vmatprep.mubr.f32.mxu0 0.0
    %2108 = vmatmul.mubr.f32.gmra.mrb[0].mxu0 %v1719
    %v2109 = vpop.f32.mrb[0].mxu0
    %v2110 = vadd.f32 %v433, %v2109
    %v2111 = vpop.f32.mrb[0].mxu0
    %v2112 = vadd.f32 %v437, %v2111
    %2113 = vdwg.mxu0
    %2114 = vmatprep.subr.mxu0 %v345
    %2115 = vmatpush1.msra.mxu0 %v344
    %2116 = vmatprep.subr.mxu0 %v349
    %2117 = vmatpush1.msra.mxu0 %v348
    %2118 = vmatprep.subr.mxu0 %v353
    %2119 = vmatpush1.msra.mxu0 %v352
    %2120 = vmatprep.subr.mxu0 %v357
    %2121 = vmatpush1.msra.mxu0 %v356
    %2122 = vmatprep.subr.mxu0 %v361
    %2123 = vmatpush1.msra.mxu0 %v360
    %2124 = vmatprep.subr.mxu0 %v365
    %2125 = vmatpush1.msra.mxu0 %v364
    %2126 = vmatprep.subr.mxu0 %v369
    %2127 = vmatpush1.msra.mxu0 %v368
    %2128 = vmatprep.subr.mxu0 %v373
    %2129 = vmatpush1.msra.mxu0 %v372
    %2130 = vmatprep.subr.mxu0 %v377
    %2131 = vmatpush1.msra.mxu0 %v376
    %2132 = vmatprep.subr.mxu0 %v381
    %2133 = vmatpush1.msra.mxu0 %v380
    %2134 = vmatprep.subr.mxu0 %v385
    %2135 = vmatpush1.msra.mxu0 %v384
    %2136 = vmatprep.subr.mxu0 %v389
    %2137 = vmatpush1.msra.mxu0 %v388
    %2138 = vmatprep.subr.mxu0 %v393
    %2139 = vmatpush1.msra.mxu0 %v392
    %2140 = vmatprep.subr.mxu0 %v397
    %2141 = vmatpush1.msra.mxu0 %v396
    %2142 = vmatprep.subr.mxu0 %v401
    %2143 = vmatpush1.msra.mxu0 %v400
    %2144 = vmatprep.subr.mxu0 %v405
    %2145 = vmatpush1.msra.mxu0 %v404
    %2146 = vmatprep.subr.mxu0 0.0
    %2147 = vmatpush1.msra.mxu0 0.0
    %2148 = vmatprep.subr.mxu0 0.0
    %2149 = vmatpush1.msra.mxu0 0.0
    %2150 = vmatprep.subr.mxu0 0.0
    %2151 = vmatpush1.msra.mxu0 0.0
    %2152 = vmatprep.subr.mxu0 0.0
    %2153 = vmatpush1.msra.mxu0 0.0
    %2154 = vmatprep.subr.mxu0 0.0
    %2155 = vmatpush1.msra.mxu0 0.0
    %2156 = vmatprep.subr.mxu0 0.0
    %2157 = vmatpush1.msra.mxu0 0.0
    %2158 = vmatprep.subr.mxu0 0.0
    %2159 = vmatpush1.msra.mxu0 0.0
    %2160 = vmatprep.subr.mxu0 0.0
    %2161 = vmatpush1.msra.mxu0 0.0
    %2162 = vmatprep.subr.mxu0 0.0
    %2163 = vmatpush1.msra.mxu0 0.0
    %2164 = vmatprep.subr.mxu0 0.0
    %2165 = vmatpush1.msra.mxu0 0.0
    %2166 = vmatprep.subr.mxu0 0.0
    %2167 = vmatpush1.msra.mxu0 0.0
    %2168 = vmatprep.subr.mxu0 0.0
    %2169 = vmatpush1.msra.mxu0 0.0
    %2170 = vmatprep.subr.mxu0 0.0
    %2171 = vmatpush1.msra.mxu0 0.0
    %2172 = vmatprep.subr.mxu0 0.0
    %2173 = vmatpush1.msra.mxu0 0.0
    %2174 = vmatprep.subr.mxu0 0.0
    %2175 = vmatpush1.msra.mxu0 0.0
    %2176 = vmatprep.subr.mxu0 0.0
    %2177 = vmatpush1.msra.mxu0 0.0
    %2178 = vmatprep.mubr.f32.mxu0 0.0
    %2179 = vmatmul.mubr.f32.gmra.mrb[0].mxu0 %v1719
    %v2180 = vpop.f32.mrb[0].mxu0
    %v2181 = vadd.f32 %v441, %v2180
    %v2182 = vpop.f32.mrb[0].mxu0
    %v2183 = vadd.f32 %v445, %v2182
    %2184 = vdwg.mxu0
    %2185 = vmatprep.subr.mxu0 %v279
    %2186 = vmatpush1.msra.mxu0 %v278
    %2187 = vmatprep.subr.mxu0 %v283
    %2188 = vmatpush1.msra.mxu0 %v282
    %2189 = vmatprep.subr.mxu0 %v287
    %2190 = vmatpush1.msra.mxu0 %v286
    %2191 = vmatprep.subr.mxu0 %v291
    %2192 = vmatpush1.msra.mxu0 %v290
    %2193 = vmatprep.subr.mxu0 %v295
    %2194 = vmatpush1.msra.mxu0 %v294
    %2195 = vmatprep.subr.mxu0 %v299
    %2196 = vmatpush1.msra.mxu0 %v298
    %2197 = vmatprep.subr.mxu0 %v303
    %2198 = vmatpush1.msra.mxu0 %v302
    %2199 = vmatprep.subr.mxu0 %v307
    %2200 = vmatpush1.msra.mxu0 %v306
    %2201 = vmatprep.subr.mxu0 %v311
    %2202 = vmatpush1.msra.mxu0 %v310
    %2203 = vmatprep.subr.mxu0 %v315
    %2204 = vmatpush1.msra.mxu0 %v314
    %2205 = vmatprep.subr.mxu0 %v319
    %2206 = vmatpush1.msra.mxu0 %v318
    %2207 = vmatprep.subr.mxu0 %v323
    %2208 = vmatpush1.msra.mxu0 %v322
    %2209 = vmatprep.subr.mxu0 %v327
    %2210 = vmatpush1.msra.mxu0 %v326
    %2211 = vmatprep.subr.mxu0 %v331
    %2212 = vmatpush1.msra.mxu0 %v330
    %2213 = vmatprep.subr.mxu0 %v335
    %2214 = vmatpush1.msra.mxu0 %v334
    %2215 = vmatprep.subr.mxu0 %v339
    %2216 = vmatpush1.msra.mxu0 %v338
    %2217 = vmatprep.subr.mxu0 0.0
    %2218 = vmatpush1.msra.mxu0 0.0
    %2219 = vmatprep.subr.mxu0 0.0
    %2220 = vmatpush1.msra.mxu0 0.0
    %2221 = vmatprep.subr.mxu0 0.0
    %2222 = vmatpush1.msra.mxu0 0.0
    %2223 = vmatprep.subr.mxu0 0.0
    %2224 = vmatpush1.msra.mxu0 0.0
    %2225 = vmatprep.subr.mxu0 0.0
    %2226 = vmatpush1.msra.mxu0 0.0
    %2227 = vmatprep.subr.mxu0 0.0
    %2228 = vmatpush1.msra.mxu0 0.0
    %2229 = vmatprep.subr.mxu0 0.0
    %2230 = vmatpush1.msra.mxu0 0.0
    %2231 = vmatprep.subr.mxu0 0.0
    %2232 = vmatpush1.msra.mxu0 0.0
    %2233 = vmatprep.subr.mxu0 0.0
    %2234 = vmatpush1.msra.mxu0 0.0
    %2235 = vmatprep.subr.mxu0 0.0
    %2236 = vmatpush1.msra.mxu0 0.0
    %2237 = vmatprep.subr.mxu0 0.0
    %2238 = vmatpush1.msra.mxu0 0.0
    %2239 = vmatprep.subr.mxu0 0.0
    %2240 = vmatpush1.msra.mxu0 0.0
    %2241 = vmatprep.subr.mxu0 0.0
    %2242 = vmatpush1.msra.mxu0 0.0
    %2243 = vmatprep.subr.mxu0 0.0
    %2244 = vmatpush1.msra.mxu0 0.0
    %2245 = vmatprep.subr.mxu0 0.0
    %2246 = vmatpush1.msra.mxu0 0.0
    %2247 = vmatprep.subr.mxu0 0.0
    %2248 = vmatpush1.msra.mxu0 0.0
    %2249 = vmatprep.mubr.f32.mxu0 0.0
    %2250 = vmatmul.mubr.f32.gmra.mrb[0].mxu0 %v2041
    %v2251 = vpop.f32.mrb[0].mxu0
    %v2252 = vadd.f32 0.0, %v2251
    %v2253 = vpop.f32.mrb[0].mxu0
    %v2254 = vadd.f32 0.0, %v2253
    %2255 = vdwg.mxu0
    %2256 = vmatprep.subr.mxu0 %v281
    %2257 = vmatpush1.msra.mxu0 %v280
    %2258 = vmatprep.subr.mxu0 %v285
    %2259 = vmatpush1.msra.mxu0 %v284
    %2260 = vmatprep.subr.mxu0 %v289
    %2261 = vmatpush1.msra.mxu0 %v288
    %2262 = vmatprep.subr.mxu0 %v293
    %2263 = vmatpush1.msra.mxu0 %v292
    %2264 = vmatprep.subr.mxu0 %v297
    %2265 = vmatpush1.msra.mxu0 %v296
    %2266 = vmatprep.subr.mxu0 %v301
    %2267 = vmatpush1.msra.mxu0 %v300
    %2268 = vmatprep.subr.mxu0 %v305
    %2269 = vmatpush1.msra.mxu0 %v304
    %2270 = vmatprep.subr.mxu0 %v309
    %2271 = vmatpush1.msra.mxu0 %v308
    %2272 = vmatprep.subr.mxu0 %v313
    %2273 = vmatpush1.msra.mxu0 %v312
    %2274 = vmatprep.subr.mxu0 %v317
    %2275 = vmatpush1.msra.mxu0 %v316
    %2276 = vmatprep.subr.mxu0 %v321
    %2277 = vmatpush1.msra.mxu0 %v320
    %2278 = vmatprep.subr.mxu0 %v325
    %2279 = vmatpush1.msra.mxu0 %v324
    %2280 = vmatprep.subr.mxu0 %v329
    %2281 = vmatpush1.msra.mxu0 %v328
    %2282 = vmatprep.subr.mxu0 %v333
    %2283 = vmatpush1.msra.mxu0 %v332
    %2284 = vmatprep.subr.mxu0 %v337
    %2285 = vmatpush1.msra.mxu0 %v336
    %2286 = vmatprep.subr.mxu0 %v341
    %2287 = vmatpush1.msra.mxu0 %v340
    %2288 = vmatprep.subr.mxu0 0.0
    %2289 = vmatpush1.msra.mxu0 0.0
    %2290 = vmatprep.subr.mxu0 0.0
    %2291 = vmatpush1.msra.mxu0 0.0
    %2292 = vmatprep.subr.mxu0 0.0
    %2293 = vmatpush1.msra.mxu0 0.0
    %2294 = vmatprep.subr.mxu0 0.0
    %2295 = vmatpush1.msra.mxu0 0.0
    %2296 = vmatprep.subr.mxu0 0.0
    %2297 = vmatpush1.msra.mxu0 0.0
    %2298 = vmatprep.subr.mxu0 0.0
    %2299 = vmatpush1.msra.mxu0 0.0
    %2300 = vmatprep.subr.mxu0 0.0
    %2301 = vmatpush1.msra.mxu0 0.0
    %2302 = vmatprep.subr.mxu0 0.0
    %2303 = vmatpush1.msra.mxu0 0.0
    %2304 = vmatprep.subr.mxu0 0.0
    %2305 = vmatpush1.msra.mxu0 0.0
    %2306 = vmatprep.subr.mxu0 0.0
    %2307 = vmatpush1.msra.mxu0 0.0
    %2308 = vmatprep.subr.mxu0 0.0
    %2309 = vmatpush1.msra.mxu0 0.0
    %2310 = vmatprep.subr.mxu0 0.0
    %2311 = vmatpush1.msra.mxu0 0.0
    %2312 = vmatprep.subr.mxu0 0.0
    %2313 = vmatpush1.msra.mxu0 0.0
    %2314 = vmatprep.subr.mxu0 0.0
    %2315 = vmatpush1.msra.mxu0 0.0
    %2316 = vmatprep.subr.mxu0 0.0
    %2317 = vmatpush1.msra.mxu0 0.0
    %2318 = vmatprep.subr.mxu0 0.0
    %2319 = vmatpush1.msra.mxu0 0.0
    %2320 = vmatprep.mubr.f32.mxu0 0.0
    %2321 = vmatmul.mubr.f32.gmra.mrb[0].mxu0 %v2041
    %v2322 = vpop.f32.mrb[0].mxu0
    %v2323 = vadd.f32 0.0, %v2322
    %v2324 = vpop.f32.mrb[0].mxu0
    %v2325 = vadd.f32 0.0, %v2324
    %2326 = vdwg.mxu0
    %v2327 = vadd.f32 %v2110, %v2252
    %v2328 = vadd.f32 %v2112, %v2254
    %v2329 = vadd.f32 %v2181, %v2323
    %v2330 = vadd.f32 %v2183, %v2325
    %v2331 = vxor.u32 %v2327, 2147483648
    %v2332 = vmul.f32 %v2331, 1.442695
    %v2333 = vpow.pop %v2332
    %v2334 = vadd.f32 %v2333, 1.0
    %v2335 = vrcp.pop %v2334
    %v2336 = vmul.f32 1.0, %v2335
    %v2337 = vxor.u32 %v2328, 2147483648
    %v2338 = vmul.f32 %v2337, 1.442695
    %v2339 = vpow.pop %v2338
    %v2340 = vadd.f32 %v2339, 1.0
    %v2341 = vrcp.pop %v2340
    %v2342 = vmul.f32 1.0, %v2341
    %v2343 = vtanh.pop %v2329
    %v2344 = vxor.u32 %v2330, 2147483648
    %v2345 = vmul.f32 %v2344, 1.442695
    %v2346 = vpow.pop %v2345
    %v2347 = vadd.f32 %v2346, 1.0
    %v2348 = vrcp.pop %v2347
    %v2349 = vmul.f32 1.0, %v2348
    %v2350 = vmul.f32 %v2342, %v1720
    %v2351 = vmul.f32 %v2336, %v2343
    %v2352 = vadd.f32 %v2350, %v2351
    %v2353 = vtanh.pop %v2352
    %v2354 = vmul.f32 %v2349, %v2353
    %v2355 = vsel %vm2040, %v2354, %v1719
    %v2356 = vsel %vm2040, %v2352, %v1720
    %vm2357 = vcmp.gt.s32.totalorder %v149, 3
    %s2358 = scalar_lea.vmem [#allocation2], 6
    %v2359 = vld [vmem:[%s2358] sm:$0x3]
    %2360 = vmatprep.subr.mxu0 %v151
    %2361 = vmatpush1.msra.mxu0 %v150
    %2362 = vmatprep.subr.mxu0 %v155
    %2363 = vmatpush1.msra.mxu0 %v154
    %2364 = vmatprep.subr.mxu0 %v159
    %2365 = vmatpush1.msra.mxu0 %v158
    %2366 = vmatprep.subr.mxu0 %v163
    %2367 = vmatpush1.msra.mxu0 %v162
    %2368 = vmatprep.subr.mxu0 %v167
    %2369 = vmatpush1.msra.mxu0 %v166
    %2370 = vmatprep.subr.mxu0 %v171
    %2371 = vmatpush1.msra.mxu0 %v170
    %2372 = vmatprep.subr.mxu0 %v175
    %2373 = vmatpush1.msra.mxu0 %v174
    %2374 = vmatprep.subr.mxu0 %v179
    %2375 = vmatpush1.msra.mxu0 %v178
    %2376 = vmatprep.subr.mxu0 %v183
    %2377 = vmatpush1.msra.mxu0 %v182
    %2378 = vmatprep.subr.mxu0 %v187
    %2379 = vmatpush1.msra.mxu0 %v186
    %2380 = vmatprep.subr.mxu0 %v191
    %2381 = vmatpush1.msra.mxu0 %v190
    %2382 = vmatprep.subr.mxu0 %v195
    %2383 = vmatpush1.msra.mxu0 %v194
    %2384 = vmatprep.subr.mxu0 %v199
    %2385 = vmatpush1.msra.mxu0 %v198
    %2386 = vmatprep.subr.mxu0 %v203
    %2387 = vmatpush1.msra.mxu0 %v202
    %2388 = vmatprep.subr.mxu0 %v207
    %2389 = vmatpush1.msra.mxu0 %v206
    %2390 = vmatprep.subr.mxu0 %v211
    %2391 = vmatpush1.msra.mxu0 %v210
    %2392 = vmatprep.subr.mxu0 0.0
    %2393 = vmatpush1.msra.mxu0 0.0
    %2394 = vmatprep.subr.mxu0 0.0
    %2395 = vmatpush1.msra.mxu0 0.0
    %2396 = vmatprep.subr.mxu0 0.0
    %2397 = vmatpush1.msra.mxu0 0.0
    %2398 = vmatprep.subr.mxu0 0.0
    %2399 = vmatpush1.msra.mxu0 0.0
    %2400 = vmatprep.subr.mxu0 0.0
    %2401 = vmatpush1.msra.mxu0 0.0
    %2402 = vmatprep.subr.mxu0 0.0
    %2403 = vmatpush1.msra.mxu0 0.0
    %2404 = vmatprep.subr.mxu0 0.0
    %2405 = vmatpush1.msra.mxu0 0.0
    %2406 = vmatprep.subr.mxu0 0.0
    %2407 = vmatpush1.msra.mxu0 0.0
    %2408 = vmatprep.subr.mxu0 0.0
    %2409 = vmatpush1.msra.mxu0 0.0
    %2410 = vmatprep.subr.mxu0 0.0
    %2411 = vmatpush1.msra.mxu0 0.0
    %2412 = vmatprep.subr.mxu0 0.0
    %2413 = vmatpush1.msra.mxu0 0.0
    %2414 = vmatprep.subr.mxu0 0.0
    %2415 = vmatpush1.msra.mxu0 0.0
    %2416 = vmatprep.subr.mxu0 0.0
    %2417 = vmatpush1.msra.mxu0 0.0
    %2418 = vmatprep.subr.mxu0 0.0
    %2419 = vmatpush1.msra.mxu0 0.0
    %2420 = vmatprep.subr.mxu0 0.0
    %2421 = vmatpush1.msra.mxu0 0.0
    %2422 = vmatprep.subr.mxu0 0.0
    %2423 = vmatpush1.msra.mxu0 0.0
    %2424 = vmatprep.mubr.f32.mxu0 0.0
    %2425 = vmatmul.mubr.f32.gmra.mrb[0].mxu0 %v2359
    %v2426 = vpop.f32.mrb[0].mxu0
    %v2427 = vadd.f32 %v411, %v2426
    %v2428 = vpop.f32.mrb[0].mxu0
    %v2429 = vadd.f32 %v415, %v2428
    %2430 = vdwg.mxu0
    %2431 = vmatprep.subr.mxu0 %v153
    %2432 = vmatpush1.msra.mxu0 %v152
    %2433 = vmatprep.subr.mxu0 %v157
    %2434 = vmatpush1.msra.mxu0 %v156
    %2435 = vmatprep.subr.mxu0 %v161
    %2436 = vmatpush1.msra.mxu0 %v160
    %2437 = vmatprep.subr.mxu0 %v165
    %2438 = vmatpush1.msra.mxu0 %v164
    %2439 = vmatprep.subr.mxu0 %v169
    %2440 = vmatpush1.msra.mxu0 %v168
    %2441 = vmatprep.subr.mxu0 %v173
    %2442 = vmatpush1.msra.mxu0 %v172
    %2443 = vmatprep.subr.mxu0 %v177
    %2444 = vmatpush1.msra.mxu0 %v176
    %2445 = vmatprep.subr.mxu0 %v181
    %2446 = vmatpush1.msra.mxu0 %v180
    %2447 = vmatprep.subr.mxu0 %v185
    %2448 = vmatpush1.msra.mxu0 %v184
    %2449 = vmatprep.subr.mxu0 %v189
    %2450 = vmatpush1.msra.mxu0 %v188
    %2451 = vmatprep.subr.mxu0 %v193
    %2452 = vmatpush1.msra.mxu0 %v192
    %2453 = vmatprep.subr.mxu0 %v197
    %2454 = vmatpush1.msra.mxu0 %v196
    %2455 = vmatprep.subr.mxu0 %v201
    %2456 = vmatpush1.msra.mxu0 %v200
    %2457 = vmatprep.subr.mxu0 %v205
    %2458 = vmatpush1.msra.mxu0 %v204
    %2459 = vmatprep.subr.mxu0 %v209
    %2460 = vmatpush1.msra.mxu0 %v208
    %2461 = vmatprep.subr.mxu0 %v213
    %2462 = vmatpush1.msra.mxu0 %v212
    %2463 = vmatprep.subr.mxu0 0.0
    %2464 = vmatpush1.msra.mxu0 0.0
    %2465 = vmatprep.subr.mxu0 0.0
    %2466 = vmatpush1.msra.mxu0 0.0
    %2467 = vmatprep.subr.mxu0 0.0
    %2468 = vmatpush1.msra.mxu0 0.0
    %2469 = vmatprep.subr.mxu0 0.0
    %2470 = vmatpush1.msra.mxu0 0.0
    %2471 = vmatprep.subr.mxu0 0.0
    %2472 = vmatpush1.msra.mxu0 0.0
    %2473 = vmatprep.subr.mxu0 0.0
    %2474 = vmatpush1.msra.mxu0 0.0
    %2475 = vmatprep.subr.mxu0 0.0
    %2476 = vmatpush1.msra.mxu0 0.0
    %2477 = vmatprep.subr.mxu0 0.0
    %2478 = vmatpush1.msra.mxu0 0.0
    %2479 = vmatprep.subr.mxu0 0.0
    %2480 = vmatpush1.msra.mxu0 0.0
    %2481 = vmatprep.subr.mxu0 0.0
    %2482 = vmatpush1.msra.mxu0 0.0
    %2483 = vmatprep.subr.mxu0 0.0
    %2484 = vmatpush1.msra.mxu0 0.0
    %2485 = vmatprep.subr.mxu0 0.0
    %2486 = vmatpush1.msra.mxu0 0.0
    %2487 = vmatprep.subr.mxu0 0.0
    %2488 = vmatpush1.msra.mxu0 0.0
    %2489 = vmatprep.subr.mxu0 0.0
    %2490 = vmatpush1.msra.mxu0 0.0
    %2491 = vmatprep.subr.mxu0 0.0
    %2492 = vmatpush1.msra.mxu0 0.0
    %2493 = vmatprep.subr.mxu0 0.0
    %2494 = vmatpush1.msra.mxu0 0.0
    %2495 = vmatprep.mubr.f32.mxu0 0.0
    %2496 = vmatmul.mubr.f32.gmra.mrb[0].mxu0 %v2359
    %v2497 = vpop.f32.mrb[0].mxu0
    %v2498 = vadd.f32 %v419, %v2497
    %v2499 = vpop.f32.mrb[0].mxu0
    %v2500 = vadd.f32 %v423, %v2499
    %2501 = vdwg.mxu0
    %2502 = vmatprep.subr.mxu0 %v215
    %2503 = vmatpush1.msra.mxu0 %v214
    %2504 = vmatprep.subr.mxu0 %v219
    %2505 = vmatpush1.msra.mxu0 %v218
    %2506 = vmatprep.subr.mxu0 %v223
    %2507 = vmatpush1.msra.mxu0 %v222
    %2508 = vmatprep.subr.mxu0 %v227
    %2509 = vmatpush1.msra.mxu0 %v226
    %2510 = vmatprep.subr.mxu0 %v231
    %2511 = vmatpush1.msra.mxu0 %v230
    %2512 = vmatprep.subr.mxu0 %v235
    %2513 = vmatpush1.msra.mxu0 %v234
    %2514 = vmatprep.subr.mxu0 %v239
    %2515 = vmatpush1.msra.mxu0 %v238
    %2516 = vmatprep.subr.mxu0 %v243
    %2517 = vmatpush1.msra.mxu0 %v242
    %2518 = vmatprep.subr.mxu0 %v247
    %2519 = vmatpush1.msra.mxu0 %v246
    %2520 = vmatprep.subr.mxu0 %v251
    %2521 = vmatpush1.msra.mxu0 %v250
    %2522 = vmatprep.subr.mxu0 %v255
    %2523 = vmatpush1.msra.mxu0 %v254
    %2524 = vmatprep.subr.mxu0 %v259
    %2525 = vmatpush1.msra.mxu0 %v258
    %2526 = vmatprep.subr.mxu0 %v263
    %2527 = vmatpush1.msra.mxu0 %v262
    %2528 = vmatprep.subr.mxu0 %v267
    %2529 = vmatpush1.msra.mxu0 %v266
    %2530 = vmatprep.subr.mxu0 %v271
    %2531 = vmatpush1.msra.mxu0 %v270
    %2532 = vmatprep.subr.mxu0 %v275
    %2533 = vmatpush1.msra.mxu0 %v274
    %2534 = vmatprep.subr.mxu0 0.0
    %2535 = vmatpush1.msra.mxu0 0.0
    %2536 = vmatprep.subr.mxu0 0.0
    %2537 = vmatpush1.msra.mxu0 0.0
    %2538 = vmatprep.subr.mxu0 0.0
    %2539 = vmatpush1.msra.mxu0 0.0
    %2540 = vmatprep.subr.mxu0 0.0
    %2541 = vmatpush1.msra.mxu0 0.0
    %2542 = vmatprep.subr.mxu0 0.0
    %2543 = vmatpush1.msra.mxu0 0.0
    %2544 = vmatprep.subr.mxu0 0.0
    %2545 = vmatpush1.msra.mxu0 0.0
    %2546 = vmatprep.subr.mxu0 0.0
    %2547 = vmatpush1.msra.mxu0 0.0
    %2548 = vmatprep.subr.mxu0 0.0
    %2549 = vmatpush1.msra.mxu0 0.0
    %2550 = vmatprep.subr.mxu0 0.0
    %2551 = vmatpush1.msra.mxu0 0.0
    %2552 = vmatprep.subr.mxu0 0.0
    %2553 = vmatpush1.msra.mxu0 0.0
    %2554 = vmatprep.subr.mxu0 0.0
    %2555 = vmatpush1.msra.mxu0 0.0
    %2556 = vmatprep.subr.mxu0 0.0
    %2557 = vmatpush1.msra.mxu0 0.0
    %2558 = vmatprep.subr.mxu0 0.0
    %2559 = vmatpush1.msra.mxu0 0.0
    %2560 = vmatprep.subr.mxu0 0.0
    %2561 = vmatpush1.msra.mxu0 0.0
    %2562 = vmatprep.subr.mxu0 0.0
    %2563 = vmatpush1.msra.mxu0 0.0
    %2564 = vmatprep.subr.mxu0 0.0
    %2565 = vmatpush1.msra.mxu0 0.0
    %2566 = vmatprep.mubr.f32.mxu0 0.0
    %2567 = vmatmul.mubr.f32.gmra.mrb[0].mxu0 %v2041
    %v2568 = vpop.f32.mrb[0].mxu0
    %v2569 = vadd.f32 0.0, %v2568
    %v2570 = vpop.f32.mrb[0].mxu0
    %v2571 = vadd.f32 0.0, %v2570
    %2572 = vdwg.mxu0
    %2573 = vmatprep.subr.mxu0 %v217
    %2574 = vmatpush1.msra.mxu0 %v216
    %2575 = vmatprep.subr.mxu0 %v221
    %2576 = vmatpush1.msra.mxu0 %v220
    %2577 = vmatprep.subr.mxu0 %v225
    %2578 = vmatpush1.msra.mxu0 %v224
    %2579 = vmatprep.subr.mxu0 %v229
    %2580 = vmatpush1.msra.mxu0 %v228
    %2581 = vmatprep.subr.mxu0 %v233
    %2582 = vmatpush1.msra.mxu0 %v232
    %2583 = vmatprep.subr.mxu0 %v237
    %2584 = vmatpush1.msra.mxu0 %v236
    %2585 = vmatprep.subr.mxu0 %v241
    %2586 = vmatpush1.msra.mxu0 %v240
    %2587 = vmatprep.subr.mxu0 %v245
    %2588 = vmatpush1.msra.mxu0 %v244
    %2589 = vmatprep.subr.mxu0 %v249
    %2590 = vmatpush1.msra.mxu0 %v248
    %2591 = vmatprep.subr.mxu0 %v253
    %2592 = vmatpush1.msra.mxu0 %v252
    %2593 = vmatprep.subr.mxu0 %v257
    %2594 = vmatpush1.msra.mxu0 %v256
    %2595 = vmatprep.subr.mxu0 %v261
    %2596 = vmatpush1.msra.mxu0 %v260
    %2597 = vmatprep.subr.mxu0 %v265
    %2598 = vmatpush1.msra.mxu0 %v264
    %2599 = vmatprep.subr.mxu0 %v269
    %2600 = vmatpush1.msra.mxu0 %v268
    %2601 = vmatprep.subr.mxu0 %v273
    %2602 = vmatpush1.msra.mxu0 %v272
    %2603 = vmatprep.subr.mxu0 %v277
    %2604 = vmatpush1.msra.mxu0 %v276
    %2605 = vmatprep.subr.mxu0 0.0
    %2606 = vmatpush1.msra.mxu0 0.0
    %2607 = vmatprep.subr.mxu0 0.0
    %2608 = vmatpush1.msra.mxu0 0.0
    %2609 = vmatprep.subr.mxu0 0.0
    %2610 = vmatpush1.msra.mxu0 0.0
    %2611 = vmatprep.subr.mxu0 0.0
    %2612 = vmatpush1.msra.mxu0 0.0
    %2613 = vmatprep.subr.mxu0 0.0
    %2614 = vmatpush1.msra.mxu0 0.0
    %2615 = vmatprep.subr.mxu0 0.0
    %2616 = vmatpush1.msra.mxu0 0.0
    %2617 = vmatprep.subr.mxu0 0.0
    %2618 = vmatpush1.msra.mxu0 0.0
    %2619 = vmatprep.subr.mxu0 0.0
    %2620 = vmatpush1.msra.mxu0 0.0
    %2621 = vmatprep.subr.mxu0 0.0
    %2622 = vmatpush1.msra.mxu0 0.0
    %2623 = vmatprep.subr.mxu0 0.0
    %2624 = vmatpush1.msra.mxu0 0.0
    %2625 = vmatprep.subr.mxu0 0.0
    %2626 = vmatpush1.msra.mxu0 0.0
    %2627 = vmatprep.subr.mxu0 0.0
    %2628 = vmatpush1.msra.mxu0 0.0
    %2629 = vmatprep.subr.mxu0 0.0
    %2630 = vmatpush1.msra.mxu0 0.0
    %2631 = vmatprep.subr.mxu0 0.0
    %2632 = vmatpush1.msra.mxu0 0.0
    %2633 = vmatprep.subr.mxu0 0.0
    %2634 = vmatpush1.msra.mxu0 0.0
    %2635 = vmatprep.subr.mxu0 0.0
    %2636 = vmatpush1.msra.mxu0 0.0
    %2637 = vmatprep.mubr.f32.mxu0 0.0
    %2638 = vmatmul.mubr.f32.gmra.mrb[0].mxu0 %v2041
    %v2639 = vpop.f32.mrb[0].mxu0
    %v2640 = vadd.f32 0.0, %v2639
    %v2641 = vpop.f32.mrb[0].mxu0
    %v2642 = vadd.f32 0.0, %v2641
    %2643 = vdwg.mxu0
    %v2644 = vadd.f32 %v2427, %v2569
    %v2645 = vadd.f32 %v2429, %v2571
    %v2646 = vadd.f32 %v2498, %v2640
    %v2647 = vadd.f32 %v2500, %v2642
    %v2648 = vxor.u32 %v2644, 2147483648
    %v2649 = vmul.f32 %v2648, 1.442695
    %v2650 = vpow.pop %v2649
    %v2651 = vadd.f32 %v2650, 1.0
    %v2652 = vrcp.pop %v2651
    %v2653 = vmul.f32 1.0, %v2652
    %v2654 = vxor.u32 %v2645, 2147483648
    %v2655 = vmul.f32 %v2654, 1.442695
    %v2656 = vpow.pop %v2655
    %v2657 = vadd.f32 %v2656, 1.0
    %v2658 = vrcp.pop %v2657
    %v2659 = vmul.f32 1.0, %v2658
    %v2660 = vtanh.pop %v2646
    %v2661 = vxor.u32 %v2647, 2147483648
    %v2662 = vmul.f32 %v2661, 1.442695
    %v2663 = vpow.pop %v2662
    %v2664 = vadd.f32 %v2663, 1.0
    %v2665 = vrcp.pop %v2664
    %v2666 = vmul.f32 1.0, %v2665
    %v2667 = vmul.f32 %v2659, %v2042
    %v2668 = vmul.f32 %v2653, %v2660
    %v2669 = vadd.f32 %v2667, %v2668
    %v2670 = vtanh.pop %v2669
    %v2671 = vmul.f32 %v2666, %v2670
    %v2672 = vsel %vm2357, 1, 0
    %2673 = vset.pattern.permute.xlu0 0
    %2674 = vperm.xlu0 %2673, %v2672
    %v2675 = vpop.permute.xlu0 %2674
    %vm2676 = vcmp.eq.s32.totalorder %v2675, 1
    %v2677 = vsel %vm2676, %v2671, %v2041
    %v2678 = vsel %vm2676, %v2669, %v2042
    %2679 = vmatprep.subr.mxu0 %v343
    %2680 = vmatpush1.msra.mxu0 %v342
    %2681 = vmatprep.subr.mxu0 %v347
    %2682 = vmatpush1.msra.mxu0 %v346
    %2683 = vmatprep.subr.mxu0 %v351
    %2684 = vmatpush1.msra.mxu0 %v350
    %2685 = vmatprep.subr.mxu0 %v355
    %2686 = vmatpush1.msra.mxu0 %v354
    %2687 = vmatprep.subr.mxu0 %v359
    %2688 = vmatpush1.msra.mxu0 %v358
    %2689 = vmatprep.subr.mxu0 %v363
    %2690 = vmatpush1.msra.mxu0 %v362
    %2691 = vmatprep.subr.mxu0 %v367
    %2692 = vmatpush1.msra.mxu0 %v366
    %2693 = vmatprep.subr.mxu0 %v371
    %2694 = vmatpush1.msra.mxu0 %v370
    %2695 = vmatprep.subr.mxu0 %v375
    %2696 = vmatpush1.msra.mxu0 %v374
    %2697 = vmatprep.subr.mxu0 %v379
    %2698 = vmatpush1.msra.mxu0 %v378
    %2699 = vmatprep.subr.mxu0 %v383
    %2700 = vmatpush1.msra.mxu0 %v382
    %2701 = vmatprep.subr.mxu0 %v387
    %2702 = vmatpush1.msra.mxu0 %v386
    %2703 = vmatprep.subr.mxu0 %v391
    %2704 = vmatpush1.msra.mxu0 %v390
    %2705 = vmatprep.subr.mxu0 %v395
    %2706 = vmatpush1.msra.mxu0 %v394
    %2707 = vmatprep.subr.mxu0 %v399
    %2708 = vmatpush1.msra.mxu0 %v398
    %2709 = vmatprep.subr.mxu0 %v403
    %2710 = vmatpush1.msra.mxu0 %v402
    %2711 = vmatprep.subr.mxu0 0.0
    %2712 = vmatpush1.msra.mxu0 0.0
    %2713 = vmatprep.subr.mxu0 0.0
    %2714 = vmatpush1.msra.mxu0 0.0
    %2715 = vmatprep.subr.mxu0 0.0
    %2716 = vmatpush1.msra.mxu0 0.0
    %2717 = vmatprep.subr.mxu0 0.0
    %2718 = vmatpush1.msra.mxu0 0.0
    %2719 = vmatprep.subr.mxu0 0.0
    %2720 = vmatpush1.msra.mxu0 0.0
    %2721 = vmatprep.subr.mxu0 0.0
    %2722 = vmatpush1.msra.mxu0 0.0
    %2723 = vmatprep.subr.mxu0 0.0
    %2724 = vmatpush1.msra.mxu0 0.0
    %2725 = vmatprep.subr.mxu0 0.0
    %2726 = vmatpush1.msra.mxu0 0.0
    %2727 = vmatprep.subr.mxu0 0.0
    %2728 = vmatpush1.msra.mxu0 0.0
    %2729 = vmatprep.subr.mxu0 0.0
    %2730 = vmatpush1.msra.mxu0 0.0
    %2731 = vmatprep.subr.mxu0 0.0
    %2732 = vmatpush1.msra.mxu0 0.0
    %2733 = vmatprep.subr.mxu0 0.0
    %2734 = vmatpush1.msra.mxu0 0.0
    %2735 = vmatprep.subr.mxu0 0.0
    %2736 = vmatpush1.msra.mxu0 0.0
    %2737 = vmatprep.subr.mxu0 0.0
    %2738 = vmatpush1.msra.mxu0 0.0
    %2739 = vmatprep.subr.mxu0 0.0
    %2740 = vmatpush1.msra.mxu0 0.0
    %2741 = vmatprep.subr.mxu0 0.0
    %2742 = vmatpush1.msra.mxu0 0.0
    %2743 = vmatprep.mubr.f32.mxu0 0.0
    %2744 = vmatmul.mubr.f32.gmra.mrb[0].mxu0 %v2355
    %v2745 = vpop.f32.mrb[0].mxu0
    %v2746 = vadd.f32 %v433, %v2745
    %v2747 = vpop.f32.mrb[0].mxu0
    %v2748 = vadd.f32 %v437, %v2747
    %2749 = vdwg.mxu0
    %2750 = vmatprep.subr.mxu0 %v345
    %2751 = vmatpush1.msra.mxu0 %v344
    %2752 = vmatprep.subr.mxu0 %v349
    %2753 = vmatpush1.msra.mxu0 %v348
    %2754 = vmatprep.subr.mxu0 %v353
    %2755 = vmatpush1.msra.mxu0 %v352
    %2756 = vmatprep.subr.mxu0 %v357
    %2757 = vmatpush1.msra.mxu0 %v356
    %2758 = vmatprep.subr.mxu0 %v361
    %2759 = vmatpush1.msra.mxu0 %v360
    %2760 = vmatprep.subr.mxu0 %v365
    %2761 = vmatpush1.msra.mxu0 %v364
    %2762 = vmatprep.subr.mxu0 %v369
    %2763 = vmatpush1.msra.mxu0 %v368
    %2764 = vmatprep.subr.mxu0 %v373
    %2765 = vmatpush1.msra.mxu0 %v372
    %2766 = vmatprep.subr.mxu0 %v377
    %2767 = vmatpush1.msra.mxu0 %v376
    %2768 = vmatprep.subr.mxu0 %v381
    %2769 = vmatpush1.msra.mxu0 %v380
    %2770 = vmatprep.subr.mxu0 %v385
    %2771 = vmatpush1.msra.mxu0 %v384
    %2772 = vmatprep.subr.mxu0 %v389
    %2773 = vmatpush1.msra.mxu0 %v388
    %2774 = vmatprep.subr.mxu0 %v393
    %2775 = vmatpush1.msra.mxu0 %v392
    %2776 = vmatprep.subr.mxu0 %v397
    %2777 = vmatpush1.msra.mxu0 %v396
    %2778 = vmatprep.subr.mxu0 %v401
    %2779 = vmatpush1.msra.mxu0 %v400
    %2780 = vmatprep.subr.mxu0 %v405
    %2781 = vmatpush1.msra.mxu0 %v404
    %2782 = vmatprep.subr.mxu0 0.0
    %2783 = vmatpush1.msra.mxu0 0.0
    %2784 = vmatprep.subr.mxu0 0.0
    %2785 = vmatpush1.msra.mxu0 0.0
    %2786 = vmatprep.subr.mxu0 0.0
    %2787 = vmatpush1.msra.mxu0 0.0
    %2788 = vmatprep.subr.mxu0 0.0
    %2789 = vmatpush1.msra.mxu0 0.0
    %2790 = vmatprep.subr.mxu0 0.0
    %2791 = vmatpush1.msra.mxu0 0.0
    %2792 = vmatprep.subr.mxu0 0.0
    %2793 = vmatpush1.msra.mxu0 0.0
    %2794 = vmatprep.subr.mxu0 0.0
    %2795 = vmatpush1.msra.mxu0 0.0
    %2796 = vmatprep.subr.mxu0 0.0
    %2797 = vmatpush1.msra.mxu0 0.0
    %2798 = vmatprep.subr.mxu0 0.0
    %2799 = vmatpush1.msra.mxu0 0.0
    %2800 = vmatprep.subr.mxu0 0.0
    %2801 = vmatpush1.msra.mxu0 0.0
    %2802 = vmatprep.subr.mxu0 0.0
    %2803 = vmatpush1.msra.mxu0 0.0
    %2804 = vmatprep.subr.mxu0 0.0
    %2805 = vmatpush1.msra.mxu0 0.0
    %2806 = vmatprep.subr.mxu0 0.0
    %2807 = vmatpush1.msra.mxu0 0.0
    %2808 = vmatprep.subr.mxu0 0.0
    %2809 = vmatpush1.msra.mxu0 0.0
    %2810 = vmatprep.subr.mxu0 0.0
    %2811 = vmatpush1.msra.mxu0 0.0
    %2812 = vmatprep.subr.mxu0 0.0
    %2813 = vmatpush1.msra.mxu0 0.0
    %2814 = vmatprep.mubr.f32.mxu0 0.0
    %2815 = vmatmul.mubr.f32.gmra.mrb[0].mxu0 %v2355
    %v2816 = vpop.f32.mrb[0].mxu0
    %v2817 = vadd.f32 %v441, %v2816
    %v2818 = vpop.f32.mrb[0].mxu0
    %v2819 = vadd.f32 %v445, %v2818
    %2820 = vdwg.mxu0
    %2821 = vmatprep.subr.mxu0 %v279
    %2822 = vmatpush1.msra.mxu0 %v278
    %2823 = vmatprep.subr.mxu0 %v283
    %2824 = vmatpush1.msra.mxu0 %v282
    %2825 = vmatprep.subr.mxu0 %v287
    %2826 = vmatpush1.msra.mxu0 %v286
    %2827 = vmatprep.subr.mxu0 %v291
    %2828 = vmatpush1.msra.mxu0 %v290
    %2829 = vmatprep.subr.mxu0 %v295
    %2830 = vmatpush1.msra.mxu0 %v294
    %2831 = vmatprep.subr.mxu0 %v299
    %2832 = vmatpush1.msra.mxu0 %v298
    %2833 = vmatprep.subr.mxu0 %v303
    %2834 = vmatpush1.msra.mxu0 %v302
    %2835 = vmatprep.subr.mxu0 %v307
    %2836 = vmatpush1.msra.mxu0 %v306
    %2837 = vmatprep.subr.mxu0 %v311
    %2838 = vmatpush1.msra.mxu0 %v310
    %2839 = vmatprep.subr.mxu0 %v315
    %2840 = vmatpush1.msra.mxu0 %v314
    %2841 = vmatprep.subr.mxu0 %v319
    %2842 = vmatpush1.msra.mxu0 %v318
    %2843 = vmatprep.subr.mxu0 %v323
    %2844 = vmatpush1.msra.mxu0 %v322
    %2845 = vmatprep.subr.mxu0 %v327
    %2846 = vmatpush1.msra.mxu0 %v326
    %2847 = vmatprep.subr.mxu0 %v331
    %2848 = vmatpush1.msra.mxu0 %v330
    %2849 = vmatprep.subr.mxu0 %v335
    %2850 = vmatpush1.msra.mxu0 %v334
    %2851 = vmatprep.subr.mxu0 %v339
    %2852 = vmatpush1.msra.mxu0 %v338
    %2853 = vmatprep.subr.mxu0 0.0
    %2854 = vmatpush1.msra.mxu0 0.0
    %2855 = vmatprep.subr.mxu0 0.0
    %2856 = vmatpush1.msra.mxu0 0.0
    %2857 = vmatprep.subr.mxu0 0.0
    %2858 = vmatpush1.msra.mxu0 0.0
    %2859 = vmatprep.subr.mxu0 0.0
    %2860 = vmatpush1.msra.mxu0 0.0
    %2861 = vmatprep.subr.mxu0 0.0
    %2862 = vmatpush1.msra.mxu0 0.0
    %2863 = vmatprep.subr.mxu0 0.0
    %2864 = vmatpush1.msra.mxu0 0.0
    %2865 = vmatprep.subr.mxu0 0.0
    %2866 = vmatpush1.msra.mxu0 0.0
    %2867 = vmatprep.subr.mxu0 0.0
    %2868 = vmatpush1.msra.mxu0 0.0
    %2869 = vmatprep.subr.mxu0 0.0
    %2870 = vmatpush1.msra.mxu0 0.0
    %2871 = vmatprep.subr.mxu0 0.0
    %2872 = vmatpush1.msra.mxu0 0.0
    %2873 = vmatprep.subr.mxu0 0.0
    %2874 = vmatpush1.msra.mxu0 0.0
    %2875 = vmatprep.subr.mxu0 0.0
    %2876 = vmatpush1.msra.mxu0 0.0
    %2877 = vmatprep.subr.mxu0 0.0
    %2878 = vmatpush1.msra.mxu0 0.0
    %2879 = vmatprep.subr.mxu0 0.0
    %2880 = vmatpush1.msra.mxu0 0.0
    %2881 = vmatprep.subr.mxu0 0.0
    %2882 = vmatpush1.msra.mxu0 0.0
    %2883 = vmatprep.subr.mxu0 0.0
    %2884 = vmatpush1.msra.mxu0 0.0
    %2885 = vmatprep.mubr.f32.mxu0 0.0
    %2886 = vmatmul.mubr.f32.gmra.mrb[0].mxu0 %v2677
    %v2887 = vpop.f32.mrb[0].mxu0
    %v2888 = vadd.f32 0.0, %v2887
    %v2889 = vpop.f32.mrb[0].mxu0
    %v2890 = vadd.f32 0.0, %v2889
    %2891 = vdwg.mxu0
    %2892 = vmatprep.subr.mxu0 %v281
    %2893 = vmatpush1.msra.mxu0 %v280
    %2894 = vmatprep.subr.mxu0 %v285
    %2895 = vmatpush1.msra.mxu0 %v284
    %2896 = vmatprep.subr.mxu0 %v289
    %2897 = vmatpush1.msra.mxu0 %v288
    %2898 = vmatprep.subr.mxu0 %v293
    %2899 = vmatpush1.msra.mxu0 %v292
    %2900 = vmatprep.subr.mxu0 %v297
    %2901 = vmatpush1.msra.mxu0 %v296
    %2902 = vmatprep.subr.mxu0 %v301
    %2903 = vmatpush1.msra.mxu0 %v300
    %2904 = vmatprep.subr.mxu0 %v305
    %2905 = vmatpush1.msra.mxu0 %v304
    %2906 = vmatprep.subr.mxu0 %v309
    %2907 = vmatpush1.msra.mxu0 %v308
    %2908 = vmatprep.subr.mxu0 %v313
    %2909 = vmatpush1.msra.mxu0 %v312
    %2910 = vmatprep.subr.mxu0 %v317
    %2911 = vmatpush1.msra.mxu0 %v316
    %2912 = vmatprep.subr.mxu0 %v321
    %2913 = vmatpush1.msra.mxu0 %v320
    %2914 = vmatprep.subr.mxu0 %v325
    %2915 = vmatpush1.msra.mxu0 %v324
    %2916 = vmatprep.subr.mxu0 %v329
    %2917 = vmatpush1.msra.mxu0 %v328
    %2918 = vmatprep.subr.mxu0 %v333
    %2919 = vmatpush1.msra.mxu0 %v332
    %2920 = vmatprep.subr.mxu0 %v337
    %2921 = vmatpush1.msra.mxu0 %v336
    %2922 = vmatprep.subr.mxu0 %v341
    %2923 = vmatpush1.msra.mxu0 %v340
    %2924 = vmatprep.subr.mxu0 0.0
    %2925 = vmatpush1.msra.mxu0 0.0
    %2926 = vmatprep.subr.mxu0 0.0
    %2927 = vmatpush1.msra.mxu0 0.0
    %2928 = vmatprep.subr.mxu0 0.0
    %2929 = vmatpush1.msra.mxu0 0.0
    %2930 = vmatprep.subr.mxu0 0.0
    %2931 = vmatpush1.msra.mxu0 0.0
    %2932 = vmatprep.subr.mxu0 0.0
    %2933 = vmatpush1.msra.mxu0 0.0
    %2934 = vmatprep.subr.mxu0 0.0
    %2935 = vmatpush1.msra.mxu0 0.0
    %2936 = vmatprep.subr.mxu0 0.0
    %2937 = vmatpush1.msra.mxu0 0.0
    %2938 = vmatprep.subr.mxu0 0.0
    %2939 = vmatpush1.msra.mxu0 0.0
    %2940 = vmatprep.subr.mxu0 0.0
    %2941 = vmatpush1.msra.mxu0 0.0
    %2942 = vmatprep.subr.mxu0 0.0
    %2943 = vmatpush1.msra.mxu0 0.0
    %2944 = vmatprep.subr.mxu0 0.0
    %2945 = vmatpush1.msra.mxu0 0.0
    %2946 = vmatprep.subr.mxu0 0.0
    %2947 = vmatpush1.msra.mxu0 0.0
    %2948 = vmatprep.subr.mxu0 0.0
    %2949 = vmatpush1.msra.mxu0 0.0
    %2950 = vmatprep.subr.mxu0 0.0
    %2951 = vmatpush1.msra.mxu0 0.0
    %2952 = vmatprep.subr.mxu0 0.0
    %2953 = vmatpush1.msra.mxu0 0.0
    %2954 = vmatprep.subr.mxu0 0.0
    %2955 = vmatpush1.msra.mxu0 0.0
    %2956 = vmatprep.mubr.f32.mxu0 0.0
    %2957 = vmatmul.mubr.f32.gmra.mrb[0].mxu0 %v2677
    %v2958 = vpop.f32.mrb[0].mxu0
    %v2959 = vadd.f32 0.0, %v2958
    %v2960 = vpop.f32.mrb[0].mxu0
    %v2961 = vadd.f32 0.0, %v2960
    %2962 = vdwg.mxu0
    %v2963 = vadd.f32 %v2746, %v2888
    %v2964 = vadd.f32 %v2748, %v2890
    %v2965 = vadd.f32 %v2817, %v2959
    %v2966 = vadd.f32 %v2819, %v2961
    %v2967 = vxor.u32 %v2963, 2147483648
    %v2968 = vmul.f32 %v2967, 1.442695
    %v2969 = vpow.pop %v2968
    %v2970 = vadd.f32 %v2969, 1.0
    %v2971 = vrcp.pop %v2970
    %v2972 = vmul.f32 1.0, %v2971
    %v2973 = vxor.u32 %v2964, 2147483648
    %v2974 = vmul.f32 %v2973, 1.442695
    %v2975 = vpow.pop %v2974
    %v2976 = vadd.f32 %v2975, 1.0
    %v2977 = vrcp.pop %v2976
    %v2978 = vmul.f32 1.0, %v2977
    %v2979 = vtanh.pop %v2965
    %v2980 = vxor.u32 %v2966, 2147483648
    %v2981 = vmul.f32 %v2980, 1.442695
    %v2982 = vpow.pop %v2981
    %v2983 = vadd.f32 %v2982, 1.0
    %v2984 = vrcp.pop %v2983
    %v2985 = vmul.f32 1.0, %v2984
    %v2986 = vmul.f32 %v2978, %v2356
    %v2987 = vmul.f32 %v2972, %v2979
    %v2988 = vadd.f32 %v2986, %v2987
    %v2989 = vtanh.pop %v2988
    %v2990 = vmul.f32 %v2985, %v2989
    %v2991 = vsel %vm2676, %v2990, %v2355
    %v2992 = vsel %vm2676, %v2988, %v2356
    %vm2993 = vcmp.gt.s32.totalorder %v149, 4
    %s2994 = scalar_lea.vmem [#allocation2], 8
    %v2995 = vld [vmem:[%s2994] sm:$0x3]
    %2996 = vmatprep.subr.mxu0 %v151
    %2997 = vmatpush1.msra.mxu0 %v150
    %2998 = vmatprep.subr.mxu0 %v155
    %2999 = vmatpush1.msra.mxu0 %v154
    %3000 = vmatprep.subr.mxu0 %v159
    %3001 = vmatpush1.msra.mxu0 %v158
    %3002 = vmatprep.subr.mxu0 %v163
    %3003 = vmatpush1.msra.mxu0 %v162
    %3004 = vmatprep.subr.mxu0 %v167
    %3005 = vmatpush1.msra.mxu0 %v166
    %3006 = vmatprep.subr.mxu0 %v171
    %3007 = vmatpush1.msra.mxu0 %v170
    %3008 = vmatprep.subr.mxu0 %v175
    %3009 = vmatpush1.msra.mxu0 %v174
    %3010 = vmatprep.subr.mxu0 %v179
    %3011 = vmatpush1.msra.mxu0 %v178
    %3012 = vmatprep.subr.mxu0 %v183
    %3013 = vmatpush1.msra.mxu0 %v182
    %3014 = vmatprep.subr.mxu0 %v187
    %3015 = vmatpush1.msra.mxu0 %v186
    %3016 = vmatprep.subr.mxu0 %v191
    %3017 = vmatpush1.msra.mxu0 %v190
    %3018 = vmatprep.subr.mxu0 %v195
    %3019 = vmatpush1.msra.mxu0 %v194
    %3020 = vmatprep.subr.mxu0 %v199
    %3021 = vmatpush1.msra.mxu0 %v198
    %3022 = vmatprep.subr.mxu0 %v203
    %3023 = vmatpush1.msra.mxu0 %v202
    %3024 = vmatprep.subr.mxu0 %v207
    %3025 = vmatpush1.msra.mxu0 %v206
    %3026 = vmatprep.subr.mxu0 %v211
    %3027 = vmatpush1.msra.mxu0 %v210
    %3028 = vmatprep.subr.mxu0 0.0
    %3029 = vmatpush1.msra.mxu0 0.0
    %3030 = vmatprep.subr.mxu0 0.0
    %3031 = vmatpush1.msra.mxu0 0.0
    %3032 = vmatprep.subr.mxu0 0.0
    %3033 = vmatpush1.msra.mxu0 0.0
    %3034 = vmatprep.subr.mxu0 0.0
    %3035 = vmatpush1.msra.mxu0 0.0
    %3036 = vmatprep.subr.mxu0 0.0
    %3037 = vmatpush1.msra.mxu0 0.0
    %3038 = vmatprep.subr.mxu0 0.0
    %3039 = vmatpush1.msra.mxu0 0.0
    %3040 = vmatprep.subr.mxu0 0.0
    %3041 = vmatpush1.msra.mxu0 0.0
    %3042 = vmatprep.subr.mxu0 0.0
    %3043 = vmatpush1.msra.mxu0 0.0
    %3044 = vmatprep.subr.mxu0 0.0
    %3045 = vmatpush1.msra.mxu0 0.0
    %3046 = vmatprep.subr.mxu0 0.0
    %3047 = vmatpush1.msra.mxu0 0.0
    %3048 = vmatprep.subr.mxu0 0.0
    %3049 = vmatpush1.msra.mxu0 0.0
    %3050 = vmatprep.subr.mxu0 0.0
    %3051 = vmatpush1.msra.mxu0 0.0
    %3052 = vmatprep.subr.mxu0 0.0
    %3053 = vmatpush1.msra.mxu0 0.0
    %3054 = vmatprep.subr.mxu0 0.0
    %3055 = vmatpush1.msra.mxu0 0.0
    %3056 = vmatprep.subr.mxu0 0.0
    %3057 = vmatpush1.msra.mxu0 0.0
    %3058 = vmatprep.subr.mxu0 0.0
    %3059 = vmatpush1.msra.mxu0 0.0
    %3060 = vmatprep.mubr.f32.mxu0 0.0
    %3061 = vmatmul.mubr.f32.gmra.mrb[0].mxu0 %v2995
    %v3062 = vpop.f32.mrb[0].mxu0
    %v3063 = vadd.f32 %v411, %v3062
    %v3064 = vpop.f32.mrb[0].mxu0
    %v3065 = vadd.f32 %v415, %v3064
    %3066 = vdwg.mxu0
    %3067 = vmatprep.subr.mxu0 %v153
    %3068 = vmatpush1.msra.mxu0 %v152
    %3069 = vmatprep.subr.mxu0 %v157
    %3070 = vmatpush1.msra.mxu0 %v156
    %3071 = vmatprep.subr.mxu0 %v161
    %3072 = vmatpush1.msra.mxu0 %v160
    %3073 = vmatprep.subr.mxu0 %v165
    %3074 = vmatpush1.msra.mxu0 %v164
    %3075 = vmatprep.subr.mxu0 %v169
    %3076 = vmatpush1.msra.mxu0 %v168
    %3077 = vmatprep.subr.mxu0 %v173
    %3078 = vmatpush1.msra.mxu0 %v172
    %3079 = vmatprep.subr.mxu0 %v177
    %3080 = vmatpush1.msra.mxu0 %v176
    %3081 = vmatprep.subr.mxu0 %v181
    %3082 = vmatpush1.msra.mxu0 %v180
    %3083 = vmatprep.subr.mxu0 %v185
    %3084 = vmatpush1.msra.mxu0 %v184
    %3085 = vmatprep.subr.mxu0 %v189
    %3086 = vmatpush1.msra.mxu0 %v188
    %3087 = vmatprep.subr.mxu0 %v193
    %3088 = vmatpush1.msra.mxu0 %v192
    %3089 = vmatprep.subr.mxu0 %v197
    %3090 = vmatpush1.msra.mxu0 %v196
    %3091 = vmatprep.subr.mxu0 %v201
    %3092 = vmatpush1.msra.mxu0 %v200
    %3093 = vmatprep.subr.mxu0 %v205
    %3094 = vmatpush1.msra.mxu0 %v204
    %3095 = vmatprep.subr.mxu0 %v209
    %3096 = vmatpush1.msra.mxu0 %v208
    %3097 = vmatprep.subr.mxu0 %v213
    %3098 = vmatpush1.msra.mxu0 %v212
    %3099 = vmatprep.subr.mxu0 0.0
    %3100 = vmatpush1.msra.mxu0 0.0
    %3101 = vmatprep.subr.mxu0 0.0
    %3102 = vmatpush1.msra.mxu0 0.0
    %3103 = vmatprep.subr.mxu0 0.0
    %3104 = vmatpush1.msra.mxu0 0.0
    %3105 = vmatprep.subr.mxu0 0.0
    %3106 = vmatpush1.msra.mxu0 0.0
    %3107 = vmatprep.subr.mxu0 0.0
    %3108 = vmatpush1.msra.mxu0 0.0
    %3109 = vmatprep.subr.mxu0 0.0
    %3110 = vmatpush1.msra.mxu0 0.0
    %3111 = vmatprep.subr.mxu0 0.0
    %3112 = vmatpush1.msra.mxu0 0.0
    %3113 = vmatprep.subr.mxu0 0.0
    %3114 = vmatpush1.msra.mxu0 0.0
    %3115 = vmatprep.subr.mxu0 0.0
    %3116 = vmatpush1.msra.mxu0 0.0
    %3117 = vmatprep.subr.mxu0 0.0
    %3118 = vmatpush1.msra.mxu0 0.0
    %3119 = vmatprep.subr.mxu0 0.0
    %3120 = vmatpush1.msra.mxu0 0.0
    %3121 = vmatprep.subr.mxu0 0.0
    %3122 = vmatpush1.msra.mxu0 0.0
    %3123 = vmatprep.subr.mxu0 0.0
    %3124 = vmatpush1.msra.mxu0 0.0
    %3125 = vmatprep.subr.mxu0 0.0
    %3126 = vmatpush1.msra.mxu0 0.0
    %3127 = vmatprep.subr.mxu0 0.0
    %3128 = vmatpush1.msra.mxu0 0.0
    %3129 = vmatprep.subr.mxu0 0.0
    %3130 = vmatpush1.msra.mxu0 0.0
    %3131 = vmatprep.mubr.f32.mxu0 0.0
    %3132 = vmatmul.mubr.f32.gmra.mrb[0].mxu0 %v2995
    %v3133 = vpop.f32.mrb[0].mxu0
    %v3134 = vadd.f32 %v419, %v3133
    %v3135 = vpop.f32.mrb[0].mxu0
    %v3136 = vadd.f32 %v423, %v3135
    %3137 = vdwg.mxu0
    %3138 = vmatprep.subr.mxu0 %v215
    %3139 = vmatpush1.msra.mxu0 %v214
    %3140 = vmatprep.subr.mxu0 %v219
    %3141 = vmatpush1.msra.mxu0 %v218
    %3142 = vmatprep.subr.mxu0 %v223
    %3143 = vmatpush1.msra.mxu0 %v222
    %3144 = vmatprep.subr.mxu0 %v227
    %3145 = vmatpush1.msra.mxu0 %v226
    %3146 = vmatprep.subr.mxu0 %v231
    %3147 = vmatpush1.msra.mxu0 %v230
    %3148 = vmatprep.subr.mxu0 %v235
    %3149 = vmatpush1.msra.mxu0 %v234
    %3150 = vmatprep.subr.mxu0 %v239
    %3151 = vmatpush1.msra.mxu0 %v238
    %3152 = vmatprep.subr.mxu0 %v243
    %3153 = vmatpush1.msra.mxu0 %v242
    %3154 = vmatprep.subr.mxu0 %v247
    %3155 = vmatpush1.msra.mxu0 %v246
    %3156 = vmatprep.subr.mxu0 %v251
    %3157 = vmatpush1.msra.mxu0 %v250
    %3158 = vmatprep.subr.mxu0 %v255
    %3159 = vmatpush1.msra.mxu0 %v254
    %3160 = vmatprep.subr.mxu0 %v259
    %3161 = vmatpush1.msra.mxu0 %v258
    %3162 = vmatprep.subr.mxu0 %v263
    %3163 = vmatpush1.msra.mxu0 %v262
    %3164 = vmatprep.subr.mxu0 %v267
    %3165 = vmatpush1.msra.mxu0 %v266
    %3166 = vmatprep.subr.mxu0 %v271
    %3167 = vmatpush1.msra.mxu0 %v270
    %3168 = vmatprep.subr.mxu0 %v275
    %3169 = vmatpush1.msra.mxu0 %v274
    %3170 = vmatprep.subr.mxu0 0.0
    %3171 = vmatpush1.msra.mxu0 0.0
    %3172 = vmatprep.subr.mxu0 0.0
    %3173 = vmatpush1.msra.mxu0 0.0
    %3174 = vmatprep.subr.mxu0 0.0
    %3175 = vmatpush1.msra.mxu0 0.0
    %3176 = vmatprep.subr.mxu0 0.0
    %3177 = vmatpush1.msra.mxu0 0.0
    %3178 = vmatprep.subr.mxu0 0.0
    %3179 = vmatpush1.msra.mxu0 0.0
    %3180 = vmatprep.subr.mxu0 0.0
    %3181 = vmatpush1.msra.mxu0 0.0
    %3182 = vmatprep.subr.mxu0 0.0
    %3183 = vmatpush1.msra.mxu0 0.0
    %3184 = vmatprep.subr.mxu0 0.0
    %3185 = vmatpush1.msra.mxu0 0.0
    %3186 = vmatprep.subr.mxu0 0.0
    %3187 = vmatpush1.msra.mxu0 0.0
    %3188 = vmatprep.subr.mxu0 0.0
    %3189 = vmatpush1.msra.mxu0 0.0
    %3190 = vmatprep.subr.mxu0 0.0
    %3191 = vmatpush1.msra.mxu0 0.0
    %3192 = vmatprep.subr.mxu0 0.0
    %3193 = vmatpush1.msra.mxu0 0.0
    %3194 = vmatprep.subr.mxu0 0.0
    %3195 = vmatpush1.msra.mxu0 0.0
    %3196 = vmatprep.subr.mxu0 0.0
    %3197 = vmatpush1.msra.mxu0 0.0
    %3198 = vmatprep.subr.mxu0 0.0
    %3199 = vmatpush1.msra.mxu0 0.0
    %3200 = vmatprep.subr.mxu0 0.0
    %3201 = vmatpush1.msra.mxu0 0.0
    %3202 = vmatprep.mubr.f32.mxu0 0.0
    %3203 = vmatmul.mubr.f32.gmra.mrb[0].mxu0 %v2677
    %v3204 = vpop.f32.mrb[0].mxu0
    %v3205 = vadd.f32 0.0, %v3204
    %v3206 = vpop.f32.mrb[0].mxu0
    %v3207 = vadd.f32 0.0, %v3206
    %3208 = vdwg.mxu0
    %3209 = vmatprep.subr.mxu0 %v217
    %3210 = vmatpush1.msra.mxu0 %v216
    %3211 = vmatprep.subr.mxu0 %v221
    %3212 = vmatpush1.msra.mxu0 %v220
    %3213 = vmatprep.subr.mxu0 %v225
    %3214 = vmatpush1.msra.mxu0 %v224
    %3215 = vmatprep.subr.mxu0 %v229
    %3216 = vmatpush1.msra.mxu0 %v228
    %3217 = vmatprep.subr.mxu0 %v233
    %3218 = vmatpush1.msra.mxu0 %v232
    %3219 = vmatprep.subr.mxu0 %v237
    %3220 = vmatpush1.msra.mxu0 %v236
    %3221 = vmatprep.subr.mxu0 %v241
    %3222 = vmatpush1.msra.mxu0 %v240
    %3223 = vmatprep.subr.mxu0 %v245
    %3224 = vmatpush1.msra.mxu0 %v244
    %3225 = vmatprep.subr.mxu0 %v249
    %3226 = vmatpush1.msra.mxu0 %v248
    %3227 = vmatprep.subr.mxu0 %v253
    %3228 = vmatpush1.msra.mxu0 %v252
    %3229 = vmatprep.subr.mxu0 %v257
    %3230 = vmatpush1.msra.mxu0 %v256
    %3231 = vmatprep.subr.mxu0 %v261
    %3232 = vmatpush1.msra.mxu0 %v260
    %3233 = vmatprep.subr.mxu0 %v265
    %3234 = vmatpush1.msra.mxu0 %v264
    %3235 = vmatprep.subr.mxu0 %v269
    %3236 = vmatpush1.msra.mxu0 %v268
    %3237 = vmatprep.subr.mxu0 %v273
    %3238 = vmatpush1.msra.mxu0 %v272
    %3239 = vmatprep.subr.mxu0 %v277
    %3240 = vmatpush1.msra.mxu0 %v276
    %3241 = vmatprep.subr.mxu0 0.0
    %3242 = vmatpush1.msra.mxu0 0.0
    %3243 = vmatprep.subr.mxu0 0.0
    %3244 = vmatpush1.msra.mxu0 0.0
    %3245 = vmatprep.subr.mxu0 0.0
    %3246 = vmatpush1.msra.mxu0 0.0
    %3247 = vmatprep.subr.mxu0 0.0
    %3248 = vmatpush1.msra.mxu0 0.0
    %3249 = vmatprep.subr.mxu0 0.0
    %3250 = vmatpush1.msra.mxu0 0.0
    %3251 = vmatprep.subr.mxu0 0.0
    %3252 = vmatpush1.msra.mxu0 0.0
    %3253 = vmatprep.subr.mxu0 0.0
    %3254 = vmatpush1.msra.mxu0 0.0
    %3255 = vmatprep.subr.mxu0 0.0
    %3256 = vmatpush1.msra.mxu0 0.0
    %3257 = vmatprep.subr.mxu0 0.0
    %3258 = vmatpush1.msra.mxu0 0.0
    %3259 = vmatprep.subr.mxu0 0.0
    %3260 = vmatpush1.msra.mxu0 0.0
    %3261 = vmatprep.subr.mxu0 0.0
    %3262 = vmatpush1.msra.mxu0 0.0
    %3263 = vmatprep.subr.mxu0 0.0
    %3264 = vmatpush1.msra.mxu0 0.0
    %3265 = vmatprep.subr.mxu0 0.0
    %3266 = vmatpush1.msra.mxu0 0.0
    %3267 = vmatprep.subr.mxu0 0.0
    %3268 = vmatpush1.msra.mxu0 0.0
    %3269 = vmatprep.subr.mxu0 0.0
    %3270 = vmatpush1.msra.mxu0 0.0
    %3271 = vmatprep.subr.mxu0 0.0
    %3272 = vmatpush1.msra.mxu0 0.0
    %3273 = vmatprep.mubr.f32.mxu0 0.0
    %3274 = vmatmul.mubr.f32.gmra.mrb[0].mxu0 %v2677
    %v3275 = vpop.f32.mrb[0].mxu0
    %v3276 = vadd.f32 0.0, %v3275
    %v3277 = vpop.f32.mrb[0].mxu0
    %v3278 = vadd.f32 0.0, %v3277
    %3279 = vdwg.mxu0
    %v3280 = vadd.f32 %v3063, %v3205
    %v3281 = vadd.f32 %v3065, %v3207
    %v3282 = vadd.f32 %v3134, %v3276
    %v3283 = vadd.f32 %v3136, %v3278
    %v3284 = vxor.u32 %v3280, 2147483648
    %v3285 = vmul.f32 %v3284, 1.442695
    %v3286 = vpow.pop %v3285
    %v3287 = vadd.f32 %v3286, 1.0
    %v3288 = vrcp.pop %v3287
    %v3289 = vmul.f32 1.0, %v3288
    %v3290 = vxor.u32 %v3281, 2147483648
    %v3291 = vmul.f32 %v3290, 1.442695
    %v3292 = vpow.pop %v3291
    %v3293 = vadd.f32 %v3292, 1.0
    %v3294 = vrcp.pop %v3293
    %v3295 = vmul.f32 1.0, %v3294
    %v3296 = vtanh.pop %v3282
    %v3297 = vxor.u32 %v3283, 2147483648
    %v3298 = vmul.f32 %v3297, 1.442695
    %v3299 = vpow.pop %v3298
    %v3300 = vadd.f32 %v3299, 1.0
    %v3301 = vrcp.pop %v3300
    %v3302 = vmul.f32 1.0, %v3301
    %v3303 = vmul.f32 %v3295, %v2678
    %v3304 = vmul.f32 %v3289, %v3296
    %v3305 = vadd.f32 %v3303, %v3304
    %v3306 = vtanh.pop %v3305
    %v3307 = vmul.f32 %v3302, %v3306
    %v3308 = vsel %vm2993, 1, 0
    %3309 = vset.pattern.permute.xlu0 0
    %3310 = vperm.xlu0 %3309, %v3308
    %v3311 = vpop.permute.xlu0 %3310
    %vm3312 = vcmp.eq.s32.totalorder %v3311, 1
    %v3313 = vsel %vm3312, %v3307, %v2677
    %v3314 = vsel %vm3312, %v3305, %v2678
    %3315 = vmatprep.subr.mxu0 %v343
    %3316 = vmatpush1.msra.mxu0 %v342
    %3317 = vmatprep.subr.mxu0 %v347
    %3318 = vmatpush1.msra.mxu0 %v346
    %3319 = vmatprep.subr.mxu0 %v351
    %3320 = vmatpush1.msra.mxu0 %v350
    %3321 = vmatprep.subr.mxu0 %v355
    %3322 = vmatpush1.msra.mxu0 %v354
    %3323 = vmatprep.subr.mxu0 %v359
    %3324 = vmatpush1.msra.mxu0 %v358
    %3325 = vmatprep.subr.mxu0 %v363
    %3326 = vmatpush1.msra.mxu0 %v362
    %3327 = vmatprep.subr.mxu0 %v367
    %3328 = vmatpush1.msra.mxu0 %v366
    %3329 = vmatprep.subr.mxu0 %v371
    %3330 = vmatpush1.msra.mxu0 %v370
    %3331 = vmatprep.subr.mxu0 %v375
    %3332 = vmatpush1.msra.mxu0 %v374
    %3333 = vmatprep.subr.mxu0 %v379
    %3334 = vmatpush1.msra.mxu0 %v378
    %3335 = vmatprep.subr.mxu0 %v383
    %3336 = vmatpush1.msra.mxu0 %v382
    %3337 = vmatprep.subr.mxu0 %v387
    %3338 = vmatpush1.msra.mxu0 %v386
    %3339 = vmatprep.subr.mxu0 %v391
    %3340 = vmatpush1.msra.mxu0 %v390
    %3341 = vmatprep.subr.mxu0 %v395
    %3342 = vmatpush1.msra.mxu0 %v394
    %3343 = vmatprep.subr.mxu0 %v399
    %3344 = vmatpush1.msra.mxu0 %v398
    %3345 = vmatprep.subr.mxu0 %v403
    %3346 = vmatpush1.msra.mxu0 %v402
    %3347 = vmatprep.subr.mxu0 0.0
    %3348 = vmatpush1.msra.mxu0 0.0
    %3349 = vmatprep.subr.mxu0 0.0
    %3350 = vmatpush1.msra.mxu0 0.0
    %3351 = vmatprep.subr.mxu0 0.0
    %3352 = vmatpush1.msra.mxu0 0.0
    %3353 = vmatprep.subr.mxu0 0.0
    %3354 = vmatpush1.msra.mxu0 0.0
    %3355 = vmatprep.subr.mxu0 0.0
    %3356 = vmatpush1.msra.mxu0 0.0
    %3357 = vmatprep.subr.mxu0 0.0
    %3358 = vmatpush1.msra.mxu0 0.0
    %3359 = vmatprep.subr.mxu0 0.0
    %3360 = vmatpush1.msra.mxu0 0.0
    %3361 = vmatprep.subr.mxu0 0.0
    %3362 = vmatpush1.msra.mxu0 0.0
    %3363 = vmatprep.subr.mxu0 0.0
    %3364 = vmatpush1.msra.mxu0 0.0
    %3365 = vmatprep.subr.mxu0 0.0
    %3366 = vmatpush1.msra.mxu0 0.0
    %3367 = vmatprep.subr.mxu0 0.0
    %3368 = vmatpush1.msra.mxu0 0.0
    %3369 = vmatprep.subr.mxu0 0.0
    %3370 = vmatpush1.msra.mxu0 0.0
    %3371 = vmatprep.subr.mxu0 0.0
    %3372 = vmatpush1.msra.mxu0 0.0
    %3373 = vmatprep.subr.mxu0 0.0
    %3374 = vmatpush1.msra.mxu0 0.0
    %3375 = vmatprep.subr.mxu0 0.0
    %3376 = vmatpush1.msra.mxu0 0.0
    %3377 = vmatprep.subr.mxu0 0.0
    %3378 = vmatpush1.msra.mxu0 0.0
    %3379 = vmatprep.mubr.f32.mxu0 0.0
    %3380 = vmatmul.mubr.f32.gmra.mrb[0].mxu0 %v2991
    %v3381 = vpop.f32.mrb[0].mxu0
    %v3382 = vadd.f32 %v433, %v3381
    %v3383 = vpop.f32.mrb[0].mxu0
    %v3384 = vadd.f32 %v437, %v3383
    %3385 = vdwg.mxu0
    %3386 = vmatprep.subr.mxu0 %v345
    %3387 = vmatpush1.msra.mxu0 %v344
    %3388 = vmatprep.subr.mxu0 %v349
    %3389 = vmatpush1.msra.mxu0 %v348
    %3390 = vmatprep.subr.mxu0 %v353
    %3391 = vmatpush1.msra.mxu0 %v352
    %3392 = vmatprep.subr.mxu0 %v357
    %3393 = vmatpush1.msra.mxu0 %v356
    %3394 = vmatprep.subr.mxu0 %v361
    %3395 = vmatpush1.msra.mxu0 %v360
    %3396 = vmatprep.subr.mxu0 %v365
    %3397 = vmatpush1.msra.mxu0 %v364
    %3398 = vmatprep.subr.mxu0 %v369
    %3399 = vmatpush1.msra.mxu0 %v368
    %3400 = vmatprep.subr.mxu0 %v373
    %3401 = vmatpush1.msra.mxu0 %v372
    %3402 = vmatprep.subr.mxu0 %v377
    %3403 = vmatpush1.msra.mxu0 %v376
    %3404 = vmatprep.subr.mxu0 %v381
    %3405 = vmatpush1.msra.mxu0 %v380
    %3406 = vmatprep.subr.mxu0 %v385
    %3407 = vmatpush1.msra.mxu0 %v384
    %3408 = vmatprep.subr.mxu0 %v389
    %3409 = vmatpush1.msra.mxu0 %v388
    %3410 = vmatprep.subr.mxu0 %v393
    %3411 = vmatpush1.msra.mxu0 %v392
    %3412 = vmatprep.subr.mxu0 %v397
    %3413 = vmatpush1.msra.mxu0 %v396
    %3414 = vmatprep.subr.mxu0 %v401
    %3415 = vmatpush1.msra.mxu0 %v400
    %3416 = vmatprep.subr.mxu0 %v405
    %3417 = vmatpush1.msra.mxu0 %v404
    %3418 = vmatprep.subr.mxu0 0.0
    %3419 = vmatpush1.msra.mxu0 0.0
    %3420 = vmatprep.subr.mxu0 0.0
    %3421 = vmatpush1.msra.mxu0 0.0
    %3422 = vmatprep.subr.mxu0 0.0
    %3423 = vmatpush1.msra.mxu0 0.0
    %3424 = vmatprep.subr.mxu0 0.0
    %3425 = vmatpush1.msra.mxu0 0.0
    %3426 = vmatprep.subr.mxu0 0.0
    %3427 = vmatpush1.msra.mxu0 0.0
    %3428 = vmatprep.subr.mxu0 0.0
    %3429 = vmatpush1.msra.mxu0 0.0
    %3430 = vmatprep.subr.mxu0 0.0
    %3431 = vmatpush1.msra.mxu0 0.0
    %3432 = vmatprep.subr.mxu0 0.0
    %3433 = vmatpush1.msra.mxu0 0.0
    %3434 = vmatprep.subr.mxu0 0.0
    %3435 = vmatpush1.msra.mxu0 0.0
    %3436 = vmatprep.subr.mxu0 0.0
    %3437 = vmatpush1.msra.mxu0 0.0
    %3438 = vmatprep.subr.mxu0 0.0
    %3439 = vmatpush1.msra.mxu0 0.0
    %3440 = vmatprep.subr.mxu0 0.0
    %3441 = vmatpush1.msra.mxu0 0.0
    %3442 = vmatprep.subr.mxu0 0.0
    %3443 = vmatpush1.msra.mxu0 0.0
    %3444 = vmatprep.subr.mxu0 0.0
    %3445 = vmatpush1.msra.mxu0 0.0
    %3446 = vmatprep.subr.mxu0 0.0
    %3447 = vmatpush1.msra.mxu0 0.0
    %3448 = vmatprep.subr.mxu0 0.0
    %3449 = vmatpush1.msra.mxu0 0.0
    %3450 = vmatprep.mubr.f32.mxu0 0.0
    %3451 = vmatmul.mubr.f32.gmra.mrb[0].mxu0 %v2991
    %v3452 = vpop.f32.mrb[0].mxu0
    %v3453 = vadd.f32 %v441, %v3452
    %v3454 = vpop.f32.mrb[0].mxu0
    %v3455 = vadd.f32 %v445, %v3454
    %3456 = vdwg.mxu0
    %3457 = vmatprep.subr.mxu0 %v279
    %3458 = vmatpush1.msra.mxu0 %v278
    %3459 = vmatprep.subr.mxu0 %v283
    %3460 = vmatpush1.msra.mxu0 %v282
    %3461 = vmatprep.subr.mxu0 %v287
    %3462 = vmatpush1.msra.mxu0 %v286
    %3463 = vmatprep.subr.mxu0 %v291
    %3464 = vmatpush1.msra.mxu0 %v290
    %3465 = vmatprep.subr.mxu0 %v295
    %3466 = vmatpush1.msra.mxu0 %v294
    %3467 = vmatprep.subr.mxu0 %v299
    %3468 = vmatpush1.msra.mxu0 %v298
    %3469 = vmatprep.subr.mxu0 %v303
    %3470 = vmatpush1.msra.mxu0 %v302
    %3471 = vmatprep.subr.mxu0 %v307
    %3472 = vmatpush1.msra.mxu0 %v306
    %3473 = vmatprep.subr.mxu0 %v311
    %3474 = vmatpush1.msra.mxu0 %v310
    %3475 = vmatprep.subr.mxu0 %v315
    %3476 = vmatpush1.msra.mxu0 %v314
    %3477 = vmatprep.subr.mxu0 %v319
    %3478 = vmatpush1.msra.mxu0 %v318
    %3479 = vmatprep.subr.mxu0 %v323
    %3480 = vmatpush1.msra.mxu0 %v322
    %3481 = vmatprep.subr.mxu0 %v327
    %3482 = vmatpush1.msra.mxu0 %v326
    %3483 = vmatprep.subr.mxu0 %v331
    %3484 = vmatpush1.msra.mxu0 %v330
    %3485 = vmatprep.subr.mxu0 %v335
    %3486 = vmatpush1.msra.mxu0 %v334
    %3487 = vmatprep.subr.mxu0 %v339
    %3488 = vmatpush1.msra.mxu0 %v338
    %3489 = vmatprep.subr.mxu0 0.0
    %3490 = vmatpush1.msra.mxu0 0.0
    %3491 = vmatprep.subr.mxu0 0.0
    %3492 = vmatpush1.msra.mxu0 0.0
    %3493 = vmatprep.subr.mxu0 0.0
    %3494 = vmatpush1.msra.mxu0 0.0
    %3495 = vmatprep.subr.mxu0 0.0
    %3496 = vmatpush1.msra.mxu0 0.0
    %3497 = vmatprep.subr.mxu0 0.0
    %3498 = vmatpush1.msra.mxu0 0.0
    %3499 = vmatprep.subr.mxu0 0.0
    %3500 = vmatpush1.msra.mxu0 0.0
    %3501 = vmatprep.subr.mxu0 0.0
    %3502 = vmatpush1.msra.mxu0 0.0
    %3503 = vmatprep.subr.mxu0 0.0
    %3504 = vmatpush1.msra.mxu0 0.0
    %3505 = vmatprep.subr.mxu0 0.0
    %3506 = vmatpush1.msra.mxu0 0.0
    %3507 = vmatprep.subr.mxu0 0.0
    %3508 = vmatpush1.msra.mxu0 0.0
    %3509 = vmatprep.subr.mxu0 0.0
    %3510 = vmatpush1.msra.mxu0 0.0
    %3511 = vmatprep.subr.mxu0 0.0
    %3512 = vmatpush1.msra.mxu0 0.0
    %3513 = vmatprep.subr.mxu0 0.0
    %3514 = vmatpush1.msra.mxu0 0.0
    %3515 = vmatprep.subr.mxu0 0.0
    %3516 = vmatpush1.msra.mxu0 0.0
    %3517 = vmatprep.subr.mxu0 0.0
    %3518 = vmatpush1.msra.mxu0 0.0
    %3519 = vmatprep.subr.mxu0 0.0
    %3520 = vmatpush1.msra.mxu0 0.0
    %3521 = vmatprep.mubr.f32.mxu0 0.0
    %3522 = vmatmul.mubr.f32.gmra.mrb[0].mxu0 %v3313
    %v3523 = vpop.f32.mrb[0].mxu0
    %v3524 = vadd.f32 0.0, %v3523
    %v3525 = vpop.f32.mrb[0].mxu0
    %v3526 = vadd.f32 0.0, %v3525
    %3527 = vdwg.mxu0
    %3528 = vmatprep.subr.mxu0 %v281
    %3529 = vmatpush1.msra.mxu0 %v280
    %3530 = vmatprep.subr.mxu0 %v285
    %3531 = vmatpush1.msra.mxu0 %v284
    %3532 = vmatprep.subr.mxu0 %v289
    %3533 = vmatpush1.msra.mxu0 %v288
    %3534 = vmatprep.subr.mxu0 %v293
    %3535 = vmatpush1.msra.mxu0 %v292
    %3536 = vmatprep.subr.mxu0 %v297
    %3537 = vmatpush1.msra.mxu0 %v296
    %3538 = vmatprep.subr.mxu0 %v301
    %3539 = vmatpush1.msra.mxu0 %v300
    %3540 = vmatprep.subr.mxu0 %v305
    %3541 = vmatpush1.msra.mxu0 %v304
    %3542 = vmatprep.subr.mxu0 %v309
    %3543 = vmatpush1.msra.mxu0 %v308
    %3544 = vmatprep.subr.mxu0 %v313
    %3545 = vmatpush1.msra.mxu0 %v312
    %3546 = vmatprep.subr.mxu0 %v317
    %3547 = vmatpush1.msra.mxu0 %v316
    %3548 = vmatprep.subr.mxu0 %v321
    %3549 = vmatpush1.msra.mxu0 %v320
    %3550 = vmatprep.subr.mxu0 %v325
    %3551 = vmatpush1.msra.mxu0 %v324
    %3552 = vmatprep.subr.mxu0 %v329
    %3553 = vmatpush1.msra.mxu0 %v328
    %3554 = vmatprep.subr.mxu0 %v333
    %3555 = vmatpush1.msra.mxu0 %v332
    %3556 = vmatprep.subr.mxu0 %v337
    %3557 = vmatpush1.msra.mxu0 %v336
    %3558 = vmatprep.subr.mxu0 %v341
    %3559 = vmatpush1.msra.mxu0 %v340
    %3560 = vmatprep.subr.mxu0 0.0
    %3561 = vmatpush1.msra.mxu0 0.0
    %3562 = vmatprep.subr.mxu0 0.0
    %3563 = vmatpush1.msra.mxu0 0.0
    %3564 = vmatprep.subr.mxu0 0.0
    %3565 = vmatpush1.msra.mxu0 0.0
    %3566 = vmatprep.subr.mxu0 0.0
    %3567 = vmatpush1.msra.mxu0 0.0
    %3568 = vmatprep.subr.mxu0 0.0
    %3569 = vmatpush1.msra.mxu0 0.0
    %3570 = vmatprep.subr.mxu0 0.0
    %3571 = vmatpush1.msra.mxu0 0.0
    %3572 = vmatprep.subr.mxu0 0.0
    %3573 = vmatpush1.msra.mxu0 0.0
    %3574 = vmatprep.subr.mxu0 0.0
    %3575 = vmatpush1.msra.mxu0 0.0
    %3576 = vmatprep.subr.mxu0 0.0
    %3577 = vmatpush1.msra.mxu0 0.0
    %3578 = vmatprep.subr.mxu0 0.0
    %3579 = vmatpush1.msra.mxu0 0.0
    %3580 = vmatprep.subr.mxu0 0.0
    %3581 = vmatpush1.msra.mxu0 0.0
    %3582 = vmatprep.subr.mxu0 0.0
    %3583 = vmatpush1.msra.mxu0 0.0
    %3584 = vmatprep.subr.mxu0 0.0
    %3585 = vmatpush1.msra.mxu0 0.0
    %3586 = vmatprep.subr.mxu0 0.0
    %3587 = vmatpush1.msra.mxu0 0.0
    %3588 = vmatprep.subr.mxu0 0.0
    %3589 = vmatpush1.msra.mxu0 0.0
    %3590 = vmatprep.subr.mxu0 0.0
    %3591 = vmatpush1.msra.mxu0 0.0
    %3592 = vmatprep.mubr.f32.mxu0 0.0
    %3593 = vmatmul.mubr.f32.gmra.mrb[0].mxu0 %v3313
    %v3594 = vpop.f32.mrb[0].mxu0
    %v3595 = vadd.f32 0.0, %v3594
    %v3596 = vpop.f32.mrb[0].mxu0
    %v3597 = vadd.f32 0.0, %v3596
    %3598 = vdwg.mxu0
    %v3599 = vadd.f32 %v3382, %v3524
    %v3600 = vadd.f32 %v3384, %v3526
    %v3601 = vadd.f32 %v3453, %v3595
    %v3602 = vadd.f32 %v3455, %v3597
    %v3603 = vxor.u32 %v3599, 2147483648
    %v3604 = vmul.f32 %v3603, 1.442695
    %v3605 = vpow.pop %v3604
    %v3606 = vadd.f32 %v3605, 1.0
    %v3607 = vrcp.pop %v3606
    %v3608 = vmul.f32 1.0, %v3607
    %v3609 = vxor.u32 %v3600, 2147483648
    %v3610 = vmul.f32 %v3609, 1.442695
    %v3611 = vpow.pop %v3610
    %v3612 = vadd.f32 %v3611, 1.0
    %v3613 = vrcp.pop %v3612
    %v3614 = vmul.f32 1.0, %v3613
    %v3615 = vtanh.pop %v3601
    %v3616 = vxor.u32 %v3602, 2147483648
    %v3617 = vmul.f32 %v3616, 1.442695
    %v3618 = vpow.pop %v3617
    %v3619 = vadd.f32 %v3618, 1.0
    %v3620 = vrcp.pop %v3619
    %v3621 = vmul.f32 1.0, %v3620
    %v3622 = vmul.f32 %v3614, %v2992
    %v3623 = vmul.f32 %v3608, %v3615
    %v3624 = vadd.f32 %v3622, %v3623
    %v3625 = vtanh.pop %v3624
    %v3626 = vmul.f32 %v3621, %v3625
    %v3627 = vsel %vm3312, %v3626, %v2991
    %v3628 = vsel %vm3312, %v3624, %v2992
    %vm3629 = vcmp.gt.s32.totalorder %v149, 5
    %s3630 = scalar_lea.vmem [#allocation2], 10
    %v3631 = vld [vmem:[%s3630] sm:$0x3]
    %3632 = vmatprep.subr.mxu0 %v151
    %3633 = vmatpush1.msra.mxu0 %v150
    %3634 = vmatprep.subr.mxu0 %v155
    %3635 = vmatpush1.msra.mxu0 %v154
    %3636 = vmatprep.subr.mxu0 %v159
    %3637 = vmatpush1.msra.mxu0 %v158
    %3638 = vmatprep.subr.mxu0 %v163
    %3639 = vmatpush1.msra.mxu0 %v162
    %3640 = vmatprep.subr.mxu0 %v167
    %3641 = vmatpush1.msra.mxu0 %v166
    %3642 = vmatprep.subr.mxu0 %v171
    %3643 = vmatpush1.msra.mxu0 %v170
    %3644 = vmatprep.subr.mxu0 %v175
    %3645 = vmatpush1.msra.mxu0 %v174
    %3646 = vmatprep.subr.mxu0 %v179
    %3647 = vmatpush1.msra.mxu0 %v178
    %3648 = vmatprep.subr.mxu0 %v183
    %3649 = vmatpush1.msra.mxu0 %v182
    %3650 = vmatprep.subr.mxu0 %v187
    %3651 = vmatpush1.msra.mxu0 %v186
    %3652 = vmatprep.subr.mxu0 %v191
    %3653 = vmatpush1.msra.mxu0 %v190
    %3654 = vmatprep.subr.mxu0 %v195
    %3655 = vmatpush1.msra.mxu0 %v194
    %3656 = vmatprep.subr.mxu0 %v199
    %3657 = vmatpush1.msra.mxu0 %v198
    %3658 = vmatprep.subr.mxu0 %v203
    %3659 = vmatpush1.msra.mxu0 %v202
    %3660 = vmatprep.subr.mxu0 %v207
    %3661 = vmatpush1.msra.mxu0 %v206
    %3662 = vmatprep.subr.mxu0 %v211
    %3663 = vmatpush1.msra.mxu0 %v210
    %3664 = vmatprep.subr.mxu0 0.0
    %3665 = vmatpush1.msra.mxu0 0.0
    %3666 = vmatprep.subr.mxu0 0.0
    %3667 = vmatpush1.msra.mxu0 0.0
    %3668 = vmatprep.subr.mxu0 0.0
    %3669 = vmatpush1.msra.mxu0 0.0
    %3670 = vmatprep.subr.mxu0 0.0
    %3671 = vmatpush1.msra.mxu0 0.0
    %3672 = vmatprep.subr.mxu0 0.0
    %3673 = vmatpush1.msra.mxu0 0.0
    %3674 = vmatprep.subr.mxu0 0.0
    %3675 = vmatpush1.msra.mxu0 0.0
    %3676 = vmatprep.subr.mxu0 0.0
    %3677 = vmatpush1.msra.mxu0 0.0
    %3678 = vmatprep.subr.mxu0 0.0
    %3679 = vmatpush1.msra.mxu0 0.0
    %3680 = vmatprep.subr.mxu0 0.0
    %3681 = vmatpush1.msra.mxu0 0.0
    %3682 = vmatprep.subr.mxu0 0.0
    %3683 = vmatpush1.msra.mxu0 0.0
    %3684 = vmatprep.subr.mxu0 0.0
    %3685 = vmatpush1.msra.mxu0 0.0
    %3686 = vmatprep.subr.mxu0 0.0
    %3687 = vmatpush1.msra.mxu0 0.0
    %3688 = vmatprep.subr.mxu0 0.0
    %3689 = vmatpush1.msra.mxu0 0.0
    %3690 = vmatprep.subr.mxu0 0.0
    %3691 = vmatpush1.msra.mxu0 0.0
    %3692 = vmatprep.subr.mxu0 0.0
    %3693 = vmatpush1.msra.mxu0 0.0
    %3694 = vmatprep.subr.mxu0 0.0
    %3695 = vmatpush1.msra.mxu0 0.0
    %3696 = vmatprep.mubr.f32.mxu0 0.0
    %3697 = vmatmul.mubr.f32.gmra.mrb[0].mxu0 %v3631
    %v3698 = vpop.f32.mrb[0].mxu0
    %v3699 = vadd.f32 %v411, %v3698
    %v3700 = vpop.f32.mrb[0].mxu0
    %v3701 = vadd.f32 %v415, %v3700
    %3702 = vdwg.mxu0
    %3703 = vmatprep.subr.mxu0 %v153
    %3704 = vmatpush1.msra.mxu0 %v152
    %3705 = vmatprep.subr.mxu0 %v157
    %3706 = vmatpush1.msra.mxu0 %v156
    %3707 = vmatprep.subr.mxu0 %v161
    %3708 = vmatpush1.msra.mxu0 %v160
    %3709 = vmatprep.subr.mxu0 %v165
    %3710 = vmatpush1.msra.mxu0 %v164
    %3711 = vmatprep.subr.mxu0 %v169
    %3712 = vmatpush1.msra.mxu0 %v168
    %3713 = vmatprep.subr.mxu0 %v173
    %3714 = vmatpush1.msra.mxu0 %v172
    %3715 = vmatprep.subr.mxu0 %v177
    %3716 = vmatpush1.msra.mxu0 %v176
    %3717 = vmatprep.subr.mxu0 %v181
    %3718 = vmatpush1.msra.mxu0 %v180
    %3719 = vmatprep.subr.mxu0 %v185
    %3720 = vmatpush1.msra.mxu0 %v184
    %3721 = vmatprep.subr.mxu0 %v189
    %3722 = vmatpush1.msra.mxu0 %v188
    %3723 = vmatprep.subr.mxu0 %v193
    %3724 = vmatpush1.msra.mxu0 %v192
    %3725 = vmatprep.subr.mxu0 %v197
    %3726 = vmatpush1.msra.mxu0 %v196
    %3727 = vmatprep.subr.mxu0 %v201
    %3728 = vmatpush1.msra.mxu0 %v200
    %3729 = vmatprep.subr.mxu0 %v205
    %3730 = vmatpush1.msra.mxu0 %v204
    %3731 = vmatprep.subr.mxu0 %v209
    %3732 = vmatpush1.msra.mxu0 %v208
    %3733 = vmatprep.subr.mxu0 %v213
    %3734 = vmatpush1.msra.mxu0 %v212
    %3735 = vmatprep.subr.mxu0 0.0
    %3736 = vmatpush1.msra.mxu0 0.0
    %3737 = vmatprep.subr.mxu0 0.0
    %3738 = vmatpush1.msra.mxu0 0.0
    %3739 = vmatprep.subr.mxu0 0.0
    %3740 = vmatpush1.msra.mxu0 0.0
    %3741 = vmatprep.subr.mxu0 0.0
    %3742 = vmatpush1.msra.mxu0 0.0
    %3743 = vmatprep.subr.mxu0 0.0
    %3744 = vmatpush1.msra.mxu0 0.0
    %3745 = vmatprep.subr.mxu0 0.0
    %3746 = vmatpush1.msra.mxu0 0.0
    %3747 = vmatprep.subr.mxu0 0.0
    %3748 = vmatpush1.msra.mxu0 0.0
    %3749 = vmatprep.subr.mxu0 0.0
    %3750 = vmatpush1.msra.mxu0 0.0
    %3751 = vmatprep.subr.mxu0 0.0
    %3752 = vmatpush1.msra.mxu0 0.0
    %3753 = vmatprep.subr.mxu0 0.0
    %3754 = vmatpush1.msra.mxu0 0.0
    %3755 = vmatprep.subr.mxu0 0.0
    %3756 = vmatpush1.msra.mxu0 0.0
    %3757 = vmatprep.subr.mxu0 0.0
    %3758 = vmatpush1.msra.mxu0 0.0
    %3759 = vmatprep.subr.mxu0 0.0
    %3760 = vmatpush1.msra.mxu0 0.0
    %3761 = vmatprep.subr.mxu0 0.0
    %3762 = vmatpush1.msra.mxu0 0.0
    %3763 = vmatprep.subr.mxu0 0.0
    %3764 = vmatpush1.msra.mxu0 0.0
    %3765 = vmatprep.subr.mxu0 0.0
    %3766 = vmatpush1.msra.mxu0 0.0
    %3767 = vmatprep.mubr.f32.mxu0 0.0
    %3768 = vmatmul.mubr.f32.gmra.mrb[0].mxu0 %v3631
    %v3769 = vpop.f32.mrb[0].mxu0
    %v3770 = vadd.f32 %v419, %v3769
    %v3771 = vpop.f32.mrb[0].mxu0
    %v3772 = vadd.f32 %v423, %v3771
    %3773 = vdwg.mxu0
    %3774 = vmatprep.subr.mxu0 %v215
    %3775 = vmatpush1.msra.mxu0 %v214
    %3776 = vmatprep.subr.mxu0 %v219
    %3777 = vmatpush1.msra.mxu0 %v218
    %3778 = vmatprep.subr.mxu0 %v223
    %3779 = vmatpush1.msra.mxu0 %v222
    %3780 = vmatprep.subr.mxu0 %v227
    %3781 = vmatpush1.msra.mxu0 %v226
    %3782 = vmatprep.subr.mxu0 %v231
    %3783 = vmatpush1.msra.mxu0 %v230
    %3784 = vmatprep.subr.mxu0 %v235
    %3785 = vmatpush1.msra.mxu0 %v234
    %3786 = vmatprep.subr.mxu0 %v239
    %3787 = vmatpush1.msra.mxu0 %v238
    %3788 = vmatprep.subr.mxu0 %v243
    %3789 = vmatpush1.msra.mxu0 %v242
    %3790 = vmatprep.subr.mxu0 %v247
    %3791 = vmatpush1.msra.mxu0 %v246
    %3792 = vmatprep.subr.mxu0 %v251
    %3793 = vmatpush1.msra.mxu0 %v250
    %3794 = vmatprep.subr.mxu0 %v255
    %3795 = vmatpush1.msra.mxu0 %v254
    %3796 = vmatprep.subr.mxu0 %v259
    %3797 = vmatpush1.msra.mxu0 %v258
    %3798 = vmatprep.subr.mxu0 %v263
    %3799 = vmatpush1.msra.mxu0 %v262
    %3800 = vmatprep.subr.mxu0 %v267
    %3801 = vmatpush1.msra.mxu0 %v266
    %3802 = vmatprep.subr.mxu0 %v271
    %3803 = vmatpush1.msra.mxu0 %v270
    %3804 = vmatprep.subr.mxu0 %v275
    %3805 = vmatpush1.msra.mxu0 %v274
    %3806 = vmatprep.subr.mxu0 0.0
    %3807 = vmatpush1.msra.mxu0 0.0
    %3808 = vmatprep.subr.mxu0 0.0
    %3809 = vmatpush1.msra.mxu0 0.0
    %3810 = vmatprep.subr.mxu0 0.0
    %3811 = vmatpush1.msra.mxu0 0.0
    %3812 = vmatprep.subr.mxu0 0.0
    %3813 = vmatpush1.msra.mxu0 0.0
    %3814 = vmatprep.subr.mxu0 0.0
    %3815 = vmatpush1.msra.mxu0 0.0
    %3816 = vmatprep.subr.mxu0 0.0
    %3817 = vmatpush1.msra.mxu0 0.0
    %3818 = vmatprep.subr.mxu0 0.0
    %3819 = vmatpush1.msra.mxu0 0.0
    %3820 = vmatprep.subr.mxu0 0.0
    %3821 = vmatpush1.msra.mxu0 0.0
    %3822 = vmatprep.subr.mxu0 0.0
    %3823 = vmatpush1.msra.mxu0 0.0
    %3824 = vmatprep.subr.mxu0 0.0
    %3825 = vmatpush1.msra.mxu0 0.0
    %3826 = vmatprep.subr.mxu0 0.0
    %3827 = vmatpush1.msra.mxu0 0.0
    %3828 = vmatprep.subr.mxu0 0.0
    %3829 = vmatpush1.msra.mxu0 0.0
    %3830 = vmatprep.subr.mxu0 0.0
    %3831 = vmatpush1.msra.mxu0 0.0
    %3832 = vmatprep.subr.mxu0 0.0
    %3833 = vmatpush1.msra.mxu0 0.0
    %3834 = vmatprep.subr.mxu0 0.0
    %3835 = vmatpush1.msra.mxu0 0.0
    %3836 = vmatprep.subr.mxu0 0.0
    %3837 = vmatpush1.msra.mxu0 0.0
    %3838 = vmatprep.mubr.f32.mxu0 0.0
    %3839 = vmatmul.mubr.f32.gmra.mrb[0].mxu0 %v3313
    %v3840 = vpop.f32.mrb[0].mxu0
    %v3841 = vadd.f32 0.0, %v3840
    %v3842 = vpop.f32.mrb[0].mxu0
    %v3843 = vadd.f32 0.0, %v3842
    %3844 = vdwg.mxu0
    %3845 = vmatprep.subr.mxu0 %v217
    %3846 = vmatpush1.msra.mxu0 %v216
    %3847 = vmatprep.subr.mxu0 %v221
    %3848 = vmatpush1.msra.mxu0 %v220
    %3849 = vmatprep.subr.mxu0 %v225
    %3850 = vmatpush1.msra.mxu0 %v224
    %3851 = vmatprep.subr.mxu0 %v229
    %3852 = vmatpush1.msra.mxu0 %v228
    %3853 = vmatprep.subr.mxu0 %v233
    %3854 = vmatpush1.msra.mxu0 %v232
    %3855 = vmatprep.subr.mxu0 %v237
    %3856 = vmatpush1.msra.mxu0 %v236
    %3857 = vmatprep.subr.mxu0 %v241
    %3858 = vmatpush1.msra.mxu0 %v240
    %3859 = vmatprep.subr.mxu0 %v245
    %3860 = vmatpush1.msra.mxu0 %v244
    %3861 = vmatprep.subr.mxu0 %v249
    %3862 = vmatpush1.msra.mxu0 %v248
    %3863 = vmatprep.subr.mxu0 %v253
    %3864 = vmatpush1.msra.mxu0 %v252
    %3865 = vmatprep.subr.mxu0 %v257
    %3866 = vmatpush1.msra.mxu0 %v256
    %3867 = vmatprep.subr.mxu0 %v261
    %3868 = vmatpush1.msra.mxu0 %v260
    %3869 = vmatprep.subr.mxu0 %v265
    %3870 = vmatpush1.msra.mxu0 %v264
    %3871 = vmatprep.subr.mxu0 %v269
    %3872 = vmatpush1.msra.mxu0 %v268
    %3873 = vmatprep.subr.mxu0 %v273
    %3874 = vmatpush1.msra.mxu0 %v272
    %3875 = vmatprep.subr.mxu0 %v277
    %3876 = vmatpush1.msra.mxu0 %v276
    %3877 = vmatprep.subr.mxu0 0.0
    %3878 = vmatpush1.msra.mxu0 0.0
    %3879 = vmatprep.subr.mxu0 0.0
    %3880 = vmatpush1.msra.mxu0 0.0
    %3881 = vmatprep.subr.mxu0 0.0
    %3882 = vmatpush1.msra.mxu0 0.0
    %3883 = vmatprep.subr.mxu0 0.0
    %3884 = vmatpush1.msra.mxu0 0.0
    %3885 = vmatprep.subr.mxu0 0.0
    %3886 = vmatpush1.msra.mxu0 0.0
    %3887 = vmatprep.subr.mxu0 0.0
    %3888 = vmatpush1.msra.mxu0 0.0
    %3889 = vmatprep.subr.mxu0 0.0
    %3890 = vmatpush1.msra.mxu0 0.0
    %3891 = vmatprep.subr.mxu0 0.0
    %3892 = vmatpush1.msra.mxu0 0.0
    %3893 = vmatprep.subr.mxu0 0.0
    %3894 = vmatpush1.msra.mxu0 0.0
    %3895 = vmatprep.subr.mxu0 0.0
    %3896 = vmatpush1.msra.mxu0 0.0
    %3897 = vmatprep.subr.mxu0 0.0
    %3898 = vmatpush1.msra.mxu0 0.0
    %3899 = vmatprep.subr.mxu0 0.0
    %3900 = vmatpush1.msra.mxu0 0.0
    %3901 = vmatprep.subr.mxu0 0.0
    %3902 = vmatpush1.msra.mxu0 0.0
    %3903 = vmatprep.subr.mxu0 0.0
    %3904 = vmatpush1.msra.mxu0 0.0
    %3905 = vmatprep.subr.mxu0 0.0
    %3906 = vmatpush1.msra.mxu0 0.0
    %3907 = vmatprep.subr.mxu0 0.0
    %3908 = vmatpush1.msra.mxu0 0.0
    %3909 = vmatprep.mubr.f32.mxu0 0.0
    %3910 = vmatmul.mubr.f32.gmra.mrb[0].mxu0 %v3313
    %v3911 = vpop.f32.mrb[0].mxu0
    %v3912 = vadd.f32 0.0, %v3911
    %v3913 = vpop.f32.mrb[0].mxu0
    %v3914 = vadd.f32 0.0, %v3913
    %3915 = vdwg.mxu0
    %v3916 = vadd.f32 %v3699, %v3841
    %v3917 = vadd.f32 %v3701, %v3843
    %v3918 = vadd.f32 %v3770, %v3912
    %v3919 = vadd.f32 %v3772, %v3914
    %v3920 = vxor.u32 %v3916, 2147483648
    %v3921 = vmul.f32 %v3920, 1.442695
    %v3922 = vpow.pop %v3921
    %v3923 = vadd.f32 %v3922, 1.0
    %v3924 = vrcp.pop %v3923
    %v3925 = vmul.f32 1.0, %v3924
    %v3926 = vxor.u32 %v3917, 2147483648
    %v3927 = vmul.f32 %v3926, 1.442695
    %v3928 = vpow.pop %v3927
    %v3929 = vadd.f32 %v3928, 1.0
    %v3930 = vrcp.pop %v3929
    %v3931 = vmul.f32 1.0, %v3930
    %v3932 = vtanh.pop %v3918
    %v3933 = vxor.u32 %v3919, 2147483648
    %v3934 = vmul.f32 %v3933, 1.442695
    %v3935 = vpow.pop %v3934
    %v3936 = vadd.f32 %v3935, 1.0
    %v3937 = vrcp.pop %v3936
    %v3938 = vmul.f32 1.0, %v3937
    %v3939 = vmul.f32 %v3931, %v3314
    %v3940 = vmul.f32 %v3925, %v3932
    %v3941 = vadd.f32 %v3939, %v3940
    %v3942 = vtanh.pop %v3941
    %v3943 = vmul.f32 %v3938, %v3942
    %v3944 = vsel %vm3629, 1, 0
    %3945 = vset.pattern.permute.xlu0 0
    %3946 = vperm.xlu0 %3945, %v3944
    %v3947 = vpop.permute.xlu0 %3946
    %vm3948 = vcmp.eq.s32.totalorder %v3947, 1
    %v3949 = vsel %vm3948, %v3943, %v3313
    %v3950 = vsel %vm3948, %v3941, %v3314
    %3951 = vmatprep.subr.mxu0 %v343
    %3952 = vmatpush1.msra.mxu0 %v342
    %3953 = vmatprep.subr.mxu0 %v347
    %3954 = vmatpush1.msra.mxu0 %v346
    %3955 = vmatprep.subr.mxu0 %v351
    %3956 = vmatpush1.msra.mxu0 %v350
    %3957 = vmatprep.subr.mxu0 %v355
    %3958 = vmatpush1.msra.mxu0 %v354
    %3959 = vmatprep.subr.mxu0 %v359
    %3960 = vmatpush1.msra.mxu0 %v358
    %3961 = vmatprep.subr.mxu0 %v363
    %3962 = vmatpush1.msra.mxu0 %v362
    %3963 = vmatprep.subr.mxu0 %v367
    %3964 = vmatpush1.msra.mxu0 %v366
    %3965 = vmatprep.subr.mxu0 %v371
    %3966 = vmatpush1.msra.mxu0 %v370
    %3967 = vmatprep.subr.mxu0 %v375
    %3968 = vmatpush1.msra.mxu0 %v374
    %3969 = vmatprep.subr.mxu0 %v379
    %3970 = vmatpush1.msra.mxu0 %v378
    %3971 = vmatprep.subr.mxu0 %v383
    %3972 = vmatpush1.msra.mxu0 %v382
    %3973 = vmatprep.subr.mxu0 %v387
    %3974 = vmatpush1.msra.mxu0 %v386
    %3975 = vmatprep.subr.mxu0 %v391
    %3976 = vmatpush1.msra.mxu0 %v390
    %3977 = vmatprep.subr.mxu0 %v395
    %3978 = vmatpush1.msra.mxu0 %v394
    %3979 = vmatprep.subr.mxu0 %v399
    %3980 = vmatpush1.msra.mxu0 %v398
    %3981 = vmatprep.subr.mxu0 %v403
    %3982 = vmatpush1.msra.mxu0 %v402
    %3983 = vmatprep.subr.mxu0 0.0
    %3984 = vmatpush1.msra.mxu0 0.0
    %3985 = vmatprep.subr.mxu0 0.0
    %3986 = vmatpush1.msra.mxu0 0.0
    %3987 = vmatprep.subr.mxu0 0.0
    %3988 = vmatpush1.msra.mxu0 0.0
    %3989 = vmatprep.subr.mxu0 0.0
    %3990 = vmatpush1.msra.mxu0 0.0
    %3991 = vmatprep.subr.mxu0 0.0
    %3992 = vmatpush1.msra.mxu0 0.0
    %3993 = vmatprep.subr.mxu0 0.0
    %3994 = vmatpush1.msra.mxu0 0.0
    %3995 = vmatprep.subr.mxu0 0.0
    %3996 = vmatpush1.msra.mxu0 0.0
    %3997 = vmatprep.subr.mxu0 0.0
    %3998 = vmatpush1.msra.mxu0 0.0
    %3999 = vmatprep.subr.mxu0 0.0
    %4000 = vmatpush1.msra.mxu0 0.0
    %4001 = vmatprep.subr.mxu0 0.0
    %4002 = vmatpush1.msra.mxu0 0.0
    %4003 = vmatprep.subr.mxu0 0.0
    %4004 = vmatpush1.msra.mxu0 0.0
    %4005 = vmatprep.subr.mxu0 0.0
    %4006 = vmatpush1.msra.mxu0 0.0
    %4007 = vmatprep.subr.mxu0 0.0
    %4008 = vmatpush1.msra.mxu0 0.0
    %4009 = vmatprep.subr.mxu0 0.0
    %4010 = vmatpush1.msra.mxu0 0.0
    %4011 = vmatprep.subr.mxu0 0.0
    %4012 = vmatpush1.msra.mxu0 0.0
    %4013 = vmatprep.subr.mxu0 0.0
    %4014 = vmatpush1.msra.mxu0 0.0
    %4015 = vmatprep.mubr.f32.mxu0 0.0
    %4016 = vmatmul.mubr.f32.gmra.mrb[0].mxu0 %v3627
    %v4017 = vpop.f32.mrb[0].mxu0
    %v4018 = vadd.f32 %v433, %v4017
    %v4019 = vpop.f32.mrb[0].mxu0
    %v4020 = vadd.f32 %v437, %v4019
    %4021 = vdwg.mxu0
    %4022 = vmatprep.subr.mxu0 %v345
    %4023 = vmatpush1.msra.mxu0 %v344
    %4024 = vmatprep.subr.mxu0 %v349
    %4025 = vmatpush1.msra.mxu0 %v348
    %4026 = vmatprep.subr.mxu0 %v353
    %4027 = vmatpush1.msra.mxu0 %v352
    %4028 = vmatprep.subr.mxu0 %v357
    %4029 = vmatpush1.msra.mxu0 %v356
    %4030 = vmatprep.subr.mxu0 %v361
    %4031 = vmatpush1.msra.mxu0 %v360
    %4032 = vmatprep.subr.mxu0 %v365
    %4033 = vmatpush1.msra.mxu0 %v364
    %4034 = vmatprep.subr.mxu0 %v369
    %4035 = vmatpush1.msra.mxu0 %v368
    %4036 = vmatprep.subr.mxu0 %v373
    %4037 = vmatpush1.msra.mxu0 %v372
    %4038 = vmatprep.subr.mxu0 %v377
    %4039 = vmatpush1.msra.mxu0 %v376
    %4040 = vmatprep.subr.mxu0 %v381
    %4041 = vmatpush1.msra.mxu0 %v380
    %4042 = vmatprep.subr.mxu0 %v385
    %4043 = vmatpush1.msra.mxu0 %v384
    %4044 = vmatprep.subr.mxu0 %v389
    %4045 = vmatpush1.msra.mxu0 %v388
    %4046 = vmatprep.subr.mxu0 %v393
    %4047 = vmatpush1.msra.mxu0 %v392
    %4048 = vmatprep.subr.mxu0 %v397
    %4049 = vmatpush1.msra.mxu0 %v396
    %4050 = vmatprep.subr.mxu0 %v401
    %4051 = vmatpush1.msra.mxu0 %v400
    %4052 = vmatprep.subr.mxu0 %v405
    %4053 = vmatpush1.msra.mxu0 %v404
    %4054 = vmatprep.subr.mxu0 0.0
    %4055 = vmatpush1.msra.mxu0 0.0
    %4056 = vmatprep.subr.mxu0 0.0
    %4057 = vmatpush1.msra.mxu0 0.0
    %4058 = vmatprep.subr.mxu0 0.0
    %4059 = vmatpush1.msra.mxu0 0.0
    %4060 = vmatprep.subr.mxu0 0.0
    %4061 = vmatpush1.msra.mxu0 0.0
    %4062 = vmatprep.subr.mxu0 0.0
    %4063 = vmatpush1.msra.mxu0 0.0
    %4064 = vmatprep.subr.mxu0 0.0
    %4065 = vmatpush1.msra.mxu0 0.0
    %4066 = vmatprep.subr.mxu0 0.0
    %4067 = vmatpush1.msra.mxu0 0.0
    %4068 = vmatprep.subr.mxu0 0.0
    %4069 = vmatpush1.msra.mxu0 0.0
    %4070 = vmatprep.subr.mxu0 0.0
    %4071 = vmatpush1.msra.mxu0 0.0
    %4072 = vmatprep.subr.mxu0 0.0
    %4073 = vmatpush1.msra.mxu0 0.0
    %4074 = vmatprep.subr.mxu0 0.0
    %4075 = vmatpush1.msra.mxu0 0.0
    %4076 = vmatprep.subr.mxu0 0.0
    %4077 = vmatpush1.msra.mxu0 0.0
    %4078 = vmatprep.subr.mxu0 0.0
    %4079 = vmatpush1.msra.mxu0 0.0
    %4080 = vmatprep.subr.mxu0 0.0
    %4081 = vmatpush1.msra.mxu0 0.0
    %4082 = vmatprep.subr.mxu0 0.0
    %4083 = vmatpush1.msra.mxu0 0.0
    %4084 = vmatprep.subr.mxu0 0.0
    %4085 = vmatpush1.msra.mxu0 0.0
    %4086 = vmatprep.mubr.f32.mxu0 0.0
    %4087 = vmatmul.mubr.f32.gmra.mrb[0].mxu0 %v3627
    %v4088 = vpop.f32.mrb[0].mxu0
    %v4089 = vadd.f32 %v441, %v4088
    %v4090 = vpop.f32.mrb[0].mxu0
    %v4091 = vadd.f32 %v445, %v4090
    %4092 = vdwg.mxu0
    %4093 = vmatprep.subr.mxu0 %v279
    %4094 = vmatpush1.msra.mxu0 %v278
    %4095 = vmatprep.subr.mxu0 %v283
    %4096 = vmatpush1.msra.mxu0 %v282
    %4097 = vmatprep.subr.mxu0 %v287
    %4098 = vmatpush1.msra.mxu0 %v286
    %4099 = vmatprep.subr.mxu0 %v291
    %4100 = vmatpush1.msra.mxu0 %v290
    %4101 = vmatprep.subr.mxu0 %v295
    %4102 = vmatpush1.msra.mxu0 %v294
    %4103 = vmatprep.subr.mxu0 %v299
    %4104 = vmatpush1.msra.mxu0 %v298
    %4105 = vmatprep.subr.mxu0 %v303
    %4106 = vmatpush1.msra.mxu0 %v302
    %4107 = vmatprep.subr.mxu0 %v307
    %4108 = vmatpush1.msra.mxu0 %v306
    %4109 = vmatprep.subr.mxu0 %v311
    %4110 = vmatpush1.msra.mxu0 %v310
    %4111 = vmatprep.subr.mxu0 %v315
    %4112 = vmatpush1.msra.mxu0 %v314
    %4113 = vmatprep.subr.mxu0 %v319
    %4114 = vmatpush1.msra.mxu0 %v318
    %4115 = vmatprep.subr.mxu0 %v323
    %4116 = vmatpush1.msra.mxu0 %v322
    %4117 = vmatprep.subr.mxu0 %v327
    %4118 = vmatpush1.msra.mxu0 %v326
    %4119 = vmatprep.subr.mxu0 %v331
    %4120 = vmatpush1.msra.mxu0 %v330
    %4121 = vmatprep.subr.mxu0 %v335
    %4122 = vmatpush1.msra.mxu0 %v334
    %4123 = vmatprep.subr.mxu0 %v339
    %4124 = vmatpush1.msra.mxu0 %v338
    %4125 = vmatprep.subr.mxu0 0.0
    %4126 = vmatpush1.msra.mxu0 0.0
    %4127 = vmatprep.subr.mxu0 0.0
    %4128 = vmatpush1.msra.mxu0 0.0
    %4129 = vmatprep.subr.mxu0 0.0
    %4130 = vmatpush1.msra.mxu0 0.0
    %4131 = vmatprep.subr.mxu0 0.0
    %4132 = vmatpush1.msra.mxu0 0.0
    %4133 = vmatprep.subr.mxu0 0.0
    %4134 = vmatpush1.msra.mxu0 0.0
    %4135 = vmatprep.subr.mxu0 0.0
    %4136 = vmatpush1.msra.mxu0 0.0
    %4137 = vmatprep.subr.mxu0 0.0
    %4138 = vmatpush1.msra.mxu0 0.0
    %4139 = vmatprep.subr.mxu0 0.0
    %4140 = vmatpush1.msra.mxu0 0.0
    %4141 = vmatprep.subr.mxu0 0.0
    %4142 = vmatpush1.msra.mxu0 0.0
    %4143 = vmatprep.subr.mxu0 0.0
    %4144 = vmatpush1.msra.mxu0 0.0
    %4145 = vmatprep.subr.mxu0 0.0
    %4146 = vmatpush1.msra.mxu0 0.0
    %4147 = vmatprep.subr.mxu0 0.0
    %4148 = vmatpush1.msra.mxu0 0.0
    %4149 = vmatprep.subr.mxu0 0.0
    %4150 = vmatpush1.msra.mxu0 0.0
    %4151 = vmatprep.subr.mxu0 0.0
    %4152 = vmatpush1.msra.mxu0 0.0
    %4153 = vmatprep.subr.mxu0 0.0
    %4154 = vmatpush1.msra.mxu0 0.0
    %4155 = vmatprep.subr.mxu0 0.0
    %4156 = vmatpush1.msra.mxu0 0.0
    %4157 = vmatprep.mubr.f32.mxu0 0.0
    %4158 = vmatmul.mubr.f32.gmra.mrb[0].mxu0 %v3949
    %v4159 = vpop.f32.mrb[0].mxu0
    %v4160 = vadd.f32 0.0, %v4159
    %v4161 = vpop.f32.mrb[0].mxu0
    %v4162 = vadd.f32 0.0, %v4161
    %4163 = vdwg.mxu0
    %4164 = vmatprep.subr.mxu0 %v281
    %4165 = vmatpush1.msra.mxu0 %v280
    %4166 = vmatprep.subr.mxu0 %v285
    %4167 = vmatpush1.msra.mxu0 %v284
    %4168 = vmatprep.subr.mxu0 %v289
    %4169 = vmatpush1.msra.mxu0 %v288
    %4170 = vmatprep.subr.mxu0 %v293
    %4171 = vmatpush1.msra.mxu0 %v292
    %4172 = vmatprep.subr.mxu0 %v297
    %4173 = vmatpush1.msra.mxu0 %v296
    %4174 = vmatprep.subr.mxu0 %v301
    %4175 = vmatpush1.msra.mxu0 %v300
    %4176 = vmatprep.subr.mxu0 %v305
    %4177 = vmatpush1.msra.mxu0 %v304
    %4178 = vmatprep.subr.mxu0 %v309
    %4179 = vmatpush1.msra.mxu0 %v308
    %4180 = vmatprep.subr.mxu0 %v313
    %4181 = vmatpush1.msra.mxu0 %v312
    %4182 = vmatprep.subr.mxu0 %v317
    %4183 = vmatpush1.msra.mxu0 %v316
    %4184 = vmatprep.subr.mxu0 %v321
    %4185 = vmatpush1.msra.mxu0 %v320
    %4186 = vmatprep.subr.mxu0 %v325
    %4187 = vmatpush1.msra.mxu0 %v324
    %4188 = vmatprep.subr.mxu0 %v329
    %4189 = vmatpush1.msra.mxu0 %v328
    %4190 = vmatprep.subr.mxu0 %v333
    %4191 = vmatpush1.msra.mxu0 %v332
    %4192 = vmatprep.subr.mxu0 %v337
    %4193 = vmatpush1.msra.mxu0 %v336
    %4194 = vmatprep.subr.mxu0 %v341
    %4195 = vmatpush1.msra.mxu0 %v340
    %4196 = vmatprep.subr.mxu0 0.0
    %4197 = vmatpush1.msra.mxu0 0.0
    %4198 = vmatprep.subr.mxu0 0.0
    %4199 = vmatpush1.msra.mxu0 0.0
    %4200 = vmatprep.subr.mxu0 0.0
    %4201 = vmatpush1.msra.mxu0 0.0
    %4202 = vmatprep.subr.mxu0 0.0
    %4203 = vmatpush1.msra.mxu0 0.0
    %4204 = vmatprep.subr.mxu0 0.0
    %4205 = vmatpush1.msra.mxu0 0.0
    %4206 = vmatprep.subr.mxu0 0.0
    %4207 = vmatpush1.msra.mxu0 0.0
    %4208 = vmatprep.subr.mxu0 0.0
    %4209 = vmatpush1.msra.mxu0 0.0
    %4210 = vmatprep.subr.mxu0 0.0
    %4211 = vmatpush1.msra.mxu0 0.0
    %4212 = vmatprep.subr.mxu0 0.0
    %4213 = vmatpush1.msra.mxu0 0.0
    %4214 = vmatprep.subr.mxu0 0.0
    %4215 = vmatpush1.msra.mxu0 0.0
    %4216 = vmatprep.subr.mxu0 0.0
    %4217 = vmatpush1.msra.mxu0 0.0
    %4218 = vmatprep.subr.mxu0 0.0
    %4219 = vmatpush1.msra.mxu0 0.0
    %4220 = vmatprep.subr.mxu0 0.0
    %4221 = vmatpush1.msra.mxu0 0.0
    %4222 = vmatprep.subr.mxu0 0.0
    %4223 = vmatpush1.msra.mxu0 0.0
    %4224 = vmatprep.subr.mxu0 0.0
    %4225 = vmatpush1.msra.mxu0 0.0
    %4226 = vmatprep.subr.mxu0 0.0
    %4227 = vmatpush1.msra.mxu0 0.0
    %4228 = vmatprep.mubr.f32.mxu0 0.0
    %4229 = vmatmul.mubr.f32.gmra.mrb[0].mxu0 %v3949
    %v4230 = vpop.f32.mrb[0].mxu0
    %v4231 = vadd.f32 0.0, %v4230
    %v4232 = vpop.f32.mrb[0].mxu0
    %v4233 = vadd.f32 0.0, %v4232
    %4234 = vdwg.mxu0
    %v4235 = vadd.f32 %v4018, %v4160
    %v4236 = vadd.f32 %v4020, %v4162
    %v4237 = vadd.f32 %v4089, %v4231
    %v4238 = vadd.f32 %v4091, %v4233
    %v4239 = vxor.u32 %v4235, 2147483648
    %v4240 = vmul.f32 %v4239, 1.442695
    %v4241 = vpow.pop %v4240
    %v4242 = vadd.f32 %v4241, 1.0
    %v4243 = vrcp.pop %v4242
    %v4244 = vmul.f32 1.0, %v4243
    %v4245 = vxor.u32 %v4236, 2147483648
    %v4246 = vmul.f32 %v4245, 1.442695
    %v4247 = vpow.pop %v4246
    %v4248 = vadd.f32 %v4247, 1.0
    %v4249 = vrcp.pop %v4248
    %v4250 = vmul.f32 1.0, %v4249
    %v4251 = vtanh.pop %v4237
    %v4252 = vxor.u32 %v4238, 2147483648
    %v4253 = vmul.f32 %v4252, 1.442695
    %v4254 = vpow.pop %v4253
    %v4255 = vadd.f32 %v4254, 1.0
    %v4256 = vrcp.pop %v4255
    %v4257 = vmul.f32 1.0, %v4256
    %v4258 = vmul.f32 %v4250, %v3628
    %v4259 = vmul.f32 %v4244, %v4251
    %v4260 = vadd.f32 %v4258, %v4259
    %v4261 = vtanh.pop %v4260
    %v4262 = vmul.f32 %v4257, %v4261
    %v4263 = vsel %vm3948, %v4262, %v3627
    %v4264 = vsel %vm3948, %v4260, %v3628
    %vm4265 = vcmp.gt.s32.totalorder %v149, 6
    %s4266 = scalar_lea.vmem [#allocation2], 12
    %v4267 = vld [vmem:[%s4266] sm:$0x3]
    %4268 = vmatprep.subr.mxu0 %v151
    %4269 = vmatpush1.msra.mxu0 %v150
    %4270 = vmatprep.subr.mxu0 %v155
    %4271 = vmatpush1.msra.mxu0 %v154
    %4272 = vmatprep.subr.mxu0 %v159
    %4273 = vmatpush1.msra.mxu0 %v158
    %4274 = vmatprep.subr.mxu0 %v163
    %4275 = vmatpush1.msra.mxu0 %v162
    %4276 = vmatprep.subr.mxu0 %v167
    %4277 = vmatpush1.msra.mxu0 %v166
    %4278 = vmatprep.subr.mxu0 %v171
    %4279 = vmatpush1.msra.mxu0 %v170
    %4280 = vmatprep.subr.mxu0 %v175
    %4281 = vmatpush1.msra.mxu0 %v174
    %4282 = vmatprep.subr.mxu0 %v179
    %4283 = vmatpush1.msra.mxu0 %v178
    %4284 = vmatprep.subr.mxu0 %v183
    %4285 = vmatpush1.msra.mxu0 %v182
    %4286 = vmatprep.subr.mxu0 %v187
    %4287 = vmatpush1.msra.mxu0 %v186
    %4288 = vmatprep.subr.mxu0 %v191
    %4289 = vmatpush1.msra.mxu0 %v190
    %4290 = vmatprep.subr.mxu0 %v195
    %4291 = vmatpush1.msra.mxu0 %v194
    %4292 = vmatprep.subr.mxu0 %v199
    %4293 = vmatpush1.msra.mxu0 %v198
    %4294 = vmatprep.subr.mxu0 %v203
    %4295 = vmatpush1.msra.mxu0 %v202
    %4296 = vmatprep.subr.mxu0 %v207
    %4297 = vmatpush1.msra.mxu0 %v206
    %4298 = vmatprep.subr.mxu0 %v211
    %4299 = vmatpush1.msra.mxu0 %v210
    %4300 = vmatprep.subr.mxu0 0.0
    %4301 = vmatpush1.msra.mxu0 0.0
    %4302 = vmatprep.subr.mxu0 0.0
    %4303 = vmatpush1.msra.mxu0 0.0
    %4304 = vmatprep.subr.mxu0 0.0
    %4305 = vmatpush1.msra.mxu0 0.0
    %4306 = vmatprep.subr.mxu0 0.0
    %4307 = vmatpush1.msra.mxu0 0.0
    %4308 = vmatprep.subr.mxu0 0.0
    %4309 = vmatpush1.msra.mxu0 0.0
    %4310 = vmatprep.subr.mxu0 0.0
    %4311 = vmatpush1.msra.mxu0 0.0
    %4312 = vmatprep.subr.mxu0 0.0
    %4313 = vmatpush1.msra.mxu0 0.0
    %4314 = vmatprep.subr.mxu0 0.0
    %4315 = vmatpush1.msra.mxu0 0.0
    %4316 = vmatprep.subr.mxu0 0.0
    %4317 = vmatpush1.msra.mxu0 0.0
    %4318 = vmatprep.subr.mxu0 0.0
    %4319 = vmatpush1.msra.mxu0 0.0
    %4320 = vmatprep.subr.mxu0 0.0
    %4321 = vmatpush1.msra.mxu0 0.0
    %4322 = vmatprep.subr.mxu0 0.0
    %4323 = vmatpush1.msra.mxu0 0.0
    %4324 = vmatprep.subr.mxu0 0.0
    %4325 = vmatpush1.msra.mxu0 0.0
    %4326 = vmatprep.subr.mxu0 0.0
    %4327 = vmatpush1.msra.mxu0 0.0
    %4328 = vmatprep.subr.mxu0 0.0
    %4329 = vmatpush1.msra.mxu0 0.0
    %4330 = vmatprep.subr.mxu0 0.0
    %4331 = vmatpush1.msra.mxu0 0.0
    %4332 = vmatprep.mubr.f32.mxu0 0.0
    %4333 = vmatmul.mubr.f32.gmra.mrb[0].mxu0 %v4267
    %v4334 = vpop.f32.mrb[0].mxu0
    %v4335 = vadd.f32 %v411, %v4334
    %v4336 = vpop.f32.mrb[0].mxu0
    %v4337 = vadd.f32 %v415, %v4336
    %4338 = vdwg.mxu0
    %4339 = vmatprep.subr.mxu0 %v153
    %4340 = vmatpush1.msra.mxu0 %v152
    %4341 = vmatprep.subr.mxu0 %v157
    %4342 = vmatpush1.msra.mxu0 %v156
    %4343 = vmatprep.subr.mxu0 %v161
    %4344 = vmatpush1.msra.mxu0 %v160
    %4345 = vmatprep.subr.mxu0 %v165
    %4346 = vmatpush1.msra.mxu0 %v164
    %4347 = vmatprep.subr.mxu0 %v169
    %4348 = vmatpush1.msra.mxu0 %v168
    %4349 = vmatprep.subr.mxu0 %v173
    %4350 = vmatpush1.msra.mxu0 %v172
    %4351 = vmatprep.subr.mxu0 %v177
    %4352 = vmatpush1.msra.mxu0 %v176
    %4353 = vmatprep.subr.mxu0 %v181
    %4354 = vmatpush1.msra.mxu0 %v180
    %4355 = vmatprep.subr.mxu0 %v185
    %4356 = vmatpush1.msra.mxu0 %v184
    %4357 = vmatprep.subr.mxu0 %v189
    %4358 = vmatpush1.msra.mxu0 %v188
    %4359 = vmatprep.subr.mxu0 %v193
    %4360 = vmatpush1.msra.mxu0 %v192
    %4361 = vmatprep.subr.mxu0 %v197
    %4362 = vmatpush1.msra.mxu0 %v196
    %4363 = vmatprep.subr.mxu0 %v201
    %4364 = vmatpush1.msra.mxu0 %v200
    %4365 = vmatprep.subr.mxu0 %v205
    %4366 = vmatpush1.msra.mxu0 %v204
    %4367 = vmatprep.subr.mxu0 %v209
    %4368 = vmatpush1.msra.mxu0 %v208
    %4369 = vmatprep.subr.mxu0 %v213
    %4370 = vmatpush1.msra.mxu0 %v212
    %4371 = vmatprep.subr.mxu0 0.0
    %4372 = vmatpush1.msra.mxu0 0.0
    %4373 = vmatprep.subr.mxu0 0.0
    %4374 = vmatpush1.msra.mxu0 0.0
    %4375 = vmatprep.subr.mxu0 0.0
    %4376 = vmatpush1.msra.mxu0 0.0
    %4377 = vmatprep.subr.mxu0 0.0
    %4378 = vmatpush1.msra.mxu0 0.0
    %4379 = vmatprep.subr.mxu0 0.0
    %4380 = vmatpush1.msra.mxu0 0.0
    %4381 = vmatprep.subr.mxu0 0.0
    %4382 = vmatpush1.msra.mxu0 0.0
    %4383 = vmatprep.subr.mxu0 0.0
    %4384 = vmatpush1.msra.mxu0 0.0
    %4385 = vmatprep.subr.mxu0 0.0
    %4386 = vmatpush1.msra.mxu0 0.0
    %4387 = vmatprep.subr.mxu0 0.0
    %4388 = vmatpush1.msra.mxu0 0.0
    %4389 = vmatprep.subr.mxu0 0.0
    %4390 = vmatpush1.msra.mxu0 0.0
    %4391 = vmatprep.subr.mxu0 0.0
    %4392 = vmatpush1.msra.mxu0 0.0
    %4393 = vmatprep.subr.mxu0 0.0
    %4394 = vmatpush1.msra.mxu0 0.0
    %4395 = vmatprep.subr.mxu0 0.0
    %4396 = vmatpush1.msra.mxu0 0.0
    %4397 = vmatprep.subr.mxu0 0.0
    %4398 = vmatpush1.msra.mxu0 0.0
    %4399 = vmatprep.subr.mxu0 0.0
    %4400 = vmatpush1.msra.mxu0 0.0
    %4401 = vmatprep.subr.mxu0 0.0
    %4402 = vmatpush1.msra.mxu0 0.0
    %4403 = vmatprep.mubr.f32.mxu0 0.0
    %4404 = vmatmul.mubr.f32.gmra.mrb[0].mxu0 %v4267
    %v4405 = vpop.f32.mrb[0].mxu0
    %v4406 = vadd.f32 %v419, %v4405
    %v4407 = vpop.f32.mrb[0].mxu0
    %v4408 = vadd.f32 %v423, %v4407
    %4409 = vdwg.mxu0
    %4410 = vmatprep.subr.mxu0 %v215
    %4411 = vmatpush1.msra.mxu0 %v214
    %4412 = vmatprep.subr.mxu0 %v219
    %4413 = vmatpush1.msra.mxu0 %v218
    %4414 = vmatprep.subr.mxu0 %v223
    %4415 = vmatpush1.msra.mxu0 %v222
    %4416 = vmatprep.subr.mxu0 %v227
    %4417 = vmatpush1.msra.mxu0 %v226
    %4418 = vmatprep.subr.mxu0 %v231
    %4419 = vmatpush1.msra.mxu0 %v230
    %4420 = vmatprep.subr.mxu0 %v235
    %4421 = vmatpush1.msra.mxu0 %v234
    %4422 = vmatprep.subr.mxu0 %v239
    %4423 = vmatpush1.msra.mxu0 %v238
    %4424 = vmatprep.subr.mxu0 %v243
    %4425 = vmatpush1.msra.mxu0 %v242
    %4426 = vmatprep.subr.mxu0 %v247
    %4427 = vmatpush1.msra.mxu0 %v246
    %4428 = vmatprep.subr.mxu0 %v251
    %4429 = vmatpush1.msra.mxu0 %v250
    %4430 = vmatprep.subr.mxu0 %v255
    %4431 = vmatpush1.msra.mxu0 %v254
    %4432 = vmatprep.subr.mxu0 %v259
    %4433 = vmatpush1.msra.mxu0 %v258
    %4434 = vmatprep.subr.mxu0 %v263
    %4435 = vmatpush1.msra.mxu0 %v262
    %4436 = vmatprep.subr.mxu0 %v267
    %4437 = vmatpush1.msra.mxu0 %v266
    %4438 = vmatprep.subr.mxu0 %v271
    %4439 = vmatpush1.msra.mxu0 %v270
    %4440 = vmatprep.subr.mxu0 %v275
    %4441 = vmatpush1.msra.mxu0 %v274
    %4442 = vmatprep.subr.mxu0 0.0
    %4443 = vmatpush1.msra.mxu0 0.0
    %4444 = vmatprep.subr.mxu0 0.0
    %4445 = vmatpush1.msra.mxu0 0.0
    %4446 = vmatprep.subr.mxu0 0.0
    %4447 = vmatpush1.msra.mxu0 0.0
    %4448 = vmatprep.subr.mxu0 0.0
    %4449 = vmatpush1.msra.mxu0 0.0
    %4450 = vmatprep.subr.mxu0 0.0
    %4451 = vmatpush1.msra.mxu0 0.0
    %4452 = vmatprep.subr.mxu0 0.0
    %4453 = vmatpush1.msra.mxu0 0.0
    %4454 = vmatprep.subr.mxu0 0.0
    %4455 = vmatpush1.msra.mxu0 0.0
    %4456 = vmatprep.subr.mxu0 0.0
    %4457 = vmatpush1.msra.mxu0 0.0
    %4458 = vmatprep.subr.mxu0 0.0
    %4459 = vmatpush1.msra.mxu0 0.0
    %4460 = vmatprep.subr.mxu0 0.0
    %4461 = vmatpush1.msra.mxu0 0.0
    %4462 = vmatprep.subr.mxu0 0.0
    %4463 = vmatpush1.msra.mxu0 0.0
    %4464 = vmatprep.subr.mxu0 0.0
    %4465 = vmatpush1.msra.mxu0 0.0
    %4466 = vmatprep.subr.mxu0 0.0
    %4467 = vmatpush1.msra.mxu0 0.0
    %4468 = vmatprep.subr.mxu0 0.0
    %4469 = vmatpush1.msra.mxu0 0.0
    %4470 = vmatprep.subr.mxu0 0.0
    %4471 = vmatpush1.msra.mxu0 0.0
    %4472 = vmatprep.subr.mxu0 0.0
    %4473 = vmatpush1.msra.mxu0 0.0
    %4474 = vmatprep.mubr.f32.mxu0 0.0
    %4475 = vmatmul.mubr.f32.gmra.mrb[0].mxu0 %v3949
    %v4476 = vpop.f32.mrb[0].mxu0
    %v4477 = vadd.f32 0.0, %v4476
    %v4478 = vpop.f32.mrb[0].mxu0
    %v4479 = vadd.f32 0.0, %v4478
    %4480 = vdwg.mxu0
    %4481 = vmatprep.subr.mxu0 %v217
    %4482 = vmatpush1.msra.mxu0 %v216
    %4483 = vmatprep.subr.mxu0 %v221
    %4484 = vmatpush1.msra.mxu0 %v220
    %4485 = vmatprep.subr.mxu0 %v225
    %4486 = vmatpush1.msra.mxu0 %v224
    %4487 = vmatprep.subr.mxu0 %v229
    %4488 = vmatpush1.msra.mxu0 %v228
    %4489 = vmatprep.subr.mxu0 %v233
    %4490 = vmatpush1.msra.mxu0 %v232
    %4491 = vmatprep.subr.mxu0 %v237
    %4492 = vmatpush1.msra.mxu0 %v236
    %4493 = vmatprep.subr.mxu0 %v241
    %4494 = vmatpush1.msra.mxu0 %v240
    %4495 = vmatprep.subr.mxu0 %v245
    %4496 = vmatpush1.msra.mxu0 %v244
    %4497 = vmatprep.subr.mxu0 %v249
    %4498 = vmatpush1.msra.mxu0 %v248
    %4499 = vmatprep.subr.mxu0 %v253
    %4500 = vmatpush1.msra.mxu0 %v252
    %4501 = vmatprep.subr.mxu0 %v257
    %4502 = vmatpush1.msra.mxu0 %v256
    %4503 = vmatprep.subr.mxu0 %v261
    %4504 = vmatpush1.msra.mxu0 %v260
    %4505 = vmatprep.subr.mxu0 %v265
    %4506 = vmatpush1.msra.mxu0 %v264
    %4507 = vmatprep.subr.mxu0 %v269
    %4508 = vmatpush1.msra.mxu0 %v268
    %4509 = vmatprep.subr.mxu0 %v273
    %4510 = vmatpush1.msra.mxu0 %v272
    %4511 = vmatprep.subr.mxu0 %v277
    %4512 = vmatpush1.msra.mxu0 %v276
    %4513 = vmatprep.subr.mxu0 0.0
    %4514 = vmatpush1.msra.mxu0 0.0
    %4515 = vmatprep.subr.mxu0 0.0
    %4516 = vmatpush1.msra.mxu0 0.0
    %4517 = vmatprep.subr.mxu0 0.0
    %4518 = vmatpush1.msra.mxu0 0.0
    %4519 = vmatprep.subr.mxu0 0.0
    %4520 = vmatpush1.msra.mxu0 0.0
    %4521 = vmatprep.subr.mxu0 0.0
    %4522 = vmatpush1.msra.mxu0 0.0
    %4523 = vmatprep.subr.mxu0 0.0
    %4524 = vmatpush1.msra.mxu0 0.0
    %4525 = vmatprep.subr.mxu0 0.0
    %4526 = vmatpush1.msra.mxu0 0.0
    %4527 = vmatprep.subr.mxu0 0.0
    %4528 = vmatpush1.msra.mxu0 0.0
    %4529 = vmatprep.subr.mxu0 0.0
    %4530 = vmatpush1.msra.mxu0 0.0
    %4531 = vmatprep.subr.mxu0 0.0
    %4532 = vmatpush1.msra.mxu0 0.0
    %4533 = vmatprep.subr.mxu0 0.0
    %4534 = vmatpush1.msra.mxu0 0.0
    %4535 = vmatprep.subr.mxu0 0.0
    %4536 = vmatpush1.msra.mxu0 0.0
    %4537 = vmatprep.subr.mxu0 0.0
    %4538 = vmatpush1.msra.mxu0 0.0
    %4539 = vmatprep.subr.mxu0 0.0
    %4540 = vmatpush1.msra.mxu0 0.0
    %4541 = vmatprep.subr.mxu0 0.0
    %4542 = vmatpush1.msra.mxu0 0.0
    %4543 = vmatprep.subr.mxu0 0.0
    %4544 = vmatpush1.msra.mxu0 0.0
    %4545 = vmatprep.mubr.f32.mxu0 0.0
    %4546 = vmatmul.mubr.f32.gmra.mrb[0].mxu0 %v3949
    %v4547 = vpop.f32.mrb[0].mxu0
    %v4548 = vadd.f32 0.0, %v4547
    %v4549 = vpop.f32.mrb[0].mxu0
    %v4550 = vadd.f32 0.0, %v4549
    %4551 = vdwg.mxu0
    %v4552 = vadd.f32 %v4335, %v4477
    %v4553 = vadd.f32 %v4337, %v4479
    %v4554 = vadd.f32 %v4406, %v4548
    %v4555 = vadd.f32 %v4408, %v4550
    %v4556 = vxor.u32 %v4552, 2147483648
    %v4557 = vmul.f32 %v4556, 1.442695
    %v4558 = vpow.pop %v4557
    %v4559 = vadd.f32 %v4558, 1.0
    %v4560 = vrcp.pop %v4559
    %v4561 = vmul.f32 1.0, %v4560
    %v4562 = vxor.u32 %v4553, 2147483648
    %v4563 = vmul.f32 %v4562, 1.442695
    %v4564 = vpow.pop %v4563
    %v4565 = vadd.f32 %v4564, 1.0
    %v4566 = vrcp.pop %v4565
    %v4567 = vmul.f32 1.0, %v4566
    %v4568 = vtanh.pop %v4554
    %v4569 = vxor.u32 %v4555, 2147483648
    %v4570 = vmul.f32 %v4569, 1.442695
    %v4571 = vpow.pop %v4570
    %v4572 = vadd.f32 %v4571, 1.0
    %v4573 = vrcp.pop %v4572
    %v4574 = vmul.f32 1.0, %v4573
    %v4575 = vmul.f32 %v4567, %v3950
    %v4576 = vmul.f32 %v4561, %v4568
    %v4577 = vadd.f32 %v4575, %v4576
    %v4578 = vtanh.pop %v4577
    %v4579 = vmul.f32 %v4574, %v4578
    %v4580 = vsel %vm4265, 1, 0
    %4581 = vset.pattern.permute.xlu0 0
    %4582 = vperm.xlu0 %4581, %v4580
    %v4583 = vpop.permute.xlu0 %4582
    %vm4584 = vcmp.eq.s32.totalorder %v4583, 1
    %v4585 = vsel %vm4584, %v4579, %v3949
    %v4586 = vsel %vm4584, %v4577, %v3950
    %4587 = vmatprep.subr.mxu0 %v343
    %4588 = vmatpush1.msra.mxu0 %v342
    %4589 = vmatprep.subr.mxu0 %v347
    %4590 = vmatpush1.msra.mxu0 %v346
    %4591 = vmatprep.subr.mxu0 %v351
    %4592 = vmatpush1.msra.mxu0 %v350
    %4593 = vmatprep.subr.mxu0 %v355
    %4594 = vmatpush1.msra.mxu0 %v354
    %4595 = vmatprep.subr.mxu0 %v359
    %4596 = vmatpush1.msra.mxu0 %v358
    %4597 = vmatprep.subr.mxu0 %v363
    %4598 = vmatpush1.msra.mxu0 %v362
    %4599 = vmatprep.subr.mxu0 %v367
    %4600 = vmatpush1.msra.mxu0 %v366
    %4601 = vmatprep.subr.mxu0 %v371
    %4602 = vmatpush1.msra.mxu0 %v370
    %4603 = vmatprep.subr.mxu0 %v375
    %4604 = vmatpush1.msra.mxu0 %v374
    %4605 = vmatprep.subr.mxu0 %v379
    %4606 = vmatpush1.msra.mxu0 %v378
    %4607 = vmatprep.subr.mxu0 %v383
    %4608 = vmatpush1.msra.mxu0 %v382
    %4609 = vmatprep.subr.mxu0 %v387
    %4610 = vmatpush1.msra.mxu0 %v386
    %4611 = vmatprep.subr.mxu0 %v391
    %4612 = vmatpush1.msra.mxu0 %v390
    %4613 = vmatprep.subr.mxu0 %v395
    %4614 = vmatpush1.msra.mxu0 %v394
    %4615 = vmatprep.subr.mxu0 %v399
    %4616 = vmatpush1.msra.mxu0 %v398
    %4617 = vmatprep.subr.mxu0 %v403
    %4618 = vmatpush1.msra.mxu0 %v402
    %4619 = vmatprep.subr.mxu0 0.0
    %4620 = vmatpush1.msra.mxu0 0.0
    %4621 = vmatprep.subr.mxu0 0.0
    %4622 = vmatpush1.msra.mxu0 0.0
    %4623 = vmatprep.subr.mxu0 0.0
    %4624 = vmatpush1.msra.mxu0 0.0
    %4625 = vmatprep.subr.mxu0 0.0
    %4626 = vmatpush1.msra.mxu0 0.0
    %4627 = vmatprep.subr.mxu0 0.0
    %4628 = vmatpush1.msra.mxu0 0.0
    %4629 = vmatprep.subr.mxu0 0.0
    %4630 = vmatpush1.msra.mxu0 0.0
    %4631 = vmatprep.subr.mxu0 0.0
    %4632 = vmatpush1.msra.mxu0 0.0
    %4633 = vmatprep.subr.mxu0 0.0
    %4634 = vmatpush1.msra.mxu0 0.0
    %4635 = vmatprep.subr.mxu0 0.0
    %4636 = vmatpush1.msra.mxu0 0.0
    %4637 = vmatprep.subr.mxu0 0.0
    %4638 = vmatpush1.msra.mxu0 0.0
    %4639 = vmatprep.subr.mxu0 0.0
    %4640 = vmatpush1.msra.mxu0 0.0
    %4641 = vmatprep.subr.mxu0 0.0
    %4642 = vmatpush1.msra.mxu0 0.0
    %4643 = vmatprep.subr.mxu0 0.0
    %4644 = vmatpush1.msra.mxu0 0.0
    %4645 = vmatprep.subr.mxu0 0.0
    %4646 = vmatpush1.msra.mxu0 0.0
    %4647 = vmatprep.subr.mxu0 0.0
    %4648 = vmatpush1.msra.mxu0 0.0
    %4649 = vmatprep.subr.mxu0 0.0
    %4650 = vmatpush1.msra.mxu0 0.0
    %4651 = vmatprep.mubr.f32.mxu0 0.0
    %4652 = vmatmul.mubr.f32.gmra.mrb[0].mxu0 %v4263
    %v4653 = vpop.f32.mrb[0].mxu0
    %v4654 = vadd.f32 %v433, %v4653
    %v4655 = vpop.f32.mrb[0].mxu0
    %v4656 = vadd.f32 %v437, %v4655
    %4657 = vdwg.mxu0
    %4658 = vmatprep.subr.mxu0 %v345
    %4659 = vmatpush1.msra.mxu0 %v344
    %4660 = vmatprep.subr.mxu0 %v349
    %4661 = vmatpush1.msra.mxu0 %v348
    %4662 = vmatprep.subr.mxu0 %v353
    %4663 = vmatpush1.msra.mxu0 %v352
    %4664 = vmatprep.subr.mxu0 %v357
    %4665 = vmatpush1.msra.mxu0 %v356
    %4666 = vmatprep.subr.mxu0 %v361
    %4667 = vmatpush1.msra.mxu0 %v360
    %4668 = vmatprep.subr.mxu0 %v365
    %4669 = vmatpush1.msra.mxu0 %v364
    %4670 = vmatprep.subr.mxu0 %v369
    %4671 = vmatpush1.msra.mxu0 %v368
    %4672 = vmatprep.subr.mxu0 %v373
    %4673 = vmatpush1.msra.mxu0 %v372
    %4674 = vmatprep.subr.mxu0 %v377
    %4675 = vmatpush1.msra.mxu0 %v376
    %4676 = vmatprep.subr.mxu0 %v381
    %4677 = vmatpush1.msra.mxu0 %v380
    %4678 = vmatprep.subr.mxu0 %v385
    %4679 = vmatpush1.msra.mxu0 %v384
    %4680 = vmatprep.subr.mxu0 %v389
    %4681 = vmatpush1.msra.mxu0 %v388
    %4682 = vmatprep.subr.mxu0 %v393
    %4683 = vmatpush1.msra.mxu0 %v392
    %4684 = vmatprep.subr.mxu0 %v397
    %4685 = vmatpush1.msra.mxu0 %v396
    %4686 = vmatprep.subr.mxu0 %v401
    %4687 = vmatpush1.msra.mxu0 %v400
    %4688 = vmatprep.subr.mxu0 %v405
    %4689 = vmatpush1.msra.mxu0 %v404
    %4690 = vmatprep.subr.mxu0 0.0
    %4691 = vmatpush1.msra.mxu0 0.0
    %4692 = vmatprep.subr.mxu0 0.0
    %4693 = vmatpush1.msra.mxu0 0.0
    %4694 = vmatprep.subr.mxu0 0.0
    %4695 = vmatpush1.msra.mxu0 0.0
    %4696 = vmatprep.subr.mxu0 0.0
    %4697 = vmatpush1.msra.mxu0 0.0
    %4698 = vmatprep.subr.mxu0 0.0
    %4699 = vmatpush1.msra.mxu0 0.0
    %4700 = vmatprep.subr.mxu0 0.0
    %4701 = vmatpush1.msra.mxu0 0.0
    %4702 = vmatprep.subr.mxu0 0.0
    %4703 = vmatpush1.msra.mxu0 0.0
    %4704 = vmatprep.subr.mxu0 0.0
    %4705 = vmatpush1.msra.mxu0 0.0
    %4706 = vmatprep.subr.mxu0 0.0
    %4707 = vmatpush1.msra.mxu0 0.0
    %4708 = vmatprep.subr.mxu0 0.0
    %4709 = vmatpush1.msra.mxu0 0.0
    %4710 = vmatprep.subr.mxu0 0.0
    %4711 = vmatpush1.msra.mxu0 0.0
    %4712 = vmatprep.subr.mxu0 0.0
    %4713 = vmatpush1.msra.mxu0 0.0
    %4714 = vmatprep.subr.mxu0 0.0
    %4715 = vmatpush1.msra.mxu0 0.0
    %4716 = vmatprep.subr.mxu0 0.0
    %4717 = vmatpush1.msra.mxu0 0.0
    %4718 = vmatprep.subr.mxu0 0.0
    %4719 = vmatpush1.msra.mxu0 0.0
    %4720 = vmatprep.subr.mxu0 0.0
    %4721 = vmatpush1.msra.mxu0 0.0
    %4722 = vmatprep.mubr.f32.mxu0 0.0
    %4723 = vmatmul.mubr.f32.gmra.mrb[0].mxu0 %v4263
    %v4724 = vpop.f32.mrb[0].mxu0
    %v4725 = vadd.f32 %v441, %v4724
    %v4726 = vpop.f32.mrb[0].mxu0
    %v4727 = vadd.f32 %v445, %v4726
    %4728 = vdwg.mxu0
    %4729 = vmatprep.subr.mxu0 %v279
    %4730 = vmatpush1.msra.mxu0 %v278
    %4731 = vmatprep.subr.mxu0 %v283
    %4732 = vmatpush1.msra.mxu0 %v282
    %4733 = vmatprep.subr.mxu0 %v287
    %4734 = vmatpush1.msra.mxu0 %v286
    %4735 = vmatprep.subr.mxu0 %v291
    %4736 = vmatpush1.msra.mxu0 %v290
    %4737 = vmatprep.subr.mxu0 %v295
    %4738 = vmatpush1.msra.mxu0 %v294
    %4739 = vmatprep.subr.mxu0 %v299
    %4740 = vmatpush1.msra.mxu0 %v298
    %4741 = vmatprep.subr.mxu0 %v303
    %4742 = vmatpush1.msra.mxu0 %v302
    %4743 = vmatprep.subr.mxu0 %v307
    %4744 = vmatpush1.msra.mxu0 %v306
    %4745 = vmatprep.subr.mxu0 %v311
    %4746 = vmatpush1.msra.mxu0 %v310
    %4747 = vmatprep.subr.mxu0 %v315
    %4748 = vmatpush1.msra.mxu0 %v314
    %4749 = vmatprep.subr.mxu0 %v319
    %4750 = vmatpush1.msra.mxu0 %v318
    %4751 = vmatprep.subr.mxu0 %v323
    %4752 = vmatpush1.msra.mxu0 %v322
    %4753 = vmatprep.subr.mxu0 %v327
    %4754 = vmatpush1.msra.mxu0 %v326
    %4755 = vmatprep.subr.mxu0 %v331
    %4756 = vmatpush1.msra.mxu0 %v330
    %4757 = vmatprep.subr.mxu0 %v335
    %4758 = vmatpush1.msra.mxu0 %v334
    %4759 = vmatprep.subr.mxu0 %v339
    %4760 = vmatpush1.msra.mxu0 %v338
    %4761 = vmatprep.subr.mxu0 0.0
    %4762 = vmatpush1.msra.mxu0 0.0
    %4763 = vmatprep.subr.mxu0 0.0
    %4764 = vmatpush1.msra.mxu0 0.0
    %4765 = vmatprep.subr.mxu0 0.0
    %4766 = vmatpush1.msra.mxu0 0.0
    %4767 = vmatprep.subr.mxu0 0.0
    %4768 = vmatpush1.msra.mxu0 0.0
    %4769 = vmatprep.subr.mxu0 0.0
    %4770 = vmatpush1.msra.mxu0 0.0
    %4771 = vmatprep.subr.mxu0 0.0
    %4772 = vmatpush1.msra.mxu0 0.0
    %4773 = vmatprep.subr.mxu0 0.0
    %4774 = vmatpush1.msra.mxu0 0.0
    %4775 = vmatprep.subr.mxu0 0.0
    %4776 = vmatpush1.msra.mxu0 0.0
    %4777 = vmatprep.subr.mxu0 0.0
    %4778 = vmatpush1.msra.mxu0 0.0
    %4779 = vmatprep.subr.mxu0 0.0
    %4780 = vmatpush1.msra.mxu0 0.0
    %4781 = vmatprep.subr.mxu0 0.0
    %4782 = vmatpush1.msra.mxu0 0.0
    %4783 = vmatprep.subr.mxu0 0.0
    %4784 = vmatpush1.msra.mxu0 0.0
    %4785 = vmatprep.subr.mxu0 0.0
    %4786 = vmatpush1.msra.mxu0 0.0
    %4787 = vmatprep.subr.mxu0 0.0
    %4788 = vmatpush1.msra.mxu0 0.0
    %4789 = vmatprep.subr.mxu0 0.0
    %4790 = vmatpush1.msra.mxu0 0.0
    %4791 = vmatprep.subr.mxu0 0.0
    %4792 = vmatpush1.msra.mxu0 0.0
    %4793 = vmatprep.mubr.f32.mxu0 0.0
    %4794 = vmatmul.mubr.f32.gmra.mrb[0].mxu0 %v4585
    %v4795 = vpop.f32.mrb[0].mxu0
    %v4796 = vadd.f32 0.0, %v4795
    %v4797 = vpop.f32.mrb[0].mxu0
    %v4798 = vadd.f32 0.0, %v4797
    %4799 = vdwg.mxu0
    %4800 = vmatprep.subr.mxu0 %v281
    %4801 = vmatpush1.msra.mxu0 %v280
    %4802 = vmatprep.subr.mxu0 %v285
    %4803 = vmatpush1.msra.mxu0 %v284
    %4804 = vmatprep.subr.mxu0 %v289
    %4805 = vmatpush1.msra.mxu0 %v288
    %4806 = vmatprep.subr.mxu0 %v293
    %4807 = vmatpush1.msra.mxu0 %v292
    %4808 = vmatprep.subr.mxu0 %v297
    %4809 = vmatpush1.msra.mxu0 %v296
    %4810 = vmatprep.subr.mxu0 %v301
    %4811 = vmatpush1.msra.mxu0 %v300
    %4812 = vmatprep.subr.mxu0 %v305
    %4813 = vmatpush1.msra.mxu0 %v304
    %4814 = vmatprep.subr.mxu0 %v309
    %4815 = vmatpush1.msra.mxu0 %v308
    %4816 = vmatprep.subr.mxu0 %v313
    %4817 = vmatpush1.msra.mxu0 %v312
    %4818 = vmatprep.subr.mxu0 %v317
    %4819 = vmatpush1.msra.mxu0 %v316
    %4820 = vmatprep.subr.mxu0 %v321
    %4821 = vmatpush1.msra.mxu0 %v320
    %4822 = vmatprep.subr.mxu0 %v325
    %4823 = vmatpush1.msra.mxu0 %v324
    %4824 = vmatprep.subr.mxu0 %v329
    %4825 = vmatpush1.msra.mxu0 %v328
    %4826 = vmatprep.subr.mxu0 %v333
    %4827 = vmatpush1.msra.mxu0 %v332
    %4828 = vmatprep.subr.mxu0 %v337
    %4829 = vmatpush1.msra.mxu0 %v336
    %4830 = vmatprep.subr.mxu0 %v341
    %4831 = vmatpush1.msra.mxu0 %v340
    %4832 = vmatprep.subr.mxu0 0.0
    %4833 = vmatpush1.msra.mxu0 0.0
    %4834 = vmatprep.subr.mxu0 0.0
    %4835 = vmatpush1.msra.mxu0 0.0
    %4836 = vmatprep.subr.mxu0 0.0
    %4837 = vmatpush1.msra.mxu0 0.0
    %4838 = vmatprep.subr.mxu0 0.0
    %4839 = vmatpush1.msra.mxu0 0.0
    %4840 = vmatprep.subr.mxu0 0.0
    %4841 = vmatpush1.msra.mxu0 0.0
    %4842 = vmatprep.subr.mxu0 0.0
    %4843 = vmatpush1.msra.mxu0 0.0
    %4844 = vmatprep.subr.mxu0 0.0
    %4845 = vmatpush1.msra.mxu0 0.0
    %4846 = vmatprep.subr.mxu0 0.0
    %4847 = vmatpush1.msra.mxu0 0.0
    %4848 = vmatprep.subr.mxu0 0.0
    %4849 = vmatpush1.msra.mxu0 0.0
    %4850 = vmatprep.subr.mxu0 0.0
    %4851 = vmatpush1.msra.mxu0 0.0
    %4852 = vmatprep.subr.mxu0 0.0
    %4853 = vmatpush1.msra.mxu0 0.0
    %4854 = vmatprep.subr.mxu0 0.0
    %4855 = vmatpush1.msra.mxu0 0.0
    %4856 = vmatprep.subr.mxu0 0.0
    %4857 = vmatpush1.msra.mxu0 0.0
    %4858 = vmatprep.subr.mxu0 0.0
    %4859 = vmatpush1.msra.mxu0 0.0
    %4860 = vmatprep.subr.mxu0 0.0
    %4861 = vmatpush1.msra.mxu0 0.0
    %4862 = vmatprep.subr.mxu0 0.0
    %4863 = vmatpush1.msra.mxu0 0.0
    %4864 = vmatprep.mubr.f32.mxu0 0.0
    %4865 = vmatmul.mubr.f32.gmra.mrb[0].mxu0 %v4585
    %v4866 = vpop.f32.mrb[0].mxu0
    %v4867 = vadd.f32 0.0, %v4866
    %v4868 = vpop.f32.mrb[0].mxu0
    %v4869 = vadd.f32 0.0, %v4868
    %4870 = vdwg.mxu0
    %v4871 = vadd.f32 %v4654, %v4796
    %v4872 = vadd.f32 %v4656, %v4798
    %v4873 = vadd.f32 %v4725, %v4867
    %v4874 = vadd.f32 %v4727, %v4869
    %v4875 = vxor.u32 %v4871, 2147483648
    %v4876 = vmul.f32 %v4875, 1.442695
    %v4877 = vpow.pop %v4876
    %v4878 = vadd.f32 %v4877, 1.0
    %v4879 = vrcp.pop %v4878
    %v4880 = vmul.f32 1.0, %v4879
    %v4881 = vxor.u32 %v4872, 2147483648
    %v4882 = vmul.f32 %v4881, 1.442695
    %v4883 = vpow.pop %v4882
    %v4884 = vadd.f32 %v4883, 1.0
    %v4885 = vrcp.pop %v4884
    %v4886 = vmul.f32 1.0, %v4885
    %v4887 = vtanh.pop %v4873
    %v4888 = vxor.u32 %v4874, 2147483648
    %v4889 = vmul.f32 %v4888, 1.442695
    %v4890 = vpow.pop %v4889
    %v4891 = vadd.f32 %v4890, 1.0
    %v4892 = vrcp.pop %v4891
    %v4893 = vmul.f32 1.0, %v4892
    %v4894 = vmul.f32 %v4886, %v4264
    %v4895 = vmul.f32 %v4880, %v4887
    %v4896 = vadd.f32 %v4894, %v4895
    %v4897 = vtanh.pop %v4896
    %v4898 = vmul.f32 %v4893, %v4897
    %v4899 = vsel %vm4584, %v4898, %v4263
    %v4900 = vsel %vm4584, %v4896, %v4264
    %vm4901 = vcmp.gt.s32.totalorder %v149, 7
    %s4902 = scalar_lea.vmem [#allocation2], 14
    %v4903 = vld [vmem:[%s4902] sm:$0x3]
    %4904 = vmatprep.subr.mxu0 %v151
    %4905 = vmatpush1.msra.mxu0 %v150
    %4906 = vmatprep.subr.mxu0 %v155
    %4907 = vmatpush1.msra.mxu0 %v154
    %4908 = vmatprep.subr.mxu0 %v159
    %4909 = vmatpush1.msra.mxu0 %v158
    %4910 = vmatprep.subr.mxu0 %v163
    %4911 = vmatpush1.msra.mxu0 %v162
    %4912 = vmatprep.subr.mxu0 %v167
    %4913 = vmatpush1.msra.mxu0 %v166
    %4914 = vmatprep.subr.mxu0 %v171
    %4915 = vmatpush1.msra.mxu0 %v170
    %4916 = vmatprep.subr.mxu0 %v175
    %4917 = vmatpush1.msra.mxu0 %v174
    %4918 = vmatprep.subr.mxu0 %v179
    %4919 = vmatpush1.msra.mxu0 %v178
    %4920 = vmatprep.subr.mxu0 %v183
    %4921 = vmatpush1.msra.mxu0 %v182
    %4922 = vmatprep.subr.mxu0 %v187
    %4923 = vmatpush1.msra.mxu0 %v186
    %4924 = vmatprep.subr.mxu0 %v191
    %4925 = vmatpush1.msra.mxu0 %v190
    %4926 = vmatprep.subr.mxu0 %v195
    %4927 = vmatpush1.msra.mxu0 %v194
    %4928 = vmatprep.subr.mxu0 %v199
    %4929 = vmatpush1.msra.mxu0 %v198
    %4930 = vmatprep.subr.mxu0 %v203
    %4931 = vmatpush1.msra.mxu0 %v202
    %4932 = vmatprep.subr.mxu0 %v207
    %4933 = vmatpush1.msra.mxu0 %v206
    %4934 = vmatprep.subr.mxu0 %v211
    %4935 = vmatpush1.msra.mxu0 %v210
    %4936 = vmatprep.subr.mxu0 0.0
    %4937 = vmatpush1.msra.mxu0 0.0
    %4938 = vmatprep.subr.mxu0 0.0
    %4939 = vmatpush1.msra.mxu0 0.0
    %4940 = vmatprep.subr.mxu0 0.0
    %4941 = vmatpush1.msra.mxu0 0.0
    %4942 = vmatprep.subr.mxu0 0.0
    %4943 = vmatpush1.msra.mxu0 0.0
    %4944 = vmatprep.subr.mxu0 0.0
    %4945 = vmatpush1.msra.mxu0 0.0
    %4946 = vmatprep.subr.mxu0 0.0
    %4947 = vmatpush1.msra.mxu0 0.0
    %4948 = vmatprep.subr.mxu0 0.0
    %4949 = vmatpush1.msra.mxu0 0.0
    %4950 = vmatprep.subr.mxu0 0.0
    %4951 = vmatpush1.msra.mxu0 0.0
    %4952 = vmatprep.subr.mxu0 0.0
    %4953 = vmatpush1.msra.mxu0 0.0
    %4954 = vmatprep.subr.mxu0 0.0
    %4955 = vmatpush1.msra.mxu0 0.0
    %4956 = vmatprep.subr.mxu0 0.0
    %4957 = vmatpush1.msra.mxu0 0.0
    %4958 = vmatprep.subr.mxu0 0.0
    %4959 = vmatpush1.msra.mxu0 0.0
    %4960 = vmatprep.subr.mxu0 0.0
    %4961 = vmatpush1.msra.mxu0 0.0
    %4962 = vmatprep.subr.mxu0 0.0
    %4963 = vmatpush1.msra.mxu0 0.0
    %4964 = vmatprep.subr.mxu0 0.0
    %4965 = vmatpush1.msra.mxu0 0.0
    %4966 = vmatprep.subr.mxu0 0.0
    %4967 = vmatpush1.msra.mxu0 0.0
    %4968 = vmatprep.mubr.f32.mxu0 0.0
    %4969 = vmatmul.mubr.f32.gmra.mrb[0].mxu0 %v4903
    %v4970 = vpop.f32.mrb[0].mxu0
    %v4971 = vadd.f32 %v411, %v4970
    %v4972 = vpop.f32.mrb[0].mxu0
    %v4973 = vadd.f32 %v415, %v4972
    %4974 = vdwg.mxu0
    %4975 = vmatprep.subr.mxu0 %v153
    %4976 = vmatpush1.msra.mxu0 %v152
    %4977 = vmatprep.subr.mxu0 %v157
    %4978 = vmatpush1.msra.mxu0 %v156
    %4979 = vmatprep.subr.mxu0 %v161
    %4980 = vmatpush1.msra.mxu0 %v160
    %4981 = vmatprep.subr.mxu0 %v165
    %4982 = vmatpush1.msra.mxu0 %v164
    %4983 = vmatprep.subr.mxu0 %v169
    %4984 = vmatpush1.msra.mxu0 %v168
    %4985 = vmatprep.subr.mxu0 %v173
    %4986 = vmatpush1.msra.mxu0 %v172
    %4987 = vmatprep.subr.mxu0 %v177
    %4988 = vmatpush1.msra.mxu0 %v176
    %4989 = vmatprep.subr.mxu0 %v181
    %4990 = vmatpush1.msra.mxu0 %v180
    %4991 = vmatprep.subr.mxu0 %v185
    %4992 = vmatpush1.msra.mxu0 %v184
    %4993 = vmatprep.subr.mxu0 %v189
    %4994 = vmatpush1.msra.mxu0 %v188
    %4995 = vmatprep.subr.mxu0 %v193
    %4996 = vmatpush1.msra.mxu0 %v192
    %4997 = vmatprep.subr.mxu0 %v197
    %4998 = vmatpush1.msra.mxu0 %v196
    %4999 = vmatprep.subr.mxu0 %v201
    %5000 = vmatpush1.msra.mxu0 %v200
    %5001 = vmatprep.subr.mxu0 %v205
    %5002 = vmatpush1.msra.mxu0 %v204
    %5003 = vmatprep.subr.mxu0 %v209
    %5004 = vmatpush1.msra.mxu0 %v208
    %5005 = vmatprep.subr.mxu0 %v213
    %5006 = vmatpush1.msra.mxu0 %v212
    %5007 = vmatprep.subr.mxu0 0.0
    %5008 = vmatpush1.msra.mxu0 0.0
    %5009 = vmatprep.subr.mxu0 0.0
    %5010 = vmatpush1.msra.mxu0 0.0
    %5011 = vmatprep.subr.mxu0 0.0
    %5012 = vmatpush1.msra.mxu0 0.0
    %5013 = vmatprep.subr.mxu0 0.0
    %5014 = vmatpush1.msra.mxu0 0.0
    %5015 = vmatprep.subr.mxu0 0.0
    %5016 = vmatpush1.msra.mxu0 0.0
    %5017 = vmatprep.subr.mxu0 0.0
    %5018 = vmatpush1.msra.mxu0 0.0
    %5019 = vmatprep.subr.mxu0 0.0
    %5020 = vmatpush1.msra.mxu0 0.0
    %5021 = vmatprep.subr.mxu0 0.0
    %5022 = vmatpush1.msra.mxu0 0.0
    %5023 = vmatprep.subr.mxu0 0.0
    %5024 = vmatpush1.msra.mxu0 0.0
    %5025 = vmatprep.subr.mxu0 0.0
    %5026 = vmatpush1.msra.mxu0 0.0
    %5027 = vmatprep.subr.mxu0 0.0
    %5028 = vmatpush1.msra.mxu0 0.0
    %5029 = vmatprep.subr.mxu0 0.0
    %5030 = vmatpush1.msra.mxu0 0.0
    %5031 = vmatprep.subr.mxu0 0.0
    %5032 = vmatpush1.msra.mxu0 0.0
    %5033 = vmatprep.subr.mxu0 0.0
    %5034 = vmatpush1.msra.mxu0 0.0
    %5035 = vmatprep.subr.mxu0 0.0
    %5036 = vmatpush1.msra.mxu0 0.0
    %5037 = vmatprep.subr.mxu0 0.0
    %5038 = vmatpush1.msra.mxu0 0.0
    %5039 = vmatprep.mubr.f32.mxu0 0.0
    %5040 = vmatmul.mubr.f32.gmra.mrb[0].mxu0 %v4903
    %v5041 = vpop.f32.mrb[0].mxu0
    %v5042 = vadd.f32 %v419, %v5041
    %v5043 = vpop.f32.mrb[0].mxu0
    %v5044 = vadd.f32 %v423, %v5043
    %5045 = vdwg.mxu0
    %5046 = vmatprep.subr.mxu0 %v215
    %5047 = vmatpush1.msra.mxu0 %v214
    %5048 = vmatprep.subr.mxu0 %v219
    %5049 = vmatpush1.msra.mxu0 %v218
    %5050 = vmatprep.subr.mxu0 %v223
    %5051 = vmatpush1.msra.mxu0 %v222
    %5052 = vmatprep.subr.mxu0 %v227
    %5053 = vmatpush1.msra.mxu0 %v226
    %5054 = vmatprep.subr.mxu0 %v231
    %5055 = vmatpush1.msra.mxu0 %v230
    %5056 = vmatprep.subr.mxu0 %v235
    %5057 = vmatpush1.msra.mxu0 %v234
    %5058 = vmatprep.subr.mxu0 %v239
    %5059 = vmatpush1.msra.mxu0 %v238
    %5060 = vmatprep.subr.mxu0 %v243
    %5061 = vmatpush1.msra.mxu0 %v242
    %5062 = vmatprep.subr.mxu0 %v247
    %5063 = vmatpush1.msra.mxu0 %v246
    %5064 = vmatprep.subr.mxu0 %v251
    %5065 = vmatpush1.msra.mxu0 %v250
    %5066 = vmatprep.subr.mxu0 %v255
    %5067 = vmatpush1.msra.mxu0 %v254
    %5068 = vmatprep.subr.mxu0 %v259
    %5069 = vmatpush1.msra.mxu0 %v258
    %5070 = vmatprep.subr.mxu0 %v263
    %5071 = vmatpush1.msra.mxu0 %v262
    %5072 = vmatprep.subr.mxu0 %v267
    %5073 = vmatpush1.msra.mxu0 %v266
    %5074 = vmatprep.subr.mxu0 %v271
    %5075 = vmatpush1.msra.mxu0 %v270
    %5076 = vmatprep.subr.mxu0 %v275
    %5077 = vmatpush1.msra.mxu0 %v274
    %5078 = vmatprep.subr.mxu0 0.0
    %5079 = vmatpush1.msra.mxu0 0.0
    %5080 = vmatprep.subr.mxu0 0.0
    %5081 = vmatpush1.msra.mxu0 0.0
    %5082 = vmatprep.subr.mxu0 0.0
    %5083 = vmatpush1.msra.mxu0 0.0
    %5084 = vmatprep.subr.mxu0 0.0
    %5085 = vmatpush1.msra.mxu0 0.0
    %5086 = vmatprep.subr.mxu0 0.0
    %5087 = vmatpush1.msra.mxu0 0.0
    %5088 = vmatprep.subr.mxu0 0.0
    %5089 = vmatpush1.msra.mxu0 0.0
    %5090 = vmatprep.subr.mxu0 0.0
    %5091 = vmatpush1.msra.mxu0 0.0
    %5092 = vmatprep.subr.mxu0 0.0
    %5093 = vmatpush1.msra.mxu0 0.0
    %5094 = vmatprep.subr.mxu0 0.0
    %5095 = vmatpush1.msra.mxu0 0.0
    %5096 = vmatprep.subr.mxu0 0.0
    %5097 = vmatpush1.msra.mxu0 0.0
    %5098 = vmatprep.subr.mxu0 0.0
    %5099 = vmatpush1.msra.mxu0 0.0
    %5100 = vmatprep.subr.mxu0 0.0
    %5101 = vmatpush1.msra.mxu0 0.0
    %5102 = vmatprep.subr.mxu0 0.0
    %5103 = vmatpush1.msra.mxu0 0.0
    %5104 = vmatprep.subr.mxu0 0.0
    %5105 = vmatpush1.msra.mxu0 0.0
    %5106 = vmatprep.subr.mxu0 0.0
    %5107 = vmatpush1.msra.mxu0 0.0
    %5108 = vmatprep.subr.mxu0 0.0
    %5109 = vmatpush1.msra.mxu0 0.0
    %5110 = vmatprep.mubr.f32.mxu0 0.0
    %5111 = vmatmul.mubr.f32.gmra.mrb[0].mxu0 %v4585
    %v5112 = vpop.f32.mrb[0].mxu0
    %v5113 = vadd.f32 0.0, %v5112
    %v5114 = vpop.f32.mrb[0].mxu0
    %v5115 = vadd.f32 0.0, %v5114
    %5116 = vdwg.mxu0
    %5117 = vmatprep.subr.mxu0 %v217
    %5118 = vmatpush1.msra.mxu0 %v216
    %5119 = vmatprep.subr.mxu0 %v221
    %5120 = vmatpush1.msra.mxu0 %v220
    %5121 = vmatprep.subr.mxu0 %v225
    %5122 = vmatpush1.msra.mxu0 %v224
    %5123 = vmatprep.subr.mxu0 %v229
    %5124 = vmatpush1.msra.mxu0 %v228
    %5125 = vmatprep.subr.mxu0 %v233
    %5126 = vmatpush1.msra.mxu0 %v232
    %5127 = vmatprep.subr.mxu0 %v237
    %5128 = vmatpush1.msra.mxu0 %v236
    %5129 = vmatprep.subr.mxu0 %v241
    %5130 = vmatpush1.msra.mxu0 %v240
    %5131 = vmatprep.subr.mxu0 %v245
    %5132 = vmatpush1.msra.mxu0 %v244
    %5133 = vmatprep.subr.mxu0 %v249
    %5134 = vmatpush1.msra.mxu0 %v248
    %5135 = vmatprep.subr.mxu0 %v253
    %5136 = vmatpush1.msra.mxu0 %v252
    %5137 = vmatprep.subr.mxu0 %v257
    %5138 = vmatpush1.msra.mxu0 %v256
    %5139 = vmatprep.subr.mxu0 %v261
    %5140 = vmatpush1.msra.mxu0 %v260
    %5141 = vmatprep.subr.mxu0 %v265
    %5142 = vmatpush1.msra.mxu0 %v264
    %5143 = vmatprep.subr.mxu0 %v269
    %5144 = vmatpush1.msra.mxu0 %v268
    %5145 = vmatprep.subr.mxu0 %v273
    %5146 = vmatpush1.msra.mxu0 %v272
    %5147 = vmatprep.subr.mxu0 %v277
    %5148 = vmatpush1.msra.mxu0 %v276
    %5149 = vmatprep.subr.mxu0 0.0
    %5150 = vmatpush1.msra.mxu0 0.0
    %5151 = vmatprep.subr.mxu0 0.0
    %5152 = vmatpush1.msra.mxu0 0.0
    %5153 = vmatprep.subr.mxu0 0.0
    %5154 = vmatpush1.msra.mxu0 0.0
    %5155 = vmatprep.subr.mxu0 0.0
    %5156 = vmatpush1.msra.mxu0 0.0
    %5157 = vmatprep.subr.mxu0 0.0
    %5158 = vmatpush1.msra.mxu0 0.0
    %5159 = vmatprep.subr.mxu0 0.0
    %5160 = vmatpush1.msra.mxu0 0.0
    %5161 = vmatprep.subr.mxu0 0.0
    %5162 = vmatpush1.msra.mxu0 0.0
    %5163 = vmatprep.subr.mxu0 0.0
    %5164 = vmatpush1.msra.mxu0 0.0
    %5165 = vmatprep.subr.mxu0 0.0
    %5166 = vmatpush1.msra.mxu0 0.0
    %5167 = vmatprep.subr.mxu0 0.0
    %5168 = vmatpush1.msra.mxu0 0.0
    %5169 = vmatprep.subr.mxu0 0.0
    %5170 = vmatpush1.msra.mxu0 0.0
    %5171 = vmatprep.subr.mxu0 0.0
    %5172 = vmatpush1.msra.mxu0 0.0
    %5173 = vmatprep.subr.mxu0 0.0
    %5174 = vmatpush1.msra.mxu0 0.0
    %5175 = vmatprep.subr.mxu0 0.0
    %5176 = vmatpush1.msra.mxu0 0.0
    %5177 = vmatprep.subr.mxu0 0.0
    %5178 = vmatpush1.msra.mxu0 0.0
    %5179 = vmatprep.subr.mxu0 0.0
    %5180 = vmatpush1.msra.mxu0 0.0
    %5181 = vmatprep.mubr.f32.mxu0 0.0
    %5182 = vmatmul.mubr.f32.gmra.mrb[0].mxu0 %v4585
    %v5183 = vpop.f32.mrb[0].mxu0
    %v5184 = vadd.f32 0.0, %v5183
    %v5185 = vpop.f32.mrb[0].mxu0
    %v5186 = vadd.f32 0.0, %v5185
    %5187 = vdwg.mxu0
    %v5188 = vadd.f32 %v4971, %v5113
    %v5189 = vadd.f32 %v4973, %v5115
    %v5190 = vadd.f32 %v5042, %v5184
    %v5191 = vadd.f32 %v5044, %v5186
    %v5192 = vxor.u32 %v5188, 2147483648
    %v5193 = vmul.f32 %v5192, 1.442695
    %v5194 = vpow.pop %v5193
    %v5195 = vadd.f32 %v5194, 1.0
    %v5196 = vrcp.pop %v5195
    %v5197 = vmul.f32 1.0, %v5196
    %v5198 = vxor.u32 %v5189, 2147483648
    %v5199 = vmul.f32 %v5198, 1.442695
    %v5200 = vpow.pop %v5199
    %v5201 = vadd.f32 %v5200, 1.0
    %v5202 = vrcp.pop %v5201
    %v5203 = vmul.f32 1.0, %v5202
    %v5204 = vtanh.pop %v5190
    %v5205 = vxor.u32 %v5191, 2147483648
    %v5206 = vmul.f32 %v5205, 1.442695
    %v5207 = vpow.pop %v5206
    %v5208 = vadd.f32 %v5207, 1.0
    %v5209 = vrcp.pop %v5208
    %v5210 = vmul.f32 1.0, %v5209
    %v5211 = vmul.f32 %v5203, %v4586
    %v5212 = vmul.f32 %v5197, %v5204
    %v5213 = vadd.f32 %v5211, %v5212
    %v5214 = vtanh.pop %v5213
    %v5215 = vmul.f32 %v5210, %v5214
    %v5216 = vsel %vm4901, 1, 0
    %5217 = vset.pattern.permute.xlu0 0
    %5218 = vperm.xlu0 %5217, %v5216
    %v5219 = vpop.permute.xlu0 %5218
    %vm5220 = vcmp.eq.s32.totalorder %v5219, 1
    %v5221 = vsel %vm5220, %v5215, %v4585
    %5222 = vmatprep.subr.mxu0 %v343
    %5223 = vmatpush1.msra.mxu0 %v342
    %5224 = vmatprep.subr.mxu0 %v347
    %5225 = vmatpush1.msra.mxu0 %v346
    %5226 = vmatprep.subr.mxu0 %v351
    %5227 = vmatpush1.msra.mxu0 %v350
    %5228 = vmatprep.subr.mxu0 %v355
    %5229 = vmatpush1.msra.mxu0 %v354
    %5230 = vmatprep.subr.mxu0 %v359
    %5231 = vmatpush1.msra.mxu0 %v358
    %5232 = vmatprep.subr.mxu0 %v363
    %5233 = vmatpush1.msra.mxu0 %v362
    %5234 = vmatprep.subr.mxu0 %v367
    %5235 = vmatpush1.msra.mxu0 %v366
    %5236 = vmatprep.subr.mxu0 %v371
    %5237 = vmatpush1.msra.mxu0 %v370
    %5238 = vmatprep.subr.mxu0 %v375
    %5239 = vmatpush1.msra.mxu0 %v374
    %5240 = vmatprep.subr.mxu0 %v379
    %5241 = vmatpush1.msra.mxu0 %v378
    %5242 = vmatprep.subr.mxu0 %v383
    %5243 = vmatpush1.msra.mxu0 %v382
    %5244 = vmatprep.subr.mxu0 %v387
    %5245 = vmatpush1.msra.mxu0 %v386
    %5246 = vmatprep.subr.mxu0 %v391
    %5247 = vmatpush1.msra.mxu0 %v390
    %5248 = vmatprep.subr.mxu0 %v395
    %5249 = vmatpush1.msra.mxu0 %v394
    %5250 = vmatprep.subr.mxu0 %v399
    %5251 = vmatpush1.msra.mxu0 %v398
    %5252 = vmatprep.subr.mxu0 %v403
    %5253 = vmatpush1.msra.mxu0 %v402
    %5254 = vmatprep.subr.mxu0 0.0
    %5255 = vmatpush1.msra.mxu0 0.0
    %5256 = vmatprep.subr.mxu0 0.0
    %5257 = vmatpush1.msra.mxu0 0.0
    %5258 = vmatprep.subr.mxu0 0.0
    %5259 = vmatpush1.msra.mxu0 0.0
    %5260 = vmatprep.subr.mxu0 0.0
    %5261 = vmatpush1.msra.mxu0 0.0
    %5262 = vmatprep.subr.mxu0 0.0
    %5263 = vmatpush1.msra.mxu0 0.0
    %5264 = vmatprep.subr.mxu0 0.0
    %5265 = vmatpush1.msra.mxu0 0.0
    %5266 = vmatprep.subr.mxu0 0.0
    %5267 = vmatpush1.msra.mxu0 0.0
    %5268 = vmatprep.subr.mxu0 0.0
    %5269 = vmatpush1.msra.mxu0 0.0
    %5270 = vmatprep.subr.mxu0 0.0
    %5271 = vmatpush1.msra.mxu0 0.0
    %5272 = vmatprep.subr.mxu0 0.0
    %5273 = vmatpush1.msra.mxu0 0.0
    %5274 = vmatprep.subr.mxu0 0.0
    %5275 = vmatpush1.msra.mxu0 0.0
    %5276 = vmatprep.subr.mxu0 0.0
    %5277 = vmatpush1.msra.mxu0 0.0
    %5278 = vmatprep.subr.mxu0 0.0
    %5279 = vmatpush1.msra.mxu0 0.0
    %5280 = vmatprep.subr.mxu0 0.0
    %5281 = vmatpush1.msra.mxu0 0.0
    %5282 = vmatprep.subr.mxu0 0.0
    %5283 = vmatpush1.msra.mxu0 0.0
    %5284 = vmatprep.subr.mxu0 0.0
    %5285 = vmatpush1.msra.mxu0 0.0
    %5286 = vmatprep.mubr.f32.mxu0 0.0
    %5287 = vmatmul.mubr.f32.gmra.mrb[0].mxu0 %v4899
    %v5288 = vpop.f32.mrb[0].mxu0
    %v5289 = vadd.f32 %v433, %v5288
    %v5290 = vpop.f32.mrb[0].mxu0
    %v5291 = vadd.f32 %v437, %v5290
    %5292 = vdwg.mxu0
    %5293 = vmatprep.subr.mxu0 %v345
    %5294 = vmatpush1.msra.mxu0 %v344
    %5295 = vmatprep.subr.mxu0 %v349
    %5296 = vmatpush1.msra.mxu0 %v348
    %5297 = vmatprep.subr.mxu0 %v353
    %5298 = vmatpush1.msra.mxu0 %v352
    %5299 = vmatprep.subr.mxu0 %v357
    %5300 = vmatpush1.msra.mxu0 %v356
    %5301 = vmatprep.subr.mxu0 %v361
    %5302 = vmatpush1.msra.mxu0 %v360
    %5303 = vmatprep.subr.mxu0 %v365
    %5304 = vmatpush1.msra.mxu0 %v364
    %5305 = vmatprep.subr.mxu0 %v369
    %5306 = vmatpush1.msra.mxu0 %v368
    %5307 = vmatprep.subr.mxu0 %v373
    %5308 = vmatpush1.msra.mxu0 %v372
    %5309 = vmatprep.subr.mxu0 %v377
    %5310 = vmatpush1.msra.mxu0 %v376
    %5311 = vmatprep.subr.mxu0 %v381
    %5312 = vmatpush1.msra.mxu0 %v380
    %5313 = vmatprep.subr.mxu0 %v385
    %5314 = vmatpush1.msra.mxu0 %v384
    %5315 = vmatprep.subr.mxu0 %v389
    %5316 = vmatpush1.msra.mxu0 %v388
    %5317 = vmatprep.subr.mxu0 %v393
    %5318 = vmatpush1.msra.mxu0 %v392
    %5319 = vmatprep.subr.mxu0 %v397
    %5320 = vmatpush1.msra.mxu0 %v396
    %5321 = vmatprep.subr.mxu0 %v401
    %5322 = vmatpush1.msra.mxu0 %v400
    %5323 = vmatprep.subr.mxu0 %v405
    %5324 = vmatpush1.msra.mxu0 %v404
    %5325 = vmatprep.subr.mxu0 0.0
    %5326 = vmatpush1.msra.mxu0 0.0
    %5327 = vmatprep.subr.mxu0 0.0
    %5328 = vmatpush1.msra.mxu0 0.0
    %5329 = vmatprep.subr.mxu0 0.0
    %5330 = vmatpush1.msra.mxu0 0.0
    %5331 = vmatprep.subr.mxu0 0.0
    %5332 = vmatpush1.msra.mxu0 0.0
    %5333 = vmatprep.subr.mxu0 0.0
    %5334 = vmatpush1.msra.mxu0 0.0
    %5335 = vmatprep.subr.mxu0 0.0
    %5336 = vmatpush1.msra.mxu0 0.0
    %5337 = vmatprep.subr.mxu0 0.0
    %5338 = vmatpush1.msra.mxu0 0.0
    %5339 = vmatprep.subr.mxu0 0.0
    %5340 = vmatpush1.msra.mxu0 0.0
    %5341 = vmatprep.subr.mxu0 0.0
    %5342 = vmatpush1.msra.mxu0 0.0
    %5343 = vmatprep.subr.mxu0 0.0
    %5344 = vmatpush1.msra.mxu0 0.0
    %5345 = vmatprep.subr.mxu0 0.0
    %5346 = vmatpush1.msra.mxu0 0.0
    %5347 = vmatprep.subr.mxu0 0.0
    %5348 = vmatpush1.msra.mxu0 0.0
    %5349 = vmatprep.subr.mxu0 0.0
    %5350 = vmatpush1.msra.mxu0 0.0
    %5351 = vmatprep.subr.mxu0 0.0
    %5352 = vmatpush1.msra.mxu0 0.0
    %5353 = vmatprep.subr.mxu0 0.0
    %5354 = vmatpush1.msra.mxu0 0.0
    %5355 = vmatprep.subr.mxu0 0.0
    %5356 = vmatpush1.msra.mxu0 0.0
    %5357 = vmatprep.mubr.f32.mxu0 0.0
    %5358 = vmatmul.mubr.f32.gmra.mrb[0].mxu0 %v4899
    %v5359 = vpop.f32.mrb[0].mxu0
    %v5360 = vadd.f32 %v441, %v5359
    %v5361 = vpop.f32.mrb[0].mxu0
    %v5362 = vadd.f32 %v445, %v5361
    %5363 = vdwg.mxu0
    %5364 = vmatprep.subr.mxu0 %v279
    %5365 = vmatpush1.msra.mxu0 %v278
    %5366 = vmatprep.subr.mxu0 %v283
    %5367 = vmatpush1.msra.mxu0 %v282
    %5368 = vmatprep.subr.mxu0 %v287
    %5369 = vmatpush1.msra.mxu0 %v286
    %5370 = vmatprep.subr.mxu0 %v291
    %5371 = vmatpush1.msra.mxu0 %v290
    %5372 = vmatprep.subr.mxu0 %v295
    %5373 = vmatpush1.msra.mxu0 %v294
    %5374 = vmatprep.subr.mxu0 %v299
    %5375 = vmatpush1.msra.mxu0 %v298
    %5376 = vmatprep.subr.mxu0 %v303
    %5377 = vmatpush1.msra.mxu0 %v302
    %5378 = vmatprep.subr.mxu0 %v307
    %5379 = vmatpush1.msra.mxu0 %v306
    %5380 = vmatprep.subr.mxu0 %v311
    %5381 = vmatpush1.msra.mxu0 %v310
    %5382 = vmatprep.subr.mxu0 %v315
    %5383 = vmatpush1.msra.mxu0 %v314
    %5384 = vmatprep.subr.mxu0 %v319
    %5385 = vmatpush1.msra.mxu0 %v318
    %5386 = vmatprep.subr.mxu0 %v323
    %5387 = vmatpush1.msra.mxu0 %v322
    %5388 = vmatprep.subr.mxu0 %v327
    %5389 = vmatpush1.msra.mxu0 %v326
    %5390 = vmatprep.subr.mxu0 %v331
    %5391 = vmatpush1.msra.mxu0 %v330
    %5392 = vmatprep.subr.mxu0 %v335
    %5393 = vmatpush1.msra.mxu0 %v334
    %5394 = vmatprep.subr.mxu0 %v339
    %5395 = vmatpush1.msra.mxu0 %v338
    %5396 = vmatprep.subr.mxu0 0.0
    %5397 = vmatpush1.msra.mxu0 0.0
    %5398 = vmatprep.subr.mxu0 0.0
    %5399 = vmatpush1.msra.mxu0 0.0
    %5400 = vmatprep.subr.mxu0 0.0
    %5401 = vmatpush1.msra.mxu0 0.0
    %5402 = vmatprep.subr.mxu0 0.0
    %5403 = vmatpush1.msra.mxu0 0.0
    %5404 = vmatprep.subr.mxu0 0.0
    %5405 = vmatpush1.msra.mxu0 0.0
    %5406 = vmatprep.subr.mxu0 0.0
    %5407 = vmatpush1.msra.mxu0 0.0
    %5408 = vmatprep.subr.mxu0 0.0
    %5409 = vmatpush1.msra.mxu0 0.0
    %5410 = vmatprep.subr.mxu0 0.0
    %5411 = vmatpush1.msra.mxu0 0.0
    %5412 = vmatprep.subr.mxu0 0.0
    %5413 = vmatpush1.msra.mxu0 0.0
    %5414 = vmatprep.subr.mxu0 0.0
    %5415 = vmatpush1.msra.mxu0 0.0
    %5416 = vmatprep.subr.mxu0 0.0
    %5417 = vmatpush1.msra.mxu0 0.0
    %5418 = vmatprep.subr.mxu0 0.0
    %5419 = vmatpush1.msra.mxu0 0.0
    %5420 = vmatprep.subr.mxu0 0.0
    %5421 = vmatpush1.msra.mxu0 0.0
    %5422 = vmatprep.subr.mxu0 0.0
    %5423 = vmatpush1.msra.mxu0 0.0
    %5424 = vmatprep.subr.mxu0 0.0
    %5425 = vmatpush1.msra.mxu0 0.0
    %5426 = vmatprep.subr.mxu0 0.0
    %5427 = vmatpush1.msra.mxu0 0.0
    %5428 = vmatprep.mubr.f32.mxu0 0.0
    %5429 = vmatmul.mubr.f32.gmra.mrb[0].mxu0 %v5221
    %v5430 = vpop.f32.mrb[0].mxu0
    %v5431 = vadd.f32 0.0, %v5430
    %v5432 = vpop.f32.mrb[0].mxu0
    %v5433 = vadd.f32 0.0, %v5432
    %5434 = vdwg.mxu0
    %5435 = vmatprep.subr.mxu0 %v281
    %5436 = vmatpush1.msra.mxu0 %v280
    %5437 = vmatprep.subr.mxu0 %v285
    %5438 = vmatpush1.msra.mxu0 %v284
    %5439 = vmatprep.subr.mxu0 %v289
    %5440 = vmatpush1.msra.mxu0 %v288
    %5441 = vmatprep.subr.mxu0 %v293
    %5442 = vmatpush1.msra.mxu0 %v292
    %5443 = vmatprep.subr.mxu0 %v297
    %5444 = vmatpush1.msra.mxu0 %v296
    %5445 = vmatprep.subr.mxu0 %v301
    %5446 = vmatpush1.msra.mxu0 %v300
    %5447 = vmatprep.subr.mxu0 %v305
    %5448 = vmatpush1.msra.mxu0 %v304
    %5449 = vmatprep.subr.mxu0 %v309
    %5450 = vmatpush1.msra.mxu0 %v308
    %5451 = vmatprep.subr.mxu0 %v313
    %5452 = vmatpush1.msra.mxu0 %v312
    %5453 = vmatprep.subr.mxu0 %v317
    %5454 = vmatpush1.msra.mxu0 %v316
    %5455 = vmatprep.subr.mxu0 %v321
    %5456 = vmatpush1.msra.mxu0 %v320
    %5457 = vmatprep.subr.mxu0 %v325
    %5458 = vmatpush1.msra.mxu0 %v324
    %5459 = vmatprep.subr.mxu0 %v329
    %5460 = vmatpush1.msra.mxu0 %v328
    %5461 = vmatprep.subr.mxu0 %v333
    %5462 = vmatpush1.msra.mxu0 %v332
    %5463 = vmatprep.subr.mxu0 %v337
    %5464 = vmatpush1.msra.mxu0 %v336
    %5465 = vmatprep.subr.mxu0 %v341
    %5466 = vmatpush1.msra.mxu0 %v340
    %5467 = vmatprep.subr.mxu0 0.0
    %5468 = vmatpush1.msra.mxu0 0.0
    %5469 = vmatprep.subr.mxu0 0.0
    %5470 = vmatpush1.msra.mxu0 0.0
    %5471 = vmatprep.subr.mxu0 0.0
    %5472 = vmatpush1.msra.mxu0 0.0
    %5473 = vmatprep.subr.mxu0 0.0
    %5474 = vmatpush1.msra.mxu0 0.0
    %5475 = vmatprep.subr.mxu0 0.0
    %5476 = vmatpush1.msra.mxu0 0.0
    %5477 = vmatprep.subr.mxu0 0.0
    %5478 = vmatpush1.msra.mxu0 0.0
    %5479 = vmatprep.subr.mxu0 0.0
    %5480 = vmatpush1.msra.mxu0 0.0
    %5481 = vmatprep.subr.mxu0 0.0
    %5482 = vmatpush1.msra.mxu0 0.0
    %5483 = vmatprep.subr.mxu0 0.0
    %5484 = vmatpush1.msra.mxu0 0.0
    %5485 = vmatprep.subr.mxu0 0.0
    %5486 = vmatpush1.msra.mxu0 0.0
    %5487 = vmatprep.subr.mxu0 0.0
    %5488 = vmatpush1.msra.mxu0 0.0
    %5489 = vmatprep.subr.mxu0 0.0
    %5490 = vmatpush1.msra.mxu0 0.0
    %5491 = vmatprep.subr.mxu0 0.0
    %5492 = vmatpush1.msra.mxu0 0.0
    %5493 = vmatprep.subr.mxu0 0.0
    %5494 = vmatpush1.msra.mxu0 0.0
    %5495 = vmatprep.subr.mxu0 0.0
    %5496 = vmatpush1.msra.mxu0 0.0
    %5497 = vmatprep.subr.mxu0 0.0
    %5498 = vmatpush1.msra.mxu0 0.0
    %5499 = vmatprep.mubr.f32.mxu0 0.0
    %5500 = vmatmul.mubr.f32.gmra.mrb[0].mxu0 %v5221
    %v5501 = vpop.f32.mrb[0].mxu0
    %v5502 = vadd.f32 0.0, %v5501
    %v5503 = vpop.f32.mrb[0].mxu0
    %v5504 = vadd.f32 0.0, %v5503
    %5505 = vdwg.mxu0
    %v5506 = vadd.f32 %v5289, %v5431
    %v5507 = vadd.f32 %v5291, %v5433
    %v5508 = vadd.f32 %v5360, %v5502
    %v5509 = vadd.f32 %v5362, %v5504
    %v5510 = vxor.u32 %v5506, 2147483648
    %v5511 = vmul.f32 %v5510, 1.442695
    %v5512 = vpow.pop %v5511
    %v5513 = vadd.f32 %v5512, 1.0
    %v5514 = vrcp.pop %v5513
    %v5515 = vmul.f32 1.0, %v5514
    %v5516 = vxor.u32 %v5507, 2147483648
    %v5517 = vmul.f32 %v5516, 1.442695
    %v5518 = vpow.pop %v5517
    %v5519 = vadd.f32 %v5518, 1.0
    %v5520 = vrcp.pop %v5519
    %v5521 = vmul.f32 1.0, %v5520
    %v5522 = vtanh.pop %v5508
    %v5523 = vxor.u32 %v5509, 2147483648
    %v5524 = vmul.f32 %v5523, 1.442695
    %v5525 = vpow.pop %v5524
    %v5526 = vadd.f32 %v5525, 1.0
    %v5527 = vrcp.pop %v5526
    %v5528 = vmul.f32 1.0, %v5527
    %v5529 = vmul.f32 %v5521, %v4900
    %v5530 = vmul.f32 %v5515, %v5522
    %v5531 = vadd.f32 %v5529, %v5530
    %v5532 = vtanh.pop %v5531
    %v5533 = vmul.f32 %v5528, %v5532
    %v5534 = vsel %vm5220, %v5533, %v4899
    %v5535 = vld [vmem:[%s8] sm:$0x1]
    %v5537 = vlaneseq
    %v5538 = vshrl.u32 %v5537, 7
    %v5539 = vsub.s32 0, %v5538
    %v5540 = vrot.slane %v5535, %v5539
    %v5542 = vmul.f32 %v5534, %v5540
    %v5543 = vld [vmem:[%s9] sm:$0x1]
    %v5545 = vlaneseq
    %v5546 = vshrl.u32 %v5545, 7
    %v5547 = vsub.s32 0, %v5546
    %v5548 = vrot.slane %v5543, %v5547
    %v5550 = vadd.f32 %v5542, %v5548
    %v5551 = vld [vmem:[#allocation11] sm:$0xff]
    %v5552 = vld [vmem:[#allocation11 + $0x8] sm:$0xff]
    %v5553 = vld [vmem:[#allocation11 + $0x10] sm:$0xff]
    %v5554 = vld [vmem:[#allocation11 + $0x18] sm:$0xff]
    %v5555 = vld [vmem:[#allocation11 + $0x20] sm:$0xff]
    %v5556 = vld [vmem:[#allocation11 + $0x28] sm:$0xff]
    %v5557 = vld [vmem:[#allocation11 + $0x30] sm:$0xff]
    %v5558 = vld [vmem:[#allocation11 + $0x38] sm:$0xff]
    %v5559 = vld [vmem:[#allocation11 + $0x40] sm:$0xff]
    %v5560 = vld [vmem:[#allocation11 + $0x48] sm:$0xff]
    %v5561 = vld [vmem:[#allocation11 + $0x50] sm:$0xff]
    %v5562 = vld [vmem:[#allocation11 + $0x58] sm:$0xff]
    %v5563 = vld [vmem:[#allocation11 + $0x60] sm:$0xff]
    %v5564 = vld [vmem:[#allocation11 + $0x68] sm:$0xff]
    %v5565 = vld [vmem:[#allocation11 + $0x70] sm:$0xff]
    %v5566 = vld [vmem:[#allocation11 + $0x78] sm:$0xff]
    %v5567 = vld [vmem:[%s11] sm:$0x1]
    %v5569 = vlaneseq
    %v5570 = vshrl.u32 %v5569, 7
    %v5571 = vsub.s32 0, %v5570
    %v5572 = vrot.slane %v5567, %v5571
    %5574 = vmatprep.subr.mxu0 0.0
    %5575 = vmatpush1.msra.mxu0 %v5551
    %5576 = vmatprep.subr.mxu0 0.0
    %5577 = vmatpush1.msra.mxu0 %v5552
    %5578 = vmatprep.subr.mxu0 0.0
    %5579 = vmatpush1.msra.mxu0 %v5553
    %5580 = vmatprep.subr.mxu0 0.0
    %5581 = vmatpush1.msra.mxu0 %v5554
    %5582 = vmatprep.subr.mxu0 0.0
    %5583 = vmatpush1.msra.mxu0 %v5555
    %5584 = vmatprep.subr.mxu0 0.0
    %5585 = vmatpush1.msra.mxu0 %v5556
    %5586 = vmatprep.subr.mxu0 0.0
    %5587 = vmatpush1.msra.mxu0 %v5557
    %5588 = vmatprep.subr.mxu0 0.0
    %5589 = vmatpush1.msra.mxu0 %v5558
    %5590 = vmatprep.subr.mxu0 0.0
    %5591 = vmatpush1.msra.mxu0 %v5559
    %5592 = vmatprep.subr.mxu0 0.0
    %5593 = vmatpush1.msra.mxu0 %v5560
    %5594 = vmatprep.subr.mxu0 0.0
    %5595 = vmatpush1.msra.mxu0 %v5561
    %5596 = vmatprep.subr.mxu0 0.0
    %5597 = vmatpush1.msra.mxu0 %v5562
    %5598 = vmatprep.subr.mxu0 0.0
    %5599 = vmatpush1.msra.mxu0 %v5563
    %5600 = vmatprep.subr.mxu0 0.0
    %5601 = vmatpush1.msra.mxu0 %v5564
    %5602 = vmatprep.subr.mxu0 0.0
    %5603 = vmatpush1.msra.mxu0 %v5565
    %5604 = vmatprep.subr.mxu0 0.0
    %5605 = vmatpush1.msra.mxu0 %v5566
    %5606 = vmatprep.subr.mxu0 0.0
    %5607 = vmatpush1.msra.mxu0 0.0
    %5608 = vmatprep.subr.mxu0 0.0
    %5609 = vmatpush1.msra.mxu0 0.0
    %5610 = vmatprep.subr.mxu0 0.0
    %5611 = vmatpush1.msra.mxu0 0.0
    %5612 = vmatprep.subr.mxu0 0.0
    %5613 = vmatpush1.msra.mxu0 0.0
    %5614 = vmatprep.subr.mxu0 0.0
    %5615 = vmatpush1.msra.mxu0 0.0
    %5616 = vmatprep.subr.mxu0 0.0
    %5617 = vmatpush1.msra.mxu0 0.0
    %5618 = vmatprep.subr.mxu0 0.0
    %5619 = vmatpush1.msra.mxu0 0.0
    %5620 = vmatprep.subr.mxu0 0.0
    %5621 = vmatpush1.msra.mxu0 0.0
    %5622 = vmatprep.subr.mxu0 0.0
    %5623 = vmatpush1.msra.mxu0 0.0
    %5624 = vmatprep.subr.mxu0 0.0
    %5625 = vmatpush1.msra.mxu0 0.0
    %5626 = vmatprep.subr.mxu0 0.0
    %5627 = vmatpush1.msra.mxu0 0.0
    %5628 = vmatprep.subr.mxu0 0.0
    %5629 = vmatpush1.msra.mxu0 0.0
    %5630 = vmatprep.subr.mxu0 0.0
    %5631 = vmatpush1.msra.mxu0 0.0
    %5632 = vmatprep.subr.mxu0 0.0
    %5633 = vmatpush1.msra.mxu0 0.0
    %5634 = vmatprep.subr.mxu0 0.0
    %5635 = vmatpush1.msra.mxu0 0.0
    %5636 = vmatprep.subr.mxu0 0.0
    %5637 = vmatpush1.msra.mxu0 0.0
    %5638 = vmatprep.mubr.f32.mxu0 0.0
    %5639 = vmatmul.mubr.f32.gmra.mrb[0].mxu0 %v5550
    %v5640 = vpop.f32.mrb[0].mxu0
    %v5641 = vadd.f32 %v5572, %v5640
    %v5642 = vpop.f32.mrb[0].mxu0
    %5643 = vdwg.mxu0
    %v5644 = vld [vmem:[%s12] sm:$0x1]
    %v5646 = vlaneseq
    %v5647 = vshrl.u32 %v5646, 7
    %v5648 = vsub.s32 0, %v5647
    %v5649 = vrot.slane %v5644, %v5648
    %v5651 = vmul.f32 %v5641, %v5649
    %v5652 = vld [vmem:[%s13] sm:$0x1]
    %v5654 = vlaneseq
    %v5655 = vshrl.u32 %v5654, 7
    %v5656 = vsub.s32 0, %v5655
    %v5657 = vrot.slane %v5652, %v5656
    %v5659 = vadd.f32 %v5651, %v5657
    %v5660 = vld [vmem:[#allocation13] sm:$0xff]
    %v5661 = vld [vmem:[#allocation13 + $0x8] sm:$0xff]
    %v5662 = vld [vmem:[#allocation13 + $0x10] sm:$0xff]
    %v5663 = vld [vmem:[#allocation13 + $0x18] sm:$0xff]
    %v5664 = vld [vmem:[#allocation13 + $0x20] sm:$0xff]
    %v5665 = vld [vmem:[#allocation13 + $0x28] sm:$0xff]
    %v5666 = vld [vmem:[#allocation13 + $0x30] sm:$0xff]
    %v5667 = vld [vmem:[#allocation13 + $0x38] sm:$0xff]
    %v5668 = vld [vmem:[#allocation13 + $0x40] sm:$0xff]
    %v5669 = vld [vmem:[#allocation13 + $0x48] sm:$0xff]
    %v5670 = vld [vmem:[#allocation13 + $0x50] sm:$0xff]
    %v5671 = vld [vmem:[#allocation13 + $0x58] sm:$0xff]
    %v5672 = vld [vmem:[#allocation13 + $0x60] sm:$0xff]
    %v5673 = vld [vmem:[#allocation13 + $0x68] sm:$0xff]
    %v5674 = vld [vmem:[#allocation13 + $0x70] sm:$0xff]
    %v5675 = vld [vmem:[#allocation13 + $0x78] sm:$0xff]
    %v5676 = vld [vmem:[%s15] sm:$0x1]
    %v5678 = vlaneseq
    %v5679 = vshrl.u32 %v5678, 7
    %v5680 = vsub.s32 0, %v5679
    %v5681 = vrot.slane %v5676, %v5680
    %5683 = vmatprep.subr.mxu0 0.0
    %5684 = vmatpush1.msra.mxu0 %v5660
    %5685 = vmatprep.subr.mxu0 0.0
    %5686 = vmatpush1.msra.mxu0 %v5661
    %5687 = vmatprep.subr.mxu0 0.0
    %5688 = vmatpush1.msra.mxu0 %v5662
    %5689 = vmatprep.subr.mxu0 0.0
    %5690 = vmatpush1.msra.mxu0 %v5663
    %5691 = vmatprep.subr.mxu0 0.0
    %5692 = vmatpush1.msra.mxu0 %v5664
    %5693 = vmatprep.subr.mxu0 0.0
    %5694 = vmatpush1.msra.mxu0 %v5665
    %5695 = vmatprep.subr.mxu0 0.0
    %5696 = vmatpush1.msra.mxu0 %v5666
    %5697 = vmatprep.subr.mxu0 0.0
    %5698 = vmatpush1.msra.mxu0 %v5667
    %5699 = vmatprep.subr.mxu0 0.0
    %5700 = vmatpush1.msra.mxu0 %v5668
    %5701 = vmatprep.subr.mxu0 0.0
    %5702 = vmatpush1.msra.mxu0 %v5669
    %5703 = vmatprep.subr.mxu0 0.0
    %5704 = vmatpush1.msra.mxu0 %v5670
    %5705 = vmatprep.subr.mxu0 0.0
    %5706 = vmatpush1.msra.mxu0 %v5671
    %5707 = vmatprep.subr.mxu0 0.0
    %5708 = vmatpush1.msra.mxu0 %v5672
    %5709 = vmatprep.subr.mxu0 0.0
    %5710 = vmatpush1.msra.mxu0 %v5673
    %5711 = vmatprep.subr.mxu0 0.0
    %5712 = vmatpush1.msra.mxu0 %v5674
    %5713 = vmatprep.subr.mxu0 0.0
    %5714 = vmatpush1.msra.mxu0 %v5675
    %5715 = vmatprep.subr.mxu0 0.0
    %5716 = vmatpush1.msra.mxu0 0.0
    %5717 = vmatprep.subr.mxu0 0.0
    %5718 = vmatpush1.msra.mxu0 0.0
    %5719 = vmatprep.subr.mxu0 0.0
    %5720 = vmatpush1.msra.mxu0 0.0
    %5721 = vmatprep.subr.mxu0 0.0
    %5722 = vmatpush1.msra.mxu0 0.0
    %5723 = vmatprep.subr.mxu0 0.0
    %5724 = vmatpush1.msra.mxu0 0.0
    %5725 = vmatprep.subr.mxu0 0.0
    %5726 = vmatpush1.msra.mxu0 0.0
    %5727 = vmatprep.subr.mxu0 0.0
    %5728 = vmatpush1.msra.mxu0 0.0
    %5729 = vmatprep.subr.mxu0 0.0
    %5730 = vmatpush1.msra.mxu0 0.0
    %5731 = vmatprep.subr.mxu0 0.0
    %5732 = vmatpush1.msra.mxu0 0.0
    %5733 = vmatprep.subr.mxu0 0.0
    %5734 = vmatpush1.msra.mxu0 0.0
    %5735 = vmatprep.subr.mxu0 0.0
    %5736 = vmatpush1.msra.mxu0 0.0
    %5737 = vmatprep.subr.mxu0 0.0
    %5738 = vmatpush1.msra.mxu0 0.0
    %5739 = vmatprep.subr.mxu0 0.0
    %5740 = vmatpush1.msra.mxu0 0.0
    %5741 = vmatprep.subr.mxu0 0.0
    %5742 = vmatpush1.msra.mxu0 0.0
    %5743 = vmatprep.subr.mxu0 0.0
    %5744 = vmatpush1.msra.mxu0 0.0
    %5745 = vmatprep.subr.mxu0 0.0
    %5746 = vmatpush1.msra.mxu0 0.0
    %5747 = vmatprep.mubr.f32.mxu0 0.0
    %5748 = vmatmul.mubr.f32.gmra.mrb[0].mxu0 %v5659
    %v5749 = vpop.f32.mrb[0].mxu0
    %v5750 = vadd.f32 %v5681, %v5749
    %v5751 = vpop.f32.mrb[0].mxu0
    %5752 = vdwg.mxu0
    %vm5753 = vcmask 1041408
    %v5754 = vsel %vm5753, %v5750, -inf
    %5755 = vmax.xlane.f32.xlu0 %v5754
    %v5756 = vpop.xlane.xlu0 %5755
    %v5757 = vsub.f32 %v5750, %v5756
    %v5758 = vmul.f32 %v5757, 1.442695
    %v5759 = vpow.pop %v5758
    %v5760 = vsel %vm5753, %v5759, 0.0
    %5761 = vadd.xlane.f32.xlu0 %v5760
    %v5762 = vpop.xlane.xlu0 %5761
    %v5763 = vrcp.pop %v5762
    %v5764 = vmul.f32 %v5759, %v5763
    %5765 = vst [vmem:[#allocation14] sm:$0x3] %v5764
    // Predicated region
    $region94: #{tpu_custom_call.1} parent=1 // pred_check
      _
    $region95: #{tpu_custom_call.1} parent=1 // pred_check_branch
      %5767 = sbr.rel (0) target = $region97
    $region96: #{tpu_custom_call.1} parent=1 // pred_region
      %s5769 = ssub.s32 32, 32
      %5770 = vsyncadd [#allocation4], %s5769
      %s5772 = sshll.u32 [#allocation14], 4
      %s5773 = int_to_ptr.vmem [resolvable:$true] %s5772
      %5775 = dma.vmem_to_hbm [thread:$0]  %s5773, 32, %s16, [#allocation4]
    $region97: #{tpu_custom_call.1} parent=1 // pred_fallthru
      _
    // Predicated region
    $region98: #{tpu_custom_call.1} parent=1 // pred_check
      _
    $region99: #{tpu_custom_call.1} parent=1 // pred_check_branch
      %5777 = sbr.rel (0) target = $region101
    $region100: #{tpu_custom_call.1} parent=1 // pred_region
      %5778 = dma.done [#allocation4], 32
    $region101: #{tpu_custom_call.1} parent=1 // pred_fallthru
      _
    %5779 = vsyncpa [#allocation3], 1
    %5780 = vsyncpa [#allocation6], 1
    %5781 = vsyncpa [#allocation9], 1
    %5782 = vsyncpa [#allocation12], 1
    %5783 = vsyncpa [#allocation4], 1

</llo_original>
